<compile_context>
chip_gen: v5e
topology: v5e:2x2
jax: 0.10.0
libtpu: 0.0.40
codegen_flags: <defaults>
</compile_context>

<pallas_src>
import functools

import jax
import jax.numpy as jnp
from jax.experimental import pallas as pl
from jax.experimental.pallas import tpu as pltpu


def mlp_kernel(x_ref, w0_ref, b0_ref, w_mlp_ref, b_mlp_ref,
               w_fc_ref, b_fc_ref, out_ref, *, n_rest_layers):
    # Fused (input_projection -> trunk layer 0): exact fold, no nonlinearity between
    # them. bf16 x bf16 on the MXU with f32 accumulation; bias + ReLU on the VPU in
    # f32, then a single cast back to bf16 per layer (halves inter-layer traffic).
    acc = jnp.dot(x_ref[...], w0_ref[...], preferred_element_type=jnp.float32)
    h = jnp.maximum(acc + b0_ref[...], 0.0).astype(jnp.bfloat16)

    # Remaining trunk layers, statically unrolled.
    for i in range(n_rest_layers):
        acc = jnp.dot(h, w_mlp_ref[i], preferred_element_type=jnp.float32)
        h = jnp.maximum(acc + b_mlp_ref[i], 0.0).astype(jnp.bfloat16)

    # Head: Linear(d_model, 1) as a VPU multiply + lane reduction (no N=1 matmul).
    logits = jnp.sum(h.astype(jnp.float32) * w_fc_ref[...], axis=-1, keepdims=True)
    sig = jax.nn.sigmoid(logits + b_fc_ref[0])          # (block_m, 1) f32

    # Lane-dense writeback: (block_m, 1) -> (1, block_m) is one cheap XLU transpose;
    # the store is then a full-width unmasked vst (no 128x broadcast inflation).
    out_ref[0] = jnp.transpose(sig)                     # out_ref: (1, 1, block_m)


def mlp_forward(x, params, *, input_length, input_dim, n_layers, block_m=512):
    """x: (B, input_length, input_dim) float32. Returns (B,) float32."""
    B = x.shape[0]
    in_feat = input_length * input_dim
    x_flat = x.reshape(B, in_feat)

    w_in, b_in, w_mlp, b_mlp, w_fc, b_fc = params
    d_model = w_in.shape[1]
    n_rest = n_layers - 1  # trunk layer 0 is fused into the input projection

    # --- Exact algebraic fusion of input projection into trunk layer 0 (f32). ---
    # relu((x @ w_in + b_in) @ W0 + b0) == relu(x @ (w_in @ W0) + (b_in @ W0 + b0))
    w0 = (w_in @ w_mlp[0]).astype(jnp.float32)                 # (in_feat, d_model)
    b0 = (b_in @ w_mlp[0] + b_mlp[0]).astype(jnp.float32)      # (1, d_model)

    # Zero-pad the tiny contraction dim up to a lane-dense multiple of 128.
    in_feat_pad = max(128, ((in_feat + 127) // 128) * 128)
    if in_feat_pad != in_feat:
        x_flat = jnp.pad(x_flat, ((0, 0), (0, in_feat_pad - in_feat)))
        w0 = jnp.pad(w0, ((0, in_feat_pad - in_feat), (0, 0)))

    # Pad batch to a multiple of the tile. block_m=512 keeps >=2 tiles for typical
    # batches so the "parallel" batch axis actually shards across v7x's 2 TCs.
    num_tiles = pl.cdiv(B, block_m)
    B_pad = num_tiles * block_m
    if B_pad != B:
        x_flat = jnp.pad(x_flat, ((0, B_pad - B), (0, 0)))

    # bf16 matmul operands (MXU-native); biases and head weight stay f32.
    x_bf = x_flat.astype(jnp.bfloat16)
    w0_bf = w0.astype(jnp.bfloat16)
    w_rest_bf = w_mlp[1:].astype(jnp.bfloat16)                 # (n_rest, d, d)
    b_rest = b_mlp[1:].astype(jnp.float32)                     # (n_rest, 1, d)
    w_fc_row = w_fc.reshape(1, d_model).astype(jnp.float32)    # head weight, lane-major
    b_fc_s = b_fc.reshape(1).astype(jnp.float32)               # scalar bias -> SMEM

    flops = 2 * B_pad * (in_feat_pad * d_model
                         + n_rest * d_model * d_model + d_model)
    bytes_accessed = (x_bf.size * 2 + w0_bf.size * 2 + w_rest_bf.size * 2
                      + b0.size * 4 + b_rest.size * 4 + w_fc_row.size * 4 + 4
                      + B_pad * 4)

    out = pl.pallas_call(
        functools.partial(mlp_kernel, n_rest_layers=n_rest),
        out_shape=jax.ShapeDtypeStruct((num_tiles, 1, block_m), jnp.float32),
        grid=(num_tiles,),
        in_specs=[
            # Activations: tiled over batch, auto double-buffered by Pallas.
            pl.BlockSpec((block_m, in_feat_pad), lambda i: (i, 0)),
            # Weights/biases: constant index_map -> resident in VMEM across steps.
            # TODO(synk): pl.Buffered(1) + per-layer weight streaming for d_model>=1024.
            pl.BlockSpec((in_feat_pad, d_model), lambda i: (0, 0)),
            pl.BlockSpec((1, d_model), lambda i: (0, 0)),
            pl.BlockSpec((n_rest, d_model, d_model), lambda i: (0, 0, 0)),
            pl.BlockSpec((n_rest, 1, d_model), lambda i: (0, 0, 0)),
            pl.BlockSpec((1, d_model), lambda i: (0, 0)),
            # Scalar head bias in SMEM (avoids a padded (8,128) VMEM tile).
            pl.BlockSpec(memory_space=pltpu.MemorySpace.SMEM),
        ],
        out_specs=pl.BlockSpec((1, 1, block_m), lambda i: (i, 0, 0)),
        compiler_params=pltpu.CompilerParams(
            dimension_semantics=("parallel",),
            vmem_limit_bytes=32 * 1024 * 1024),
        cost_estimate=pl.CostEstimate(
            flops=flops, transcendentals=B_pad, bytes_accessed=bytes_accessed),
    )(x_bf, w0_bf, b0, w_rest_bf, b_rest, w_fc_row, b_fc_s)

    # torch.sigmoid(x).squeeze(): contiguous reshape (no strided gather), drop pad rows.
    return out.reshape(B_pad)[:B]


def init_params(key, *, input_length, input_dim, d_model, n_layers):
    """Deterministic PyTorch-Linear-style init: U(-1/sqrt(fan_in), 1/sqrt(fan_in))."""
    keys = jax.random.split(key, 6)
    in_feat = input_length * input_dim

    def uni(k, shape, fan_in):
        bound = 1.0 / jnp.sqrt(jnp.float32(fan_in))
        return jax.random.uniform(k, shape, jnp.float32, -bound, bound)

    w_in = uni(keys[0], (in_feat, d_model), in_feat)
    b_in = uni(keys[1], (1, d_model), in_feat)
    w_mlp = uni(keys[2], (n_layers, d_model, d_model), d_model)
    b_mlp = uni(keys[3], (n_layers, 1, d_model), d_model)
    w_fc = uni(keys[4], (d_model, 1), d_model)
    b_fc = uni(keys[5], (1, 1), d_model)
    return (w_in, b_in, w_mlp, b_mlp, w_fc, b_fc)


def reference_forward(x, params, *, input_length, input_dim, n_layers):
    """Pure-JAX f32 reference mirroring the PyTorch forward."""
    w_in, b_in, w_mlp, b_mlp, w_fc, b_fc = params
    h = x.reshape(x.shape[0], input_length * input_dim) @ w_in + b_in
    for i in range(n_layers):
        h = jnp.maximum(h @ w_mlp[i] + b_mlp[i], 0.0)
    return jnp.squeeze(jax.nn.sigmoid(h @ w_fc + b_fc), axis=-1)


if __name__ == "__main__":
    # Small, TPU-friendly shapes consistent with the module's forward.
    batch = 1000            # not a multiple of block_m -> exercises the padding path
    input_length = 8
    input_dim = 4
    d_model = 256
    n_layers = 6
    block_m = 512           # B_pad=1024 -> 2 tiles (one per TC on v7x)

    key = jax.random.PRNGKey(0)
    k_x, k_p = jax.random.split(key)
    x = jax.random.normal(k_x, (batch, input_length, input_dim), jnp.float32)
    params = init_params(k_p, input_length=input_length, input_dim=input_dim,
                         d_model=d_model, n_layers=n_layers)

    out = mlp_forward(x, params, input_length=input_length, input_dim=input_dim,
                      n_layers=n_layers, block_m=block_m)
    out = jax.block_until_ready(out)

    ref = reference_forward(x, params, input_length=input_length,
                            input_dim=input_dim, n_layers=n_layers)
    assert out.shape == (batch,)
    # bf16 matmul operands / inter-layer activations with f32 accumulation
    # -> loosened tolerance vs the pure-f32 reference.
    assert jnp.allclose(out, ref, atol=2e-2, rtol=0.0), float(jnp.max(jnp.abs(out - ref)))

    print("KERNEL_OK")
</pallas_src>

<mosaic_0001>
module attributes {stable_mosaic.version = 11 : i64} {
  func.func @mlp_kernel(%arg0: i32, %arg1: memref<512x128xbf16, #tpu.memory_space<vmem>>, %arg2: memref<128x256xbf16, #tpu.memory_space<vmem>>, %arg3: memref<1x256xf32, #tpu.memory_space<vmem>>, %arg4: memref<5x256x256xbf16, #tpu.memory_space<vmem>>, %arg5: memref<5x1x256xf32, #tpu.memory_space<vmem>>, %arg6: memref<1x256xf32, #tpu.memory_space<vmem>>, %arg7: memref<1xf32, #tpu.memory_space<smem>>, %arg8: memref<1x1x512xf32, #tpu.memory_space<vmem>>) attributes {dimension_semantics = [#tpu.dimension_semantics<parallel>], iteration_bounds = array<i64: 2>, scalar_prefetch = 0 : i64, scratch_operands = 0 : i64, tpu.core_type = #tpu.core_type<tc>, window_params = [{transform_indices = @transform_0, window_bounds = array<i64: 512, 128>}, {pipeline_mode = #tpu.pipeline_mode<synchronous>, transform_indices = @transform_1, window_bounds = array<i64: 128, 256>}, {pipeline_mode = #tpu.pipeline_mode<synchronous>, transform_indices = @transform_2, window_bounds = array<i64: 1, 256>}, {pipeline_mode = #tpu.pipeline_mode<synchronous>, transform_indices = @transform_3, window_bounds = array<i64: 5, 256, 256>}, {pipeline_mode = #tpu.pipeline_mode<synchronous>, transform_indices = @transform_4, window_bounds = array<i64: 5, 1, 256>}, {pipeline_mode = #tpu.pipeline_mode<synchronous>, transform_indices = @transform_5, window_bounds = array<i64: 1, 256>}, {transform_indices = @transform_6, window_bounds = array<i64: 1>}, {transform_indices = @transform_7, window_bounds = array<i64: 1, 1, 512>}]} {
    %c0 = arith.constant 0 : index
    %c0_0 = arith.constant 0 : index
    %0 = vector.load %arg1[%c0, %c0_0] : memref<512x128xbf16, #tpu.memory_space<vmem>>, vector<512x128xbf16>
    %c0_1 = arith.constant 0 : index
    %c0_2 = arith.constant 0 : index
    %1 = vector.load %arg2[%c0_1, %c0_2] : memref<128x256xbf16, #tpu.memory_space<vmem>>, vector<128x256xbf16>
    %cst = arith.constant dense<0.000000e+00> : vector<512x256xf32>
    %2 = tpu.matmul %0, %1, %cst {dimension_numbers = #tpu.dot_dimension_numbers<[1], [0], [0], [1], [0, 0, 1, 1], [], []>} : vector<512x128xbf16>, vector<128x256xbf16>, vector<512x256xf32> -> vector<512x256xf32>
    %c0_3 = arith.constant 0 : index
    %c0_4 = arith.constant 0 : index
    %3 = vector.load %arg3[%c0_3, %c0_4] : memref<1x256xf32, #tpu.memory_space<vmem>>, vector<1x256xf32>
    %4 = vector.broadcast %3 : vector<1x256xf32> to vector<512x256xf32>
    %5 = arith.addf %2, %4 : vector<512x256xf32>
    %cst_5 = arith.constant 0.000000e+00 : f32
    %6 = vector.broadcast %cst_5 : f32 to vector<512x256xf32>
    %7 = arith.maximumf %5, %6 : vector<512x256xf32>
    %8 = arith.truncf %7 : vector<512x256xf32> to vector<512x256xbf16>
    %c0_6 = arith.constant 0 : index
    %c0_7 = arith.constant 0 : index
    %c0_8 = arith.constant 0 : index
    %9 = vector.load %arg4[%c0_6, %c0_7, %c0_8] : memref<5x256x256xbf16, #tpu.memory_space<vmem>>, vector<1x256x256xbf16>
    %10 = vector.shape_cast %9 : vector<1x256x256xbf16> to vector<256x256xbf16>
    %cst_9 = arith.constant dense<0.000000e+00> : vector<512x256xf32>
    %11 = tpu.matmul %8, %10, %cst_9 {dimension_numbers = #tpu.dot_dimension_numbers<[1], [0], [0], [1], [0, 0, 1, 1], [], []>} : vector<512x256xbf16>, vector<256x256xbf16>, vector<512x256xf32> -> vector<512x256xf32>
    %c0_10 = arith.constant 0 : index
    %c0_11 = arith.constant 0 : index
    %c0_12 = arith.constant 0 : index
    %12 = vector.load %arg5[%c0_10, %c0_11, %c0_12] : memref<5x1x256xf32, #tpu.memory_space<vmem>>, vector<1x1x256xf32>
    %13 = vector.shape_cast %12 : vector<1x1x256xf32> to vector<1x256xf32>
    %14 = vector.broadcast %13 : vector<1x256xf32> to vector<512x256xf32>
    %15 = arith.addf %11, %14 : vector<512x256xf32>
    %cst_13 = arith.constant 0.000000e+00 : f32
    %16 = vector.broadcast %cst_13 : f32 to vector<512x256xf32>
    %17 = arith.maximumf %15, %16 : vector<512x256xf32>
    %18 = arith.truncf %17 : vector<512x256xf32> to vector<512x256xbf16>
    %c1 = arith.constant 1 : index
    %c0_14 = arith.constant 0 : index
    %c0_15 = arith.constant 0 : index
    %19 = vector.load %arg4[%c1, %c0_14, %c0_15] : memref<5x256x256xbf16, #tpu.memory_space<vmem>>, vector<1x256x256xbf16>
    %20 = vector.shape_cast %19 : vector<1x256x256xbf16> to vector<256x256xbf16>
    %cst_16 = arith.constant dense<0.000000e+00> : vector<512x256xf32>
    %21 = tpu.matmul %18, %20, %cst_16 {dimension_numbers = #tpu.dot_dimension_numbers<[1], [0], [0], [1], [0, 0, 1, 1], [], []>} : vector<512x256xbf16>, vector<256x256xbf16>, vector<512x256xf32> -> vector<512x256xf32>
    %c1_17 = arith.constant 1 : index
    %c0_18 = arith.constant 0 : index
    %c0_19 = arith.constant 0 : index
    %22 = vector.load %arg5[%c1_17, %c0_18, %c0_19] : memref<5x1x256xf32, #tpu.memory_space<vmem>>, vector<1x1x256xf32>
    %23 = vector.shape_cast %22 : vector<1x1x256xf32> to vector<1x256xf32>
    %24 = vector.broadcast %23 : vector<1x256xf32> to vector<512x256xf32>
    %25 = arith.addf %21, %24 : vector<512x256xf32>
    %cst_20 = arith.constant 0.000000e+00 : f32
    %26 = vector.broadcast %cst_20 : f32 to vector<512x256xf32>
    %27 = arith.maximumf %25, %26 : vector<512x256xf32>
    %28 = arith.truncf %27 : vector<512x256xf32> to vector<512x256xbf16>
    %c2 = arith.constant 2 : index
    %c0_21 = arith.constant 0 : index
    %c0_22 = arith.constant 0 : index
    %29 = vector.load %arg4[%c2, %c0_21, %c0_22] : memref<5x256x256xbf16, #tpu.memory_space<vmem>>, vector<1x256x256xbf16>
    %30 = vector.shape_cast %29 : vector<1x256x256xbf16> to vector<256x256xbf16>
    %cst_23 = arith.constant dense<0.000000e+00> : vector<512x256xf32>
    %31 = tpu.matmul %28, %30, %cst_23 {dimension_numbers = #tpu.dot_dimension_numbers<[1], [0], [0], [1], [0, 0, 1, 1], [], []>} : vector<512x256xbf16>, vector<256x256xbf16>, vector<512x256xf32> -> vector<512x256xf32>
    %c2_24 = arith.constant 2 : index
    %c0_25 = arith.constant 0 : index
    %c0_26 = arith.constant 0 : index
    %32 = vector.load %arg5[%c2_24, %c0_25, %c0_26] : memref<5x1x256xf32, #tpu.memory_space<vmem>>, vector<1x1x256xf32>
    %33 = vector.shape_cast %32 : vector<1x1x256xf32> to vector<1x256xf32>
    %34 = vector.broadcast %33 : vector<1x256xf32> to vector<512x256xf32>
    %35 = arith.addf %31, %34 : vector<512x256xf32>
    %cst_27 = arith.constant 0.000000e+00 : f32
    %36 = vector.broadcast %cst_27 : f32 to vector<512x256xf32>
    %37 = arith.maximumf %35, %36 : vector<512x256xf32>
    %38 = arith.truncf %37 : vector<512x256xf32> to vector<512x256xbf16>
    %c3 = arith.constant 3 : index
    %c0_28 = arith.constant 0 : index
    %c0_29 = arith.constant 0 : index
    %39 = vector.load %arg4[%c3, %c0_28, %c0_29] : memref<5x256x256xbf16, #tpu.memory_space<vmem>>, vector<1x256x256xbf16>
    %40 = vector.shape_cast %39 : vector<1x256x256xbf16> to vector<256x256xbf16>
    %cst_30 = arith.constant dense<0.000000e+00> : vector<512x256xf32>
    %41 = tpu.matmul %38, %40, %cst_30 {dimension_numbers = #tpu.dot_dimension_numbers<[1], [0], [0], [1], [0, 0, 1, 1], [], []>} : vector<512x256xbf16>, vector<256x256xbf16>, vector<512x256xf32> -> vector<512x256xf32>
    %c3_31 = arith.constant 3 : index
    %c0_32 = arith.constant 0 : index
    %c0_33 = arith.constant 0 : index
    %42 = vector.load %arg5[%c3_31, %c0_32, %c0_33] : memref<5x1x256xf32, #tpu.memory_space<vmem>>, vector<1x1x256xf32>
    %43 = vector.shape_cast %42 : vector<1x1x256xf32> to vector<1x256xf32>
    %44 = vector.broadcast %43 : vector<1x256xf32> to vector<512x256xf32>
    %45 = arith.addf %41, %44 : vector<512x256xf32>
    %cst_34 = arith.constant 0.000000e+00 : f32
    %46 = vector.broadcast %cst_34 : f32 to vector<512x256xf32>
    %47 = arith.maximumf %45, %46 : vector<512x256xf32>
    %48 = arith.truncf %47 : vector<512x256xf32> to vector<512x256xbf16>
    %c4 = arith.constant 4 : index
    %c0_35 = arith.constant 0 : index
    %c0_36 = arith.constant 0 : index
    %49 = vector.load %arg4[%c4, %c0_35, %c0_36] : memref<5x256x256xbf16, #tpu.memory_space<vmem>>, vector<1x256x256xbf16>
    %50 = vector.shape_cast %49 : vector<1x256x256xbf16> to vector<256x256xbf16>
    %cst_37 = arith.constant dense<0.000000e+00> : vector<512x256xf32>
    %51 = tpu.matmul %48, %50, %cst_37 {dimension_numbers = #tpu.dot_dimension_numbers<[1], [0], [0], [1], [0, 0, 1, 1], [], []>} : vector<512x256xbf16>, vector<256x256xbf16>, vector<512x256xf32> -> vector<512x256xf32>
    %c4_38 = arith.constant 4 : index
    %c0_39 = arith.constant 0 : index
    %c0_40 = arith.constant 0 : index
    %52 = vector.load %arg5[%c4_38, %c0_39, %c0_40] : memref<5x1x256xf32, #tpu.memory_space<vmem>>, vector<1x1x256xf32>
    %53 = vector.shape_cast %52 : vector<1x1x256xf32> to vector<1x256xf32>
    %54 = vector.broadcast %53 : vector<1x256xf32> to vector<512x256xf32>
    %55 = arith.addf %51, %54 : vector<512x256xf32>
    %cst_41 = arith.constant 0.000000e+00 : f32
    %56 = vector.broadcast %cst_41 : f32 to vector<512x256xf32>
    %57 = arith.maximumf %55, %56 : vector<512x256xf32>
    %58 = arith.truncf %57 : vector<512x256xf32> to vector<512x256xbf16>
    %59 = arith.extf %58 : vector<512x256xbf16> to vector<512x256xf32>
    %c0_42 = arith.constant 0 : index
    %c0_43 = arith.constant 0 : index
    %60 = vector.load %arg6[%c0_42, %c0_43] : memref<1x256xf32, #tpu.memory_space<vmem>>, vector<1x256xf32>
    %61 = vector.broadcast %60 : vector<1x256xf32> to vector<512x256xf32>
    %62 = arith.mulf %59, %61 : vector<512x256xf32>
    %cst_44 = arith.constant dense<0.000000e+00> : vector<512xf32>
    %63 = vector.multi_reduction <add>, %62, %cst_44 [1] : vector<512x256xf32> to vector<512xf32>
    %64 = vector.shape_cast %63 : vector<512xf32> to vector<512x1xf32>
    %c0_45 = arith.constant 0 : index
    %65 = memref.load %arg7[%c0_45] : memref<1xf32, #tpu.memory_space<smem>>
    %66 = vector.broadcast %65 : f32 to vector<512x1xf32>
    %67 = arith.addf %64, %66 : vector<512x1xf32>
    %68 = arith.negf %67 : vector<512x1xf32>
    %69 = math.exp %68 : vector<512x1xf32>
    %cst_46 = arith.constant 1.000000e+00 : f32
    %70 = vector.broadcast %cst_46 : f32 to vector<512x1xf32>
    %71 = arith.addf %70, %69 : vector<512x1xf32>
    %72 = arith.divf %70, %71 : vector<512x1xf32>
    %73 = tpu.transpose %72, [1, 0] : vector<512x1xf32> -> vector<1x512xf32>
    %c0_47 = arith.constant 0 : index
    %c0_48 = arith.constant 0 : index
    %c0_49 = arith.constant 0 : index
    %74 = vector.load %arg8[%c0_47, %c0_48, %c0_49] : memref<1x1x512xf32, #tpu.memory_space<vmem>>, vector<1x1x512xf32>
    %75 = vector.shape_cast %74 : vector<1x1x512xf32> to vector<1x512xf32>
    %76 = vector.shape_cast %73 : vector<1x512xf32> to vector<1x1x512xf32>
    tpu.vector_store %arg8[%c0_47, %c0_48, %c0_49], %76 {strides = array<i32>} : memref<1x1x512xf32, #tpu.memory_space<vmem>>, vector<1x1x512xf32>,
    return
  }
  func.func @transform_0(%arg0: i32) -> (i32, i32) {
    %c0_i32 = arith.constant 0 : i32
    %c0_i32_0 = arith.constant 0 : i32
    return %arg0, %c0_i32 : i32, i32
  }
  func.func @transform_1(%arg0: i32) -> (i32, i32) {
    %c0_i32 = arith.constant 0 : i32
    %c0_i32_0 = arith.constant 0 : i32
    %c0_i32_1 = arith.constant 0 : i32
    return %c0_i32, %c0_i32_0 : i32, i32
  }
  func.func @transform_2(%arg0: i32) -> (i32, i32) {
    %c0_i32 = arith.constant 0 : i32
    %c0_i32_0 = arith.constant 0 : i32
    %c0_i32_1 = arith.constant 0 : i32
    return %c0_i32, %c0_i32_0 : i32, i32
  }
  func.func @transform_3(%arg0: i32) -> (i32, i32, i32) {
    %c0_i32 = arith.constant 0 : i32
    %c0_i32_0 = arith.constant 0 : i32
    %c0_i32_1 = arith.constant 0 : i32
    %c0_i32_2 = arith.constant 0 : i32
    return %c0_i32, %c0_i32_0, %c0_i32_1 : i32, i32, i32
  }
  func.func @transform_4(%arg0: i32) -> (i32, i32, i32) {
    %c0_i32 = arith.constant 0 : i32
    %c0_i32_0 = arith.constant 0 : i32
    %c0_i32_1 = arith.constant 0 : i32
    %c0_i32_2 = arith.constant 0 : i32
    return %c0_i32, %c0_i32_0, %c0_i32_1 : i32, i32, i32
  }
  func.func @transform_5(%arg0: i32) -> (i32, i32) {
    %c0_i32 = arith.constant 0 : i32
    %c0_i32_0 = arith.constant 0 : i32
    %c0_i32_1 = arith.constant 0 : i32
    return %c0_i32, %c0_i32_0 : i32, i32
  }
  func.func @transform_6(%arg0: i32) -> i32 {
    %c0_i32 = arith.constant 0 : i32
    %c0_i32_0 = arith.constant 0 : i32
    return %c0_i32 : i32
  }
  func.func @transform_7(%arg0: i32) -> (i32, i32, i32) {
    %c0_i32 = arith.constant 0 : i32
    %c0_i32_0 = arith.constant 0 : i32
    %c0_i32_1 = arith.constant 0 : i32
    return %arg0, %c0_i32, %c0_i32_0 : i32, i32, i32
  }
}

</mosaic_0001>

<llo_original>
// kernel: tpu_custom_call.1
$region0: #{tpu_custom_call.1}
  #allocation0 [shape = 'u32[]', space=smem, size = 0x4, offset = 0x4, fixed_abs, tag = 'smem constant byte address 0x4 - core index']
  #allocation1 [shape = 'u32[72,128]{1,0:T(1,128)}', space=vmem, size = 0x9000, scoped, tag = 'internal scratch']
  #allocation2 [shape = 'f32[1]{0:T(128)S(6)}', space=smem, size = 0x200, scoped, tag = 'scoped memory for tpu_custom_call.1']
  %s0 = inlined_call_operand.hbm [shape: bf16[1024,128], index: 0, kind: input, shape index: {}]
  %s1 = inlined_call_operand.hbm [shape: bf16[128,256], index: 1, kind: input, shape index: {}]
  %s2 = inlined_call_operand.vmem [shape: f32[1,256], index: 2, kind: input, shape index: {}]
  %s3 = inlined_call_operand.hbm [shape: bf16[5,256,256], index: 3, kind: input, shape index: {}]
  %s4 = inlined_call_operand.hbm [shape: f32[5,1,256], index: 4, kind: input, shape index: {}]
  %s5 = inlined_call_operand.vmem [shape: f32[1,256], index: 5, kind: input, shape index: {}]
  %s6 = inlined_call_operand.<no memory space> [shape: f32[1], index: 6, kind: input, shape index: {}]
  %s7 = inlined_call_operand.hbm [shape: f32[2,1,512], index: 7, kind: output, shape index: {}]
  %s8 = sld [smem:[#allocation0]]
  $region77: #{tpu_custom_call.1} parent=0
    _
  %s10 = ssub.s32 1, %s8
  %s11 = scalar_select 0, %s10, %s8
  %12 = sst [smem:[#allocation2]] %s6
  $region1: #{tpu_custom_call.1} parent=0
    #allocation3 [shape = 'u8[262144]{0}', space=vmem, size = 0x40000, scoped, tag = 'input window, operand 0']
    #allocation4 [shape = 's32[2]{0}', space=sflag, size = 0x8, scoped, tag = 'scoped memory for tpu_custom_call.1']
    #allocation5 [shape = 's32[2]{0}', space=sflag, size = 0x8, scoped, tag = 'scoped memory for tpu_custom_call.1']
    #allocation6 [shape = 'u8[65536]{0}', space=vmem, size = 0x10000, scoped, tag = 'input window, operand 1, single buffered']
    #allocation7 [shape = 's32[1]{0}', space=sflag, size = 0x4, scoped, tag = 'scoped memory for tpu_custom_call.1']
    #allocation8 [shape = 'u8[655360]{0}', space=vmem, size = 0xa0000, scoped, tag = 'input window, operand 3, single buffered']
    #allocation9 [shape = 'u8[5120]{0}', space=vmem, size = 0x1400, scoped, tag = 'input window, operand 4, single buffered']
    #allocation10 [shape = 's32[1]{0}', space=sflag, size = 0x4, scoped, tag = 'scoped memory for tpu_custom_call.1']
    #allocation11 [shape = 'u8[4096]{0}', space=vmem, size = 0x1000, scoped, tag = 'output window, operand 0']
    %13 = vsyncpa [#allocation4], 0
    %s14 = scalar_lea.sflag [#allocation4], 1
    %15 = vsyncpa %s14, 0
    %16 = vsyncpa [#allocation7], 0
    %17 = vsyncpa [#allocation10], 0
    %18 = vsyncpa [#allocation5], 0
    %s19 = scalar_lea.sflag [#allocation5], 1
    %20 = vsyncpa %s19, 0
    loop: start=0, step=1, limit=4
    $region2: #{tpu_custom_call.1} parent=1 // loop_pre_header
      _
    $region3: #{tpu_custom_call.1} parent=1 // loop_header
      %s22 = sphi 0, %s26
      %p23 = scmp.ge.s32.totalorder %s22, 4
      %s32 = sphi 0, %s34
      %s35 = sphi 0, %s32
      %s36 = sphi 0, %s35
      %s52 = sphi 0, %s36
      %s56 = sphi 0, %s56
      %s58 = sphi 0, %s56
      %s59 = sphi 0, %s58
      %s73 = sphi 0, %s59
      %s77 = sphi 0, %s77
      %s79 = sphi 0, %s77
      %s80 = sphi 0, %s79
      %s94 = sphi 0, %s80
      %s98 = sphi 0, %s98
      %s100 = sphi 0, %s98
      %s101 = sphi 0, %s100
      %s115 = sphi 0, %s101
      %s119 = sphi 0, %s119
      %s121 = sphi 0, %s119
      %s122 = sphi 0, %s121
      %s136 = sphi 0, %s122
      %s140 = sphi 0, %s140
      %s142 = sphi 0, %s140
      %s143 = sphi 0, %s142
      %s157 = sphi 0, %s143
      %s161 = sphi 0, %s161
      %s163 = sphi 0, %s161
      %s164 = sphi 0, %s163
      %s178 = sphi 0, %s164
      %s184 = sphi 0, %s186
      %s187 = sphi 0, %s184
      %s188 = sphi 0, %s187
      %s204 = sphi 0, %s188
    $region4: #{tpu_custom_call.1} parent=1 // loop_header_branch
      %25 = sbr.rel (%p23) target = $region8
    $region5: #{tpu_custom_call.1} parent=1 // loop_body
      %s27 = ssub.s32 %s22, 1
      %s28 = ssub.s32 %s22, 2
      %s29 = sadd.s32 %s22, 1
      %s30 = ssub.s32 %s22, %s29
      %p31 = scmp.eq.s32.totalorder %s30, 0
      %s33 = sadd.s32 %s32, 1
      %s34 = scalar_select %p31, %s32, %s33
      %p37 = pneg %p31
      %p38 = scmp.eq.s32.totalorder %s22, 1
      %p39 = por %p37, %p38
      %p40 = scmp.ne.s32.totalorder %s32, %s35
      %p41 = scmp.eq.s32.totalorder %s22, 0
      %p42 = por %p40, %p41
      %p43 = scmp.ne.s32.totalorder %s32, %s35
      %p44 = scmp.eq.s32.totalorder %s27, 1
      %p45 = por %p43, %p44
      %p46 = scmp.ne.s32.totalorder %s35, %s36
      %p47 = scmp.eq.s32.totalorder %s27, 0
      %p48 = por %p46, %p47
      %p49 = scmp.ne.s32.totalorder %s35, %s36
      %p50 = scmp.eq.s32.totalorder %s28, 1
      %p51 = por %p49, %p50
      %p53 = scmp.ne.s32.totalorder %s36, %s52
      %p54 = scmp.eq.s32.totalorder %s28, 0
      %p55 = por %p53, %p54
      %s57 = sadd.s32 %s56, 1
      %p60 = scmp.eq.s32.totalorder %s22, 1
      %p61 = scmp.ne.s32.totalorder %s56, %s58
      %p62 = scmp.eq.s32.totalorder %s22, 0
      %p63 = por %p61, %p62
      %p64 = scmp.ne.s32.totalorder %s56, %s58
      %p65 = scmp.eq.s32.totalorder %s27, 1
      %p66 = por %p64, %p65
      %p67 = scmp.ne.s32.totalorder %s58, %s59
      %p68 = scmp.eq.s32.totalorder %s27, 0
      %p69 = por %p67, %p68
      %p70 = scmp.ne.s32.totalorder %s58, %s59
      %p71 = scmp.eq.s32.totalorder %s28, 1
      %p72 = por %p70, %p71
      %p74 = scmp.ne.s32.totalorder %s59, %s73
      %p75 = scmp.eq.s32.totalorder %s28, 0
      %p76 = por %p74, %p75
      %s78 = sadd.s32 %s77, 1
      %p81 = scmp.eq.s32.totalorder %s22, 1
      %p82 = scmp.ne.s32.totalorder %s77, %s79
      %p83 = scmp.eq.s32.totalorder %s22, 0
      %p84 = por %p82, %p83
      %p85 = scmp.ne.s32.totalorder %s77, %s79
      %p86 = scmp.eq.s32.totalorder %s27, 1
      %p87 = por %p85, %p86
      %p88 = scmp.ne.s32.totalorder %s79, %s80
      %p89 = scmp.eq.s32.totalorder %s27, 0
      %p90 = por %p88, %p89
      %p91 = scmp.ne.s32.totalorder %s79, %s80
      %p92 = scmp.eq.s32.totalorder %s28, 1
      %p93 = por %p91, %p92
      %p95 = scmp.ne.s32.totalorder %s80, %s94
      %p96 = scmp.eq.s32.totalorder %s28, 0
      %p97 = por %p95, %p96
      %s99 = sadd.s32 %s98, 1
      %p102 = scmp.eq.s32.totalorder %s22, 1
      %p103 = scmp.ne.s32.totalorder %s98, %s100
      %p104 = scmp.eq.s32.totalorder %s22, 0
      %p105 = por %p103, %p104
      %p106 = scmp.ne.s32.totalorder %s98, %s100
      %p107 = scmp.eq.s32.totalorder %s27, 1
      %p108 = por %p106, %p107
      %p109 = scmp.ne.s32.totalorder %s100, %s101
      %p110 = scmp.eq.s32.totalorder %s27, 0
      %p111 = por %p109, %p110
      %p112 = scmp.ne.s32.totalorder %s100, %s101
      %p113 = scmp.eq.s32.totalorder %s28, 1
      %p114 = por %p112, %p113
      %p116 = scmp.ne.s32.totalorder %s101, %s115
      %p117 = scmp.eq.s32.totalorder %s28, 0
      %p118 = por %p116, %p117
      %s120 = sadd.s32 %s119, 1
      %p123 = scmp.eq.s32.totalorder %s22, 1
      %p124 = scmp.ne.s32.totalorder %s119, %s121
      %p125 = scmp.eq.s32.totalorder %s22, 0
      %p126 = por %p124, %p125
      %p127 = scmp.ne.s32.totalorder %s119, %s121
      %p128 = scmp.eq.s32.totalorder %s27, 1
      %p129 = por %p127, %p128
      %p130 = scmp.ne.s32.totalorder %s121, %s122
      %p131 = scmp.eq.s32.totalorder %s27, 0
      %p132 = por %p130, %p131
      %p133 = scmp.ne.s32.totalorder %s121, %s122
      %p134 = scmp.eq.s32.totalorder %s28, 1
      %p135 = por %p133, %p134
      %p137 = scmp.ne.s32.totalorder %s122, %s136
      %p138 = scmp.eq.s32.totalorder %s28, 0
      %p139 = por %p137, %p138
      %s141 = sadd.s32 %s140, 1
      %p144 = scmp.eq.s32.totalorder %s22, 1
      %p145 = scmp.ne.s32.totalorder %s140, %s142
      %p146 = scmp.eq.s32.totalorder %s22, 0
      %p147 = por %p145, %p146
      %p148 = scmp.ne.s32.totalorder %s140, %s142
      %p149 = scmp.eq.s32.totalorder %s27, 1
      %p150 = por %p148, %p149
      %p151 = scmp.ne.s32.totalorder %s142, %s143
      %p152 = scmp.eq.s32.totalorder %s27, 0
      %p153 = por %p151, %p152
      %p154 = scmp.ne.s32.totalorder %s142, %s143
      %p155 = scmp.eq.s32.totalorder %s28, 1
      %p156 = por %p154, %p155
      %p158 = scmp.ne.s32.totalorder %s143, %s157
      %p159 = scmp.eq.s32.totalorder %s28, 0
      %p160 = por %p158, %p159
      %s162 = sadd.s32 %s161, 1
      %p165 = scmp.eq.s32.totalorder %s22, 1
      %p166 = scmp.ne.s32.totalorder %s161, %s163
      %p167 = scmp.eq.s32.totalorder %s22, 0
      %p168 = por %p166, %p167
      %p169 = scmp.ne.s32.totalorder %s161, %s163
      %p170 = scmp.eq.s32.totalorder %s27, 1
      %p171 = por %p169, %p170
      %p172 = scmp.ne.s32.totalorder %s163, %s164
      %p173 = scmp.eq.s32.totalorder %s27, 0
      %p174 = por %p172, %p173
      %p175 = scmp.ne.s32.totalorder %s163, %s164
      %p176 = scmp.eq.s32.totalorder %s28, 1
      %p177 = por %p175, %p176
      %p179 = scmp.ne.s32.totalorder %s164, %s178
      %p180 = scmp.eq.s32.totalorder %s28, 0
      %p181 = por %p179, %p180
      %s182 = ssub.s32 %s22, %s29
      %p183 = scmp.eq.s32.totalorder %s182, 0
      %s185 = sadd.s32 %s184, 1
      %s186 = scalar_select %p183, %s184, %s185
      %p189 = pneg %p183
      %p190 = scmp.eq.s32.totalorder %s22, 1
      %p191 = por %p189, %p190
      %p192 = scmp.ne.s32.totalorder %s184, %s187
      %p193 = scmp.eq.s32.totalorder %s22, 0
      %p194 = por %p192, %p193
      %p195 = scmp.ne.s32.totalorder %s184, %s187
      %p196 = scmp.eq.s32.totalorder %s27, 1
      %p197 = por %p195, %p196
      %p198 = scmp.ne.s32.totalorder %s187, %s188
      %p199 = scmp.eq.s32.totalorder %s27, 0
      %p200 = por %p198, %p199
      %p201 = scmp.ne.s32.totalorder %s187, %s188
      %p202 = scmp.eq.s32.totalorder %s28, 1
      %p203 = por %p201, %p202
      %p205 = scmp.ne.s32.totalorder %s188, %s204
      %p206 = scmp.eq.s32.totalorder %s28, 0
      %p207 = por %p205, %p206
      %p208 = scmp.le.s32.totalorder 1, %s22
      %p209 = scmp.lt.s32.totalorder %s22, 3
      %p210 = pnand %p208, %p209
      %p211 = pneg %p210
      // Predicated region
      $region9: #{tpu_custom_call.1} parent=5 // pred_check
        _
      $region10: #{tpu_custom_call.1} parent=5 // pred_check_branch
        %213 = sbr.rel (%p210) target = $region12
      $region11: #{tpu_custom_call.1} parent=5 // pred_region
        %s214 = ssub.s32 %s22, 1
        // Predicated region
        $region13: #{tpu_custom_call.1} parent=11 // pred_check
          %p215 = pneg %p69
        $region14: #{tpu_custom_call.1} parent=11 // pred_check_branch
          %217 = sbr.rel (%p215) target = $region16
        $region15: #{tpu_custom_call.1} parent=11 // pred_region
          %219 = vsyncadd [#allocation7], 0
          %s220 = sshll.u32 %s1, 4
          %s221 = int_to_ptr.hbm [resolvable:$true] %s220
          %s222 = sshll.u32 [#allocation6], 4
          %s223 = int_to_ptr.vmem [resolvable:$true] %s222
          %228 = dma.hbm_to_vmem [thread:$0]  %s221, 2048, %s223, [#allocation7], 128, 128, 8
        $region16: #{tpu_custom_call.1} parent=11 // pred_fallthru
          _
        // Predicated region
        $region17: #{tpu_custom_call.1} parent=11 // pred_check
          %p229 = pneg %p90
        $region18: #{tpu_custom_call.1} parent=11 // pred_check_branch
          %231 = sbr.rel (%p229) target = $region20
        $region19: #{tpu_custom_call.1} parent=11 // pred_region
          _
        $region20: #{tpu_custom_call.1} parent=11 // pred_fallthru
          _
        // Predicated region
        $region21: #{tpu_custom_call.1} parent=11 // pred_check
          %p232 = pneg %p111
        $region22: #{tpu_custom_call.1} parent=11 // pred_check_branch
          %234 = sbr.rel (%p232) target = $region24
        $region23: #{tpu_custom_call.1} parent=11 // pred_region
          %236 = vsyncadd [#allocation7], 0
          %s237 = sshll.u32 %s3, 4
          %s238 = int_to_ptr.hbm [resolvable:$true] %s237
          %s239 = sshll.u32 [#allocation8], 4
          %s240 = int_to_ptr.vmem [resolvable:$true] %s239
          %245 = dma.hbm_to_vmem [thread:$0]  %s238, 20480, %s240, [#allocation7], 128, 128, 8
        $region24: #{tpu_custom_call.1} parent=11 // pred_fallthru
          _
        // Predicated region
        $region25: #{tpu_custom_call.1} parent=11 // pred_check
          %p246 = pneg %p132
        $region26: #{tpu_custom_call.1} parent=11 // pred_check_branch
          %248 = sbr.rel (%p246) target = $region28
        $region27: #{tpu_custom_call.1} parent=11 // pred_region
          %250 = vsyncadd [#allocation10], 0
          %s251 = sshll.u32 %s4, 4
          %s252 = int_to_ptr.hbm [resolvable:$true] %s251
          %s253 = sshll.u32 [#allocation9], 4
          %s254 = int_to_ptr.vmem [resolvable:$true] %s253
          %259 = dma.hbm_to_vmem [thread:$0]  %s252, 160, %s254, [#allocation10], 32, 32, 2
        $region28: #{tpu_custom_call.1} parent=11 // pred_fallthru
          _
        // Predicated region
        $region29: #{tpu_custom_call.1} parent=11 // pred_check
          %p260 = pneg %p153
        $region30: #{tpu_custom_call.1} parent=11 // pred_check_branch
          %262 = sbr.rel (%p260) target = $region32
        $region31: #{tpu_custom_call.1} parent=11 // pred_region
          _
        $region32: #{tpu_custom_call.1} parent=11 // pred_fallthru
          _
        // Predicated region
        $region33: #{tpu_custom_call.1} parent=11 // pred_check
          %p263 = pneg %p174
        $region34: #{tpu_custom_call.1} parent=11 // pred_check_branch
          %265 = sbr.rel (%p263) target = $region36
        $region35: #{tpu_custom_call.1} parent=11 // pred_region
          _
        $region36: #{tpu_custom_call.1} parent=11 // pred_fallthru
          _
      $region12: #{tpu_custom_call.1} parent=5 // pred_fallthru
        _
      %p266 = scmp.lt.s32.totalorder %s22, 2
      // Predicated region
      $region37: #{tpu_custom_call.1} parent=5 // pred_check
        %p267 = pneg %p266
      $region38: #{tpu_custom_call.1} parent=5 // pred_check_branch
        %269 = sbr.rel (%p267) target = $region40
      $region39: #{tpu_custom_call.1} parent=5 // pred_region
        // Predicated region
        $region41: #{tpu_custom_call.1} parent=39 // pred_check
          %p270 = pneg %p42
        $region42: #{tpu_custom_call.1} parent=39 // pred_check_branch
          %272 = sbr.rel (%p270) target = $region44
        $region43: #{tpu_custom_call.1} parent=39 // pred_region
          %s273 = sand.u32 %s32, 1
          %s274 = scalar_lea.sflag [#allocation4], %s273
          %s275 = sand.u32 %s32, 1
          %s276 = smul.addr %s275, 256
          %s277 = scalar_lea.vmem [#allocation3], %s276
          %s278 = smul.u32 64, %s22
          %280 = vsyncadd %s274, 0
          %s281 = smul.addr %s278, 4
          %s282 = scalar_lea.hbm %s0, %s281
          %s283 = sshll.u32 %s282, 4
          %s284 = int_to_ptr.hbm [resolvable:$true] %s283
          %s285 = sshll.u32 %s277, 4
          %s286 = int_to_ptr.vmem [resolvable:$true] %s285
          %291 = dma.hbm_to_vmem [thread:$0]  %s284, 4096, %s286, %s274, 64, 64, 4
        $region44: #{tpu_custom_call.1} parent=39 // pred_fallthru
          _
      $region40: #{tpu_custom_call.1} parent=5 // pred_fallthru
        _
      %p292 = scmp.le.s32.totalorder 1, %s22
      %p293 = scmp.lt.s32.totalorder %s22, 3
      %p294 = pnand %p292, %p293
      %p295 = pneg %p294
      // Predicated region
      $region45: #{tpu_custom_call.1} parent=5 // pred_check
        _
      $region46: #{tpu_custom_call.1} parent=5 // pred_check_branch
        %297 = sbr.rel (%p294) target = $region48
      $region47: #{tpu_custom_call.1} parent=5 // pred_region
        %s298 = ssub.s32 %s22, 1
        %s299 = sand.u32 %s35, 1
        %s300 = scalar_lea.sflag [#allocation4], %s299
        %s301 = sand.u32 %s35, 1
        %s302 = smul.addr %s301, 256
        %s303 = scalar_lea.vmem [#allocation3], %s302
        // Predicated region
        $region49: #{tpu_custom_call.1} parent=47 // pred_check
          %p304 = pneg %p48
        $region50: #{tpu_custom_call.1} parent=47 // pred_check_branch
          %306 = sbr.rel (%p304) target = $region52
        $region51: #{tpu_custom_call.1} parent=47 // pred_region
          %308 = dma.done %s300, 4096
        $region52: #{tpu_custom_call.1} parent=47 // pred_fallthru
          _
        // Predicated region
        $region53: #{tpu_custom_call.1} parent=47 // pred_check
          %p309 = pneg %p69
        $region54: #{tpu_custom_call.1} parent=47 // pred_check_branch
          %311 = sbr.rel (%p309) target = $region56
        $region55: #{tpu_custom_call.1} parent=47 // pred_region
          %313 = dma.done [#allocation7], 2048
        $region56: #{tpu_custom_call.1} parent=47 // pred_fallthru
          _
        // Predicated region
        $region57: #{tpu_custom_call.1} parent=47 // pred_check
          %p314 = pneg %p111
        $region58: #{tpu_custom_call.1} parent=47 // pred_check_branch
          %316 = sbr.rel (%p314) target = $region60
        $region59: #{tpu_custom_call.1} parent=47 // pred_region
          %318 = dma.done [#allocation7], 20480
        $region60: #{tpu_custom_call.1} parent=47 // pred_fallthru
          _
        // Predicated region
        $region61: #{tpu_custom_call.1} parent=47 // pred_check
          %p319 = pneg %p132
        $region62: #{tpu_custom_call.1} parent=47 // pred_check_branch
          %321 = sbr.rel (%p319) target = $region64
        $region63: #{tpu_custom_call.1} parent=47 // pred_region
          %323 = dma.done [#allocation10], 160
        $region64: #{tpu_custom_call.1} parent=47 // pred_fallthru
          _
        %s324 = sand.u32 %s35, 1
        %s325 = scalar_lea.sflag [#allocation4], %s324
        %s326 = sand.u32 %s35, 1
        %s327 = smul.addr %s326, 256
        %s328 = scalar_lea.vmem [#allocation3], %s327
        %p329 = pneg %p48
        %p330 = pneg %p45
        %p331 = pneg %p69
        %p332 = pneg %p66
        %p333 = pneg %p90
        %p334 = pneg %p87
        %p335 = pneg %p111
        %p336 = pneg %p108
        %p337 = pneg %p132
        %p338 = pneg %p129
        %p339 = pneg %p153
        %p340 = pneg %p150
        %p341 = pneg %p174
        %p342 = pneg %p171
        %p343 = pneg %p200
        %p344 = pneg %p197
        %s345 = sand.u32 %s187, 1
        %s346 = scalar_lea.sflag [#allocation5], %s345
        %s347 = sand.u32 %s187, 1
        %s348 = smul.addr %s347, 4
        %s349 = scalar_lea.vmem [#allocation11], %s348
        %s350 = smul.u32 64, %s27
        %v351 = vld [vmem:[%s303] sm:$0xf]
        %v352 = vld [vmem:[%s303 + $0x4] sm:$0xf]
        %v353 = vld [vmem:[%s303 + $0x8] sm:$0xf]
        %v354 = vld [vmem:[%s303 + $0xc] sm:$0xf]
        %v355 = vld [vmem:[%s303 + $0x10] sm:$0xf]
        %v356 = vld [vmem:[%s303 + $0x14] sm:$0xf]
        %v357 = vld [vmem:[%s303 + $0x18] sm:$0xf]
        %v358 = vld [vmem:[%s303 + $0x1c] sm:$0xf]
        %v359 = vld [vmem:[%s303 + $0x20] sm:$0xf]
        %v360 = vld [vmem:[%s303 + $0x24] sm:$0xf]
        %v361 = vld [vmem:[%s303 + $0x28] sm:$0xf]
        %v362 = vld [vmem:[%s303 + $0x2c] sm:$0xf]
        %v363 = vld [vmem:[%s303 + $0x30] sm:$0xf]
        %v364 = vld [vmem:[%s303 + $0x34] sm:$0xf]
        %v365 = vld [vmem:[%s303 + $0x38] sm:$0xf]
        %v366 = vld [vmem:[%s303 + $0x3c] sm:$0xf]
        %v367 = vld [vmem:[%s303 + $0x40] sm:$0xf]
        %v368 = vld [vmem:[%s303 + $0x44] sm:$0xf]
        %v369 = vld [vmem:[%s303 + $0x48] sm:$0xf]
        %v370 = vld [vmem:[%s303 + $0x4c] sm:$0xf]
        %v371 = vld [vmem:[%s303 + $0x50] sm:$0xf]
        %v372 = vld [vmem:[%s303 + $0x54] sm:$0xf]
        %v373 = vld [vmem:[%s303 + $0x58] sm:$0xf]
        %v374 = vld [vmem:[%s303 + $0x5c] sm:$0xf]
        %v375 = vld [vmem:[%s303 + $0x60] sm:$0xf]
        %v376 = vld [vmem:[%s303 + $0x64] sm:$0xf]
        %v377 = vld [vmem:[%s303 + $0x68] sm:$0xf]
        %v378 = vld [vmem:[%s303 + $0x6c] sm:$0xf]
        %v379 = vld [vmem:[%s303 + $0x70] sm:$0xf]
        %v380 = vld [vmem:[%s303 + $0x74] sm:$0xf]
        %v381 = vld [vmem:[%s303 + $0x78] sm:$0xf]
        %v382 = vld [vmem:[%s303 + $0x7c] sm:$0xf]
        %v383 = vld [vmem:[%s303 + $0x80] sm:$0xf]
        %v384 = vld [vmem:[%s303 + $0x84] sm:$0xf]
        %v385 = vld [vmem:[%s303 + $0x88] sm:$0xf]
        %v386 = vld [vmem:[%s303 + $0x8c] sm:$0xf]
        %v387 = vld [vmem:[%s303 + $0x90] sm:$0xf]
        %v388 = vld [vmem:[%s303 + $0x94] sm:$0xf]
        %v389 = vld [vmem:[%s303 + $0x98] sm:$0xf]
        %v390 = vld [vmem:[%s303 + $0x9c] sm:$0xf]
        %v391 = vld [vmem:[%s303 + $0xa0] sm:$0xf]
        %v392 = vld [vmem:[%s303 + $0xa4] sm:$0xf]
        %v393 = vld [vmem:[%s303 + $0xa8] sm:$0xf]
        %v394 = vld [vmem:[%s303 + $0xac] sm:$0xf]
        %v395 = vld [vmem:[%s303 + $0xb0] sm:$0xf]
        %v396 = vld [vmem:[%s303 + $0xb4] sm:$0xf]
        %v397 = vld [vmem:[%s303 + $0xb8] sm:$0xf]
        %v398 = vld [vmem:[%s303 + $0xbc] sm:$0xf]
        %v399 = vld [vmem:[%s303 + $0xc0] sm:$0xf]
        %v400 = vld [vmem:[%s303 + $0xc4] sm:$0xf]
        %v401 = vld [vmem:[%s303 + $0xc8] sm:$0xf]
        %v402 = vld [vmem:[%s303 + $0xcc] sm:$0xf]
        %v403 = vld [vmem:[%s303 + $0xd0] sm:$0xf]
        %v404 = vld [vmem:[%s303 + $0xd4] sm:$0xf]
        %v405 = vld [vmem:[%s303 + $0xd8] sm:$0xf]
        %v406 = vld [vmem:[%s303 + $0xdc] sm:$0xf]
        %v407 = vld [vmem:[%s303 + $0xe0] sm:$0xf]
        %v408 = vld [vmem:[%s303 + $0xe4] sm:$0xf]
        %v409 = vld [vmem:[%s303 + $0xe8] sm:$0xf]
        %v410 = vld [vmem:[%s303 + $0xec] sm:$0xf]
        %v411 = vld [vmem:[%s303 + $0xf0] sm:$0xf]
        %v412 = vld [vmem:[%s303 + $0xf4] sm:$0xf]
        %v413 = vld [vmem:[%s303 + $0xf8] sm:$0xf]
        %v414 = vld [vmem:[%s303 + $0xfc] sm:$0xf]
        %v415 = vld [vmem:[#allocation6] sm:$0xff]
        %v416 = vld [vmem:[#allocation6 + $0x8] sm:$0xff]
        %v417 = vld [vmem:[#allocation6 + $0x10] sm:$0xff]
        %v418 = vld [vmem:[#allocation6 + $0x18] sm:$0xff]
        %v419 = vld [vmem:[#allocation6 + $0x20] sm:$0xff]
        %v420 = vld [vmem:[#allocation6 + $0x28] sm:$0xff]
        %v421 = vld [vmem:[#allocation6 + $0x30] sm:$0xff]
        %v422 = vld [vmem:[#allocation6 + $0x38] sm:$0xff]
        %v423 = vld [vmem:[#allocation6 + $0x40] sm:$0xff]
        %v424 = vld [vmem:[#allocation6 + $0x48] sm:$0xff]
        %v425 = vld [vmem:[#allocation6 + $0x50] sm:$0xff]
        %v426 = vld [vmem:[#allocation6 + $0x58] sm:$0xff]
        %v427 = vld [vmem:[#allocation6 + $0x60] sm:$0xff]
        %v428 = vld [vmem:[#allocation6 + $0x68] sm:$0xff]
        %v429 = vld [vmem:[#allocation6 + $0x70] sm:$0xff]
        %v430 = vld [vmem:[#allocation6 + $0x78] sm:$0xff]
        %v431 = vld [vmem:[%s2] sm:$0x3]
        %v433 = vperm.slane %v431, 0
        %v434 = vperm.slane %v431, 1
        %v501 = vunpack.c.l.b16 %v351
        %v502 = vunpack.c.l.b16 %v352
        %v503 = vunpack.c.l.b16 %v353
        %v504 = vunpack.c.l.b16 %v354
        %v505 = vunpack.c.l.b16 %v355
        %v506 = vunpack.c.l.b16 %v356
        %v507 = vunpack.c.l.b16 %v357
        %v508 = vunpack.c.l.b16 %v358
        %v509 = vunpack.c.l.b16 %v359
        %v510 = vunpack.c.l.b16 %v360
        %v511 = vunpack.c.l.b16 %v361
        %v512 = vunpack.c.l.b16 %v362
        %v513 = vunpack.c.l.b16 %v363
        %v514 = vunpack.c.l.b16 %v364
        %v515 = vunpack.c.l.b16 %v365
        %v516 = vunpack.c.l.b16 %v366
        %v517 = vunpack.c.l.b16 %v367
        %v518 = vunpack.c.l.b16 %v368
        %v519 = vunpack.c.l.b16 %v369
        %v520 = vunpack.c.l.b16 %v370
        %v521 = vunpack.c.l.b16 %v371
        %v522 = vunpack.c.l.b16 %v372
        %v523 = vunpack.c.l.b16 %v373
        %v524 = vunpack.c.l.b16 %v374
        %v525 = vunpack.c.l.b16 %v375
        %v526 = vunpack.c.l.b16 %v376
        %v527 = vunpack.c.l.b16 %v377
        %v528 = vunpack.c.l.b16 %v378
        %v529 = vunpack.c.l.b16 %v379
        %v530 = vunpack.c.l.b16 %v380
        %v531 = vunpack.c.l.b16 %v381
        %v532 = vunpack.c.l.b16 %v382
        %v533 = vunpack.c.l.b16 %v383
        %v534 = vunpack.c.l.b16 %v384
        %v535 = vunpack.c.l.b16 %v385
        %v536 = vunpack.c.l.b16 %v386
        %v537 = vunpack.c.l.b16 %v387
        %v538 = vunpack.c.l.b16 %v388
        %v539 = vunpack.c.l.b16 %v389
        %v540 = vunpack.c.l.b16 %v390
        %v541 = vunpack.c.l.b16 %v391
        %v542 = vunpack.c.l.b16 %v392
        %v543 = vunpack.c.l.b16 %v393
        %v544 = vunpack.c.l.b16 %v394
        %v545 = vunpack.c.l.b16 %v395
        %v546 = vunpack.c.l.b16 %v396
        %v547 = vunpack.c.l.b16 %v397
        %v548 = vunpack.c.l.b16 %v398
        %v549 = vunpack.c.l.b16 %v399
        %v550 = vunpack.c.l.b16 %v400
        %v551 = vunpack.c.l.b16 %v401
        %v552 = vunpack.c.l.b16 %v402
        %v553 = vunpack.c.l.b16 %v403
        %v554 = vunpack.c.l.b16 %v404
        %v555 = vunpack.c.l.b16 %v405
        %v556 = vunpack.c.l.b16 %v406
        %v557 = vunpack.c.l.b16 %v407
        %v558 = vunpack.c.l.b16 %v408
        %v559 = vunpack.c.l.b16 %v409
        %v560 = vunpack.c.l.b16 %v410
        %v561 = vunpack.c.l.b16 %v411
        %v562 = vunpack.c.l.b16 %v412
        %v563 = vunpack.c.l.b16 %v413
        %v564 = vunpack.c.l.b16 %v414
        %v565 = vpack.c.b16 %v502, %v501
        %v566 = vpack.c.b16 %v504, %v503
        %v567 = vpack.c.b16 %v506, %v505
        %v568 = vpack.c.b16 %v508, %v507
        %v569 = vpack.c.b16 %v510, %v509
        %v570 = vpack.c.b16 %v512, %v511
        %v571 = vpack.c.b16 %v514, %v513
        %v572 = vpack.c.b16 %v516, %v515
        %v573 = vpack.c.b16 %v518, %v517
        %v574 = vpack.c.b16 %v520, %v519
        %v575 = vpack.c.b16 %v522, %v521
        %v576 = vpack.c.b16 %v524, %v523
        %v577 = vpack.c.b16 %v526, %v525
        %v578 = vpack.c.b16 %v528, %v527
        %v579 = vpack.c.b16 %v530, %v529
        %v580 = vpack.c.b16 %v532, %v531
        %v581 = vpack.c.b16 %v534, %v533
        %v582 = vpack.c.b16 %v536, %v535
        %v583 = vpack.c.b16 %v538, %v537
        %v584 = vpack.c.b16 %v540, %v539
        %v585 = vpack.c.b16 %v542, %v541
        %v586 = vpack.c.b16 %v544, %v543
        %v587 = vpack.c.b16 %v546, %v545
        %v588 = vpack.c.b16 %v548, %v547
        %v589 = vpack.c.b16 %v550, %v549
        %v590 = vpack.c.b16 %v552, %v551
        %v591 = vpack.c.b16 %v554, %v553
        %v592 = vpack.c.b16 %v556, %v555
        %v593 = vpack.c.b16 %v558, %v557
        %v594 = vpack.c.b16 %v560, %v559
        %v595 = vpack.c.b16 %v562, %v561
        %v596 = vpack.c.b16 %v564, %v563
        %v645 = vunpack.c.l.b16 %v415
        %v646 = vunpack.c.h.b16 %v415
        %v647 = vunpack.c.l.b16 %v416
        %v648 = vunpack.c.h.b16 %v416
        %v649 = vunpack.c.l.b16 %v417
        %v650 = vunpack.c.h.b16 %v417
        %v651 = vunpack.c.l.b16 %v418
        %v652 = vunpack.c.h.b16 %v418
        %v653 = vunpack.c.l.b16 %v419
        %v654 = vunpack.c.h.b16 %v419
        %v655 = vunpack.c.l.b16 %v420
        %v656 = vunpack.c.h.b16 %v420
        %v657 = vunpack.c.l.b16 %v421
        %v658 = vunpack.c.h.b16 %v421
        %v659 = vunpack.c.l.b16 %v422
        %v660 = vunpack.c.h.b16 %v422
        %v661 = vunpack.c.l.b16 %v423
        %v662 = vunpack.c.h.b16 %v423
        %v663 = vunpack.c.l.b16 %v424
        %v664 = vunpack.c.h.b16 %v424
        %v665 = vunpack.c.l.b16 %v425
        %v666 = vunpack.c.h.b16 %v425
        %v667 = vunpack.c.l.b16 %v426
        %v668 = vunpack.c.h.b16 %v426
        %v669 = vunpack.c.l.b16 %v427
        %v670 = vunpack.c.h.b16 %v427
        %v671 = vunpack.c.l.b16 %v428
        %v672 = vunpack.c.h.b16 %v428
        %v673 = vunpack.c.l.b16 %v429
        %v674 = vunpack.c.h.b16 %v429
        %v675 = vunpack.c.l.b16 %v430
        %v676 = vunpack.c.h.b16 %v430
        %v677 = vpack.c.b16 %v647, %v645
        %v678 = vpack.c.b16 %v648, %v646
        %v679 = vpack.c.b16 %v651, %v649
        %v680 = vpack.c.b16 %v652, %v650
        %v681 = vpack.c.b16 %v655, %v653
        %v682 = vpack.c.b16 %v656, %v654
        %v683 = vpack.c.b16 %v659, %v657
        %v684 = vpack.c.b16 %v660, %v658
        %v685 = vpack.c.b16 %v663, %v661
        %v686 = vpack.c.b16 %v664, %v662
        %v687 = vpack.c.b16 %v667, %v665
        %v688 = vpack.c.b16 %v668, %v666
        %v689 = vpack.c.b16 %v671, %v669
        %v690 = vpack.c.b16 %v672, %v670
        %v691 = vpack.c.b16 %v675, %v673
        %v692 = vpack.c.b16 %v676, %v674
        %709 = vmatpush.bf16.msra.mxu0 %v691
        %710 = vmatpush.bf16.msra.mxu0 %v689
        %711 = vmatpush.bf16.msra.mxu0 %v687
        %712 = vmatpush.bf16.msra.mxu0 %v685
        %713 = vmatpush.bf16.msra.mxu0 %v683
        %714 = vmatpush.bf16.msra.mxu0 %v681
        %715 = vmatpush.bf16.msra.mxu0 %v679
        %716 = vmatpush.bf16.msra.mxu0 %v677
        %717 = vmatmul.bf16.gmra.mxu0 %v565
        %v718 = vpop.f32.mrf.mxu0
        %v719 = vadd.f32 %v433, %v718
        %v720 = vpop.f32.mrf.mxu0
        %v721 = vadd.f32 %v433, %v720
        %722 = vmatmul.bf16.gmra.mxu0 %v566
        %v723 = vpop.f32.mrf.mxu0
        %v724 = vadd.f32 %v433, %v723
        %v725 = vpop.f32.mrf.mxu0
        %v726 = vadd.f32 %v433, %v725
        %727 = vmatmul.bf16.gmra.mxu0 %v567
        %v728 = vpop.f32.mrf.mxu0
        %v729 = vadd.f32 %v433, %v728
        %v730 = vpop.f32.mrf.mxu0
        %v731 = vadd.f32 %v433, %v730
        %732 = vmatmul.bf16.gmra.mxu0 %v568
        %v733 = vpop.f32.mrf.mxu0
        %v734 = vadd.f32 %v433, %v733
        %v735 = vpop.f32.mrf.mxu0
        %v736 = vadd.f32 %v433, %v735
        %737 = vmatmul.bf16.gmra.mxu0 %v569
        %v738 = vpop.f32.mrf.mxu0
        %v739 = vadd.f32 %v433, %v738
        %v740 = vpop.f32.mrf.mxu0
        %v741 = vadd.f32 %v433, %v740
        %742 = vmatmul.bf16.gmra.mxu0 %v570
        %v743 = vpop.f32.mrf.mxu0
        %v744 = vadd.f32 %v433, %v743
        %v745 = vpop.f32.mrf.mxu0
        %v746 = vadd.f32 %v433, %v745
        %747 = vmatmul.bf16.gmra.mxu0 %v571
        %v748 = vpop.f32.mrf.mxu0
        %v749 = vadd.f32 %v433, %v748
        %v750 = vpop.f32.mrf.mxu0
        %v751 = vadd.f32 %v433, %v750
        %752 = vmatmul.bf16.gmra.mxu0 %v572
        %v753 = vpop.f32.mrf.mxu0
        %v754 = vadd.f32 %v433, %v753
        %v755 = vpop.f32.mrf.mxu0
        %v756 = vadd.f32 %v433, %v755
        %757 = vmatmul.bf16.gmra.mxu0 %v573
        %v758 = vpop.f32.mrf.mxu0
        %v759 = vadd.f32 %v433, %v758
        %v760 = vpop.f32.mrf.mxu0
        %v761 = vadd.f32 %v433, %v760
        %762 = vmatmul.bf16.gmra.mxu0 %v574
        %v763 = vpop.f32.mrf.mxu0
        %v764 = vadd.f32 %v433, %v763
        %v765 = vpop.f32.mrf.mxu0
        %v766 = vadd.f32 %v433, %v765
        %767 = vmatmul.bf16.gmra.mxu0 %v575
        %v768 = vpop.f32.mrf.mxu0
        %v769 = vadd.f32 %v433, %v768
        %v770 = vpop.f32.mrf.mxu0
        %v771 = vadd.f32 %v433, %v770
        %772 = vmatmul.bf16.gmra.mxu0 %v576
        %v773 = vpop.f32.mrf.mxu0
        %v774 = vadd.f32 %v433, %v773
        %v775 = vpop.f32.mrf.mxu0
        %v776 = vadd.f32 %v433, %v775
        %777 = vmatmul.bf16.gmra.mxu0 %v577
        %v778 = vpop.f32.mrf.mxu0
        %v779 = vadd.f32 %v433, %v778
        %v780 = vpop.f32.mrf.mxu0
        %v781 = vadd.f32 %v433, %v780
        %782 = vmatmul.bf16.gmra.mxu0 %v578
        %v783 = vpop.f32.mrf.mxu0
        %v784 = vadd.f32 %v433, %v783
        %v785 = vpop.f32.mrf.mxu0
        %v786 = vadd.f32 %v433, %v785
        %787 = vmatmul.bf16.gmra.mxu0 %v579
        %v788 = vpop.f32.mrf.mxu0
        %v789 = vadd.f32 %v433, %v788
        %v790 = vpop.f32.mrf.mxu0
        %v791 = vadd.f32 %v433, %v790
        %792 = vmatmul.bf16.gmra.mxu0 %v580
        %v793 = vpop.f32.mrf.mxu0
        %v794 = vadd.f32 %v433, %v793
        %v795 = vpop.f32.mrf.mxu0
        %v796 = vadd.f32 %v433, %v795
        %797 = vmatmul.bf16.gmra.mxu0 %v581
        %v798 = vpop.f32.mrf.mxu0
        %v799 = vadd.f32 %v433, %v798
        %v800 = vpop.f32.mrf.mxu0
        %v801 = vadd.f32 %v433, %v800
        %802 = vmatmul.bf16.gmra.mxu0 %v582
        %v803 = vpop.f32.mrf.mxu0
        %v804 = vadd.f32 %v433, %v803
        %v805 = vpop.f32.mrf.mxu0
        %v806 = vadd.f32 %v433, %v805
        %807 = vmatmul.bf16.gmra.mxu0 %v583
        %v808 = vpop.f32.mrf.mxu0
        %v809 = vadd.f32 %v433, %v808
        %v810 = vpop.f32.mrf.mxu0
        %v811 = vadd.f32 %v433, %v810
        %812 = vmatmul.bf16.gmra.mxu0 %v584
        %v813 = vpop.f32.mrf.mxu0
        %v814 = vadd.f32 %v433, %v813
        %v815 = vpop.f32.mrf.mxu0
        %v816 = vadd.f32 %v433, %v815
        %817 = vmatmul.bf16.gmra.mxu0 %v585
        %v818 = vpop.f32.mrf.mxu0
        %v819 = vadd.f32 %v433, %v818
        %v820 = vpop.f32.mrf.mxu0
        %v821 = vadd.f32 %v433, %v820
        %822 = vmatmul.bf16.gmra.mxu0 %v586
        %v823 = vpop.f32.mrf.mxu0
        %v824 = vadd.f32 %v433, %v823
        %v825 = vpop.f32.mrf.mxu0
        %v826 = vadd.f32 %v433, %v825
        %827 = vmatmul.bf16.gmra.mxu0 %v587
        %v828 = vpop.f32.mrf.mxu0
        %v829 = vadd.f32 %v433, %v828
        %v830 = vpop.f32.mrf.mxu0
        %v831 = vadd.f32 %v433, %v830
        %832 = vmatmul.bf16.gmra.mxu0 %v588
        %v833 = vpop.f32.mrf.mxu0
        %v834 = vadd.f32 %v433, %v833
        %v835 = vpop.f32.mrf.mxu0
        %v836 = vadd.f32 %v433, %v835
        %837 = vmatmul.bf16.gmra.mxu0 %v589
        %v838 = vpop.f32.mrf.mxu0
        %v839 = vadd.f32 %v433, %v838
        %v840 = vpop.f32.mrf.mxu0
        %v841 = vadd.f32 %v433, %v840
        %842 = vmatmul.bf16.gmra.mxu0 %v590
        %v843 = vpop.f32.mrf.mxu0
        %v844 = vadd.f32 %v433, %v843
        %v845 = vpop.f32.mrf.mxu0
        %v846 = vadd.f32 %v433, %v845
        %847 = vmatmul.bf16.gmra.mxu0 %v591
        %v848 = vpop.f32.mrf.mxu0
        %v849 = vadd.f32 %v433, %v848
        %v850 = vpop.f32.mrf.mxu0
        %v851 = vadd.f32 %v433, %v850
        %852 = vmatmul.bf16.gmra.mxu0 %v592
        %v853 = vpop.f32.mrf.mxu0
        %v854 = vadd.f32 %v433, %v853
        %v855 = vpop.f32.mrf.mxu0
        %v856 = vadd.f32 %v433, %v855
        %857 = vmatmul.bf16.gmra.mxu0 %v593
        %v858 = vpop.f32.mrf.mxu0
        %v859 = vadd.f32 %v433, %v858
        %v860 = vpop.f32.mrf.mxu0
        %v861 = vadd.f32 %v433, %v860
        %862 = vmatmul.bf16.gmra.mxu0 %v594
        %v863 = vpop.f32.mrf.mxu0
        %v864 = vadd.f32 %v433, %v863
        %v865 = vpop.f32.mrf.mxu0
        %v866 = vadd.f32 %v433, %v865
        %867 = vmatmul.bf16.gmra.mxu0 %v595
        %v868 = vpop.f32.mrf.mxu0
        %v869 = vadd.f32 %v433, %v868
        %v870 = vpop.f32.mrf.mxu0
        %v871 = vadd.f32 %v433, %v870
        %872 = vmatmul.bf16.gmra.mxu0 %v596
        %v873 = vpop.f32.mrf.mxu0
        %v874 = vadd.f32 %v433, %v873
        %v875 = vpop.f32.mrf.mxu0
        %v876 = vadd.f32 %v433, %v875
        %877 = vdwg.mxu0
        %878 = vmatpush.bf16.msra.mxu0 %v692
        %879 = vmatpush.bf16.msra.mxu0 %v690
        %880 = vmatpush.bf16.msra.mxu0 %v688
        %881 = vmatpush.bf16.msra.mxu0 %v686
        %882 = vmatpush.bf16.msra.mxu0 %v684
        %883 = vmatpush.bf16.msra.mxu0 %v682
        %884 = vmatpush.bf16.msra.mxu0 %v680
        %885 = vmatpush.bf16.msra.mxu0 %v678
        %886 = vmatmul.bf16.gmra.mxu0 %v565
        %v887 = vpop.f32.mrf.mxu0
        %v888 = vadd.f32 %v434, %v887
        %v889 = vpop.f32.mrf.mxu0
        %v890 = vadd.f32 %v434, %v889
        %891 = vmatmul.bf16.gmra.mxu0 %v566
        %v892 = vpop.f32.mrf.mxu0
        %v893 = vadd.f32 %v434, %v892
        %v894 = vpop.f32.mrf.mxu0
        %v895 = vadd.f32 %v434, %v894
        %896 = vmatmul.bf16.gmra.mxu0 %v567
        %v897 = vpop.f32.mrf.mxu0
        %v898 = vadd.f32 %v434, %v897
        %v899 = vpop.f32.mrf.mxu0
        %v900 = vadd.f32 %v434, %v899
        %901 = vmatmul.bf16.gmra.mxu0 %v568
        %v902 = vpop.f32.mrf.mxu0
        %v903 = vadd.f32 %v434, %v902
        %v904 = vpop.f32.mrf.mxu0
        %v905 = vadd.f32 %v434, %v904
        %906 = vmatmul.bf16.gmra.mxu0 %v569
        %v907 = vpop.f32.mrf.mxu0
        %v908 = vadd.f32 %v434, %v907
        %v909 = vpop.f32.mrf.mxu0
        %v910 = vadd.f32 %v434, %v909
        %911 = vmatmul.bf16.gmra.mxu0 %v570
        %v912 = vpop.f32.mrf.mxu0
        %v913 = vadd.f32 %v434, %v912
        %v914 = vpop.f32.mrf.mxu0
        %v915 = vadd.f32 %v434, %v914
        %916 = vmatmul.bf16.gmra.mxu0 %v571
        %v917 = vpop.f32.mrf.mxu0
        %v918 = vadd.f32 %v434, %v917
        %v919 = vpop.f32.mrf.mxu0
        %v920 = vadd.f32 %v434, %v919
        %921 = vmatmul.bf16.gmra.mxu0 %v572
        %v922 = vpop.f32.mrf.mxu0
        %v923 = vadd.f32 %v434, %v922
        %v924 = vpop.f32.mrf.mxu0
        %v925 = vadd.f32 %v434, %v924
        %926 = vmatmul.bf16.gmra.mxu0 %v573
        %v927 = vpop.f32.mrf.mxu0
        %v928 = vadd.f32 %v434, %v927
        %v929 = vpop.f32.mrf.mxu0
        %v930 = vadd.f32 %v434, %v929
        %931 = vmatmul.bf16.gmra.mxu0 %v574
        %v932 = vpop.f32.mrf.mxu0
        %v933 = vadd.f32 %v434, %v932
        %v934 = vpop.f32.mrf.mxu0
        %v935 = vadd.f32 %v434, %v934
        %936 = vmatmul.bf16.gmra.mxu0 %v575
        %v937 = vpop.f32.mrf.mxu0
        %v938 = vadd.f32 %v434, %v937
        %v939 = vpop.f32.mrf.mxu0
        %v940 = vadd.f32 %v434, %v939
        %941 = vmatmul.bf16.gmra.mxu0 %v576
        %v942 = vpop.f32.mrf.mxu0
        %v943 = vadd.f32 %v434, %v942
        %v944 = vpop.f32.mrf.mxu0
        %v945 = vadd.f32 %v434, %v944
        %946 = vmatmul.bf16.gmra.mxu0 %v577
        %v947 = vpop.f32.mrf.mxu0
        %v948 = vadd.f32 %v434, %v947
        %v949 = vpop.f32.mrf.mxu0
        %v950 = vadd.f32 %v434, %v949
        %951 = vmatmul.bf16.gmra.mxu0 %v578
        %v952 = vpop.f32.mrf.mxu0
        %v953 = vadd.f32 %v434, %v952
        %v954 = vpop.f32.mrf.mxu0
        %v955 = vadd.f32 %v434, %v954
        %956 = vmatmul.bf16.gmra.mxu0 %v579
        %v957 = vpop.f32.mrf.mxu0
        %v958 = vadd.f32 %v434, %v957
        %v959 = vpop.f32.mrf.mxu0
        %v960 = vadd.f32 %v434, %v959
        %961 = vmatmul.bf16.gmra.mxu0 %v580
        %v962 = vpop.f32.mrf.mxu0
        %v963 = vadd.f32 %v434, %v962
        %v964 = vpop.f32.mrf.mxu0
        %v965 = vadd.f32 %v434, %v964
        %966 = vmatmul.bf16.gmra.mxu0 %v581
        %v967 = vpop.f32.mrf.mxu0
        %v968 = vadd.f32 %v434, %v967
        %v969 = vpop.f32.mrf.mxu0
        %v970 = vadd.f32 %v434, %v969
        %971 = vmatmul.bf16.gmra.mxu0 %v582
        %v972 = vpop.f32.mrf.mxu0
        %v973 = vadd.f32 %v434, %v972
        %v974 = vpop.f32.mrf.mxu0
        %v975 = vadd.f32 %v434, %v974
        %976 = vmatmul.bf16.gmra.mxu0 %v583
        %v977 = vpop.f32.mrf.mxu0
        %v978 = vadd.f32 %v434, %v977
        %v979 = vpop.f32.mrf.mxu0
        %v980 = vadd.f32 %v434, %v979
        %981 = vmatmul.bf16.gmra.mxu0 %v584
        %v982 = vpop.f32.mrf.mxu0
        %v983 = vadd.f32 %v434, %v982
        %v984 = vpop.f32.mrf.mxu0
        %v985 = vadd.f32 %v434, %v984
        %986 = vmatmul.bf16.gmra.mxu0 %v585
        %v987 = vpop.f32.mrf.mxu0
        %v988 = vadd.f32 %v434, %v987
        %v989 = vpop.f32.mrf.mxu0
        %v990 = vadd.f32 %v434, %v989
        %991 = vmatmul.bf16.gmra.mxu0 %v586
        %v992 = vpop.f32.mrf.mxu0
        %v993 = vadd.f32 %v434, %v992
        %v994 = vpop.f32.mrf.mxu0
        %v995 = vadd.f32 %v434, %v994
        %996 = vmatmul.bf16.gmra.mxu0 %v587
        %v997 = vpop.f32.mrf.mxu0
        %v998 = vadd.f32 %v434, %v997
        %v999 = vpop.f32.mrf.mxu0
        %v1000 = vadd.f32 %v434, %v999
        %1001 = vmatmul.bf16.gmra.mxu0 %v588
        %v1002 = vpop.f32.mrf.mxu0
        %v1003 = vadd.f32 %v434, %v1002
        %v1004 = vpop.f32.mrf.mxu0
        %v1005 = vadd.f32 %v434, %v1004
        %1006 = vmatmul.bf16.gmra.mxu0 %v589
        %v1007 = vpop.f32.mrf.mxu0
        %v1008 = vadd.f32 %v434, %v1007
        %v1009 = vpop.f32.mrf.mxu0
        %v1010 = vadd.f32 %v434, %v1009
        %1011 = vmatmul.bf16.gmra.mxu0 %v590
        %v1012 = vpop.f32.mrf.mxu0
        %v1013 = vadd.f32 %v434, %v1012
        %v1014 = vpop.f32.mrf.mxu0
        %v1015 = vadd.f32 %v434, %v1014
        %1016 = vmatmul.bf16.gmra.mxu0 %v591
        %v1017 = vpop.f32.mrf.mxu0
        %v1018 = vadd.f32 %v434, %v1017
        %v1019 = vpop.f32.mrf.mxu0
        %v1020 = vadd.f32 %v434, %v1019
        %1021 = vmatmul.bf16.gmra.mxu0 %v592
        %v1022 = vpop.f32.mrf.mxu0
        %v1023 = vadd.f32 %v434, %v1022
        %v1024 = vpop.f32.mrf.mxu0
        %v1025 = vadd.f32 %v434, %v1024
        %1026 = vmatmul.bf16.gmra.mxu0 %v593
        %v1027 = vpop.f32.mrf.mxu0
        %v1028 = vadd.f32 %v434, %v1027
        %v1029 = vpop.f32.mrf.mxu0
        %v1030 = vadd.f32 %v434, %v1029
        %1031 = vmatmul.bf16.gmra.mxu0 %v594
        %v1032 = vpop.f32.mrf.mxu0
        %v1033 = vadd.f32 %v434, %v1032
        %v1034 = vpop.f32.mrf.mxu0
        %v1035 = vadd.f32 %v434, %v1034
        %1036 = vmatmul.bf16.gmra.mxu0 %v595
        %v1037 = vpop.f32.mrf.mxu0
        %v1038 = vadd.f32 %v434, %v1037
        %v1039 = vpop.f32.mrf.mxu0
        %v1040 = vadd.f32 %v434, %v1039
        %1041 = vmatmul.bf16.gmra.mxu0 %v596
        %v1042 = vpop.f32.mrf.mxu0
        %v1043 = vadd.f32 %v434, %v1042
        %v1044 = vpop.f32.mrf.mxu0
        %v1045 = vadd.f32 %v434, %v1044
        %1046 = vdwg.mxu0
        %v1047 = vmax.f32 %v719, 0.0
        %v1048 = vmax.f32 %v888, 0.0
        %v1049 = vmax.f32 %v721, 0.0
        %v1050 = vmax.f32 %v890, 0.0
        %v1051 = vmax.f32 %v724, 0.0
        %v1052 = vmax.f32 %v893, 0.0
        %v1053 = vmax.f32 %v726, 0.0
        %v1054 = vmax.f32 %v895, 0.0
        %v1055 = vmax.f32 %v729, 0.0
        %v1056 = vmax.f32 %v898, 0.0
        %v1057 = vmax.f32 %v731, 0.0
        %v1058 = vmax.f32 %v900, 0.0
        %v1059 = vmax.f32 %v734, 0.0
        %v1060 = vmax.f32 %v903, 0.0
        %v1061 = vmax.f32 %v736, 0.0
        %v1062 = vmax.f32 %v905, 0.0
        %v1063 = vmax.f32 %v739, 0.0
        %v1064 = vmax.f32 %v908, 0.0
        %v1065 = vmax.f32 %v741, 0.0
        %v1066 = vmax.f32 %v910, 0.0
        %v1067 = vmax.f32 %v744, 0.0
        %v1068 = vmax.f32 %v913, 0.0
        %v1069 = vmax.f32 %v746, 0.0
        %v1070 = vmax.f32 %v915, 0.0
        %v1071 = vmax.f32 %v749, 0.0
        %v1072 = vmax.f32 %v918, 0.0
        %v1073 = vmax.f32 %v751, 0.0
        %v1074 = vmax.f32 %v920, 0.0
        %v1075 = vmax.f32 %v754, 0.0
        %v1076 = vmax.f32 %v923, 0.0
        %v1077 = vmax.f32 %v756, 0.0
        %v1078 = vmax.f32 %v925, 0.0
        %v1079 = vmax.f32 %v759, 0.0
        %v1080 = vmax.f32 %v928, 0.0
        %v1081 = vmax.f32 %v761, 0.0
        %v1082 = vmax.f32 %v930, 0.0
        %v1083 = vmax.f32 %v764, 0.0
        %v1084 = vmax.f32 %v933, 0.0
        %v1085 = vmax.f32 %v766, 0.0
        %v1086 = vmax.f32 %v935, 0.0
        %v1087 = vmax.f32 %v769, 0.0
        %v1088 = vmax.f32 %v938, 0.0
        %v1089 = vmax.f32 %v771, 0.0
        %v1090 = vmax.f32 %v940, 0.0
        %v1091 = vmax.f32 %v774, 0.0
        %v1092 = vmax.f32 %v943, 0.0
        %v1093 = vmax.f32 %v776, 0.0
        %v1094 = vmax.f32 %v945, 0.0
        %v1095 = vmax.f32 %v779, 0.0
        %v1096 = vmax.f32 %v948, 0.0
        %v1097 = vmax.f32 %v781, 0.0
        %v1098 = vmax.f32 %v950, 0.0
        %v1099 = vmax.f32 %v784, 0.0
        %v1100 = vmax.f32 %v953, 0.0
        %v1101 = vmax.f32 %v786, 0.0
        %v1102 = vmax.f32 %v955, 0.0
        %v1103 = vmax.f32 %v789, 0.0
        %v1104 = vmax.f32 %v958, 0.0
        %v1105 = vmax.f32 %v791, 0.0
        %v1106 = vmax.f32 %v960, 0.0
        %v1107 = vmax.f32 %v794, 0.0
        %v1108 = vmax.f32 %v963, 0.0
        %v1109 = vmax.f32 %v796, 0.0
        %v1110 = vmax.f32 %v965, 0.0
        %v1111 = vmax.f32 %v799, 0.0
        %v1112 = vmax.f32 %v968, 0.0
        %v1113 = vmax.f32 %v801, 0.0
        %v1114 = vmax.f32 %v970, 0.0
        %v1115 = vmax.f32 %v804, 0.0
        %v1116 = vmax.f32 %v973, 0.0
        %v1117 = vmax.f32 %v806, 0.0
        %v1118 = vmax.f32 %v975, 0.0
        %v1119 = vmax.f32 %v809, 0.0
        %v1120 = vmax.f32 %v978, 0.0
        %v1121 = vmax.f32 %v811, 0.0
        %v1122 = vmax.f32 %v980, 0.0
        %v1123 = vmax.f32 %v814, 0.0
        %v1124 = vmax.f32 %v983, 0.0
        %v1125 = vmax.f32 %v816, 0.0
        %v1126 = vmax.f32 %v985, 0.0
        %v1127 = vmax.f32 %v819, 0.0
        %v1128 = vmax.f32 %v988, 0.0
        %v1129 = vmax.f32 %v821, 0.0
        %v1130 = vmax.f32 %v990, 0.0
        %v1131 = vmax.f32 %v824, 0.0
        %v1132 = vmax.f32 %v993, 0.0
        %v1133 = vmax.f32 %v826, 0.0
        %v1134 = vmax.f32 %v995, 0.0
        %v1135 = vmax.f32 %v829, 0.0
        %v1136 = vmax.f32 %v998, 0.0
        %v1137 = vmax.f32 %v831, 0.0
        %v1138 = vmax.f32 %v1000, 0.0
        %v1139 = vmax.f32 %v834, 0.0
        %v1140 = vmax.f32 %v1003, 0.0
        %v1141 = vmax.f32 %v836, 0.0
        %v1142 = vmax.f32 %v1005, 0.0
        %v1143 = vmax.f32 %v839, 0.0
        %v1144 = vmax.f32 %v1008, 0.0
        %v1145 = vmax.f32 %v841, 0.0
        %v1146 = vmax.f32 %v1010, 0.0
        %v1147 = vmax.f32 %v844, 0.0
        %v1148 = vmax.f32 %v1013, 0.0
        %v1149 = vmax.f32 %v846, 0.0
        %v1150 = vmax.f32 %v1015, 0.0
        %v1151 = vmax.f32 %v849, 0.0
        %v1152 = vmax.f32 %v1018, 0.0
        %v1153 = vmax.f32 %v851, 0.0
        %v1154 = vmax.f32 %v1020, 0.0
        %v1155 = vmax.f32 %v854, 0.0
        %v1156 = vmax.f32 %v1023, 0.0
        %v1157 = vmax.f32 %v856, 0.0
        %v1158 = vmax.f32 %v1025, 0.0
        %v1159 = vmax.f32 %v859, 0.0
        %v1160 = vmax.f32 %v1028, 0.0
        %v1161 = vmax.f32 %v861, 0.0
        %v1162 = vmax.f32 %v1030, 0.0
        %v1163 = vmax.f32 %v864, 0.0
        %v1164 = vmax.f32 %v1033, 0.0
        %v1165 = vmax.f32 %v866, 0.0
        %v1166 = vmax.f32 %v1035, 0.0
        %v1167 = vmax.f32 %v869, 0.0
        %v1168 = vmax.f32 %v1038, 0.0
        %v1169 = vmax.f32 %v871, 0.0
        %v1170 = vmax.f32 %v1040, 0.0
        %v1171 = vmax.f32 %v874, 0.0
        %v1172 = vmax.f32 %v1043, 0.0
        %v1173 = vmax.f32 %v876, 0.0
        %v1174 = vmax.f32 %v1045, 0.0
        %v1175 = vpack.c.bf16 %v1049, %v1047
        %v1176 = vpack.c.bf16 %v1050, %v1048
        %v1177 = vpack.c.bf16 %v1053, %v1051
        %v1178 = vpack.c.bf16 %v1054, %v1052
        %v1179 = vpack.c.bf16 %v1057, %v1055
        %v1180 = vpack.c.bf16 %v1058, %v1056
        %v1181 = vpack.c.bf16 %v1061, %v1059
        %v1182 = vpack.c.bf16 %v1062, %v1060
        %v1183 = vpack.c.bf16 %v1065, %v1063
        %v1184 = vpack.c.bf16 %v1066, %v1064
        %v1185 = vpack.c.bf16 %v1069, %v1067
        %v1186 = vpack.c.bf16 %v1070, %v1068
        %v1187 = vpack.c.bf16 %v1073, %v1071
        %v1188 = vpack.c.bf16 %v1074, %v1072
        %v1189 = vpack.c.bf16 %v1077, %v1075
        %v1190 = vpack.c.bf16 %v1078, %v1076
        %v1191 = vpack.c.bf16 %v1081, %v1079
        %v1192 = vpack.c.bf16 %v1082, %v1080
        %v1193 = vpack.c.bf16 %v1085, %v1083
        %v1194 = vpack.c.bf16 %v1086, %v1084
        %v1195 = vpack.c.bf16 %v1089, %v1087
        %v1196 = vpack.c.bf16 %v1090, %v1088
        %v1197 = vpack.c.bf16 %v1093, %v1091
        %v1198 = vpack.c.bf16 %v1094, %v1092
        %v1199 = vpack.c.bf16 %v1097, %v1095
        %v1200 = vpack.c.bf16 %v1098, %v1096
        %v1201 = vpack.c.bf16 %v1101, %v1099
        %v1202 = vpack.c.bf16 %v1102, %v1100
        %v1203 = vpack.c.bf16 %v1105, %v1103
        %v1204 = vpack.c.bf16 %v1106, %v1104
        %v1205 = vpack.c.bf16 %v1109, %v1107
        %v1206 = vpack.c.bf16 %v1110, %v1108
        %v1207 = vpack.c.bf16 %v1113, %v1111
        %v1208 = vpack.c.bf16 %v1114, %v1112
        %v1209 = vpack.c.bf16 %v1117, %v1115
        %v1210 = vpack.c.bf16 %v1118, %v1116
        %v1211 = vpack.c.bf16 %v1121, %v1119
        %v1212 = vpack.c.bf16 %v1122, %v1120
        %v1213 = vpack.c.bf16 %v1125, %v1123
        %v1214 = vpack.c.bf16 %v1126, %v1124
        %v1215 = vpack.c.bf16 %v1129, %v1127
        %v1216 = vpack.c.bf16 %v1130, %v1128
        %v1217 = vpack.c.bf16 %v1133, %v1131
        %v1218 = vpack.c.bf16 %v1134, %v1132
        %v1219 = vpack.c.bf16 %v1137, %v1135
        %v1220 = vpack.c.bf16 %v1138, %v1136
        %v1221 = vpack.c.bf16 %v1141, %v1139
        %v1222 = vpack.c.bf16 %v1142, %v1140
        %v1223 = vpack.c.bf16 %v1145, %v1143
        %v1224 = vpack.c.bf16 %v1146, %v1144
        %v1225 = vpack.c.bf16 %v1149, %v1147
        %v1226 = vpack.c.bf16 %v1150, %v1148
        %v1227 = vpack.c.bf16 %v1153, %v1151
        %v1228 = vpack.c.bf16 %v1154, %v1152
        %v1229 = vpack.c.bf16 %v1157, %v1155
        %v1230 = vpack.c.bf16 %v1158, %v1156
        %v1231 = vpack.c.bf16 %v1161, %v1159
        %v1232 = vpack.c.bf16 %v1162, %v1160
        %v1233 = vpack.c.bf16 %v1165, %v1163
        %v1234 = vpack.c.bf16 %v1166, %v1164
        %v1235 = vpack.c.bf16 %v1169, %v1167
        %v1236 = vpack.c.bf16 %v1170, %v1168
        %v1237 = vpack.c.bf16 %v1173, %v1171
        %v1238 = vpack.c.bf16 %v1174, %v1172
        %v1239 = vld [vmem:[#allocation8] sm:$0xff]
        %v1240 = vld [vmem:[#allocation8 + $0x8] sm:$0xff]
        %v1241 = vld [vmem:[#allocation8 + $0x10] sm:$0xff]
        %v1242 = vld [vmem:[#allocation8 + $0x18] sm:$0xff]
        %v1243 = vld [vmem:[#allocation8 + $0x20] sm:$0xff]
        %v1244 = vld [vmem:[#allocation8 + $0x28] sm:$0xff]
        %v1245 = vld [vmem:[#allocation8 + $0x30] sm:$0xff]
        %v1246 = vld [vmem:[#allocation8 + $0x38] sm:$0xff]
        %v1247 = vld [vmem:[#allocation8 + $0x40] sm:$0xff]
        %v1248 = vld [vmem:[#allocation8 + $0x48] sm:$0xff]
        %v1249 = vld [vmem:[#allocation8 + $0x50] sm:$0xff]
        %v1250 = vld [vmem:[#allocation8 + $0x58] sm:$0xff]
        %v1251 = vld [vmem:[#allocation8 + $0x60] sm:$0xff]
        %v1252 = vld [vmem:[#allocation8 + $0x68] sm:$0xff]
        %v1253 = vld [vmem:[#allocation8 + $0x70] sm:$0xff]
        %v1254 = vld [vmem:[#allocation8 + $0x78] sm:$0xff]
        %v1255 = vld [vmem:[#allocation8 + $0x80] sm:$0xff]
        %v1256 = vld [vmem:[#allocation8 + $0x88] sm:$0xff]
        %v1257 = vld [vmem:[#allocation8 + $0x90] sm:$0xff]
        %v1258 = vld [vmem:[#allocation8 + $0x98] sm:$0xff]
        %v1259 = vld [vmem:[#allocation8 + $0xa0] sm:$0xff]
        %v1260 = vld [vmem:[#allocation8 + $0xa8] sm:$0xff]
        %v1261 = vld [vmem:[#allocation8 + $0xb0] sm:$0xff]
        %v1262 = vld [vmem:[#allocation8 + $0xb8] sm:$0xff]
        %v1263 = vld [vmem:[#allocation8 + $0xc0] sm:$0xff]
        %v1264 = vld [vmem:[#allocation8 + $0xc8] sm:$0xff]
        %v1265 = vld [vmem:[#allocation8 + $0xd0] sm:$0xff]
        %v1266 = vld [vmem:[#allocation8 + $0xd8] sm:$0xff]
        %v1267 = vld [vmem:[#allocation8 + $0xe0] sm:$0xff]
        %v1268 = vld [vmem:[#allocation8 + $0xe8] sm:$0xff]
        %v1269 = vld [vmem:[#allocation8 + $0xf0] sm:$0xff]
        %v1270 = vld [vmem:[#allocation8 + $0xf8] sm:$0xff]
        %v1271 = vld [vmem:[#allocation9] sm:$0x3]
        %v1273 = vperm.slane %v1271, 0
        %v1274 = vperm.slane %v1271, 1
        %v1309 = vunpack.c.l.b16 %v1239
        %v1310 = vunpack.c.h.b16 %v1239
        %v1311 = vunpack.c.l.b16 %v1240
        %v1312 = vunpack.c.h.b16 %v1240
        %v1313 = vunpack.c.l.b16 %v1241
        %v1314 = vunpack.c.h.b16 %v1241
        %v1315 = vunpack.c.l.b16 %v1242
        %v1316 = vunpack.c.h.b16 %v1242
        %v1317 = vunpack.c.l.b16 %v1243
        %v1318 = vunpack.c.h.b16 %v1243
        %v1319 = vunpack.c.l.b16 %v1244
        %v1320 = vunpack.c.h.b16 %v1244
        %v1321 = vunpack.c.l.b16 %v1245
        %v1322 = vunpack.c.h.b16 %v1245
        %v1323 = vunpack.c.l.b16 %v1246
        %v1324 = vunpack.c.h.b16 %v1246
        %v1325 = vunpack.c.l.b16 %v1247
        %v1326 = vunpack.c.h.b16 %v1247
        %v1327 = vunpack.c.l.b16 %v1248
        %v1328 = vunpack.c.h.b16 %v1248
        %v1329 = vunpack.c.l.b16 %v1249
        %v1330 = vunpack.c.h.b16 %v1249
        %v1331 = vunpack.c.l.b16 %v1250
        %v1332 = vunpack.c.h.b16 %v1250
        %v1333 = vunpack.c.l.b16 %v1251
        %v1334 = vunpack.c.h.b16 %v1251
        %v1335 = vunpack.c.l.b16 %v1252
        %v1336 = vunpack.c.h.b16 %v1252
        %v1337 = vunpack.c.l.b16 %v1253
        %v1338 = vunpack.c.h.b16 %v1253
        %v1339 = vunpack.c.l.b16 %v1254
        %v1340 = vunpack.c.h.b16 %v1254
        %v1341 = vunpack.c.l.b16 %v1255
        %v1342 = vunpack.c.h.b16 %v1255
        %v1343 = vunpack.c.l.b16 %v1256
        %v1344 = vunpack.c.h.b16 %v1256
        %v1345 = vunpack.c.l.b16 %v1257
        %v1346 = vunpack.c.h.b16 %v1257
        %v1347 = vunpack.c.l.b16 %v1258
        %v1348 = vunpack.c.h.b16 %v1258
        %v1349 = vunpack.c.l.b16 %v1259
        %v1350 = vunpack.c.h.b16 %v1259
        %v1351 = vunpack.c.l.b16 %v1260
        %v1352 = vunpack.c.h.b16 %v1260
        %v1353 = vunpack.c.l.b16 %v1261
        %v1354 = vunpack.c.h.b16 %v1261
        %v1355 = vunpack.c.l.b16 %v1262
        %v1356 = vunpack.c.h.b16 %v1262
        %v1357 = vunpack.c.l.b16 %v1263
        %v1358 = vunpack.c.h.b16 %v1263
        %v1359 = vunpack.c.l.b16 %v1264
        %v1360 = vunpack.c.h.b16 %v1264
        %v1361 = vunpack.c.l.b16 %v1265
        %v1362 = vunpack.c.h.b16 %v1265
        %v1363 = vunpack.c.l.b16 %v1266
        %v1364 = vunpack.c.h.b16 %v1266
        %v1365 = vunpack.c.l.b16 %v1267
        %v1366 = vunpack.c.h.b16 %v1267
        %v1367 = vunpack.c.l.b16 %v1268
        %v1368 = vunpack.c.h.b16 %v1268
        %v1369 = vunpack.c.l.b16 %v1269
        %v1370 = vunpack.c.h.b16 %v1269
        %v1371 = vunpack.c.l.b16 %v1270
        %v1372 = vunpack.c.h.b16 %v1270
        %v1373 = vpack.c.b16 %v1311, %v1309
        %v1374 = vpack.c.b16 %v1312, %v1310
        %v1375 = vpack.c.b16 %v1315, %v1313
        %v1376 = vpack.c.b16 %v1316, %v1314
        %v1377 = vpack.c.b16 %v1319, %v1317
        %v1378 = vpack.c.b16 %v1320, %v1318
        %v1379 = vpack.c.b16 %v1323, %v1321
        %v1380 = vpack.c.b16 %v1324, %v1322
        %v1381 = vpack.c.b16 %v1327, %v1325
        %v1382 = vpack.c.b16 %v1328, %v1326
        %v1383 = vpack.c.b16 %v1331, %v1329
        %v1384 = vpack.c.b16 %v1332, %v1330
        %v1385 = vpack.c.b16 %v1335, %v1333
        %v1386 = vpack.c.b16 %v1336, %v1334
        %v1387 = vpack.c.b16 %v1339, %v1337
        %v1388 = vpack.c.b16 %v1340, %v1338
        %v1389 = vpack.c.b16 %v1343, %v1341
        %v1390 = vpack.c.b16 %v1344, %v1342
        %v1391 = vpack.c.b16 %v1347, %v1345
        %v1392 = vpack.c.b16 %v1348, %v1346
        %v1393 = vpack.c.b16 %v1351, %v1349
        %v1394 = vpack.c.b16 %v1352, %v1350
        %v1395 = vpack.c.b16 %v1355, %v1353
        %v1396 = vpack.c.b16 %v1356, %v1354
        %v1397 = vpack.c.b16 %v1359, %v1357
        %v1398 = vpack.c.b16 %v1360, %v1358
        %v1399 = vpack.c.b16 %v1363, %v1361
        %v1400 = vpack.c.b16 %v1364, %v1362
        %v1401 = vpack.c.b16 %v1367, %v1365
        %v1402 = vpack.c.b16 %v1368, %v1366
        %v1403 = vpack.c.b16 %v1371, %v1369
        %v1404 = vpack.c.b16 %v1372, %v1370
        %1437 = vmatpush.bf16.msra.mxu0 %v1387
        %1438 = vmatpush.bf16.msra.mxu0 %v1385
        %1439 = vmatpush.bf16.msra.mxu0 %v1383
        %1440 = vmatpush.bf16.msra.mxu0 %v1381
        %1441 = vmatpush.bf16.msra.mxu0 %v1379
        %1442 = vmatpush.bf16.msra.mxu0 %v1377
        %1443 = vmatpush.bf16.msra.mxu0 %v1375
        %1444 = vmatpush.bf16.msra.mxu0 %v1373
        %1445 = vmatmul.bf16.gmra.mxu0 %v1175
        %v1446 = vpop.f32.mrf.mxu0
        %v1447 = vadd.f32 %v1273, %v1446
        %v1448 = vpop.f32.mrf.mxu0
        %v1449 = vadd.f32 %v1273, %v1448
        %1450 = vmatmul.bf16.gmra.mxu0 %v1177
        %v1451 = vpop.f32.mrf.mxu0
        %v1452 = vadd.f32 %v1273, %v1451
        %v1453 = vpop.f32.mrf.mxu0
        %v1454 = vadd.f32 %v1273, %v1453
        %1455 = vmatmul.bf16.gmra.mxu0 %v1179
        %v1456 = vpop.f32.mrf.mxu0
        %v1457 = vadd.f32 %v1273, %v1456
        %v1458 = vpop.f32.mrf.mxu0
        %v1459 = vadd.f32 %v1273, %v1458
        %1460 = vmatmul.bf16.gmra.mxu0 %v1181
        %v1461 = vpop.f32.mrf.mxu0
        %v1462 = vadd.f32 %v1273, %v1461
        %v1463 = vpop.f32.mrf.mxu0
        %v1464 = vadd.f32 %v1273, %v1463
        %1465 = vmatmul.bf16.gmra.mxu0 %v1183
        %v1466 = vpop.f32.mrf.mxu0
        %v1467 = vadd.f32 %v1273, %v1466
        %v1468 = vpop.f32.mrf.mxu0
        %v1469 = vadd.f32 %v1273, %v1468
        %1470 = vmatmul.bf16.gmra.mxu0 %v1185
        %v1471 = vpop.f32.mrf.mxu0
        %v1472 = vadd.f32 %v1273, %v1471
        %v1473 = vpop.f32.mrf.mxu0
        %v1474 = vadd.f32 %v1273, %v1473
        %1475 = vmatmul.bf16.gmra.mxu0 %v1187
        %v1476 = vpop.f32.mrf.mxu0
        %v1477 = vadd.f32 %v1273, %v1476
        %v1478 = vpop.f32.mrf.mxu0
        %v1479 = vadd.f32 %v1273, %v1478
        %1480 = vmatmul.bf16.gmra.mxu0 %v1189
        %v1481 = vpop.f32.mrf.mxu0
        %v1482 = vadd.f32 %v1273, %v1481
        %v1483 = vpop.f32.mrf.mxu0
        %v1484 = vadd.f32 %v1273, %v1483
        %1485 = vmatmul.bf16.gmra.mxu0 %v1191
        %v1486 = vpop.f32.mrf.mxu0
        %v1487 = vadd.f32 %v1273, %v1486
        %v1488 = vpop.f32.mrf.mxu0
        %v1489 = vadd.f32 %v1273, %v1488
        %1490 = vmatmul.bf16.gmra.mxu0 %v1193
        %v1491 = vpop.f32.mrf.mxu0
        %v1492 = vadd.f32 %v1273, %v1491
        %v1493 = vpop.f32.mrf.mxu0
        %v1494 = vadd.f32 %v1273, %v1493
        %1495 = vmatmul.bf16.gmra.mxu0 %v1195
        %v1496 = vpop.f32.mrf.mxu0
        %v1497 = vadd.f32 %v1273, %v1496
        %v1498 = vpop.f32.mrf.mxu0
        %v1499 = vadd.f32 %v1273, %v1498
        %1500 = vmatmul.bf16.gmra.mxu0 %v1197
        %v1501 = vpop.f32.mrf.mxu0
        %v1502 = vadd.f32 %v1273, %v1501
        %v1503 = vpop.f32.mrf.mxu0
        %v1504 = vadd.f32 %v1273, %v1503
        %1505 = vmatmul.bf16.gmra.mxu0 %v1199
        %v1506 = vpop.f32.mrf.mxu0
        %v1507 = vadd.f32 %v1273, %v1506
        %v1508 = vpop.f32.mrf.mxu0
        %v1509 = vadd.f32 %v1273, %v1508
        %1510 = vmatmul.bf16.gmra.mxu0 %v1201
        %v1511 = vpop.f32.mrf.mxu0
        %v1512 = vadd.f32 %v1273, %v1511
        %v1513 = vpop.f32.mrf.mxu0
        %v1514 = vadd.f32 %v1273, %v1513
        %1515 = vmatmul.bf16.gmra.mxu0 %v1203
        %v1516 = vpop.f32.mrf.mxu0
        %v1517 = vadd.f32 %v1273, %v1516
        %v1518 = vpop.f32.mrf.mxu0
        %v1519 = vadd.f32 %v1273, %v1518
        %1520 = vmatmul.bf16.gmra.mxu0 %v1205
        %v1521 = vpop.f32.mrf.mxu0
        %v1522 = vadd.f32 %v1273, %v1521
        %v1523 = vpop.f32.mrf.mxu0
        %v1524 = vadd.f32 %v1273, %v1523
        %1525 = vmatmul.bf16.gmra.mxu0 %v1207
        %v1526 = vpop.f32.mrf.mxu0
        %v1527 = vadd.f32 %v1273, %v1526
        %v1528 = vpop.f32.mrf.mxu0
        %v1529 = vadd.f32 %v1273, %v1528
        %1530 = vmatmul.bf16.gmra.mxu0 %v1209
        %v1531 = vpop.f32.mrf.mxu0
        %v1532 = vadd.f32 %v1273, %v1531
        %v1533 = vpop.f32.mrf.mxu0
        %v1534 = vadd.f32 %v1273, %v1533
        %1535 = vmatmul.bf16.gmra.mxu0 %v1211
        %v1536 = vpop.f32.mrf.mxu0
        %v1537 = vadd.f32 %v1273, %v1536
        %v1538 = vpop.f32.mrf.mxu0
        %v1539 = vadd.f32 %v1273, %v1538
        %1540 = vmatmul.bf16.gmra.mxu0 %v1213
        %v1541 = vpop.f32.mrf.mxu0
        %v1542 = vadd.f32 %v1273, %v1541
        %v1543 = vpop.f32.mrf.mxu0
        %v1544 = vadd.f32 %v1273, %v1543
        %1545 = vmatmul.bf16.gmra.mxu0 %v1215
        %v1546 = vpop.f32.mrf.mxu0
        %v1547 = vadd.f32 %v1273, %v1546
        %v1548 = vpop.f32.mrf.mxu0
        %v1549 = vadd.f32 %v1273, %v1548
        %1550 = vmatmul.bf16.gmra.mxu0 %v1217
        %v1551 = vpop.f32.mrf.mxu0
        %v1552 = vadd.f32 %v1273, %v1551
        %v1553 = vpop.f32.mrf.mxu0
        %v1554 = vadd.f32 %v1273, %v1553
        %1555 = vmatmul.bf16.gmra.mxu0 %v1219
        %v1556 = vpop.f32.mrf.mxu0
        %v1557 = vadd.f32 %v1273, %v1556
        %v1558 = vpop.f32.mrf.mxu0
        %v1559 = vadd.f32 %v1273, %v1558
        %1560 = vmatmul.bf16.gmra.mxu0 %v1221
        %v1561 = vpop.f32.mrf.mxu0
        %v1562 = vadd.f32 %v1273, %v1561
        %v1563 = vpop.f32.mrf.mxu0
        %v1564 = vadd.f32 %v1273, %v1563
        %1565 = vmatmul.bf16.gmra.mxu0 %v1223
        %v1566 = vpop.f32.mrf.mxu0
        %v1567 = vadd.f32 %v1273, %v1566
        %v1568 = vpop.f32.mrf.mxu0
        %v1569 = vadd.f32 %v1273, %v1568
        %1570 = vmatmul.bf16.gmra.mxu0 %v1225
        %v1571 = vpop.f32.mrf.mxu0
        %v1572 = vadd.f32 %v1273, %v1571
        %v1573 = vpop.f32.mrf.mxu0
        %v1574 = vadd.f32 %v1273, %v1573
        %1575 = vmatmul.bf16.gmra.mxu0 %v1227
        %v1576 = vpop.f32.mrf.mxu0
        %v1577 = vadd.f32 %v1273, %v1576
        %v1578 = vpop.f32.mrf.mxu0
        %v1579 = vadd.f32 %v1273, %v1578
        %1580 = vmatmul.bf16.gmra.mxu0 %v1229
        %v1581 = vpop.f32.mrf.mxu0
        %v1582 = vadd.f32 %v1273, %v1581
        %v1583 = vpop.f32.mrf.mxu0
        %v1584 = vadd.f32 %v1273, %v1583
        %1585 = vmatmul.bf16.gmra.mxu0 %v1231
        %v1586 = vpop.f32.mrf.mxu0
        %v1587 = vadd.f32 %v1273, %v1586
        %v1588 = vpop.f32.mrf.mxu0
        %v1589 = vadd.f32 %v1273, %v1588
        %1590 = vmatmul.bf16.gmra.mxu0 %v1233
        %v1591 = vpop.f32.mrf.mxu0
        %v1592 = vadd.f32 %v1273, %v1591
        %v1593 = vpop.f32.mrf.mxu0
        %v1594 = vadd.f32 %v1273, %v1593
        %1595 = vmatmul.bf16.gmra.mxu0 %v1235
        %v1596 = vpop.f32.mrf.mxu0
        %v1597 = vadd.f32 %v1273, %v1596
        %v1598 = vpop.f32.mrf.mxu0
        %v1599 = vadd.f32 %v1273, %v1598
        %1600 = vmatmul.bf16.gmra.mxu0 %v1237
        %v1601 = vpop.f32.mrf.mxu0
        %v1602 = vadd.f32 %v1273, %v1601
        %v1603 = vpop.f32.mrf.mxu0
        %v1604 = vadd.f32 %v1273, %v1603
        %1605 = vdwg.mxu0
        %1606 = vmatpush.bf16.msra.mxu0 %v1403
        %1607 = vmatpush.bf16.msra.mxu0 %v1401
        %1608 = vmatpush.bf16.msra.mxu0 %v1399
        %1609 = vmatpush.bf16.msra.mxu0 %v1397
        %1610 = vmatpush.bf16.msra.mxu0 %v1395
        %1611 = vmatpush.bf16.msra.mxu0 %v1393
        %1612 = vmatpush.bf16.msra.mxu0 %v1391
        %1613 = vmatpush.bf16.msra.mxu0 %v1389
        %1614 = vmatmul.bf16.gmra.mxu0 %v1176
        %v1615 = vpop.f32.mrf.mxu0
        %v1616 = vadd.f32 %v1447, %v1615
        %v1617 = vpop.f32.mrf.mxu0
        %v1618 = vadd.f32 %v1449, %v1617
        %1619 = vmatmul.bf16.gmra.mxu0 %v1178
        %v1620 = vpop.f32.mrf.mxu0
        %v1621 = vadd.f32 %v1452, %v1620
        %v1622 = vpop.f32.mrf.mxu0
        %v1623 = vadd.f32 %v1454, %v1622
        %1624 = vmatmul.bf16.gmra.mxu0 %v1180
        %v1625 = vpop.f32.mrf.mxu0
        %v1626 = vadd.f32 %v1457, %v1625
        %v1627 = vpop.f32.mrf.mxu0
        %v1628 = vadd.f32 %v1459, %v1627
        %1629 = vmatmul.bf16.gmra.mxu0 %v1182
        %v1630 = vpop.f32.mrf.mxu0
        %v1631 = vadd.f32 %v1462, %v1630
        %v1632 = vpop.f32.mrf.mxu0
        %v1633 = vadd.f32 %v1464, %v1632
        %1634 = vmatmul.bf16.gmra.mxu0 %v1184
        %v1635 = vpop.f32.mrf.mxu0
        %v1636 = vadd.f32 %v1467, %v1635
        %v1637 = vpop.f32.mrf.mxu0
        %v1638 = vadd.f32 %v1469, %v1637
        %1639 = vmatmul.bf16.gmra.mxu0 %v1186
        %v1640 = vpop.f32.mrf.mxu0
        %v1641 = vadd.f32 %v1472, %v1640
        %v1642 = vpop.f32.mrf.mxu0
        %v1643 = vadd.f32 %v1474, %v1642
        %1644 = vmatmul.bf16.gmra.mxu0 %v1188
        %v1645 = vpop.f32.mrf.mxu0
        %v1646 = vadd.f32 %v1477, %v1645
        %v1647 = vpop.f32.mrf.mxu0
        %v1648 = vadd.f32 %v1479, %v1647
        %1649 = vmatmul.bf16.gmra.mxu0 %v1190
        %v1650 = vpop.f32.mrf.mxu0
        %v1651 = vadd.f32 %v1482, %v1650
        %v1652 = vpop.f32.mrf.mxu0
        %v1653 = vadd.f32 %v1484, %v1652
        %1654 = vmatmul.bf16.gmra.mxu0 %v1192
        %v1655 = vpop.f32.mrf.mxu0
        %v1656 = vadd.f32 %v1487, %v1655
        %v1657 = vpop.f32.mrf.mxu0
        %v1658 = vadd.f32 %v1489, %v1657
        %1659 = vmatmul.bf16.gmra.mxu0 %v1194
        %v1660 = vpop.f32.mrf.mxu0
        %v1661 = vadd.f32 %v1492, %v1660
        %v1662 = vpop.f32.mrf.mxu0
        %v1663 = vadd.f32 %v1494, %v1662
        %1664 = vmatmul.bf16.gmra.mxu0 %v1196
        %v1665 = vpop.f32.mrf.mxu0
        %v1666 = vadd.f32 %v1497, %v1665
        %v1667 = vpop.f32.mrf.mxu0
        %v1668 = vadd.f32 %v1499, %v1667
        %1669 = vmatmul.bf16.gmra.mxu0 %v1198
        %v1670 = vpop.f32.mrf.mxu0
        %v1671 = vadd.f32 %v1502, %v1670
        %v1672 = vpop.f32.mrf.mxu0
        %v1673 = vadd.f32 %v1504, %v1672
        %1674 = vmatmul.bf16.gmra.mxu0 %v1200
        %v1675 = vpop.f32.mrf.mxu0
        %v1676 = vadd.f32 %v1507, %v1675
        %v1677 = vpop.f32.mrf.mxu0
        %v1678 = vadd.f32 %v1509, %v1677
        %1679 = vmatmul.bf16.gmra.mxu0 %v1202
        %v1680 = vpop.f32.mrf.mxu0
        %v1681 = vadd.f32 %v1512, %v1680
        %v1682 = vpop.f32.mrf.mxu0
        %v1683 = vadd.f32 %v1514, %v1682
        %1684 = vmatmul.bf16.gmra.mxu0 %v1204
        %v1685 = vpop.f32.mrf.mxu0
        %v1686 = vadd.f32 %v1517, %v1685
        %v1687 = vpop.f32.mrf.mxu0
        %v1688 = vadd.f32 %v1519, %v1687
        %1689 = vmatmul.bf16.gmra.mxu0 %v1206
        %v1690 = vpop.f32.mrf.mxu0
        %v1691 = vadd.f32 %v1522, %v1690
        %v1692 = vpop.f32.mrf.mxu0
        %v1693 = vadd.f32 %v1524, %v1692
        %1694 = vmatmul.bf16.gmra.mxu0 %v1208
        %v1695 = vpop.f32.mrf.mxu0
        %v1696 = vadd.f32 %v1527, %v1695
        %v1697 = vpop.f32.mrf.mxu0
        %v1698 = vadd.f32 %v1529, %v1697
        %1699 = vmatmul.bf16.gmra.mxu0 %v1210
        %v1700 = vpop.f32.mrf.mxu0
        %v1701 = vadd.f32 %v1532, %v1700
        %v1702 = vpop.f32.mrf.mxu0
        %v1703 = vadd.f32 %v1534, %v1702
        %1704 = vmatmul.bf16.gmra.mxu0 %v1212
        %v1705 = vpop.f32.mrf.mxu0
        %v1706 = vadd.f32 %v1537, %v1705
        %v1707 = vpop.f32.mrf.mxu0
        %v1708 = vadd.f32 %v1539, %v1707
        %1709 = vmatmul.bf16.gmra.mxu0 %v1214
        %v1710 = vpop.f32.mrf.mxu0
        %v1711 = vadd.f32 %v1542, %v1710
        %v1712 = vpop.f32.mrf.mxu0
        %v1713 = vadd.f32 %v1544, %v1712
        %1714 = vmatmul.bf16.gmra.mxu0 %v1216
        %v1715 = vpop.f32.mrf.mxu0
        %v1716 = vadd.f32 %v1547, %v1715
        %v1717 = vpop.f32.mrf.mxu0
        %v1718 = vadd.f32 %v1549, %v1717
        %1719 = vmatmul.bf16.gmra.mxu0 %v1218
        %v1720 = vpop.f32.mrf.mxu0
        %v1721 = vadd.f32 %v1552, %v1720
        %v1722 = vpop.f32.mrf.mxu0
        %v1723 = vadd.f32 %v1554, %v1722
        %1724 = vmatmul.bf16.gmra.mxu0 %v1220
        %v1725 = vpop.f32.mrf.mxu0
        %v1726 = vadd.f32 %v1557, %v1725
        %v1727 = vpop.f32.mrf.mxu0
        %v1728 = vadd.f32 %v1559, %v1727
        %1729 = vmatmul.bf16.gmra.mxu0 %v1222
        %v1730 = vpop.f32.mrf.mxu0
        %v1731 = vadd.f32 %v1562, %v1730
        %v1732 = vpop.f32.mrf.mxu0
        %v1733 = vadd.f32 %v1564, %v1732
        %1734 = vmatmul.bf16.gmra.mxu0 %v1224
        %v1735 = vpop.f32.mrf.mxu0
        %v1736 = vadd.f32 %v1567, %v1735
        %v1737 = vpop.f32.mrf.mxu0
        %v1738 = vadd.f32 %v1569, %v1737
        %1739 = vmatmul.bf16.gmra.mxu0 %v1226
        %v1740 = vpop.f32.mrf.mxu0
        %v1741 = vadd.f32 %v1572, %v1740
        %v1742 = vpop.f32.mrf.mxu0
        %v1743 = vadd.f32 %v1574, %v1742
        %1744 = vmatmul.bf16.gmra.mxu0 %v1228
        %v1745 = vpop.f32.mrf.mxu0
        %v1746 = vadd.f32 %v1577, %v1745
        %v1747 = vpop.f32.mrf.mxu0
        %v1748 = vadd.f32 %v1579, %v1747
        %1749 = vmatmul.bf16.gmra.mxu0 %v1230
        %v1750 = vpop.f32.mrf.mxu0
        %v1751 = vadd.f32 %v1582, %v1750
        %v1752 = vpop.f32.mrf.mxu0
        %v1753 = vadd.f32 %v1584, %v1752
        %1754 = vmatmul.bf16.gmra.mxu0 %v1232
        %v1755 = vpop.f32.mrf.mxu0
        %v1756 = vadd.f32 %v1587, %v1755
        %v1757 = vpop.f32.mrf.mxu0
        %v1758 = vadd.f32 %v1589, %v1757
        %1759 = vmatmul.bf16.gmra.mxu0 %v1234
        %v1760 = vpop.f32.mrf.mxu0
        %v1761 = vadd.f32 %v1592, %v1760
        %v1762 = vpop.f32.mrf.mxu0
        %v1763 = vadd.f32 %v1594, %v1762
        %1764 = vmatmul.bf16.gmra.mxu0 %v1236
        %v1765 = vpop.f32.mrf.mxu0
        %v1766 = vadd.f32 %v1597, %v1765
        %v1767 = vpop.f32.mrf.mxu0
        %v1768 = vadd.f32 %v1599, %v1767
        %1769 = vmatmul.bf16.gmra.mxu0 %v1238
        %v1770 = vpop.f32.mrf.mxu0
        %v1771 = vadd.f32 %v1602, %v1770
        %v1772 = vpop.f32.mrf.mxu0
        %v1773 = vadd.f32 %v1604, %v1772
        %1774 = vdwg.mxu0
        %1775 = vmatpush.bf16.msra.mxu0 %v1388
        %1776 = vmatpush.bf16.msra.mxu0 %v1386
        %1777 = vmatpush.bf16.msra.mxu0 %v1384
        %1778 = vmatpush.bf16.msra.mxu0 %v1382
        %1779 = vmatpush.bf16.msra.mxu0 %v1380
        %1780 = vmatpush.bf16.msra.mxu0 %v1378
        %1781 = vmatpush.bf16.msra.mxu0 %v1376
        %1782 = vmatpush.bf16.msra.mxu0 %v1374
        %1783 = vmatmul.bf16.gmra.mxu0 %v1175
        %v1784 = vpop.f32.mrf.mxu0
        %v1785 = vadd.f32 %v1274, %v1784
        %v1786 = vpop.f32.mrf.mxu0
        %v1787 = vadd.f32 %v1274, %v1786
        %1788 = vmatmul.bf16.gmra.mxu0 %v1177
        %v1789 = vpop.f32.mrf.mxu0
        %v1790 = vadd.f32 %v1274, %v1789
        %v1791 = vpop.f32.mrf.mxu0
        %v1792 = vadd.f32 %v1274, %v1791
        %1793 = vmatmul.bf16.gmra.mxu0 %v1179
        %v1794 = vpop.f32.mrf.mxu0
        %v1795 = vadd.f32 %v1274, %v1794
        %v1796 = vpop.f32.mrf.mxu0
        %v1797 = vadd.f32 %v1274, %v1796
        %1798 = vmatmul.bf16.gmra.mxu0 %v1181
        %v1799 = vpop.f32.mrf.mxu0
        %v1800 = vadd.f32 %v1274, %v1799
        %v1801 = vpop.f32.mrf.mxu0
        %v1802 = vadd.f32 %v1274, %v1801
        %1803 = vmatmul.bf16.gmra.mxu0 %v1183
        %v1804 = vpop.f32.mrf.mxu0
        %v1805 = vadd.f32 %v1274, %v1804
        %v1806 = vpop.f32.mrf.mxu0
        %v1807 = vadd.f32 %v1274, %v1806
        %1808 = vmatmul.bf16.gmra.mxu0 %v1185
        %v1809 = vpop.f32.mrf.mxu0
        %v1810 = vadd.f32 %v1274, %v1809
        %v1811 = vpop.f32.mrf.mxu0
        %v1812 = vadd.f32 %v1274, %v1811
        %1813 = vmatmul.bf16.gmra.mxu0 %v1187
        %v1814 = vpop.f32.mrf.mxu0
        %v1815 = vadd.f32 %v1274, %v1814
        %v1816 = vpop.f32.mrf.mxu0
        %v1817 = vadd.f32 %v1274, %v1816
        %1818 = vmatmul.bf16.gmra.mxu0 %v1189
        %v1819 = vpop.f32.mrf.mxu0
        %v1820 = vadd.f32 %v1274, %v1819
        %v1821 = vpop.f32.mrf.mxu0
        %v1822 = vadd.f32 %v1274, %v1821
        %1823 = vmatmul.bf16.gmra.mxu0 %v1191
        %v1824 = vpop.f32.mrf.mxu0
        %v1825 = vadd.f32 %v1274, %v1824
        %v1826 = vpop.f32.mrf.mxu0
        %v1827 = vadd.f32 %v1274, %v1826
        %1828 = vmatmul.bf16.gmra.mxu0 %v1193
        %v1829 = vpop.f32.mrf.mxu0
        %v1830 = vadd.f32 %v1274, %v1829
        %v1831 = vpop.f32.mrf.mxu0
        %v1832 = vadd.f32 %v1274, %v1831
        %1833 = vmatmul.bf16.gmra.mxu0 %v1195
        %v1834 = vpop.f32.mrf.mxu0
        %v1835 = vadd.f32 %v1274, %v1834
        %v1836 = vpop.f32.mrf.mxu0
        %v1837 = vadd.f32 %v1274, %v1836
        %1838 = vmatmul.bf16.gmra.mxu0 %v1197
        %v1839 = vpop.f32.mrf.mxu0
        %v1840 = vadd.f32 %v1274, %v1839
        %v1841 = vpop.f32.mrf.mxu0
        %v1842 = vadd.f32 %v1274, %v1841
        %1843 = vmatmul.bf16.gmra.mxu0 %v1199
        %v1844 = vpop.f32.mrf.mxu0
        %v1845 = vadd.f32 %v1274, %v1844
        %v1846 = vpop.f32.mrf.mxu0
        %v1847 = vadd.f32 %v1274, %v1846
        %1848 = vmatmul.bf16.gmra.mxu0 %v1201
        %v1849 = vpop.f32.mrf.mxu0
        %v1850 = vadd.f32 %v1274, %v1849
        %v1851 = vpop.f32.mrf.mxu0
        %v1852 = vadd.f32 %v1274, %v1851
        %1853 = vmatmul.bf16.gmra.mxu0 %v1203
        %v1854 = vpop.f32.mrf.mxu0
        %v1855 = vadd.f32 %v1274, %v1854
        %v1856 = vpop.f32.mrf.mxu0
        %v1857 = vadd.f32 %v1274, %v1856
        %1858 = vmatmul.bf16.gmra.mxu0 %v1205
        %v1859 = vpop.f32.mrf.mxu0
        %v1860 = vadd.f32 %v1274, %v1859
        %v1861 = vpop.f32.mrf.mxu0
        %v1862 = vadd.f32 %v1274, %v1861
        %1863 = vmatmul.bf16.gmra.mxu0 %v1207
        %v1864 = vpop.f32.mrf.mxu0
        %v1865 = vadd.f32 %v1274, %v1864
        %v1866 = vpop.f32.mrf.mxu0
        %v1867 = vadd.f32 %v1274, %v1866
        %1868 = vmatmul.bf16.gmra.mxu0 %v1209
        %v1869 = vpop.f32.mrf.mxu0
        %v1870 = vadd.f32 %v1274, %v1869
        %v1871 = vpop.f32.mrf.mxu0
        %v1872 = vadd.f32 %v1274, %v1871
        %1873 = vmatmul.bf16.gmra.mxu0 %v1211
        %v1874 = vpop.f32.mrf.mxu0
        %v1875 = vadd.f32 %v1274, %v1874
        %v1876 = vpop.f32.mrf.mxu0
        %v1877 = vadd.f32 %v1274, %v1876
        %1878 = vmatmul.bf16.gmra.mxu0 %v1213
        %v1879 = vpop.f32.mrf.mxu0
        %v1880 = vadd.f32 %v1274, %v1879
        %v1881 = vpop.f32.mrf.mxu0
        %v1882 = vadd.f32 %v1274, %v1881
        %1883 = vmatmul.bf16.gmra.mxu0 %v1215
        %v1884 = vpop.f32.mrf.mxu0
        %v1885 = vadd.f32 %v1274, %v1884
        %v1886 = vpop.f32.mrf.mxu0
        %v1887 = vadd.f32 %v1274, %v1886
        %1888 = vmatmul.bf16.gmra.mxu0 %v1217
        %v1889 = vpop.f32.mrf.mxu0
        %v1890 = vadd.f32 %v1274, %v1889
        %v1891 = vpop.f32.mrf.mxu0
        %v1892 = vadd.f32 %v1274, %v1891
        %1893 = vmatmul.bf16.gmra.mxu0 %v1219
        %v1894 = vpop.f32.mrf.mxu0
        %v1895 = vadd.f32 %v1274, %v1894
        %v1896 = vpop.f32.mrf.mxu0
        %v1897 = vadd.f32 %v1274, %v1896
        %1898 = vmatmul.bf16.gmra.mxu0 %v1221
        %v1899 = vpop.f32.mrf.mxu0
        %v1900 = vadd.f32 %v1274, %v1899
        %v1901 = vpop.f32.mrf.mxu0
        %v1902 = vadd.f32 %v1274, %v1901
        %1903 = vmatmul.bf16.gmra.mxu0 %v1223
        %v1904 = vpop.f32.mrf.mxu0
        %v1905 = vadd.f32 %v1274, %v1904
        %v1906 = vpop.f32.mrf.mxu0
        %v1907 = vadd.f32 %v1274, %v1906
        %1908 = vmatmul.bf16.gmra.mxu0 %v1225
        %v1909 = vpop.f32.mrf.mxu0
        %v1910 = vadd.f32 %v1274, %v1909
        %v1911 = vpop.f32.mrf.mxu0
        %v1912 = vadd.f32 %v1274, %v1911
        %1913 = vmatmul.bf16.gmra.mxu0 %v1227
        %v1914 = vpop.f32.mrf.mxu0
        %v1915 = vadd.f32 %v1274, %v1914
        %v1916 = vpop.f32.mrf.mxu0
        %v1917 = vadd.f32 %v1274, %v1916
        %1918 = vmatmul.bf16.gmra.mxu0 %v1229
        %v1919 = vpop.f32.mrf.mxu0
        %v1920 = vadd.f32 %v1274, %v1919
        %v1921 = vpop.f32.mrf.mxu0
        %v1922 = vadd.f32 %v1274, %v1921
        %1923 = vmatmul.bf16.gmra.mxu0 %v1231
        %v1924 = vpop.f32.mrf.mxu0
        %v1925 = vadd.f32 %v1274, %v1924
        %v1926 = vpop.f32.mrf.mxu0
        %v1927 = vadd.f32 %v1274, %v1926
        %1928 = vmatmul.bf16.gmra.mxu0 %v1233
        %v1929 = vpop.f32.mrf.mxu0
        %v1930 = vadd.f32 %v1274, %v1929
        %v1931 = vpop.f32.mrf.mxu0
        %v1932 = vadd.f32 %v1274, %v1931
        %1933 = vmatmul.bf16.gmra.mxu0 %v1235
        %v1934 = vpop.f32.mrf.mxu0
        %v1935 = vadd.f32 %v1274, %v1934
        %v1936 = vpop.f32.mrf.mxu0
        %v1937 = vadd.f32 %v1274, %v1936
        %1938 = vmatmul.bf16.gmra.mxu0 %v1237
        %v1939 = vpop.f32.mrf.mxu0
        %v1940 = vadd.f32 %v1274, %v1939
        %v1941 = vpop.f32.mrf.mxu0
        %v1942 = vadd.f32 %v1274, %v1941
        %1943 = vdwg.mxu0
        %1944 = vmatpush.bf16.msra.mxu0 %v1404
        %1945 = vmatpush.bf16.msra.mxu0 %v1402
        %1946 = vmatpush.bf16.msra.mxu0 %v1400
        %1947 = vmatpush.bf16.msra.mxu0 %v1398
        %1948 = vmatpush.bf16.msra.mxu0 %v1396
        %1949 = vmatpush.bf16.msra.mxu0 %v1394
        %1950 = vmatpush.bf16.msra.mxu0 %v1392
        %1951 = vmatpush.bf16.msra.mxu0 %v1390
        %1952 = vmatmul.bf16.gmra.mxu0 %v1176
        %v1953 = vpop.f32.mrf.mxu0
        %v1954 = vadd.f32 %v1785, %v1953
        %v1955 = vpop.f32.mrf.mxu0
        %v1956 = vadd.f32 %v1787, %v1955
        %1957 = vmatmul.bf16.gmra.mxu0 %v1178
        %v1958 = vpop.f32.mrf.mxu0
        %v1959 = vadd.f32 %v1790, %v1958
        %v1960 = vpop.f32.mrf.mxu0
        %v1961 = vadd.f32 %v1792, %v1960
        %1962 = vmatmul.bf16.gmra.mxu0 %v1180
        %v1963 = vpop.f32.mrf.mxu0
        %v1964 = vadd.f32 %v1795, %v1963
        %v1965 = vpop.f32.mrf.mxu0
        %v1966 = vadd.f32 %v1797, %v1965
        %1967 = vmatmul.bf16.gmra.mxu0 %v1182
        %v1968 = vpop.f32.mrf.mxu0
        %v1969 = vadd.f32 %v1800, %v1968
        %v1970 = vpop.f32.mrf.mxu0
        %v1971 = vadd.f32 %v1802, %v1970
        %1972 = vmatmul.bf16.gmra.mxu0 %v1184
        %v1973 = vpop.f32.mrf.mxu0
        %v1974 = vadd.f32 %v1805, %v1973
        %v1975 = vpop.f32.mrf.mxu0
        %v1976 = vadd.f32 %v1807, %v1975
        %1977 = vmatmul.bf16.gmra.mxu0 %v1186
        %v1978 = vpop.f32.mrf.mxu0
        %v1979 = vadd.f32 %v1810, %v1978
        %v1980 = vpop.f32.mrf.mxu0
        %v1981 = vadd.f32 %v1812, %v1980
        %1982 = vmatmul.bf16.gmra.mxu0 %v1188
        %v1983 = vpop.f32.mrf.mxu0
        %v1984 = vadd.f32 %v1815, %v1983
        %v1985 = vpop.f32.mrf.mxu0
        %v1986 = vadd.f32 %v1817, %v1985
        %1987 = vmatmul.bf16.gmra.mxu0 %v1190
        %v1988 = vpop.f32.mrf.mxu0
        %v1989 = vadd.f32 %v1820, %v1988
        %v1990 = vpop.f32.mrf.mxu0
        %v1991 = vadd.f32 %v1822, %v1990
        %1992 = vmatmul.bf16.gmra.mxu0 %v1192
        %v1993 = vpop.f32.mrf.mxu0
        %v1994 = vadd.f32 %v1825, %v1993
        %v1995 = vpop.f32.mrf.mxu0
        %v1996 = vadd.f32 %v1827, %v1995
        %1997 = vmatmul.bf16.gmra.mxu0 %v1194
        %v1998 = vpop.f32.mrf.mxu0
        %v1999 = vadd.f32 %v1830, %v1998
        %v2000 = vpop.f32.mrf.mxu0
        %v2001 = vadd.f32 %v1832, %v2000
        %2002 = vmatmul.bf16.gmra.mxu0 %v1196
        %v2003 = vpop.f32.mrf.mxu0
        %v2004 = vadd.f32 %v1835, %v2003
        %v2005 = vpop.f32.mrf.mxu0
        %v2006 = vadd.f32 %v1837, %v2005
        %2007 = vmatmul.bf16.gmra.mxu0 %v1198
        %v2008 = vpop.f32.mrf.mxu0
        %v2009 = vadd.f32 %v1840, %v2008
        %v2010 = vpop.f32.mrf.mxu0
        %v2011 = vadd.f32 %v1842, %v2010
        %2012 = vmatmul.bf16.gmra.mxu0 %v1200
        %v2013 = vpop.f32.mrf.mxu0
        %v2014 = vadd.f32 %v1845, %v2013
        %v2015 = vpop.f32.mrf.mxu0
        %v2016 = vadd.f32 %v1847, %v2015
        %2017 = vmatmul.bf16.gmra.mxu0 %v1202
        %v2018 = vpop.f32.mrf.mxu0
        %v2019 = vadd.f32 %v1850, %v2018
        %v2020 = vpop.f32.mrf.mxu0
        %v2021 = vadd.f32 %v1852, %v2020
        %2022 = vmatmul.bf16.gmra.mxu0 %v1204
        %v2023 = vpop.f32.mrf.mxu0
        %v2024 = vadd.f32 %v1855, %v2023
        %v2025 = vpop.f32.mrf.mxu0
        %v2026 = vadd.f32 %v1857, %v2025
        %2027 = vmatmul.bf16.gmra.mxu0 %v1206
        %v2028 = vpop.f32.mrf.mxu0
        %v2029 = vadd.f32 %v1860, %v2028
        %v2030 = vpop.f32.mrf.mxu0
        %v2031 = vadd.f32 %v1862, %v2030
        %2032 = vmatmul.bf16.gmra.mxu0 %v1208
        %v2033 = vpop.f32.mrf.mxu0
        %v2034 = vadd.f32 %v1865, %v2033
        %v2035 = vpop.f32.mrf.mxu0
        %v2036 = vadd.f32 %v1867, %v2035
        %2037 = vmatmul.bf16.gmra.mxu0 %v1210
        %v2038 = vpop.f32.mrf.mxu0
        %v2039 = vadd.f32 %v1870, %v2038
        %v2040 = vpop.f32.mrf.mxu0
        %v2041 = vadd.f32 %v1872, %v2040
        %2042 = vmatmul.bf16.gmra.mxu0 %v1212
        %v2043 = vpop.f32.mrf.mxu0
        %v2044 = vadd.f32 %v1875, %v2043
        %v2045 = vpop.f32.mrf.mxu0
        %v2046 = vadd.f32 %v1877, %v2045
        %2047 = vmatmul.bf16.gmra.mxu0 %v1214
        %v2048 = vpop.f32.mrf.mxu0
        %v2049 = vadd.f32 %v1880, %v2048
        %v2050 = vpop.f32.mrf.mxu0
        %v2051 = vadd.f32 %v1882, %v2050
        %2052 = vmatmul.bf16.gmra.mxu0 %v1216
        %v2053 = vpop.f32.mrf.mxu0
        %v2054 = vadd.f32 %v1885, %v2053
        %v2055 = vpop.f32.mrf.mxu0
        %v2056 = vadd.f32 %v1887, %v2055
        %2057 = vmatmul.bf16.gmra.mxu0 %v1218
        %v2058 = vpop.f32.mrf.mxu0
        %v2059 = vadd.f32 %v1890, %v2058
        %v2060 = vpop.f32.mrf.mxu0
        %v2061 = vadd.f32 %v1892, %v2060
        %2062 = vmatmul.bf16.gmra.mxu0 %v1220
        %v2063 = vpop.f32.mrf.mxu0
        %v2064 = vadd.f32 %v1895, %v2063
        %v2065 = vpop.f32.mrf.mxu0
        %v2066 = vadd.f32 %v1897, %v2065
        %2067 = vmatmul.bf16.gmra.mxu0 %v1222
        %v2068 = vpop.f32.mrf.mxu0
        %v2069 = vadd.f32 %v1900, %v2068
        %v2070 = vpop.f32.mrf.mxu0
        %v2071 = vadd.f32 %v1902, %v2070
        %2072 = vmatmul.bf16.gmra.mxu0 %v1224
        %v2073 = vpop.f32.mrf.mxu0
        %v2074 = vadd.f32 %v1905, %v2073
        %v2075 = vpop.f32.mrf.mxu0
        %v2076 = vadd.f32 %v1907, %v2075
        %2077 = vmatmul.bf16.gmra.mxu0 %v1226
        %v2078 = vpop.f32.mrf.mxu0
        %v2079 = vadd.f32 %v1910, %v2078
        %v2080 = vpop.f32.mrf.mxu0
        %v2081 = vadd.f32 %v1912, %v2080
        %2082 = vmatmul.bf16.gmra.mxu0 %v1228
        %v2083 = vpop.f32.mrf.mxu0
        %v2084 = vadd.f32 %v1915, %v2083
        %v2085 = vpop.f32.mrf.mxu0
        %v2086 = vadd.f32 %v1917, %v2085
        %2087 = vmatmul.bf16.gmra.mxu0 %v1230
        %v2088 = vpop.f32.mrf.mxu0
        %v2089 = vadd.f32 %v1920, %v2088
        %v2090 = vpop.f32.mrf.mxu0
        %v2091 = vadd.f32 %v1922, %v2090
        %2092 = vmatmul.bf16.gmra.mxu0 %v1232
        %v2093 = vpop.f32.mrf.mxu0
        %v2094 = vadd.f32 %v1925, %v2093
        %v2095 = vpop.f32.mrf.mxu0
        %v2096 = vadd.f32 %v1927, %v2095
        %2097 = vmatmul.bf16.gmra.mxu0 %v1234
        %v2098 = vpop.f32.mrf.mxu0
        %v2099 = vadd.f32 %v1930, %v2098
        %v2100 = vpop.f32.mrf.mxu0
        %v2101 = vadd.f32 %v1932, %v2100
        %2102 = vmatmul.bf16.gmra.mxu0 %v1236
        %v2103 = vpop.f32.mrf.mxu0
        %v2104 = vadd.f32 %v1935, %v2103
        %v2105 = vpop.f32.mrf.mxu0
        %v2106 = vadd.f32 %v1937, %v2105
        %2107 = vmatmul.bf16.gmra.mxu0 %v1238
        %v2108 = vpop.f32.mrf.mxu0
        %v2109 = vadd.f32 %v1940, %v2108
        %v2110 = vpop.f32.mrf.mxu0
        %v2111 = vadd.f32 %v1942, %v2110
        %2112 = vdwg.mxu0
        %v2113 = vmax.f32 %v1616, 0.0
        %v2114 = vmax.f32 %v1954, 0.0
        %v2115 = vmax.f32 %v1618, 0.0
        %v2116 = vmax.f32 %v1956, 0.0
        %v2117 = vmax.f32 %v1621, 0.0
        %v2118 = vmax.f32 %v1959, 0.0
        %v2119 = vmax.f32 %v1623, 0.0
        %v2120 = vmax.f32 %v1961, 0.0
        %v2121 = vmax.f32 %v1626, 0.0
        %v2122 = vmax.f32 %v1964, 0.0
        %v2123 = vmax.f32 %v1628, 0.0
        %v2124 = vmax.f32 %v1966, 0.0
        %v2125 = vmax.f32 %v1631, 0.0
        %v2126 = vmax.f32 %v1969, 0.0
        %v2127 = vmax.f32 %v1633, 0.0
        %v2128 = vmax.f32 %v1971, 0.0
        %v2129 = vmax.f32 %v1636, 0.0
        %v2130 = vmax.f32 %v1974, 0.0
        %v2131 = vmax.f32 %v1638, 0.0
        %v2132 = vmax.f32 %v1976, 0.0
        %v2133 = vmax.f32 %v1641, 0.0
        %v2134 = vmax.f32 %v1979, 0.0
        %v2135 = vmax.f32 %v1643, 0.0
        %v2136 = vmax.f32 %v1981, 0.0
        %v2137 = vmax.f32 %v1646, 0.0
        %v2138 = vmax.f32 %v1984, 0.0
        %v2139 = vmax.f32 %v1648, 0.0
        %v2140 = vmax.f32 %v1986, 0.0
        %v2141 = vmax.f32 %v1651, 0.0
        %v2142 = vmax.f32 %v1989, 0.0
        %v2143 = vmax.f32 %v1653, 0.0
        %v2144 = vmax.f32 %v1991, 0.0
        %v2145 = vmax.f32 %v1656, 0.0
        %v2146 = vmax.f32 %v1994, 0.0
        %v2147 = vmax.f32 %v1658, 0.0
        %v2148 = vmax.f32 %v1996, 0.0
        %v2149 = vmax.f32 %v1661, 0.0
        %v2150 = vmax.f32 %v1999, 0.0
        %v2151 = vmax.f32 %v1663, 0.0
        %v2152 = vmax.f32 %v2001, 0.0
        %v2153 = vmax.f32 %v1666, 0.0
        %v2154 = vmax.f32 %v2004, 0.0
        %v2155 = vmax.f32 %v1668, 0.0
        %v2156 = vmax.f32 %v2006, 0.0
        %v2157 = vmax.f32 %v1671, 0.0
        %v2158 = vmax.f32 %v2009, 0.0
        %v2159 = vmax.f32 %v1673, 0.0
        %v2160 = vmax.f32 %v2011, 0.0
        %v2161 = vmax.f32 %v1676, 0.0
        %v2162 = vmax.f32 %v2014, 0.0
        %v2163 = vmax.f32 %v1678, 0.0
        %v2164 = vmax.f32 %v2016, 0.0
        %v2165 = vmax.f32 %v1681, 0.0
        %v2166 = vmax.f32 %v2019, 0.0
        %v2167 = vmax.f32 %v1683, 0.0
        %v2168 = vmax.f32 %v2021, 0.0
        %v2169 = vmax.f32 %v1686, 0.0
        %v2170 = vmax.f32 %v2024, 0.0
        %v2171 = vmax.f32 %v1688, 0.0
        %v2172 = vmax.f32 %v2026, 0.0
        %v2173 = vmax.f32 %v1691, 0.0
        %v2174 = vmax.f32 %v2029, 0.0
        %v2175 = vmax.f32 %v1693, 0.0
        %v2176 = vmax.f32 %v2031, 0.0
        %v2177 = vmax.f32 %v1696, 0.0
        %v2178 = vmax.f32 %v2034, 0.0
        %v2179 = vmax.f32 %v1698, 0.0
        %v2180 = vmax.f32 %v2036, 0.0
        %v2181 = vmax.f32 %v1701, 0.0
        %v2182 = vmax.f32 %v2039, 0.0
        %v2183 = vmax.f32 %v1703, 0.0
        %v2184 = vmax.f32 %v2041, 0.0
        %v2185 = vmax.f32 %v1706, 0.0
        %v2186 = vmax.f32 %v2044, 0.0
        %v2187 = vmax.f32 %v1708, 0.0
        %v2188 = vmax.f32 %v2046, 0.0
        %v2189 = vmax.f32 %v1711, 0.0
        %v2190 = vmax.f32 %v2049, 0.0
        %v2191 = vmax.f32 %v1713, 0.0
        %v2192 = vmax.f32 %v2051, 0.0
        %v2193 = vmax.f32 %v1716, 0.0
        %v2194 = vmax.f32 %v2054, 0.0
        %v2195 = vmax.f32 %v1718, 0.0
        %v2196 = vmax.f32 %v2056, 0.0
        %v2197 = vmax.f32 %v1721, 0.0
        %v2198 = vmax.f32 %v2059, 0.0
        %v2199 = vmax.f32 %v1723, 0.0
        %v2200 = vmax.f32 %v2061, 0.0
        %v2201 = vmax.f32 %v1726, 0.0
        %v2202 = vmax.f32 %v2064, 0.0
        %v2203 = vmax.f32 %v1728, 0.0
        %v2204 = vmax.f32 %v2066, 0.0
        %v2205 = vmax.f32 %v1731, 0.0
        %v2206 = vmax.f32 %v2069, 0.0
        %v2207 = vmax.f32 %v1733, 0.0
        %v2208 = vmax.f32 %v2071, 0.0
        %v2209 = vmax.f32 %v1736, 0.0
        %v2210 = vmax.f32 %v2074, 0.0
        %v2211 = vmax.f32 %v1738, 0.0
        %v2212 = vmax.f32 %v2076, 0.0
        %v2213 = vmax.f32 %v1741, 0.0
        %v2214 = vmax.f32 %v2079, 0.0
        %v2215 = vmax.f32 %v1743, 0.0
        %v2216 = vmax.f32 %v2081, 0.0
        %v2217 = vmax.f32 %v1746, 0.0
        %v2218 = vmax.f32 %v2084, 0.0
        %v2219 = vmax.f32 %v1748, 0.0
        %v2220 = vmax.f32 %v2086, 0.0
        %v2221 = vmax.f32 %v1751, 0.0
        %v2222 = vmax.f32 %v2089, 0.0
        %v2223 = vmax.f32 %v1753, 0.0
        %v2224 = vmax.f32 %v2091, 0.0
        %v2225 = vmax.f32 %v1756, 0.0
        %v2226 = vmax.f32 %v2094, 0.0
        %v2227 = vmax.f32 %v1758, 0.0
        %v2228 = vmax.f32 %v2096, 0.0
        %v2229 = vmax.f32 %v1761, 0.0
        %v2230 = vmax.f32 %v2099, 0.0
        %v2231 = vmax.f32 %v1763, 0.0
        %v2232 = vmax.f32 %v2101, 0.0
        %v2233 = vmax.f32 %v1766, 0.0
        %v2234 = vmax.f32 %v2104, 0.0
        %v2235 = vmax.f32 %v1768, 0.0
        %v2236 = vmax.f32 %v2106, 0.0
        %v2237 = vmax.f32 %v1771, 0.0
        %v2238 = vmax.f32 %v2109, 0.0
        %v2239 = vmax.f32 %v1773, 0.0
        %v2240 = vmax.f32 %v2111, 0.0
        %v2241 = vpack.c.bf16 %v2115, %v2113
        %v2242 = vpack.c.bf16 %v2116, %v2114
        %v2243 = vpack.c.bf16 %v2119, %v2117
        %v2244 = vpack.c.bf16 %v2120, %v2118
        %v2245 = vpack.c.bf16 %v2123, %v2121
        %v2246 = vpack.c.bf16 %v2124, %v2122
        %v2247 = vpack.c.bf16 %v2127, %v2125
        %v2248 = vpack.c.bf16 %v2128, %v2126
        %v2249 = vpack.c.bf16 %v2131, %v2129
        %v2250 = vpack.c.bf16 %v2132, %v2130
        %v2251 = vpack.c.bf16 %v2135, %v2133
        %v2252 = vpack.c.bf16 %v2136, %v2134
        %v2253 = vpack.c.bf16 %v2139, %v2137
        %v2254 = vpack.c.bf16 %v2140, %v2138
        %v2255 = vpack.c.bf16 %v2143, %v2141
        %v2256 = vpack.c.bf16 %v2144, %v2142
        %v2257 = vpack.c.bf16 %v2147, %v2145
        %v2258 = vpack.c.bf16 %v2148, %v2146
        %v2259 = vpack.c.bf16 %v2151, %v2149
        %v2260 = vpack.c.bf16 %v2152, %v2150
        %v2261 = vpack.c.bf16 %v2155, %v2153
        %v2262 = vpack.c.bf16 %v2156, %v2154
        %v2263 = vpack.c.bf16 %v2159, %v2157
        %v2264 = vpack.c.bf16 %v2160, %v2158
        %v2265 = vpack.c.bf16 %v2163, %v2161
        %v2266 = vpack.c.bf16 %v2164, %v2162
        %v2267 = vpack.c.bf16 %v2167, %v2165
        %v2268 = vpack.c.bf16 %v2168, %v2166
        %v2269 = vpack.c.bf16 %v2171, %v2169
        %v2270 = vpack.c.bf16 %v2172, %v2170
        %v2271 = vpack.c.bf16 %v2175, %v2173
        %v2272 = vpack.c.bf16 %v2176, %v2174
        %v2273 = vpack.c.bf16 %v2179, %v2177
        %v2274 = vpack.c.bf16 %v2180, %v2178
        %v2275 = vpack.c.bf16 %v2183, %v2181
        %v2276 = vpack.c.bf16 %v2184, %v2182
        %v2277 = vpack.c.bf16 %v2187, %v2185
        %v2278 = vpack.c.bf16 %v2188, %v2186
        %v2279 = vpack.c.bf16 %v2191, %v2189
        %v2280 = vpack.c.bf16 %v2192, %v2190
        %v2281 = vpack.c.bf16 %v2195, %v2193
        %v2282 = vpack.c.bf16 %v2196, %v2194
        %v2283 = vpack.c.bf16 %v2199, %v2197
        %v2284 = vpack.c.bf16 %v2200, %v2198
        %v2285 = vpack.c.bf16 %v2203, %v2201
        %v2286 = vpack.c.bf16 %v2204, %v2202
        %v2287 = vpack.c.bf16 %v2207, %v2205
        %v2288 = vpack.c.bf16 %v2208, %v2206
        %v2289 = vpack.c.bf16 %v2211, %v2209
        %v2290 = vpack.c.bf16 %v2212, %v2210
        %v2291 = vpack.c.bf16 %v2215, %v2213
        %v2292 = vpack.c.bf16 %v2216, %v2214
        %v2293 = vpack.c.bf16 %v2219, %v2217
        %v2294 = vpack.c.bf16 %v2220, %v2218
        %v2295 = vpack.c.bf16 %v2223, %v2221
        %v2296 = vpack.c.bf16 %v2224, %v2222
        %v2297 = vpack.c.bf16 %v2227, %v2225
        %v2298 = vpack.c.bf16 %v2228, %v2226
        %v2299 = vpack.c.bf16 %v2231, %v2229
        %v2300 = vpack.c.bf16 %v2232, %v2230
        %v2301 = vpack.c.bf16 %v2235, %v2233
        %v2302 = vpack.c.bf16 %v2236, %v2234
        %v2303 = vpack.c.bf16 %v2239, %v2237
        %v2304 = vpack.c.bf16 %v2240, %v2238
        %s2305 = scalar_lea.vmem [#allocation8], 256
        %v2306 = vld [vmem:[%s2305] sm:$0xff]
        %v2307 = vld [vmem:[%s2305 + $0x8] sm:$0xff]
        %v2308 = vld [vmem:[%s2305 + $0x10] sm:$0xff]
        %v2309 = vld [vmem:[%s2305 + $0x18] sm:$0xff]
        %v2310 = vld [vmem:[%s2305 + $0x20] sm:$0xff]
        %v2311 = vld [vmem:[%s2305 + $0x28] sm:$0xff]
        %v2312 = vld [vmem:[%s2305 + $0x30] sm:$0xff]
        %v2313 = vld [vmem:[%s2305 + $0x38] sm:$0xff]
        %v2314 = vld [vmem:[%s2305 + $0x40] sm:$0xff]
        %v2315 = vld [vmem:[%s2305 + $0x48] sm:$0xff]
        %v2316 = vld [vmem:[%s2305 + $0x50] sm:$0xff]
        %v2317 = vld [vmem:[%s2305 + $0x58] sm:$0xff]
        %v2318 = vld [vmem:[%s2305 + $0x60] sm:$0xff]
        %v2319 = vld [vmem:[%s2305 + $0x68] sm:$0xff]
        %v2320 = vld [vmem:[%s2305 + $0x70] sm:$0xff]
        %v2321 = vld [vmem:[%s2305 + $0x78] sm:$0xff]
        %v2322 = vld [vmem:[%s2305 + $0x80] sm:$0xff]
        %v2323 = vld [vmem:[%s2305 + $0x88] sm:$0xff]
        %v2324 = vld [vmem:[%s2305 + $0x90] sm:$0xff]
        %v2325 = vld [vmem:[%s2305 + $0x98] sm:$0xff]
        %v2326 = vld [vmem:[%s2305 + $0xa0] sm:$0xff]
        %v2327 = vld [vmem:[%s2305 + $0xa8] sm:$0xff]
        %v2328 = vld [vmem:[%s2305 + $0xb0] sm:$0xff]
        %v2329 = vld [vmem:[%s2305 + $0xb8] sm:$0xff]
        %v2330 = vld [vmem:[%s2305 + $0xc0] sm:$0xff]
        %v2331 = vld [vmem:[%s2305 + $0xc8] sm:$0xff]
        %v2332 = vld [vmem:[%s2305 + $0xd0] sm:$0xff]
        %v2333 = vld [vmem:[%s2305 + $0xd8] sm:$0xff]
        %v2334 = vld [vmem:[%s2305 + $0xe0] sm:$0xff]
        %v2335 = vld [vmem:[%s2305 + $0xe8] sm:$0xff]
        %v2336 = vld [vmem:[%s2305 + $0xf0] sm:$0xff]
        %v2337 = vld [vmem:[%s2305 + $0xf8] sm:$0xff]
        %s2338 = scalar_lea.vmem [#allocation9], 2
        %v2339 = vld [vmem:[%s2338] sm:$0x3]
        %v2341 = vperm.slane %v2339, 0
        %v2342 = vperm.slane %v2339, 1
        %v2377 = vunpack.c.l.b16 %v2306
        %v2378 = vunpack.c.h.b16 %v2306
        %v2379 = vunpack.c.l.b16 %v2307
        %v2380 = vunpack.c.h.b16 %v2307
        %v2381 = vunpack.c.l.b16 %v2308
        %v2382 = vunpack.c.h.b16 %v2308
        %v2383 = vunpack.c.l.b16 %v2309
        %v2384 = vunpack.c.h.b16 %v2309
        %v2385 = vunpack.c.l.b16 %v2310
        %v2386 = vunpack.c.h.b16 %v2310
        %v2387 = vunpack.c.l.b16 %v2311
        %v2388 = vunpack.c.h.b16 %v2311
        %v2389 = vunpack.c.l.b16 %v2312
        %v2390 = vunpack.c.h.b16 %v2312
        %v2391 = vunpack.c.l.b16 %v2313
        %v2392 = vunpack.c.h.b16 %v2313
        %v2393 = vunpack.c.l.b16 %v2314
        %v2394 = vunpack.c.h.b16 %v2314
        %v2395 = vunpack.c.l.b16 %v2315
        %v2396 = vunpack.c.h.b16 %v2315
        %v2397 = vunpack.c.l.b16 %v2316
        %v2398 = vunpack.c.h.b16 %v2316
        %v2399 = vunpack.c.l.b16 %v2317
        %v2400 = vunpack.c.h.b16 %v2317
        %v2401 = vunpack.c.l.b16 %v2318
        %v2402 = vunpack.c.h.b16 %v2318
        %v2403 = vunpack.c.l.b16 %v2319
        %v2404 = vunpack.c.h.b16 %v2319
        %v2405 = vunpack.c.l.b16 %v2320
        %v2406 = vunpack.c.h.b16 %v2320
        %v2407 = vunpack.c.l.b16 %v2321
        %v2408 = vunpack.c.h.b16 %v2321
        %v2409 = vunpack.c.l.b16 %v2322
        %v2410 = vunpack.c.h.b16 %v2322
        %v2411 = vunpack.c.l.b16 %v2323
        %v2412 = vunpack.c.h.b16 %v2323
        %v2413 = vunpack.c.l.b16 %v2324
        %v2414 = vunpack.c.h.b16 %v2324
        %v2415 = vunpack.c.l.b16 %v2325
        %v2416 = vunpack.c.h.b16 %v2325
        %v2417 = vunpack.c.l.b16 %v2326
        %v2418 = vunpack.c.h.b16 %v2326
        %v2419 = vunpack.c.l.b16 %v2327
        %v2420 = vunpack.c.h.b16 %v2327
        %v2421 = vunpack.c.l.b16 %v2328
        %v2422 = vunpack.c.h.b16 %v2328
        %v2423 = vunpack.c.l.b16 %v2329
        %v2424 = vunpack.c.h.b16 %v2329
        %v2425 = vunpack.c.l.b16 %v2330
        %v2426 = vunpack.c.h.b16 %v2330
        %v2427 = vunpack.c.l.b16 %v2331
        %v2428 = vunpack.c.h.b16 %v2331
        %v2429 = vunpack.c.l.b16 %v2332
        %v2430 = vunpack.c.h.b16 %v2332
        %v2431 = vunpack.c.l.b16 %v2333
        %v2432 = vunpack.c.h.b16 %v2333
        %v2433 = vunpack.c.l.b16 %v2334
        %v2434 = vunpack.c.h.b16 %v2334
        %v2435 = vunpack.c.l.b16 %v2335
        %v2436 = vunpack.c.h.b16 %v2335
        %v2437 = vunpack.c.l.b16 %v2336
        %v2438 = vunpack.c.h.b16 %v2336
        %v2439 = vunpack.c.l.b16 %v2337
        %v2440 = vunpack.c.h.b16 %v2337
        %v2441 = vpack.c.b16 %v2379, %v2377
        %v2442 = vpack.c.b16 %v2380, %v2378
        %v2443 = vpack.c.b16 %v2383, %v2381
        %v2444 = vpack.c.b16 %v2384, %v2382
        %v2445 = vpack.c.b16 %v2387, %v2385
        %v2446 = vpack.c.b16 %v2388, %v2386
        %v2447 = vpack.c.b16 %v2391, %v2389
        %v2448 = vpack.c.b16 %v2392, %v2390
        %v2449 = vpack.c.b16 %v2395, %v2393
        %v2450 = vpack.c.b16 %v2396, %v2394
        %v2451 = vpack.c.b16 %v2399, %v2397
        %v2452 = vpack.c.b16 %v2400, %v2398
        %v2453 = vpack.c.b16 %v2403, %v2401
        %v2454 = vpack.c.b16 %v2404, %v2402
        %v2455 = vpack.c.b16 %v2407, %v2405
        %v2456 = vpack.c.b16 %v2408, %v2406
        %v2457 = vpack.c.b16 %v2411, %v2409
        %v2458 = vpack.c.b16 %v2412, %v2410
        %v2459 = vpack.c.b16 %v2415, %v2413
        %v2460 = vpack.c.b16 %v2416, %v2414
        %v2461 = vpack.c.b16 %v2419, %v2417
        %v2462 = vpack.c.b16 %v2420, %v2418
        %v2463 = vpack.c.b16 %v2423, %v2421
        %v2464 = vpack.c.b16 %v2424, %v2422
        %v2465 = vpack.c.b16 %v2427, %v2425
        %v2466 = vpack.c.b16 %v2428, %v2426
        %v2467 = vpack.c.b16 %v2431, %v2429
        %v2468 = vpack.c.b16 %v2432, %v2430
        %v2469 = vpack.c.b16 %v2435, %v2433
        %v2470 = vpack.c.b16 %v2436, %v2434
        %v2471 = vpack.c.b16 %v2439, %v2437
        %v2472 = vpack.c.b16 %v2440, %v2438
        %2505 = vmatpush.bf16.msra.mxu0 %v2455
        %2506 = vmatpush.bf16.msra.mxu0 %v2453
        %2507 = vmatpush.bf16.msra.mxu0 %v2451
        %2508 = vmatpush.bf16.msra.mxu0 %v2449
        %2509 = vmatpush.bf16.msra.mxu0 %v2447
        %2510 = vmatpush.bf16.msra.mxu0 %v2445
        %2511 = vmatpush.bf16.msra.mxu0 %v2443
        %2512 = vmatpush.bf16.msra.mxu0 %v2441
        %2513 = vmatmul.bf16.gmra.mxu0 %v2241
        %v2514 = vpop.f32.mrf.mxu0
        %v2515 = vadd.f32 %v2341, %v2514
        %v2516 = vpop.f32.mrf.mxu0
        %v2517 = vadd.f32 %v2341, %v2516
        %2518 = vmatmul.bf16.gmra.mxu0 %v2243
        %v2519 = vpop.f32.mrf.mxu0
        %v2520 = vadd.f32 %v2341, %v2519
        %v2521 = vpop.f32.mrf.mxu0
        %v2522 = vadd.f32 %v2341, %v2521
        %2523 = vmatmul.bf16.gmra.mxu0 %v2245
        %v2524 = vpop.f32.mrf.mxu0
        %v2525 = vadd.f32 %v2341, %v2524
        %v2526 = vpop.f32.mrf.mxu0
        %v2527 = vadd.f32 %v2341, %v2526
        %2528 = vmatmul.bf16.gmra.mxu0 %v2247
        %v2529 = vpop.f32.mrf.mxu0
        %v2530 = vadd.f32 %v2341, %v2529
        %v2531 = vpop.f32.mrf.mxu0
        %v2532 = vadd.f32 %v2341, %v2531
        %2533 = vmatmul.bf16.gmra.mxu0 %v2249
        %v2534 = vpop.f32.mrf.mxu0
        %v2535 = vadd.f32 %v2341, %v2534
        %v2536 = vpop.f32.mrf.mxu0
        %v2537 = vadd.f32 %v2341, %v2536
        %2538 = vmatmul.bf16.gmra.mxu0 %v2251
        %v2539 = vpop.f32.mrf.mxu0
        %v2540 = vadd.f32 %v2341, %v2539
        %v2541 = vpop.f32.mrf.mxu0
        %v2542 = vadd.f32 %v2341, %v2541
        %2543 = vmatmul.bf16.gmra.mxu0 %v2253
        %v2544 = vpop.f32.mrf.mxu0
        %v2545 = vadd.f32 %v2341, %v2544
        %v2546 = vpop.f32.mrf.mxu0
        %v2547 = vadd.f32 %v2341, %v2546
        %2548 = vmatmul.bf16.gmra.mxu0 %v2255
        %v2549 = vpop.f32.mrf.mxu0
        %v2550 = vadd.f32 %v2341, %v2549
        %v2551 = vpop.f32.mrf.mxu0
        %v2552 = vadd.f32 %v2341, %v2551
        %2553 = vmatmul.bf16.gmra.mxu0 %v2257
        %v2554 = vpop.f32.mrf.mxu0
        %v2555 = vadd.f32 %v2341, %v2554
        %v2556 = vpop.f32.mrf.mxu0
        %v2557 = vadd.f32 %v2341, %v2556
        %2558 = vmatmul.bf16.gmra.mxu0 %v2259
        %v2559 = vpop.f32.mrf.mxu0
        %v2560 = vadd.f32 %v2341, %v2559
        %v2561 = vpop.f32.mrf.mxu0
        %v2562 = vadd.f32 %v2341, %v2561
        %2563 = vmatmul.bf16.gmra.mxu0 %v2261
        %v2564 = vpop.f32.mrf.mxu0
        %v2565 = vadd.f32 %v2341, %v2564
        %v2566 = vpop.f32.mrf.mxu0
        %v2567 = vadd.f32 %v2341, %v2566
        %2568 = vmatmul.bf16.gmra.mxu0 %v2263
        %v2569 = vpop.f32.mrf.mxu0
        %v2570 = vadd.f32 %v2341, %v2569
        %v2571 = vpop.f32.mrf.mxu0
        %v2572 = vadd.f32 %v2341, %v2571
        %2573 = vmatmul.bf16.gmra.mxu0 %v2265
        %v2574 = vpop.f32.mrf.mxu0
        %v2575 = vadd.f32 %v2341, %v2574
        %v2576 = vpop.f32.mrf.mxu0
        %v2577 = vadd.f32 %v2341, %v2576
        %2578 = vmatmul.bf16.gmra.mxu0 %v2267
        %v2579 = vpop.f32.mrf.mxu0
        %v2580 = vadd.f32 %v2341, %v2579
        %v2581 = vpop.f32.mrf.mxu0
        %v2582 = vadd.f32 %v2341, %v2581
        %2583 = vmatmul.bf16.gmra.mxu0 %v2269
        %v2584 = vpop.f32.mrf.mxu0
        %v2585 = vadd.f32 %v2341, %v2584
        %v2586 = vpop.f32.mrf.mxu0
        %v2587 = vadd.f32 %v2341, %v2586
        %2588 = vmatmul.bf16.gmra.mxu0 %v2271
        %v2589 = vpop.f32.mrf.mxu0
        %v2590 = vadd.f32 %v2341, %v2589
        %v2591 = vpop.f32.mrf.mxu0
        %v2592 = vadd.f32 %v2341, %v2591
        %2593 = vmatmul.bf16.gmra.mxu0 %v2273
        %v2594 = vpop.f32.mrf.mxu0
        %v2595 = vadd.f32 %v2341, %v2594
        %v2596 = vpop.f32.mrf.mxu0
        %v2597 = vadd.f32 %v2341, %v2596
        %2598 = vmatmul.bf16.gmra.mxu0 %v2275
        %v2599 = vpop.f32.mrf.mxu0
        %v2600 = vadd.f32 %v2341, %v2599
        %v2601 = vpop.f32.mrf.mxu0
        %v2602 = vadd.f32 %v2341, %v2601
        %2603 = vmatmul.bf16.gmra.mxu0 %v2277
        %v2604 = vpop.f32.mrf.mxu0
        %v2605 = vadd.f32 %v2341, %v2604
        %v2606 = vpop.f32.mrf.mxu0
        %v2607 = vadd.f32 %v2341, %v2606
        %2608 = vmatmul.bf16.gmra.mxu0 %v2279
        %v2609 = vpop.f32.mrf.mxu0
        %v2610 = vadd.f32 %v2341, %v2609
        %v2611 = vpop.f32.mrf.mxu0
        %v2612 = vadd.f32 %v2341, %v2611
        %2613 = vmatmul.bf16.gmra.mxu0 %v2281
        %v2614 = vpop.f32.mrf.mxu0
        %v2615 = vadd.f32 %v2341, %v2614
        %v2616 = vpop.f32.mrf.mxu0
        %v2617 = vadd.f32 %v2341, %v2616
        %2618 = vmatmul.bf16.gmra.mxu0 %v2283
        %v2619 = vpop.f32.mrf.mxu0
        %v2620 = vadd.f32 %v2341, %v2619
        %v2621 = vpop.f32.mrf.mxu0
        %v2622 = vadd.f32 %v2341, %v2621
        %2623 = vmatmul.bf16.gmra.mxu0 %v2285
        %v2624 = vpop.f32.mrf.mxu0
        %v2625 = vadd.f32 %v2341, %v2624
        %v2626 = vpop.f32.mrf.mxu0
        %v2627 = vadd.f32 %v2341, %v2626
        %2628 = vmatmul.bf16.gmra.mxu0 %v2287
        %v2629 = vpop.f32.mrf.mxu0
        %v2630 = vadd.f32 %v2341, %v2629
        %v2631 = vpop.f32.mrf.mxu0
        %v2632 = vadd.f32 %v2341, %v2631
        %2633 = vmatmul.bf16.gmra.mxu0 %v2289
        %v2634 = vpop.f32.mrf.mxu0
        %v2635 = vadd.f32 %v2341, %v2634
        %v2636 = vpop.f32.mrf.mxu0
        %v2637 = vadd.f32 %v2341, %v2636
        %2638 = vmatmul.bf16.gmra.mxu0 %v2291
        %v2639 = vpop.f32.mrf.mxu0
        %v2640 = vadd.f32 %v2341, %v2639
        %v2641 = vpop.f32.mrf.mxu0
        %v2642 = vadd.f32 %v2341, %v2641
        %2643 = vmatmul.bf16.gmra.mxu0 %v2293
        %v2644 = vpop.f32.mrf.mxu0
        %v2645 = vadd.f32 %v2341, %v2644
        %v2646 = vpop.f32.mrf.mxu0
        %v2647 = vadd.f32 %v2341, %v2646
        %2648 = vmatmul.bf16.gmra.mxu0 %v2295
        %v2649 = vpop.f32.mrf.mxu0
        %v2650 = vadd.f32 %v2341, %v2649
        %v2651 = vpop.f32.mrf.mxu0
        %v2652 = vadd.f32 %v2341, %v2651
        %2653 = vmatmul.bf16.gmra.mxu0 %v2297
        %v2654 = vpop.f32.mrf.mxu0
        %v2655 = vadd.f32 %v2341, %v2654
        %v2656 = vpop.f32.mrf.mxu0
        %v2657 = vadd.f32 %v2341, %v2656
        %2658 = vmatmul.bf16.gmra.mxu0 %v2299
        %v2659 = vpop.f32.mrf.mxu0
        %v2660 = vadd.f32 %v2341, %v2659
        %v2661 = vpop.f32.mrf.mxu0
        %v2662 = vadd.f32 %v2341, %v2661
        %2663 = vmatmul.bf16.gmra.mxu0 %v2301
        %v2664 = vpop.f32.mrf.mxu0
        %v2665 = vadd.f32 %v2341, %v2664
        %v2666 = vpop.f32.mrf.mxu0
        %v2667 = vadd.f32 %v2341, %v2666
        %2668 = vmatmul.bf16.gmra.mxu0 %v2303
        %v2669 = vpop.f32.mrf.mxu0
        %v2670 = vadd.f32 %v2341, %v2669
        %v2671 = vpop.f32.mrf.mxu0
        %v2672 = vadd.f32 %v2341, %v2671
        %2673 = vdwg.mxu0
        %2674 = vmatpush.bf16.msra.mxu0 %v2471
        %2675 = vmatpush.bf16.msra.mxu0 %v2469
        %2676 = vmatpush.bf16.msra.mxu0 %v2467
        %2677 = vmatpush.bf16.msra.mxu0 %v2465
        %2678 = vmatpush.bf16.msra.mxu0 %v2463
        %2679 = vmatpush.bf16.msra.mxu0 %v2461
        %2680 = vmatpush.bf16.msra.mxu0 %v2459
        %2681 = vmatpush.bf16.msra.mxu0 %v2457
        %2682 = vmatmul.bf16.gmra.mxu0 %v2242
        %v2683 = vpop.f32.mrf.mxu0
        %v2684 = vadd.f32 %v2515, %v2683
        %v2685 = vpop.f32.mrf.mxu0
        %v2686 = vadd.f32 %v2517, %v2685
        %2687 = vmatmul.bf16.gmra.mxu0 %v2244
        %v2688 = vpop.f32.mrf.mxu0
        %v2689 = vadd.f32 %v2520, %v2688
        %v2690 = vpop.f32.mrf.mxu0
        %v2691 = vadd.f32 %v2522, %v2690
        %2692 = vmatmul.bf16.gmra.mxu0 %v2246
        %v2693 = vpop.f32.mrf.mxu0
        %v2694 = vadd.f32 %v2525, %v2693
        %v2695 = vpop.f32.mrf.mxu0
        %v2696 = vadd.f32 %v2527, %v2695
        %2697 = vmatmul.bf16.gmra.mxu0 %v2248
        %v2698 = vpop.f32.mrf.mxu0
        %v2699 = vadd.f32 %v2530, %v2698
        %v2700 = vpop.f32.mrf.mxu0
        %v2701 = vadd.f32 %v2532, %v2700
        %2702 = vmatmul.bf16.gmra.mxu0 %v2250
        %v2703 = vpop.f32.mrf.mxu0
        %v2704 = vadd.f32 %v2535, %v2703
        %v2705 = vpop.f32.mrf.mxu0
        %v2706 = vadd.f32 %v2537, %v2705
        %2707 = vmatmul.bf16.gmra.mxu0 %v2252
        %v2708 = vpop.f32.mrf.mxu0
        %v2709 = vadd.f32 %v2540, %v2708
        %v2710 = vpop.f32.mrf.mxu0
        %v2711 = vadd.f32 %v2542, %v2710
        %2712 = vmatmul.bf16.gmra.mxu0 %v2254
        %v2713 = vpop.f32.mrf.mxu0
        %v2714 = vadd.f32 %v2545, %v2713
        %v2715 = vpop.f32.mrf.mxu0
        %v2716 = vadd.f32 %v2547, %v2715
        %2717 = vmatmul.bf16.gmra.mxu0 %v2256
        %v2718 = vpop.f32.mrf.mxu0
        %v2719 = vadd.f32 %v2550, %v2718
        %v2720 = vpop.f32.mrf.mxu0
        %v2721 = vadd.f32 %v2552, %v2720
        %2722 = vmatmul.bf16.gmra.mxu0 %v2258
        %v2723 = vpop.f32.mrf.mxu0
        %v2724 = vadd.f32 %v2555, %v2723
        %v2725 = vpop.f32.mrf.mxu0
        %v2726 = vadd.f32 %v2557, %v2725
        %2727 = vmatmul.bf16.gmra.mxu0 %v2260
        %v2728 = vpop.f32.mrf.mxu0
        %v2729 = vadd.f32 %v2560, %v2728
        %v2730 = vpop.f32.mrf.mxu0
        %v2731 = vadd.f32 %v2562, %v2730
        %2732 = vmatmul.bf16.gmra.mxu0 %v2262
        %v2733 = vpop.f32.mrf.mxu0
        %v2734 = vadd.f32 %v2565, %v2733
        %v2735 = vpop.f32.mrf.mxu0
        %v2736 = vadd.f32 %v2567, %v2735
        %2737 = vmatmul.bf16.gmra.mxu0 %v2264
        %v2738 = vpop.f32.mrf.mxu0
        %v2739 = vadd.f32 %v2570, %v2738
        %v2740 = vpop.f32.mrf.mxu0
        %v2741 = vadd.f32 %v2572, %v2740
        %2742 = vmatmul.bf16.gmra.mxu0 %v2266
        %v2743 = vpop.f32.mrf.mxu0
        %v2744 = vadd.f32 %v2575, %v2743
        %v2745 = vpop.f32.mrf.mxu0
        %v2746 = vadd.f32 %v2577, %v2745
        %2747 = vmatmul.bf16.gmra.mxu0 %v2268
        %v2748 = vpop.f32.mrf.mxu0
        %v2749 = vadd.f32 %v2580, %v2748
        %v2750 = vpop.f32.mrf.mxu0
        %v2751 = vadd.f32 %v2582, %v2750
        %2752 = vmatmul.bf16.gmra.mxu0 %v2270
        %v2753 = vpop.f32.mrf.mxu0
        %v2754 = vadd.f32 %v2585, %v2753
        %v2755 = vpop.f32.mrf.mxu0
        %v2756 = vadd.f32 %v2587, %v2755
        %2757 = vmatmul.bf16.gmra.mxu0 %v2272
        %v2758 = vpop.f32.mrf.mxu0
        %v2759 = vadd.f32 %v2590, %v2758
        %v2760 = vpop.f32.mrf.mxu0
        %v2761 = vadd.f32 %v2592, %v2760
        %2762 = vmatmul.bf16.gmra.mxu0 %v2274
        %v2763 = vpop.f32.mrf.mxu0
        %v2764 = vadd.f32 %v2595, %v2763
        %v2765 = vpop.f32.mrf.mxu0
        %v2766 = vadd.f32 %v2597, %v2765
        %2767 = vmatmul.bf16.gmra.mxu0 %v2276
        %v2768 = vpop.f32.mrf.mxu0
        %v2769 = vadd.f32 %v2600, %v2768
        %v2770 = vpop.f32.mrf.mxu0
        %v2771 = vadd.f32 %v2602, %v2770
        %2772 = vmatmul.bf16.gmra.mxu0 %v2278
        %v2773 = vpop.f32.mrf.mxu0
        %v2774 = vadd.f32 %v2605, %v2773
        %v2775 = vpop.f32.mrf.mxu0
        %v2776 = vadd.f32 %v2607, %v2775
        %2777 = vmatmul.bf16.gmra.mxu0 %v2280
        %v2778 = vpop.f32.mrf.mxu0
        %v2779 = vadd.f32 %v2610, %v2778
        %v2780 = vpop.f32.mrf.mxu0
        %v2781 = vadd.f32 %v2612, %v2780
        %2782 = vmatmul.bf16.gmra.mxu0 %v2282
        %v2783 = vpop.f32.mrf.mxu0
        %v2784 = vadd.f32 %v2615, %v2783
        %v2785 = vpop.f32.mrf.mxu0
        %v2786 = vadd.f32 %v2617, %v2785
        %2787 = vmatmul.bf16.gmra.mxu0 %v2284
        %v2788 = vpop.f32.mrf.mxu0
        %v2789 = vadd.f32 %v2620, %v2788
        %v2790 = vpop.f32.mrf.mxu0
        %v2791 = vadd.f32 %v2622, %v2790
        %2792 = vmatmul.bf16.gmra.mxu0 %v2286
        %v2793 = vpop.f32.mrf.mxu0
        %v2794 = vadd.f32 %v2625, %v2793
        %v2795 = vpop.f32.mrf.mxu0
        %v2796 = vadd.f32 %v2627, %v2795
        %2797 = vmatmul.bf16.gmra.mxu0 %v2288
        %v2798 = vpop.f32.mrf.mxu0
        %v2799 = vadd.f32 %v2630, %v2798
        %v2800 = vpop.f32.mrf.mxu0
        %v2801 = vadd.f32 %v2632, %v2800
        %2802 = vmatmul.bf16.gmra.mxu0 %v2290
        %v2803 = vpop.f32.mrf.mxu0
        %v2804 = vadd.f32 %v2635, %v2803
        %v2805 = vpop.f32.mrf.mxu0
        %v2806 = vadd.f32 %v2637, %v2805
        %2807 = vmatmul.bf16.gmra.mxu0 %v2292
        %v2808 = vpop.f32.mrf.mxu0
        %v2809 = vadd.f32 %v2640, %v2808
        %v2810 = vpop.f32.mrf.mxu0
        %v2811 = vadd.f32 %v2642, %v2810
        %2812 = vmatmul.bf16.gmra.mxu0 %v2294
        %v2813 = vpop.f32.mrf.mxu0
        %v2814 = vadd.f32 %v2645, %v2813
        %v2815 = vpop.f32.mrf.mxu0
        %v2816 = vadd.f32 %v2647, %v2815
        %2817 = vmatmul.bf16.gmra.mxu0 %v2296
        %v2818 = vpop.f32.mrf.mxu0
        %v2819 = vadd.f32 %v2650, %v2818
        %v2820 = vpop.f32.mrf.mxu0
        %v2821 = vadd.f32 %v2652, %v2820
        %2822 = vmatmul.bf16.gmra.mxu0 %v2298
        %v2823 = vpop.f32.mrf.mxu0
        %v2824 = vadd.f32 %v2655, %v2823
        %v2825 = vpop.f32.mrf.mxu0
        %v2826 = vadd.f32 %v2657, %v2825
        %2827 = vmatmul.bf16.gmra.mxu0 %v2300
        %v2828 = vpop.f32.mrf.mxu0
        %v2829 = vadd.f32 %v2660, %v2828
        %v2830 = vpop.f32.mrf.mxu0
        %v2831 = vadd.f32 %v2662, %v2830
        %2832 = vmatmul.bf16.gmra.mxu0 %v2302
        %v2833 = vpop.f32.mrf.mxu0
        %v2834 = vadd.f32 %v2665, %v2833
        %v2835 = vpop.f32.mrf.mxu0
        %v2836 = vadd.f32 %v2667, %v2835
        %2837 = vmatmul.bf16.gmra.mxu0 %v2304
        %v2838 = vpop.f32.mrf.mxu0
        %v2839 = vadd.f32 %v2670, %v2838
        %v2840 = vpop.f32.mrf.mxu0
        %v2841 = vadd.f32 %v2672, %v2840
        %2842 = vdwg.mxu0
        %2843 = vmatpush.bf16.msra.mxu0 %v2456
        %2844 = vmatpush.bf16.msra.mxu0 %v2454
        %2845 = vmatpush.bf16.msra.mxu0 %v2452
        %2846 = vmatpush.bf16.msra.mxu0 %v2450
        %2847 = vmatpush.bf16.msra.mxu0 %v2448
        %2848 = vmatpush.bf16.msra.mxu0 %v2446
        %2849 = vmatpush.bf16.msra.mxu0 %v2444
        %2850 = vmatpush.bf16.msra.mxu0 %v2442
        %2851 = vmatmul.bf16.gmra.mxu0 %v2241
        %v2852 = vpop.f32.mrf.mxu0
        %v2853 = vadd.f32 %v2342, %v2852
        %v2854 = vpop.f32.mrf.mxu0
        %v2855 = vadd.f32 %v2342, %v2854
        %2856 = vmatmul.bf16.gmra.mxu0 %v2243
        %v2857 = vpop.f32.mrf.mxu0
        %v2858 = vadd.f32 %v2342, %v2857
        %v2859 = vpop.f32.mrf.mxu0
        %v2860 = vadd.f32 %v2342, %v2859
        %2861 = vmatmul.bf16.gmra.mxu0 %v2245
        %v2862 = vpop.f32.mrf.mxu0
        %v2863 = vadd.f32 %v2342, %v2862
        %v2864 = vpop.f32.mrf.mxu0
        %v2865 = vadd.f32 %v2342, %v2864
        %2866 = vmatmul.bf16.gmra.mxu0 %v2247
        %v2867 = vpop.f32.mrf.mxu0
        %v2868 = vadd.f32 %v2342, %v2867
        %v2869 = vpop.f32.mrf.mxu0
        %v2870 = vadd.f32 %v2342, %v2869
        %2871 = vmatmul.bf16.gmra.mxu0 %v2249
        %v2872 = vpop.f32.mrf.mxu0
        %v2873 = vadd.f32 %v2342, %v2872
        %v2874 = vpop.f32.mrf.mxu0
        %v2875 = vadd.f32 %v2342, %v2874
        %2876 = vmatmul.bf16.gmra.mxu0 %v2251
        %v2877 = vpop.f32.mrf.mxu0
        %v2878 = vadd.f32 %v2342, %v2877
        %v2879 = vpop.f32.mrf.mxu0
        %v2880 = vadd.f32 %v2342, %v2879
        %2881 = vmatmul.bf16.gmra.mxu0 %v2253
        %v2882 = vpop.f32.mrf.mxu0
        %v2883 = vadd.f32 %v2342, %v2882
        %v2884 = vpop.f32.mrf.mxu0
        %v2885 = vadd.f32 %v2342, %v2884
        %2886 = vmatmul.bf16.gmra.mxu0 %v2255
        %v2887 = vpop.f32.mrf.mxu0
        %v2888 = vadd.f32 %v2342, %v2887
        %v2889 = vpop.f32.mrf.mxu0
        %v2890 = vadd.f32 %v2342, %v2889
        %2891 = vmatmul.bf16.gmra.mxu0 %v2257
        %v2892 = vpop.f32.mrf.mxu0
        %v2893 = vadd.f32 %v2342, %v2892
        %v2894 = vpop.f32.mrf.mxu0
        %v2895 = vadd.f32 %v2342, %v2894
        %2896 = vmatmul.bf16.gmra.mxu0 %v2259
        %v2897 = vpop.f32.mrf.mxu0
        %v2898 = vadd.f32 %v2342, %v2897
        %v2899 = vpop.f32.mrf.mxu0
        %v2900 = vadd.f32 %v2342, %v2899
        %2901 = vmatmul.bf16.gmra.mxu0 %v2261
        %v2902 = vpop.f32.mrf.mxu0
        %v2903 = vadd.f32 %v2342, %v2902
        %v2904 = vpop.f32.mrf.mxu0
        %v2905 = vadd.f32 %v2342, %v2904
        %2906 = vmatmul.bf16.gmra.mxu0 %v2263
        %v2907 = vpop.f32.mrf.mxu0
        %v2908 = vadd.f32 %v2342, %v2907
        %v2909 = vpop.f32.mrf.mxu0
        %v2910 = vadd.f32 %v2342, %v2909
        %2911 = vmatmul.bf16.gmra.mxu0 %v2265
        %v2912 = vpop.f32.mrf.mxu0
        %v2913 = vadd.f32 %v2342, %v2912
        %v2914 = vpop.f32.mrf.mxu0
        %v2915 = vadd.f32 %v2342, %v2914
        %2916 = vmatmul.bf16.gmra.mxu0 %v2267
        %v2917 = vpop.f32.mrf.mxu0
        %v2918 = vadd.f32 %v2342, %v2917
        %v2919 = vpop.f32.mrf.mxu0
        %v2920 = vadd.f32 %v2342, %v2919
        %2921 = vmatmul.bf16.gmra.mxu0 %v2269
        %v2922 = vpop.f32.mrf.mxu0
        %v2923 = vadd.f32 %v2342, %v2922
        %v2924 = vpop.f32.mrf.mxu0
        %v2925 = vadd.f32 %v2342, %v2924
        %2926 = vmatmul.bf16.gmra.mxu0 %v2271
        %v2927 = vpop.f32.mrf.mxu0
        %v2928 = vadd.f32 %v2342, %v2927
        %v2929 = vpop.f32.mrf.mxu0
        %v2930 = vadd.f32 %v2342, %v2929
        %2931 = vmatmul.bf16.gmra.mxu0 %v2273
        %v2932 = vpop.f32.mrf.mxu0
        %v2933 = vadd.f32 %v2342, %v2932
        %v2934 = vpop.f32.mrf.mxu0
        %v2935 = vadd.f32 %v2342, %v2934
        %2936 = vmatmul.bf16.gmra.mxu0 %v2275
        %v2937 = vpop.f32.mrf.mxu0
        %v2938 = vadd.f32 %v2342, %v2937
        %v2939 = vpop.f32.mrf.mxu0
        %v2940 = vadd.f32 %v2342, %v2939
        %2941 = vmatmul.bf16.gmra.mxu0 %v2277
        %v2942 = vpop.f32.mrf.mxu0
        %v2943 = vadd.f32 %v2342, %v2942
        %v2944 = vpop.f32.mrf.mxu0
        %v2945 = vadd.f32 %v2342, %v2944
        %2946 = vmatmul.bf16.gmra.mxu0 %v2279
        %v2947 = vpop.f32.mrf.mxu0
        %v2948 = vadd.f32 %v2342, %v2947
        %v2949 = vpop.f32.mrf.mxu0
        %v2950 = vadd.f32 %v2342, %v2949
        %2951 = vmatmul.bf16.gmra.mxu0 %v2281
        %v2952 = vpop.f32.mrf.mxu0
        %v2953 = vadd.f32 %v2342, %v2952
        %v2954 = vpop.f32.mrf.mxu0
        %v2955 = vadd.f32 %v2342, %v2954
        %2956 = vmatmul.bf16.gmra.mxu0 %v2283
        %v2957 = vpop.f32.mrf.mxu0
        %v2958 = vadd.f32 %v2342, %v2957
        %v2959 = vpop.f32.mrf.mxu0
        %v2960 = vadd.f32 %v2342, %v2959
        %2961 = vmatmul.bf16.gmra.mxu0 %v2285
        %v2962 = vpop.f32.mrf.mxu0
        %v2963 = vadd.f32 %v2342, %v2962
        %v2964 = vpop.f32.mrf.mxu0
        %v2965 = vadd.f32 %v2342, %v2964
        %2966 = vmatmul.bf16.gmra.mxu0 %v2287
        %v2967 = vpop.f32.mrf.mxu0
        %v2968 = vadd.f32 %v2342, %v2967
        %v2969 = vpop.f32.mrf.mxu0
        %v2970 = vadd.f32 %v2342, %v2969
        %2971 = vmatmul.bf16.gmra.mxu0 %v2289
        %v2972 = vpop.f32.mrf.mxu0
        %v2973 = vadd.f32 %v2342, %v2972
        %v2974 = vpop.f32.mrf.mxu0
        %v2975 = vadd.f32 %v2342, %v2974
        %2976 = vmatmul.bf16.gmra.mxu0 %v2291
        %v2977 = vpop.f32.mrf.mxu0
        %v2978 = vadd.f32 %v2342, %v2977
        %v2979 = vpop.f32.mrf.mxu0
        %v2980 = vadd.f32 %v2342, %v2979
        %2981 = vmatmul.bf16.gmra.mxu0 %v2293
        %v2982 = vpop.f32.mrf.mxu0
        %v2983 = vadd.f32 %v2342, %v2982
        %v2984 = vpop.f32.mrf.mxu0
        %v2985 = vadd.f32 %v2342, %v2984
        %2986 = vmatmul.bf16.gmra.mxu0 %v2295
        %v2987 = vpop.f32.mrf.mxu0
        %v2988 = vadd.f32 %v2342, %v2987
        %v2989 = vpop.f32.mrf.mxu0
        %v2990 = vadd.f32 %v2342, %v2989
        %2991 = vmatmul.bf16.gmra.mxu0 %v2297
        %v2992 = vpop.f32.mrf.mxu0
        %v2993 = vadd.f32 %v2342, %v2992
        %v2994 = vpop.f32.mrf.mxu0
        %v2995 = vadd.f32 %v2342, %v2994
        %2996 = vmatmul.bf16.gmra.mxu0 %v2299
        %v2997 = vpop.f32.mrf.mxu0
        %v2998 = vadd.f32 %v2342, %v2997
        %v2999 = vpop.f32.mrf.mxu0
        %v3000 = vadd.f32 %v2342, %v2999
        %3001 = vmatmul.bf16.gmra.mxu0 %v2301
        %v3002 = vpop.f32.mrf.mxu0
        %v3003 = vadd.f32 %v2342, %v3002
        %v3004 = vpop.f32.mrf.mxu0
        %v3005 = vadd.f32 %v2342, %v3004
        %3006 = vmatmul.bf16.gmra.mxu0 %v2303
        %v3007 = vpop.f32.mrf.mxu0
        %v3008 = vadd.f32 %v2342, %v3007
        %v3009 = vpop.f32.mrf.mxu0
        %v3010 = vadd.f32 %v2342, %v3009
        %3011 = vdwg.mxu0
        %3012 = vmatpush.bf16.msra.mxu0 %v2472
        %3013 = vmatpush.bf16.msra.mxu0 %v2470
        %3014 = vmatpush.bf16.msra.mxu0 %v2468
        %3015 = vmatpush.bf16.msra.mxu0 %v2466
        %3016 = vmatpush.bf16.msra.mxu0 %v2464
        %3017 = vmatpush.bf16.msra.mxu0 %v2462
        %3018 = vmatpush.bf16.msra.mxu0 %v2460
        %3019 = vmatpush.bf16.msra.mxu0 %v2458
        %3020 = vmatmul.bf16.gmra.mxu0 %v2242
        %v3021 = vpop.f32.mrf.mxu0
        %v3022 = vadd.f32 %v2853, %v3021
        %v3023 = vpop.f32.mrf.mxu0
        %v3024 = vadd.f32 %v2855, %v3023
        %3025 = vmatmul.bf16.gmra.mxu0 %v2244
        %v3026 = vpop.f32.mrf.mxu0
        %v3027 = vadd.f32 %v2858, %v3026
        %v3028 = vpop.f32.mrf.mxu0
        %v3029 = vadd.f32 %v2860, %v3028
        %3030 = vmatmul.bf16.gmra.mxu0 %v2246
        %v3031 = vpop.f32.mrf.mxu0
        %v3032 = vadd.f32 %v2863, %v3031
        %v3033 = vpop.f32.mrf.mxu0
        %v3034 = vadd.f32 %v2865, %v3033
        %3035 = vmatmul.bf16.gmra.mxu0 %v2248
        %v3036 = vpop.f32.mrf.mxu0
        %v3037 = vadd.f32 %v2868, %v3036
        %v3038 = vpop.f32.mrf.mxu0
        %v3039 = vadd.f32 %v2870, %v3038
        %3040 = vmatmul.bf16.gmra.mxu0 %v2250
        %v3041 = vpop.f32.mrf.mxu0
        %v3042 = vadd.f32 %v2873, %v3041
        %v3043 = vpop.f32.mrf.mxu0
        %v3044 = vadd.f32 %v2875, %v3043
        %3045 = vmatmul.bf16.gmra.mxu0 %v2252
        %v3046 = vpop.f32.mrf.mxu0
        %v3047 = vadd.f32 %v2878, %v3046
        %v3048 = vpop.f32.mrf.mxu0
        %v3049 = vadd.f32 %v2880, %v3048
        %3050 = vmatmul.bf16.gmra.mxu0 %v2254
        %v3051 = vpop.f32.mrf.mxu0
        %v3052 = vadd.f32 %v2883, %v3051
        %v3053 = vpop.f32.mrf.mxu0
        %v3054 = vadd.f32 %v2885, %v3053
        %3055 = vmatmul.bf16.gmra.mxu0 %v2256
        %v3056 = vpop.f32.mrf.mxu0
        %v3057 = vadd.f32 %v2888, %v3056
        %v3058 = vpop.f32.mrf.mxu0
        %v3059 = vadd.f32 %v2890, %v3058
        %3060 = vmatmul.bf16.gmra.mxu0 %v2258
        %v3061 = vpop.f32.mrf.mxu0
        %v3062 = vadd.f32 %v2893, %v3061
        %v3063 = vpop.f32.mrf.mxu0
        %v3064 = vadd.f32 %v2895, %v3063
        %3065 = vmatmul.bf16.gmra.mxu0 %v2260
        %v3066 = vpop.f32.mrf.mxu0
        %v3067 = vadd.f32 %v2898, %v3066
        %v3068 = vpop.f32.mrf.mxu0
        %v3069 = vadd.f32 %v2900, %v3068
        %3070 = vmatmul.bf16.gmra.mxu0 %v2262
        %v3071 = vpop.f32.mrf.mxu0
        %v3072 = vadd.f32 %v2903, %v3071
        %v3073 = vpop.f32.mrf.mxu0
        %v3074 = vadd.f32 %v2905, %v3073
        %3075 = vmatmul.bf16.gmra.mxu0 %v2264
        %v3076 = vpop.f32.mrf.mxu0
        %v3077 = vadd.f32 %v2908, %v3076
        %v3078 = vpop.f32.mrf.mxu0
        %v3079 = vadd.f32 %v2910, %v3078
        %3080 = vmatmul.bf16.gmra.mxu0 %v2266
        %v3081 = vpop.f32.mrf.mxu0
        %v3082 = vadd.f32 %v2913, %v3081
        %v3083 = vpop.f32.mrf.mxu0
        %v3084 = vadd.f32 %v2915, %v3083
        %3085 = vmatmul.bf16.gmra.mxu0 %v2268
        %v3086 = vpop.f32.mrf.mxu0
        %v3087 = vadd.f32 %v2918, %v3086
        %v3088 = vpop.f32.mrf.mxu0
        %v3089 = vadd.f32 %v2920, %v3088
        %3090 = vmatmul.bf16.gmra.mxu0 %v2270
        %v3091 = vpop.f32.mrf.mxu0
        %v3092 = vadd.f32 %v2923, %v3091
        %v3093 = vpop.f32.mrf.mxu0
        %v3094 = vadd.f32 %v2925, %v3093
        %3095 = vmatmul.bf16.gmra.mxu0 %v2272
        %v3096 = vpop.f32.mrf.mxu0
        %v3097 = vadd.f32 %v2928, %v3096
        %v3098 = vpop.f32.mrf.mxu0
        %v3099 = vadd.f32 %v2930, %v3098
        %3100 = vmatmul.bf16.gmra.mxu0 %v2274
        %v3101 = vpop.f32.mrf.mxu0
        %v3102 = vadd.f32 %v2933, %v3101
        %v3103 = vpop.f32.mrf.mxu0
        %v3104 = vadd.f32 %v2935, %v3103
        %3105 = vmatmul.bf16.gmra.mxu0 %v2276
        %v3106 = vpop.f32.mrf.mxu0
        %v3107 = vadd.f32 %v2938, %v3106
        %v3108 = vpop.f32.mrf.mxu0
        %v3109 = vadd.f32 %v2940, %v3108
        %3110 = vmatmul.bf16.gmra.mxu0 %v2278
        %v3111 = vpop.f32.mrf.mxu0
        %v3112 = vadd.f32 %v2943, %v3111
        %v3113 = vpop.f32.mrf.mxu0
        %v3114 = vadd.f32 %v2945, %v3113
        %3115 = vmatmul.bf16.gmra.mxu0 %v2280
        %v3116 = vpop.f32.mrf.mxu0
        %v3117 = vadd.f32 %v2948, %v3116
        %v3118 = vpop.f32.mrf.mxu0
        %v3119 = vadd.f32 %v2950, %v3118
        %3120 = vmatmul.bf16.gmra.mxu0 %v2282
        %v3121 = vpop.f32.mrf.mxu0
        %v3122 = vadd.f32 %v2953, %v3121
        %v3123 = vpop.f32.mrf.mxu0
        %v3124 = vadd.f32 %v2955, %v3123
        %3125 = vmatmul.bf16.gmra.mxu0 %v2284
        %v3126 = vpop.f32.mrf.mxu0
        %v3127 = vadd.f32 %v2958, %v3126
        %v3128 = vpop.f32.mrf.mxu0
        %v3129 = vadd.f32 %v2960, %v3128
        %3130 = vmatmul.bf16.gmra.mxu0 %v2286
        %v3131 = vpop.f32.mrf.mxu0
        %v3132 = vadd.f32 %v2963, %v3131
        %v3133 = vpop.f32.mrf.mxu0
        %v3134 = vadd.f32 %v2965, %v3133
        %3135 = vmatmul.bf16.gmra.mxu0 %v2288
        %v3136 = vpop.f32.mrf.mxu0
        %v3137 = vadd.f32 %v2968, %v3136
        %v3138 = vpop.f32.mrf.mxu0
        %v3139 = vadd.f32 %v2970, %v3138
        %3140 = vmatmul.bf16.gmra.mxu0 %v2290
        %v3141 = vpop.f32.mrf.mxu0
        %v3142 = vadd.f32 %v2973, %v3141
        %v3143 = vpop.f32.mrf.mxu0
        %v3144 = vadd.f32 %v2975, %v3143
        %3145 = vmatmul.bf16.gmra.mxu0 %v2292
        %v3146 = vpop.f32.mrf.mxu0
        %v3147 = vadd.f32 %v2978, %v3146
        %v3148 = vpop.f32.mrf.mxu0
        %v3149 = vadd.f32 %v2980, %v3148
        %3150 = vmatmul.bf16.gmra.mxu0 %v2294
        %v3151 = vpop.f32.mrf.mxu0
        %v3152 = vadd.f32 %v2983, %v3151
        %v3153 = vpop.f32.mrf.mxu0
        %v3154 = vadd.f32 %v2985, %v3153
        %3155 = vmatmul.bf16.gmra.mxu0 %v2296
        %v3156 = vpop.f32.mrf.mxu0
        %v3157 = vadd.f32 %v2988, %v3156
        %v3158 = vpop.f32.mrf.mxu0
        %v3159 = vadd.f32 %v2990, %v3158
        %3160 = vmatmul.bf16.gmra.mxu0 %v2298
        %v3161 = vpop.f32.mrf.mxu0
        %v3162 = vadd.f32 %v2993, %v3161
        %v3163 = vpop.f32.mrf.mxu0
        %v3164 = vadd.f32 %v2995, %v3163
        %3165 = vmatmul.bf16.gmra.mxu0 %v2300
        %v3166 = vpop.f32.mrf.mxu0
        %v3167 = vadd.f32 %v2998, %v3166
        %v3168 = vpop.f32.mrf.mxu0
        %v3169 = vadd.f32 %v3000, %v3168
        %3170 = vmatmul.bf16.gmra.mxu0 %v2302
        %v3171 = vpop.f32.mrf.mxu0
        %v3172 = vadd.f32 %v3003, %v3171
        %v3173 = vpop.f32.mrf.mxu0
        %v3174 = vadd.f32 %v3005, %v3173
        %3175 = vmatmul.bf16.gmra.mxu0 %v2304
        %v3176 = vpop.f32.mrf.mxu0
        %v3177 = vadd.f32 %v3008, %v3176
        %v3178 = vpop.f32.mrf.mxu0
        %v3179 = vadd.f32 %v3010, %v3178
        %3180 = vdwg.mxu0
        %v3181 = vmax.f32 %v2684, 0.0
        %v3182 = vmax.f32 %v3022, 0.0
        %v3183 = vmax.f32 %v2686, 0.0
        %v3184 = vmax.f32 %v3024, 0.0
        %v3185 = vmax.f32 %v2689, 0.0
        %v3186 = vmax.f32 %v3027, 0.0
        %v3187 = vmax.f32 %v2691, 0.0
        %v3188 = vmax.f32 %v3029, 0.0
        %v3189 = vmax.f32 %v2694, 0.0
        %v3190 = vmax.f32 %v3032, 0.0
        %v3191 = vmax.f32 %v2696, 0.0
        %v3192 = vmax.f32 %v3034, 0.0
        %v3193 = vmax.f32 %v2699, 0.0
        %v3194 = vmax.f32 %v3037, 0.0
        %v3195 = vmax.f32 %v2701, 0.0
        %v3196 = vmax.f32 %v3039, 0.0
        %v3197 = vmax.f32 %v2704, 0.0
        %v3198 = vmax.f32 %v3042, 0.0
        %v3199 = vmax.f32 %v2706, 0.0
        %v3200 = vmax.f32 %v3044, 0.0
        %v3201 = vmax.f32 %v2709, 0.0
        %v3202 = vmax.f32 %v3047, 0.0
        %v3203 = vmax.f32 %v2711, 0.0
        %v3204 = vmax.f32 %v3049, 0.0
        %v3205 = vmax.f32 %v2714, 0.0
        %v3206 = vmax.f32 %v3052, 0.0
        %v3207 = vmax.f32 %v2716, 0.0
        %v3208 = vmax.f32 %v3054, 0.0
        %v3209 = vmax.f32 %v2719, 0.0
        %v3210 = vmax.f32 %v3057, 0.0
        %v3211 = vmax.f32 %v2721, 0.0
        %v3212 = vmax.f32 %v3059, 0.0
        %v3213 = vmax.f32 %v2724, 0.0
        %v3214 = vmax.f32 %v3062, 0.0
        %v3215 = vmax.f32 %v2726, 0.0
        %v3216 = vmax.f32 %v3064, 0.0
        %v3217 = vmax.f32 %v2729, 0.0
        %v3218 = vmax.f32 %v3067, 0.0
        %v3219 = vmax.f32 %v2731, 0.0
        %v3220 = vmax.f32 %v3069, 0.0
        %v3221 = vmax.f32 %v2734, 0.0
        %v3222 = vmax.f32 %v3072, 0.0
        %v3223 = vmax.f32 %v2736, 0.0
        %v3224 = vmax.f32 %v3074, 0.0
        %v3225 = vmax.f32 %v2739, 0.0
        %v3226 = vmax.f32 %v3077, 0.0
        %v3227 = vmax.f32 %v2741, 0.0
        %v3228 = vmax.f32 %v3079, 0.0
        %v3229 = vmax.f32 %v2744, 0.0
        %v3230 = vmax.f32 %v3082, 0.0
        %v3231 = vmax.f32 %v2746, 0.0
        %v3232 = vmax.f32 %v3084, 0.0
        %v3233 = vmax.f32 %v2749, 0.0
        %v3234 = vmax.f32 %v3087, 0.0
        %v3235 = vmax.f32 %v2751, 0.0
        %v3236 = vmax.f32 %v3089, 0.0
        %v3237 = vmax.f32 %v2754, 0.0
        %v3238 = vmax.f32 %v3092, 0.0
        %v3239 = vmax.f32 %v2756, 0.0
        %v3240 = vmax.f32 %v3094, 0.0
        %v3241 = vmax.f32 %v2759, 0.0
        %v3242 = vmax.f32 %v3097, 0.0
        %v3243 = vmax.f32 %v2761, 0.0
        %v3244 = vmax.f32 %v3099, 0.0
        %v3245 = vmax.f32 %v2764, 0.0
        %v3246 = vmax.f32 %v3102, 0.0
        %v3247 = vmax.f32 %v2766, 0.0
        %v3248 = vmax.f32 %v3104, 0.0
        %v3249 = vmax.f32 %v2769, 0.0
        %v3250 = vmax.f32 %v3107, 0.0
        %v3251 = vmax.f32 %v2771, 0.0
        %v3252 = vmax.f32 %v3109, 0.0
        %v3253 = vmax.f32 %v2774, 0.0
        %v3254 = vmax.f32 %v3112, 0.0
        %v3255 = vmax.f32 %v2776, 0.0
        %v3256 = vmax.f32 %v3114, 0.0
        %v3257 = vmax.f32 %v2779, 0.0
        %v3258 = vmax.f32 %v3117, 0.0
        %v3259 = vmax.f32 %v2781, 0.0
        %v3260 = vmax.f32 %v3119, 0.0
        %v3261 = vmax.f32 %v2784, 0.0
        %v3262 = vmax.f32 %v3122, 0.0
        %v3263 = vmax.f32 %v2786, 0.0
        %v3264 = vmax.f32 %v3124, 0.0
        %v3265 = vmax.f32 %v2789, 0.0
        %v3266 = vmax.f32 %v3127, 0.0
        %v3267 = vmax.f32 %v2791, 0.0
        %v3268 = vmax.f32 %v3129, 0.0
        %v3269 = vmax.f32 %v2794, 0.0
        %v3270 = vmax.f32 %v3132, 0.0
        %v3271 = vmax.f32 %v2796, 0.0
        %v3272 = vmax.f32 %v3134, 0.0
        %v3273 = vmax.f32 %v2799, 0.0
        %v3274 = vmax.f32 %v3137, 0.0
        %v3275 = vmax.f32 %v2801, 0.0
        %v3276 = vmax.f32 %v3139, 0.0
        %v3277 = vmax.f32 %v2804, 0.0
        %v3278 = vmax.f32 %v3142, 0.0
        %v3279 = vmax.f32 %v2806, 0.0
        %v3280 = vmax.f32 %v3144, 0.0
        %v3281 = vmax.f32 %v2809, 0.0
        %v3282 = vmax.f32 %v3147, 0.0
        %v3283 = vmax.f32 %v2811, 0.0
        %v3284 = vmax.f32 %v3149, 0.0
        %v3285 = vmax.f32 %v2814, 0.0
        %v3286 = vmax.f32 %v3152, 0.0
        %v3287 = vmax.f32 %v2816, 0.0
        %v3288 = vmax.f32 %v3154, 0.0
        %v3289 = vmax.f32 %v2819, 0.0
        %v3290 = vmax.f32 %v3157, 0.0
        %v3291 = vmax.f32 %v2821, 0.0
        %v3292 = vmax.f32 %v3159, 0.0
        %v3293 = vmax.f32 %v2824, 0.0
        %v3294 = vmax.f32 %v3162, 0.0
        %v3295 = vmax.f32 %v2826, 0.0
        %v3296 = vmax.f32 %v3164, 0.0
        %v3297 = vmax.f32 %v2829, 0.0
        %v3298 = vmax.f32 %v3167, 0.0
        %v3299 = vmax.f32 %v2831, 0.0
        %v3300 = vmax.f32 %v3169, 0.0
        %v3301 = vmax.f32 %v2834, 0.0
        %v3302 = vmax.f32 %v3172, 0.0
        %v3303 = vmax.f32 %v2836, 0.0
        %v3304 = vmax.f32 %v3174, 0.0
        %v3305 = vmax.f32 %v2839, 0.0
        %v3306 = vmax.f32 %v3177, 0.0
        %v3307 = vmax.f32 %v2841, 0.0
        %v3308 = vmax.f32 %v3179, 0.0
        %v3309 = vpack.c.bf16 %v3183, %v3181
        %v3310 = vpack.c.bf16 %v3184, %v3182
        %v3311 = vpack.c.bf16 %v3187, %v3185
        %v3312 = vpack.c.bf16 %v3188, %v3186
        %v3313 = vpack.c.bf16 %v3191, %v3189
        %v3314 = vpack.c.bf16 %v3192, %v3190
        %v3315 = vpack.c.bf16 %v3195, %v3193
        %v3316 = vpack.c.bf16 %v3196, %v3194
        %v3317 = vpack.c.bf16 %v3199, %v3197
        %v3318 = vpack.c.bf16 %v3200, %v3198
        %v3319 = vpack.c.bf16 %v3203, %v3201
        %v3320 = vpack.c.bf16 %v3204, %v3202
        %v3321 = vpack.c.bf16 %v3207, %v3205
        %v3322 = vpack.c.bf16 %v3208, %v3206
        %v3323 = vpack.c.bf16 %v3211, %v3209
        %v3324 = vpack.c.bf16 %v3212, %v3210
        %v3325 = vpack.c.bf16 %v3215, %v3213
        %v3326 = vpack.c.bf16 %v3216, %v3214
        %v3327 = vpack.c.bf16 %v3219, %v3217
        %v3328 = vpack.c.bf16 %v3220, %v3218
        %v3329 = vpack.c.bf16 %v3223, %v3221
        %v3330 = vpack.c.bf16 %v3224, %v3222
        %v3331 = vpack.c.bf16 %v3227, %v3225
        %v3332 = vpack.c.bf16 %v3228, %v3226
        %v3333 = vpack.c.bf16 %v3231, %v3229
        %v3334 = vpack.c.bf16 %v3232, %v3230
        %v3335 = vpack.c.bf16 %v3235, %v3233
        %v3336 = vpack.c.bf16 %v3236, %v3234
        %v3337 = vpack.c.bf16 %v3239, %v3237
        %v3338 = vpack.c.bf16 %v3240, %v3238
        %v3339 = vpack.c.bf16 %v3243, %v3241
        %v3340 = vpack.c.bf16 %v3244, %v3242
        %v3341 = vpack.c.bf16 %v3247, %v3245
        %v3342 = vpack.c.bf16 %v3248, %v3246
        %v3343 = vpack.c.bf16 %v3251, %v3249
        %v3344 = vpack.c.bf16 %v3252, %v3250
        %v3345 = vpack.c.bf16 %v3255, %v3253
        %v3346 = vpack.c.bf16 %v3256, %v3254
        %v3347 = vpack.c.bf16 %v3259, %v3257
        %v3348 = vpack.c.bf16 %v3260, %v3258
        %v3349 = vpack.c.bf16 %v3263, %v3261
        %v3350 = vpack.c.bf16 %v3264, %v3262
        %v3351 = vpack.c.bf16 %v3267, %v3265
        %v3352 = vpack.c.bf16 %v3268, %v3266
        %v3353 = vpack.c.bf16 %v3271, %v3269
        %v3354 = vpack.c.bf16 %v3272, %v3270
        %v3355 = vpack.c.bf16 %v3275, %v3273
        %v3356 = vpack.c.bf16 %v3276, %v3274
        %v3357 = vpack.c.bf16 %v3279, %v3277
        %v3358 = vpack.c.bf16 %v3280, %v3278
        %v3359 = vpack.c.bf16 %v3283, %v3281
        %v3360 = vpack.c.bf16 %v3284, %v3282
        %v3361 = vpack.c.bf16 %v3287, %v3285
        %v3362 = vpack.c.bf16 %v3288, %v3286
        %v3363 = vpack.c.bf16 %v3291, %v3289
        %v3364 = vpack.c.bf16 %v3292, %v3290
        %v3365 = vpack.c.bf16 %v3295, %v3293
        %v3366 = vpack.c.bf16 %v3296, %v3294
        %v3367 = vpack.c.bf16 %v3299, %v3297
        %v3368 = vpack.c.bf16 %v3300, %v3298
        %v3369 = vpack.c.bf16 %v3303, %v3301
        %v3370 = vpack.c.bf16 %v3304, %v3302
        %v3371 = vpack.c.bf16 %v3307, %v3305
        %v3372 = vpack.c.bf16 %v3308, %v3306
        %s3373 = scalar_lea.vmem [#allocation8], 512
        %v3374 = vld [vmem:[%s3373] sm:$0xff]
        %v3375 = vld [vmem:[%s3373 + $0x8] sm:$0xff]
        %v3376 = vld [vmem:[%s3373 + $0x10] sm:$0xff]
        %v3377 = vld [vmem:[%s3373 + $0x18] sm:$0xff]
        %v3378 = vld [vmem:[%s3373 + $0x20] sm:$0xff]
        %v3379 = vld [vmem:[%s3373 + $0x28] sm:$0xff]
        %v3380 = vld [vmem:[%s3373 + $0x30] sm:$0xff]
        %v3381 = vld [vmem:[%s3373 + $0x38] sm:$0xff]
        %v3382 = vld [vmem:[%s3373 + $0x40] sm:$0xff]
        %v3383 = vld [vmem:[%s3373 + $0x48] sm:$0xff]
        %v3384 = vld [vmem:[%s3373 + $0x50] sm:$0xff]
        %v3385 = vld [vmem:[%s3373 + $0x58] sm:$0xff]
        %v3386 = vld [vmem:[%s3373 + $0x60] sm:$0xff]
        %v3387 = vld [vmem:[%s3373 + $0x68] sm:$0xff]
        %v3388 = vld [vmem:[%s3373 + $0x70] sm:$0xff]
        %v3389 = vld [vmem:[%s3373 + $0x78] sm:$0xff]
        %v3390 = vld [vmem:[%s3373 + $0x80] sm:$0xff]
        %v3391 = vld [vmem:[%s3373 + $0x88] sm:$0xff]
        %v3392 = vld [vmem:[%s3373 + $0x90] sm:$0xff]
        %v3393 = vld [vmem:[%s3373 + $0x98] sm:$0xff]
        %v3394 = vld [vmem:[%s3373 + $0xa0] sm:$0xff]
        %v3395 = vld [vmem:[%s3373 + $0xa8] sm:$0xff]
        %v3396 = vld [vmem:[%s3373 + $0xb0] sm:$0xff]
        %v3397 = vld [vmem:[%s3373 + $0xb8] sm:$0xff]
        %v3398 = vld [vmem:[%s3373 + $0xc0] sm:$0xff]
        %v3399 = vld [vmem:[%s3373 + $0xc8] sm:$0xff]
        %v3400 = vld [vmem:[%s3373 + $0xd0] sm:$0xff]
        %v3401 = vld [vmem:[%s3373 + $0xd8] sm:$0xff]
        %v3402 = vld [vmem:[%s3373 + $0xe0] sm:$0xff]
        %v3403 = vld [vmem:[%s3373 + $0xe8] sm:$0xff]
        %v3404 = vld [vmem:[%s3373 + $0xf0] sm:$0xff]
        %v3405 = vld [vmem:[%s3373 + $0xf8] sm:$0xff]
        %s3406 = scalar_lea.vmem [#allocation9], 4
        %v3407 = vld [vmem:[%s3406] sm:$0x3]
        %v3409 = vperm.slane %v3407, 0
        %v3410 = vperm.slane %v3407, 1
        %v3445 = vunpack.c.l.b16 %v3374
        %v3446 = vunpack.c.h.b16 %v3374
        %v3447 = vunpack.c.l.b16 %v3375
        %v3448 = vunpack.c.h.b16 %v3375
        %v3449 = vunpack.c.l.b16 %v3376
        %v3450 = vunpack.c.h.b16 %v3376
        %v3451 = vunpack.c.l.b16 %v3377
        %v3452 = vunpack.c.h.b16 %v3377
        %v3453 = vunpack.c.l.b16 %v3378
        %v3454 = vunpack.c.h.b16 %v3378
        %v3455 = vunpack.c.l.b16 %v3379
        %v3456 = vunpack.c.h.b16 %v3379
        %v3457 = vunpack.c.l.b16 %v3380
        %v3458 = vunpack.c.h.b16 %v3380
        %v3459 = vunpack.c.l.b16 %v3381
        %v3460 = vunpack.c.h.b16 %v3381
        %v3461 = vunpack.c.l.b16 %v3382
        %v3462 = vunpack.c.h.b16 %v3382
        %v3463 = vunpack.c.l.b16 %v3383
        %v3464 = vunpack.c.h.b16 %v3383
        %v3465 = vunpack.c.l.b16 %v3384
        %v3466 = vunpack.c.h.b16 %v3384
        %v3467 = vunpack.c.l.b16 %v3385
        %v3468 = vunpack.c.h.b16 %v3385
        %v3469 = vunpack.c.l.b16 %v3386
        %v3470 = vunpack.c.h.b16 %v3386
        %v3471 = vunpack.c.l.b16 %v3387
        %v3472 = vunpack.c.h.b16 %v3387
        %v3473 = vunpack.c.l.b16 %v3388
        %v3474 = vunpack.c.h.b16 %v3388
        %v3475 = vunpack.c.l.b16 %v3389
        %v3476 = vunpack.c.h.b16 %v3389
        %v3477 = vunpack.c.l.b16 %v3390
        %v3478 = vunpack.c.h.b16 %v3390
        %v3479 = vunpack.c.l.b16 %v3391
        %v3480 = vunpack.c.h.b16 %v3391
        %v3481 = vunpack.c.l.b16 %v3392
        %v3482 = vunpack.c.h.b16 %v3392
        %v3483 = vunpack.c.l.b16 %v3393
        %v3484 = vunpack.c.h.b16 %v3393
        %v3485 = vunpack.c.l.b16 %v3394
        %v3486 = vunpack.c.h.b16 %v3394
        %v3487 = vunpack.c.l.b16 %v3395
        %v3488 = vunpack.c.h.b16 %v3395
        %v3489 = vunpack.c.l.b16 %v3396
        %v3490 = vunpack.c.h.b16 %v3396
        %v3491 = vunpack.c.l.b16 %v3397
        %v3492 = vunpack.c.h.b16 %v3397
        %v3493 = vunpack.c.l.b16 %v3398
        %v3494 = vunpack.c.h.b16 %v3398
        %v3495 = vunpack.c.l.b16 %v3399
        %v3496 = vunpack.c.h.b16 %v3399
        %v3497 = vunpack.c.l.b16 %v3400
        %v3498 = vunpack.c.h.b16 %v3400
        %v3499 = vunpack.c.l.b16 %v3401
        %v3500 = vunpack.c.h.b16 %v3401
        %v3501 = vunpack.c.l.b16 %v3402
        %v3502 = vunpack.c.h.b16 %v3402
        %v3503 = vunpack.c.l.b16 %v3403
        %v3504 = vunpack.c.h.b16 %v3403
        %v3505 = vunpack.c.l.b16 %v3404
        %v3506 = vunpack.c.h.b16 %v3404
        %v3507 = vunpack.c.l.b16 %v3405
        %v3508 = vunpack.c.h.b16 %v3405
        %v3509 = vpack.c.b16 %v3447, %v3445
        %v3510 = vpack.c.b16 %v3448, %v3446
        %v3511 = vpack.c.b16 %v3451, %v3449
        %v3512 = vpack.c.b16 %v3452, %v3450
        %v3513 = vpack.c.b16 %v3455, %v3453
        %v3514 = vpack.c.b16 %v3456, %v3454
        %v3515 = vpack.c.b16 %v3459, %v3457
        %v3516 = vpack.c.b16 %v3460, %v3458
        %v3517 = vpack.c.b16 %v3463, %v3461
        %v3518 = vpack.c.b16 %v3464, %v3462
        %v3519 = vpack.c.b16 %v3467, %v3465
        %v3520 = vpack.c.b16 %v3468, %v3466
        %v3521 = vpack.c.b16 %v3471, %v3469
        %v3522 = vpack.c.b16 %v3472, %v3470
        %v3523 = vpack.c.b16 %v3475, %v3473
        %v3524 = vpack.c.b16 %v3476, %v3474
        %v3525 = vpack.c.b16 %v3479, %v3477
        %v3526 = vpack.c.b16 %v3480, %v3478
        %v3527 = vpack.c.b16 %v3483, %v3481
        %v3528 = vpack.c.b16 %v3484, %v3482
        %v3529 = vpack.c.b16 %v3487, %v3485
        %v3530 = vpack.c.b16 %v3488, %v3486
        %v3531 = vpack.c.b16 %v3491, %v3489
        %v3532 = vpack.c.b16 %v3492, %v3490
        %v3533 = vpack.c.b16 %v3495, %v3493
        %v3534 = vpack.c.b16 %v3496, %v3494
        %v3535 = vpack.c.b16 %v3499, %v3497
        %v3536 = vpack.c.b16 %v3500, %v3498
        %v3537 = vpack.c.b16 %v3503, %v3501
        %v3538 = vpack.c.b16 %v3504, %v3502
        %v3539 = vpack.c.b16 %v3507, %v3505
        %v3540 = vpack.c.b16 %v3508, %v3506
        %3573 = vmatpush.bf16.msra.mxu0 %v3523
        %3574 = vmatpush.bf16.msra.mxu0 %v3521
        %3575 = vmatpush.bf16.msra.mxu0 %v3519
        %3576 = vmatpush.bf16.msra.mxu0 %v3517
        %3577 = vmatpush.bf16.msra.mxu0 %v3515
        %3578 = vmatpush.bf16.msra.mxu0 %v3513
        %3579 = vmatpush.bf16.msra.mxu0 %v3511
        %3580 = vmatpush.bf16.msra.mxu0 %v3509
        %3581 = vmatmul.bf16.gmra.mxu0 %v3309
        %v3582 = vpop.f32.mrf.mxu0
        %v3583 = vadd.f32 %v3409, %v3582
        %v3584 = vpop.f32.mrf.mxu0
        %v3585 = vadd.f32 %v3409, %v3584
        %3586 = vmatmul.bf16.gmra.mxu0 %v3311
        %v3587 = vpop.f32.mrf.mxu0
        %v3588 = vadd.f32 %v3409, %v3587
        %v3589 = vpop.f32.mrf.mxu0
        %v3590 = vadd.f32 %v3409, %v3589
        %3591 = vmatmul.bf16.gmra.mxu0 %v3313
        %v3592 = vpop.f32.mrf.mxu0
        %v3593 = vadd.f32 %v3409, %v3592
        %v3594 = vpop.f32.mrf.mxu0
        %v3595 = vadd.f32 %v3409, %v3594
        %3596 = vmatmul.bf16.gmra.mxu0 %v3315
        %v3597 = vpop.f32.mrf.mxu0
        %v3598 = vadd.f32 %v3409, %v3597
        %v3599 = vpop.f32.mrf.mxu0
        %v3600 = vadd.f32 %v3409, %v3599
        %3601 = vmatmul.bf16.gmra.mxu0 %v3317
        %v3602 = vpop.f32.mrf.mxu0
        %v3603 = vadd.f32 %v3409, %v3602
        %v3604 = vpop.f32.mrf.mxu0
        %v3605 = vadd.f32 %v3409, %v3604
        %3606 = vmatmul.bf16.gmra.mxu0 %v3319
        %v3607 = vpop.f32.mrf.mxu0
        %v3608 = vadd.f32 %v3409, %v3607
        %v3609 = vpop.f32.mrf.mxu0
        %v3610 = vadd.f32 %v3409, %v3609
        %3611 = vmatmul.bf16.gmra.mxu0 %v3321
        %v3612 = vpop.f32.mrf.mxu0
        %v3613 = vadd.f32 %v3409, %v3612
        %v3614 = vpop.f32.mrf.mxu0
        %v3615 = vadd.f32 %v3409, %v3614
        %3616 = vmatmul.bf16.gmra.mxu0 %v3323
        %v3617 = vpop.f32.mrf.mxu0
        %v3618 = vadd.f32 %v3409, %v3617
        %v3619 = vpop.f32.mrf.mxu0
        %v3620 = vadd.f32 %v3409, %v3619
        %3621 = vmatmul.bf16.gmra.mxu0 %v3325
        %v3622 = vpop.f32.mrf.mxu0
        %v3623 = vadd.f32 %v3409, %v3622
        %v3624 = vpop.f32.mrf.mxu0
        %v3625 = vadd.f32 %v3409, %v3624
        %3626 = vmatmul.bf16.gmra.mxu0 %v3327
        %v3627 = vpop.f32.mrf.mxu0
        %v3628 = vadd.f32 %v3409, %v3627
        %v3629 = vpop.f32.mrf.mxu0
        %v3630 = vadd.f32 %v3409, %v3629
        %3631 = vmatmul.bf16.gmra.mxu0 %v3329
        %v3632 = vpop.f32.mrf.mxu0
        %v3633 = vadd.f32 %v3409, %v3632
        %v3634 = vpop.f32.mrf.mxu0
        %v3635 = vadd.f32 %v3409, %v3634
        %3636 = vmatmul.bf16.gmra.mxu0 %v3331
        %v3637 = vpop.f32.mrf.mxu0
        %v3638 = vadd.f32 %v3409, %v3637
        %v3639 = vpop.f32.mrf.mxu0
        %v3640 = vadd.f32 %v3409, %v3639
        %3641 = vmatmul.bf16.gmra.mxu0 %v3333
        %v3642 = vpop.f32.mrf.mxu0
        %v3643 = vadd.f32 %v3409, %v3642
        %v3644 = vpop.f32.mrf.mxu0
        %v3645 = vadd.f32 %v3409, %v3644
        %3646 = vmatmul.bf16.gmra.mxu0 %v3335
        %v3647 = vpop.f32.mrf.mxu0
        %v3648 = vadd.f32 %v3409, %v3647
        %v3649 = vpop.f32.mrf.mxu0
        %v3650 = vadd.f32 %v3409, %v3649
        %3651 = vmatmul.bf16.gmra.mxu0 %v3337
        %v3652 = vpop.f32.mrf.mxu0
        %v3653 = vadd.f32 %v3409, %v3652
        %v3654 = vpop.f32.mrf.mxu0
        %v3655 = vadd.f32 %v3409, %v3654
        %3656 = vmatmul.bf16.gmra.mxu0 %v3339
        %v3657 = vpop.f32.mrf.mxu0
        %v3658 = vadd.f32 %v3409, %v3657
        %v3659 = vpop.f32.mrf.mxu0
        %v3660 = vadd.f32 %v3409, %v3659
        %3661 = vmatmul.bf16.gmra.mxu0 %v3341
        %v3662 = vpop.f32.mrf.mxu0
        %v3663 = vadd.f32 %v3409, %v3662
        %v3664 = vpop.f32.mrf.mxu0
        %v3665 = vadd.f32 %v3409, %v3664
        %3666 = vmatmul.bf16.gmra.mxu0 %v3343
        %v3667 = vpop.f32.mrf.mxu0
        %v3668 = vadd.f32 %v3409, %v3667
        %v3669 = vpop.f32.mrf.mxu0
        %v3670 = vadd.f32 %v3409, %v3669
        %3671 = vmatmul.bf16.gmra.mxu0 %v3345
        %v3672 = vpop.f32.mrf.mxu0
        %v3673 = vadd.f32 %v3409, %v3672
        %v3674 = vpop.f32.mrf.mxu0
        %v3675 = vadd.f32 %v3409, %v3674
        %3676 = vmatmul.bf16.gmra.mxu0 %v3347
        %v3677 = vpop.f32.mrf.mxu0
        %v3678 = vadd.f32 %v3409, %v3677
        %v3679 = vpop.f32.mrf.mxu0
        %v3680 = vadd.f32 %v3409, %v3679
        %3681 = vmatmul.bf16.gmra.mxu0 %v3349
        %v3682 = vpop.f32.mrf.mxu0
        %v3683 = vadd.f32 %v3409, %v3682
        %v3684 = vpop.f32.mrf.mxu0
        %v3685 = vadd.f32 %v3409, %v3684
        %3686 = vmatmul.bf16.gmra.mxu0 %v3351
        %v3687 = vpop.f32.mrf.mxu0
        %v3688 = vadd.f32 %v3409, %v3687
        %v3689 = vpop.f32.mrf.mxu0
        %v3690 = vadd.f32 %v3409, %v3689
        %3691 = vmatmul.bf16.gmra.mxu0 %v3353
        %v3692 = vpop.f32.mrf.mxu0
        %v3693 = vadd.f32 %v3409, %v3692
        %v3694 = vpop.f32.mrf.mxu0
        %v3695 = vadd.f32 %v3409, %v3694
        %3696 = vmatmul.bf16.gmra.mxu0 %v3355
        %v3697 = vpop.f32.mrf.mxu0
        %v3698 = vadd.f32 %v3409, %v3697
        %v3699 = vpop.f32.mrf.mxu0
        %v3700 = vadd.f32 %v3409, %v3699
        %3701 = vmatmul.bf16.gmra.mxu0 %v3357
        %v3702 = vpop.f32.mrf.mxu0
        %v3703 = vadd.f32 %v3409, %v3702
        %v3704 = vpop.f32.mrf.mxu0
        %v3705 = vadd.f32 %v3409, %v3704
        %3706 = vmatmul.bf16.gmra.mxu0 %v3359
        %v3707 = vpop.f32.mrf.mxu0
        %v3708 = vadd.f32 %v3409, %v3707
        %v3709 = vpop.f32.mrf.mxu0
        %v3710 = vadd.f32 %v3409, %v3709
        %3711 = vmatmul.bf16.gmra.mxu0 %v3361
        %v3712 = vpop.f32.mrf.mxu0
        %v3713 = vadd.f32 %v3409, %v3712
        %v3714 = vpop.f32.mrf.mxu0
        %v3715 = vadd.f32 %v3409, %v3714
        %3716 = vmatmul.bf16.gmra.mxu0 %v3363
        %v3717 = vpop.f32.mrf.mxu0
        %v3718 = vadd.f32 %v3409, %v3717
        %v3719 = vpop.f32.mrf.mxu0
        %v3720 = vadd.f32 %v3409, %v3719
        %3721 = vmatmul.bf16.gmra.mxu0 %v3365
        %v3722 = vpop.f32.mrf.mxu0
        %v3723 = vadd.f32 %v3409, %v3722
        %v3724 = vpop.f32.mrf.mxu0
        %v3725 = vadd.f32 %v3409, %v3724
        %3726 = vmatmul.bf16.gmra.mxu0 %v3367
        %v3727 = vpop.f32.mrf.mxu0
        %v3728 = vadd.f32 %v3409, %v3727
        %v3729 = vpop.f32.mrf.mxu0
        %v3730 = vadd.f32 %v3409, %v3729
        %3731 = vmatmul.bf16.gmra.mxu0 %v3369
        %v3732 = vpop.f32.mrf.mxu0
        %v3733 = vadd.f32 %v3409, %v3732
        %v3734 = vpop.f32.mrf.mxu0
        %v3735 = vadd.f32 %v3409, %v3734
        %3736 = vmatmul.bf16.gmra.mxu0 %v3371
        %v3737 = vpop.f32.mrf.mxu0
        %v3738 = vadd.f32 %v3409, %v3737
        %v3739 = vpop.f32.mrf.mxu0
        %v3740 = vadd.f32 %v3409, %v3739
        %3741 = vdwg.mxu0
        %3742 = vmatpush.bf16.msra.mxu0 %v3539
        %3743 = vmatpush.bf16.msra.mxu0 %v3537
        %3744 = vmatpush.bf16.msra.mxu0 %v3535
        %3745 = vmatpush.bf16.msra.mxu0 %v3533
        %3746 = vmatpush.bf16.msra.mxu0 %v3531
        %3747 = vmatpush.bf16.msra.mxu0 %v3529
        %3748 = vmatpush.bf16.msra.mxu0 %v3527
        %3749 = vmatpush.bf16.msra.mxu0 %v3525
        %3750 = vmatmul.bf16.gmra.mxu0 %v3310
        %v3751 = vpop.f32.mrf.mxu0
        %v3752 = vadd.f32 %v3583, %v3751
        %v3753 = vpop.f32.mrf.mxu0
        %v3754 = vadd.f32 %v3585, %v3753
        %3755 = vmatmul.bf16.gmra.mxu0 %v3312
        %v3756 = vpop.f32.mrf.mxu0
        %v3757 = vadd.f32 %v3588, %v3756
        %v3758 = vpop.f32.mrf.mxu0
        %v3759 = vadd.f32 %v3590, %v3758
        %3760 = vmatmul.bf16.gmra.mxu0 %v3314
        %v3761 = vpop.f32.mrf.mxu0
        %v3762 = vadd.f32 %v3593, %v3761
        %v3763 = vpop.f32.mrf.mxu0
        %v3764 = vadd.f32 %v3595, %v3763
        %3765 = vmatmul.bf16.gmra.mxu0 %v3316
        %v3766 = vpop.f32.mrf.mxu0
        %v3767 = vadd.f32 %v3598, %v3766
        %v3768 = vpop.f32.mrf.mxu0
        %v3769 = vadd.f32 %v3600, %v3768
        %3770 = vmatmul.bf16.gmra.mxu0 %v3318
        %v3771 = vpop.f32.mrf.mxu0
        %v3772 = vadd.f32 %v3603, %v3771
        %v3773 = vpop.f32.mrf.mxu0
        %v3774 = vadd.f32 %v3605, %v3773
        %3775 = vmatmul.bf16.gmra.mxu0 %v3320
        %v3776 = vpop.f32.mrf.mxu0
        %v3777 = vadd.f32 %v3608, %v3776
        %v3778 = vpop.f32.mrf.mxu0
        %v3779 = vadd.f32 %v3610, %v3778
        %3780 = vmatmul.bf16.gmra.mxu0 %v3322
        %v3781 = vpop.f32.mrf.mxu0
        %v3782 = vadd.f32 %v3613, %v3781
        %v3783 = vpop.f32.mrf.mxu0
        %v3784 = vadd.f32 %v3615, %v3783
        %3785 = vmatmul.bf16.gmra.mxu0 %v3324
        %v3786 = vpop.f32.mrf.mxu0
        %v3787 = vadd.f32 %v3618, %v3786
        %v3788 = vpop.f32.mrf.mxu0
        %v3789 = vadd.f32 %v3620, %v3788
        %3790 = vmatmul.bf16.gmra.mxu0 %v3326
        %v3791 = vpop.f32.mrf.mxu0
        %v3792 = vadd.f32 %v3623, %v3791
        %v3793 = vpop.f32.mrf.mxu0
        %v3794 = vadd.f32 %v3625, %v3793
        %3795 = vmatmul.bf16.gmra.mxu0 %v3328
        %v3796 = vpop.f32.mrf.mxu0
        %v3797 = vadd.f32 %v3628, %v3796
        %v3798 = vpop.f32.mrf.mxu0
        %v3799 = vadd.f32 %v3630, %v3798
        %3800 = vmatmul.bf16.gmra.mxu0 %v3330
        %v3801 = vpop.f32.mrf.mxu0
        %v3802 = vadd.f32 %v3633, %v3801
        %v3803 = vpop.f32.mrf.mxu0
        %v3804 = vadd.f32 %v3635, %v3803
        %3805 = vmatmul.bf16.gmra.mxu0 %v3332
        %v3806 = vpop.f32.mrf.mxu0
        %v3807 = vadd.f32 %v3638, %v3806
        %v3808 = vpop.f32.mrf.mxu0
        %v3809 = vadd.f32 %v3640, %v3808
        %3810 = vmatmul.bf16.gmra.mxu0 %v3334
        %v3811 = vpop.f32.mrf.mxu0
        %v3812 = vadd.f32 %v3643, %v3811
        %v3813 = vpop.f32.mrf.mxu0
        %v3814 = vadd.f32 %v3645, %v3813
        %3815 = vmatmul.bf16.gmra.mxu0 %v3336
        %v3816 = vpop.f32.mrf.mxu0
        %v3817 = vadd.f32 %v3648, %v3816
        %v3818 = vpop.f32.mrf.mxu0
        %v3819 = vadd.f32 %v3650, %v3818
        %3820 = vmatmul.bf16.gmra.mxu0 %v3338
        %v3821 = vpop.f32.mrf.mxu0
        %v3822 = vadd.f32 %v3653, %v3821
        %v3823 = vpop.f32.mrf.mxu0
        %v3824 = vadd.f32 %v3655, %v3823
        %3825 = vmatmul.bf16.gmra.mxu0 %v3340
        %v3826 = vpop.f32.mrf.mxu0
        %v3827 = vadd.f32 %v3658, %v3826
        %v3828 = vpop.f32.mrf.mxu0
        %v3829 = vadd.f32 %v3660, %v3828
        %3830 = vmatmul.bf16.gmra.mxu0 %v3342
        %v3831 = vpop.f32.mrf.mxu0
        %v3832 = vadd.f32 %v3663, %v3831
        %v3833 = vpop.f32.mrf.mxu0
        %v3834 = vadd.f32 %v3665, %v3833
        %3835 = vmatmul.bf16.gmra.mxu0 %v3344
        %v3836 = vpop.f32.mrf.mxu0
        %v3837 = vadd.f32 %v3668, %v3836
        %v3838 = vpop.f32.mrf.mxu0
        %v3839 = vadd.f32 %v3670, %v3838
        %3840 = vmatmul.bf16.gmra.mxu0 %v3346
        %v3841 = vpop.f32.mrf.mxu0
        %v3842 = vadd.f32 %v3673, %v3841
        %v3843 = vpop.f32.mrf.mxu0
        %v3844 = vadd.f32 %v3675, %v3843
        %3845 = vmatmul.bf16.gmra.mxu0 %v3348
        %v3846 = vpop.f32.mrf.mxu0
        %v3847 = vadd.f32 %v3678, %v3846
        %v3848 = vpop.f32.mrf.mxu0
        %v3849 = vadd.f32 %v3680, %v3848
        %3850 = vmatmul.bf16.gmra.mxu0 %v3350
        %v3851 = vpop.f32.mrf.mxu0
        %v3852 = vadd.f32 %v3683, %v3851
        %v3853 = vpop.f32.mrf.mxu0
        %v3854 = vadd.f32 %v3685, %v3853
        %3855 = vmatmul.bf16.gmra.mxu0 %v3352
        %v3856 = vpop.f32.mrf.mxu0
        %v3857 = vadd.f32 %v3688, %v3856
        %v3858 = vpop.f32.mrf.mxu0
        %v3859 = vadd.f32 %v3690, %v3858
        %3860 = vmatmul.bf16.gmra.mxu0 %v3354
        %v3861 = vpop.f32.mrf.mxu0
        %v3862 = vadd.f32 %v3693, %v3861
        %v3863 = vpop.f32.mrf.mxu0
        %v3864 = vadd.f32 %v3695, %v3863
        %3865 = vmatmul.bf16.gmra.mxu0 %v3356
        %v3866 = vpop.f32.mrf.mxu0
        %v3867 = vadd.f32 %v3698, %v3866
        %v3868 = vpop.f32.mrf.mxu0
        %v3869 = vadd.f32 %v3700, %v3868
        %3870 = vmatmul.bf16.gmra.mxu0 %v3358
        %v3871 = vpop.f32.mrf.mxu0
        %v3872 = vadd.f32 %v3703, %v3871
        %v3873 = vpop.f32.mrf.mxu0
        %v3874 = vadd.f32 %v3705, %v3873
        %3875 = vmatmul.bf16.gmra.mxu0 %v3360
        %v3876 = vpop.f32.mrf.mxu0
        %v3877 = vadd.f32 %v3708, %v3876
        %v3878 = vpop.f32.mrf.mxu0
        %v3879 = vadd.f32 %v3710, %v3878
        %3880 = vmatmul.bf16.gmra.mxu0 %v3362
        %v3881 = vpop.f32.mrf.mxu0
        %v3882 = vadd.f32 %v3713, %v3881
        %v3883 = vpop.f32.mrf.mxu0
        %v3884 = vadd.f32 %v3715, %v3883
        %3885 = vmatmul.bf16.gmra.mxu0 %v3364
        %v3886 = vpop.f32.mrf.mxu0
        %v3887 = vadd.f32 %v3718, %v3886
        %v3888 = vpop.f32.mrf.mxu0
        %v3889 = vadd.f32 %v3720, %v3888
        %3890 = vmatmul.bf16.gmra.mxu0 %v3366
        %v3891 = vpop.f32.mrf.mxu0
        %v3892 = vadd.f32 %v3723, %v3891
        %v3893 = vpop.f32.mrf.mxu0
        %v3894 = vadd.f32 %v3725, %v3893
        %3895 = vmatmul.bf16.gmra.mxu0 %v3368
        %v3896 = vpop.f32.mrf.mxu0
        %v3897 = vadd.f32 %v3728, %v3896
        %v3898 = vpop.f32.mrf.mxu0
        %v3899 = vadd.f32 %v3730, %v3898
        %3900 = vmatmul.bf16.gmra.mxu0 %v3370
        %v3901 = vpop.f32.mrf.mxu0
        %v3902 = vadd.f32 %v3733, %v3901
        %v3903 = vpop.f32.mrf.mxu0
        %v3904 = vadd.f32 %v3735, %v3903
        %3905 = vmatmul.bf16.gmra.mxu0 %v3372
        %v3906 = vpop.f32.mrf.mxu0
        %v3907 = vadd.f32 %v3738, %v3906
        %v3908 = vpop.f32.mrf.mxu0
        %v3909 = vadd.f32 %v3740, %v3908
        %3910 = vdwg.mxu0
        %3911 = vmatpush.bf16.msra.mxu0 %v3524
        %3912 = vmatpush.bf16.msra.mxu0 %v3522
        %3913 = vmatpush.bf16.msra.mxu0 %v3520
        %3914 = vmatpush.bf16.msra.mxu0 %v3518
        %3915 = vmatpush.bf16.msra.mxu0 %v3516
        %3916 = vmatpush.bf16.msra.mxu0 %v3514
        %3917 = vmatpush.bf16.msra.mxu0 %v3512
        %3918 = vmatpush.bf16.msra.mxu0 %v3510
        %3919 = vmatmul.bf16.gmra.mxu0 %v3309
        %v3920 = vpop.f32.mrf.mxu0
        %v3921 = vadd.f32 %v3410, %v3920
        %v3922 = vpop.f32.mrf.mxu0
        %v3923 = vadd.f32 %v3410, %v3922
        %3924 = vmatmul.bf16.gmra.mxu0 %v3311
        %v3925 = vpop.f32.mrf.mxu0
        %v3926 = vadd.f32 %v3410, %v3925
        %v3927 = vpop.f32.mrf.mxu0
        %v3928 = vadd.f32 %v3410, %v3927
        %3929 = vmatmul.bf16.gmra.mxu0 %v3313
        %v3930 = vpop.f32.mrf.mxu0
        %v3931 = vadd.f32 %v3410, %v3930
        %v3932 = vpop.f32.mrf.mxu0
        %v3933 = vadd.f32 %v3410, %v3932
        %3934 = vmatmul.bf16.gmra.mxu0 %v3315
        %v3935 = vpop.f32.mrf.mxu0
        %v3936 = vadd.f32 %v3410, %v3935
        %v3937 = vpop.f32.mrf.mxu0
        %v3938 = vadd.f32 %v3410, %v3937
        %3939 = vmatmul.bf16.gmra.mxu0 %v3317
        %v3940 = vpop.f32.mrf.mxu0
        %v3941 = vadd.f32 %v3410, %v3940
        %v3942 = vpop.f32.mrf.mxu0
        %v3943 = vadd.f32 %v3410, %v3942
        %3944 = vmatmul.bf16.gmra.mxu0 %v3319
        %v3945 = vpop.f32.mrf.mxu0
        %v3946 = vadd.f32 %v3410, %v3945
        %v3947 = vpop.f32.mrf.mxu0
        %v3948 = vadd.f32 %v3410, %v3947
        %3949 = vmatmul.bf16.gmra.mxu0 %v3321
        %v3950 = vpop.f32.mrf.mxu0
        %v3951 = vadd.f32 %v3410, %v3950
        %v3952 = vpop.f32.mrf.mxu0
        %v3953 = vadd.f32 %v3410, %v3952
        %3954 = vmatmul.bf16.gmra.mxu0 %v3323
        %v3955 = vpop.f32.mrf.mxu0
        %v3956 = vadd.f32 %v3410, %v3955
        %v3957 = vpop.f32.mrf.mxu0
        %v3958 = vadd.f32 %v3410, %v3957
        %3959 = vmatmul.bf16.gmra.mxu0 %v3325
        %v3960 = vpop.f32.mrf.mxu0
        %v3961 = vadd.f32 %v3410, %v3960
        %v3962 = vpop.f32.mrf.mxu0
        %v3963 = vadd.f32 %v3410, %v3962
        %3964 = vmatmul.bf16.gmra.mxu0 %v3327
        %v3965 = vpop.f32.mrf.mxu0
        %v3966 = vadd.f32 %v3410, %v3965
        %v3967 = vpop.f32.mrf.mxu0
        %v3968 = vadd.f32 %v3410, %v3967
        %3969 = vmatmul.bf16.gmra.mxu0 %v3329
        %v3970 = vpop.f32.mrf.mxu0
        %v3971 = vadd.f32 %v3410, %v3970
        %v3972 = vpop.f32.mrf.mxu0
        %v3973 = vadd.f32 %v3410, %v3972
        %3974 = vmatmul.bf16.gmra.mxu0 %v3331
        %v3975 = vpop.f32.mrf.mxu0
        %v3976 = vadd.f32 %v3410, %v3975
        %v3977 = vpop.f32.mrf.mxu0
        %v3978 = vadd.f32 %v3410, %v3977
        %3979 = vmatmul.bf16.gmra.mxu0 %v3333
        %v3980 = vpop.f32.mrf.mxu0
        %v3981 = vadd.f32 %v3410, %v3980
        %v3982 = vpop.f32.mrf.mxu0
        %v3983 = vadd.f32 %v3410, %v3982
        %3984 = vmatmul.bf16.gmra.mxu0 %v3335
        %v3985 = vpop.f32.mrf.mxu0
        %v3986 = vadd.f32 %v3410, %v3985
        %v3987 = vpop.f32.mrf.mxu0
        %v3988 = vadd.f32 %v3410, %v3987
        %3989 = vmatmul.bf16.gmra.mxu0 %v3337
        %v3990 = vpop.f32.mrf.mxu0
        %v3991 = vadd.f32 %v3410, %v3990
        %v3992 = vpop.f32.mrf.mxu0
        %v3993 = vadd.f32 %v3410, %v3992
        %3994 = vmatmul.bf16.gmra.mxu0 %v3339
        %v3995 = vpop.f32.mrf.mxu0
        %v3996 = vadd.f32 %v3410, %v3995
        %v3997 = vpop.f32.mrf.mxu0
        %v3998 = vadd.f32 %v3410, %v3997
        %3999 = vmatmul.bf16.gmra.mxu0 %v3341
        %v4000 = vpop.f32.mrf.mxu0
        %v4001 = vadd.f32 %v3410, %v4000
        %v4002 = vpop.f32.mrf.mxu0
        %v4003 = vadd.f32 %v3410, %v4002
        %4004 = vmatmul.bf16.gmra.mxu0 %v3343
        %v4005 = vpop.f32.mrf.mxu0
        %v4006 = vadd.f32 %v3410, %v4005
        %v4007 = vpop.f32.mrf.mxu0
        %v4008 = vadd.f32 %v3410, %v4007
        %4009 = vmatmul.bf16.gmra.mxu0 %v3345
        %v4010 = vpop.f32.mrf.mxu0
        %v4011 = vadd.f32 %v3410, %v4010
        %v4012 = vpop.f32.mrf.mxu0
        %v4013 = vadd.f32 %v3410, %v4012
        %4014 = vmatmul.bf16.gmra.mxu0 %v3347
        %v4015 = vpop.f32.mrf.mxu0
        %v4016 = vadd.f32 %v3410, %v4015
        %v4017 = vpop.f32.mrf.mxu0
        %v4018 = vadd.f32 %v3410, %v4017
        %4019 = vmatmul.bf16.gmra.mxu0 %v3349
        %v4020 = vpop.f32.mrf.mxu0
        %v4021 = vadd.f32 %v3410, %v4020
        %v4022 = vpop.f32.mrf.mxu0
        %v4023 = vadd.f32 %v3410, %v4022
        %4024 = vmatmul.bf16.gmra.mxu0 %v3351
        %v4025 = vpop.f32.mrf.mxu0
        %v4026 = vadd.f32 %v3410, %v4025
        %v4027 = vpop.f32.mrf.mxu0
        %v4028 = vadd.f32 %v3410, %v4027
        %4029 = vmatmul.bf16.gmra.mxu0 %v3353
        %v4030 = vpop.f32.mrf.mxu0
        %v4031 = vadd.f32 %v3410, %v4030
        %v4032 = vpop.f32.mrf.mxu0
        %v4033 = vadd.f32 %v3410, %v4032
        %4034 = vmatmul.bf16.gmra.mxu0 %v3355
        %v4035 = vpop.f32.mrf.mxu0
        %v4036 = vadd.f32 %v3410, %v4035
        %v4037 = vpop.f32.mrf.mxu0
        %v4038 = vadd.f32 %v3410, %v4037
        %4039 = vmatmul.bf16.gmra.mxu0 %v3357
        %v4040 = vpop.f32.mrf.mxu0
        %v4041 = vadd.f32 %v3410, %v4040
        %v4042 = vpop.f32.mrf.mxu0
        %v4043 = vadd.f32 %v3410, %v4042
        %4044 = vmatmul.bf16.gmra.mxu0 %v3359
        %v4045 = vpop.f32.mrf.mxu0
        %v4046 = vadd.f32 %v3410, %v4045
        %v4047 = vpop.f32.mrf.mxu0
        %v4048 = vadd.f32 %v3410, %v4047
        %4049 = vmatmul.bf16.gmra.mxu0 %v3361
        %v4050 = vpop.f32.mrf.mxu0
        %v4051 = vadd.f32 %v3410, %v4050
        %v4052 = vpop.f32.mrf.mxu0
        %v4053 = vadd.f32 %v3410, %v4052
        %4054 = vmatmul.bf16.gmra.mxu0 %v3363
        %v4055 = vpop.f32.mrf.mxu0
        %v4056 = vadd.f32 %v3410, %v4055
        %v4057 = vpop.f32.mrf.mxu0
        %v4058 = vadd.f32 %v3410, %v4057
        %4059 = vmatmul.bf16.gmra.mxu0 %v3365
        %v4060 = vpop.f32.mrf.mxu0
        %v4061 = vadd.f32 %v3410, %v4060
        %v4062 = vpop.f32.mrf.mxu0
        %v4063 = vadd.f32 %v3410, %v4062
        %4064 = vmatmul.bf16.gmra.mxu0 %v3367
        %v4065 = vpop.f32.mrf.mxu0
        %v4066 = vadd.f32 %v3410, %v4065
        %v4067 = vpop.f32.mrf.mxu0
        %v4068 = vadd.f32 %v3410, %v4067
        %4069 = vmatmul.bf16.gmra.mxu0 %v3369
        %v4070 = vpop.f32.mrf.mxu0
        %v4071 = vadd.f32 %v3410, %v4070
        %v4072 = vpop.f32.mrf.mxu0
        %v4073 = vadd.f32 %v3410, %v4072
        %4074 = vmatmul.bf16.gmra.mxu0 %v3371
        %v4075 = vpop.f32.mrf.mxu0
        %v4076 = vadd.f32 %v3410, %v4075
        %v4077 = vpop.f32.mrf.mxu0
        %v4078 = vadd.f32 %v3410, %v4077
        %4079 = vdwg.mxu0
        %4080 = vmatpush.bf16.msra.mxu0 %v3540
        %4081 = vmatpush.bf16.msra.mxu0 %v3538
        %4082 = vmatpush.bf16.msra.mxu0 %v3536
        %4083 = vmatpush.bf16.msra.mxu0 %v3534
        %4084 = vmatpush.bf16.msra.mxu0 %v3532
        %4085 = vmatpush.bf16.msra.mxu0 %v3530
        %4086 = vmatpush.bf16.msra.mxu0 %v3528
        %4087 = vmatpush.bf16.msra.mxu0 %v3526
        %4088 = vmatmul.bf16.gmra.mxu0 %v3310
        %v4089 = vpop.f32.mrf.mxu0
        %v4090 = vadd.f32 %v3921, %v4089
        %v4091 = vpop.f32.mrf.mxu0
        %v4092 = vadd.f32 %v3923, %v4091
        %4093 = vmatmul.bf16.gmra.mxu0 %v3312
        %v4094 = vpop.f32.mrf.mxu0
        %v4095 = vadd.f32 %v3926, %v4094
        %v4096 = vpop.f32.mrf.mxu0
        %v4097 = vadd.f32 %v3928, %v4096
        %4098 = vmatmul.bf16.gmra.mxu0 %v3314
        %v4099 = vpop.f32.mrf.mxu0
        %v4100 = vadd.f32 %v3931, %v4099
        %v4101 = vpop.f32.mrf.mxu0
        %v4102 = vadd.f32 %v3933, %v4101
        %4103 = vmatmul.bf16.gmra.mxu0 %v3316
        %v4104 = vpop.f32.mrf.mxu0
        %v4105 = vadd.f32 %v3936, %v4104
        %v4106 = vpop.f32.mrf.mxu0
        %v4107 = vadd.f32 %v3938, %v4106
        %4108 = vmatmul.bf16.gmra.mxu0 %v3318
        %v4109 = vpop.f32.mrf.mxu0
        %v4110 = vadd.f32 %v3941, %v4109
        %v4111 = vpop.f32.mrf.mxu0
        %v4112 = vadd.f32 %v3943, %v4111
        %4113 = vmatmul.bf16.gmra.mxu0 %v3320
        %v4114 = vpop.f32.mrf.mxu0
        %v4115 = vadd.f32 %v3946, %v4114
        %v4116 = vpop.f32.mrf.mxu0
        %v4117 = vadd.f32 %v3948, %v4116
        %4118 = vmatmul.bf16.gmra.mxu0 %v3322
        %v4119 = vpop.f32.mrf.mxu0
        %v4120 = vadd.f32 %v3951, %v4119
        %v4121 = vpop.f32.mrf.mxu0
        %v4122 = vadd.f32 %v3953, %v4121
        %4123 = vmatmul.bf16.gmra.mxu0 %v3324
        %v4124 = vpop.f32.mrf.mxu0
        %v4125 = vadd.f32 %v3956, %v4124
        %v4126 = vpop.f32.mrf.mxu0
        %v4127 = vadd.f32 %v3958, %v4126
        %4128 = vmatmul.bf16.gmra.mxu0 %v3326
        %v4129 = vpop.f32.mrf.mxu0
        %v4130 = vadd.f32 %v3961, %v4129
        %v4131 = vpop.f32.mrf.mxu0
        %v4132 = vadd.f32 %v3963, %v4131
        %4133 = vmatmul.bf16.gmra.mxu0 %v3328
        %v4134 = vpop.f32.mrf.mxu0
        %v4135 = vadd.f32 %v3966, %v4134
        %v4136 = vpop.f32.mrf.mxu0
        %v4137 = vadd.f32 %v3968, %v4136
        %4138 = vmatmul.bf16.gmra.mxu0 %v3330
        %v4139 = vpop.f32.mrf.mxu0
        %v4140 = vadd.f32 %v3971, %v4139
        %v4141 = vpop.f32.mrf.mxu0
        %v4142 = vadd.f32 %v3973, %v4141
        %4143 = vmatmul.bf16.gmra.mxu0 %v3332
        %v4144 = vpop.f32.mrf.mxu0
        %v4145 = vadd.f32 %v3976, %v4144
        %v4146 = vpop.f32.mrf.mxu0
        %v4147 = vadd.f32 %v3978, %v4146
        %4148 = vmatmul.bf16.gmra.mxu0 %v3334
        %v4149 = vpop.f32.mrf.mxu0
        %v4150 = vadd.f32 %v3981, %v4149
        %v4151 = vpop.f32.mrf.mxu0
        %v4152 = vadd.f32 %v3983, %v4151
        %4153 = vmatmul.bf16.gmra.mxu0 %v3336
        %v4154 = vpop.f32.mrf.mxu0
        %v4155 = vadd.f32 %v3986, %v4154
        %v4156 = vpop.f32.mrf.mxu0
        %v4157 = vadd.f32 %v3988, %v4156
        %4158 = vmatmul.bf16.gmra.mxu0 %v3338
        %v4159 = vpop.f32.mrf.mxu0
        %v4160 = vadd.f32 %v3991, %v4159
        %v4161 = vpop.f32.mrf.mxu0
        %v4162 = vadd.f32 %v3993, %v4161
        %4163 = vmatmul.bf16.gmra.mxu0 %v3340
        %v4164 = vpop.f32.mrf.mxu0
        %v4165 = vadd.f32 %v3996, %v4164
        %v4166 = vpop.f32.mrf.mxu0
        %v4167 = vadd.f32 %v3998, %v4166
        %4168 = vmatmul.bf16.gmra.mxu0 %v3342
        %v4169 = vpop.f32.mrf.mxu0
        %v4170 = vadd.f32 %v4001, %v4169
        %v4171 = vpop.f32.mrf.mxu0
        %v4172 = vadd.f32 %v4003, %v4171
        %4173 = vmatmul.bf16.gmra.mxu0 %v3344
        %v4174 = vpop.f32.mrf.mxu0
        %v4175 = vadd.f32 %v4006, %v4174
        %v4176 = vpop.f32.mrf.mxu0
        %v4177 = vadd.f32 %v4008, %v4176
        %4178 = vmatmul.bf16.gmra.mxu0 %v3346
        %v4179 = vpop.f32.mrf.mxu0
        %v4180 = vadd.f32 %v4011, %v4179
        %v4181 = vpop.f32.mrf.mxu0
        %v4182 = vadd.f32 %v4013, %v4181
        %4183 = vmatmul.bf16.gmra.mxu0 %v3348
        %v4184 = vpop.f32.mrf.mxu0
        %v4185 = vadd.f32 %v4016, %v4184
        %v4186 = vpop.f32.mrf.mxu0
        %v4187 = vadd.f32 %v4018, %v4186
        %4188 = vmatmul.bf16.gmra.mxu0 %v3350
        %v4189 = vpop.f32.mrf.mxu0
        %v4190 = vadd.f32 %v4021, %v4189
        %v4191 = vpop.f32.mrf.mxu0
        %v4192 = vadd.f32 %v4023, %v4191
        %4193 = vmatmul.bf16.gmra.mxu0 %v3352
        %v4194 = vpop.f32.mrf.mxu0
        %v4195 = vadd.f32 %v4026, %v4194
        %v4196 = vpop.f32.mrf.mxu0
        %v4197 = vadd.f32 %v4028, %v4196
        %4198 = vmatmul.bf16.gmra.mxu0 %v3354
        %v4199 = vpop.f32.mrf.mxu0
        %v4200 = vadd.f32 %v4031, %v4199
        %v4201 = vpop.f32.mrf.mxu0
        %v4202 = vadd.f32 %v4033, %v4201
        %4203 = vmatmul.bf16.gmra.mxu0 %v3356
        %v4204 = vpop.f32.mrf.mxu0
        %v4205 = vadd.f32 %v4036, %v4204
        %v4206 = vpop.f32.mrf.mxu0
        %v4207 = vadd.f32 %v4038, %v4206
        %4208 = vmatmul.bf16.gmra.mxu0 %v3358
        %v4209 = vpop.f32.mrf.mxu0
        %v4210 = vadd.f32 %v4041, %v4209
        %v4211 = vpop.f32.mrf.mxu0
        %v4212 = vadd.f32 %v4043, %v4211
        %4213 = vmatmul.bf16.gmra.mxu0 %v3360
        %v4214 = vpop.f32.mrf.mxu0
        %v4215 = vadd.f32 %v4046, %v4214
        %v4216 = vpop.f32.mrf.mxu0
        %v4217 = vadd.f32 %v4048, %v4216
        %4218 = vmatmul.bf16.gmra.mxu0 %v3362
        %v4219 = vpop.f32.mrf.mxu0
        %v4220 = vadd.f32 %v4051, %v4219
        %v4221 = vpop.f32.mrf.mxu0
        %v4222 = vadd.f32 %v4053, %v4221
        %4223 = vmatmul.bf16.gmra.mxu0 %v3364
        %v4224 = vpop.f32.mrf.mxu0
        %v4225 = vadd.f32 %v4056, %v4224
        %v4226 = vpop.f32.mrf.mxu0
        %v4227 = vadd.f32 %v4058, %v4226
        %4228 = vmatmul.bf16.gmra.mxu0 %v3366
        %v4229 = vpop.f32.mrf.mxu0
        %v4230 = vadd.f32 %v4061, %v4229
        %v4231 = vpop.f32.mrf.mxu0
        %v4232 = vadd.f32 %v4063, %v4231
        %4233 = vmatmul.bf16.gmra.mxu0 %v3368
        %v4234 = vpop.f32.mrf.mxu0
        %v4235 = vadd.f32 %v4066, %v4234
        %v4236 = vpop.f32.mrf.mxu0
        %v4237 = vadd.f32 %v4068, %v4236
        %4238 = vmatmul.bf16.gmra.mxu0 %v3370
        %v4239 = vpop.f32.mrf.mxu0
        %v4240 = vadd.f32 %v4071, %v4239
        %v4241 = vpop.f32.mrf.mxu0
        %v4242 = vadd.f32 %v4073, %v4241
        %4243 = vmatmul.bf16.gmra.mxu0 %v3372
        %v4244 = vpop.f32.mrf.mxu0
        %v4245 = vadd.f32 %v4076, %v4244
        %v4246 = vpop.f32.mrf.mxu0
        %v4247 = vadd.f32 %v4078, %v4246
        %4248 = vdwg.mxu0
        %v4249 = vmax.f32 %v3752, 0.0
        %v4250 = vmax.f32 %v4090, 0.0
        %v4251 = vmax.f32 %v3754, 0.0
        %v4252 = vmax.f32 %v4092, 0.0
        %v4253 = vmax.f32 %v3757, 0.0
        %v4254 = vmax.f32 %v4095, 0.0
        %v4255 = vmax.f32 %v3759, 0.0
        %v4256 = vmax.f32 %v4097, 0.0
        %v4257 = vmax.f32 %v3762, 0.0
        %v4258 = vmax.f32 %v4100, 0.0
        %v4259 = vmax.f32 %v3764, 0.0
        %v4260 = vmax.f32 %v4102, 0.0
        %v4261 = vmax.f32 %v3767, 0.0
        %v4262 = vmax.f32 %v4105, 0.0
        %v4263 = vmax.f32 %v3769, 0.0
        %v4264 = vmax.f32 %v4107, 0.0
        %v4265 = vmax.f32 %v3772, 0.0
        %v4266 = vmax.f32 %v4110, 0.0
        %v4267 = vmax.f32 %v3774, 0.0
        %v4268 = vmax.f32 %v4112, 0.0
        %v4269 = vmax.f32 %v3777, 0.0
        %v4270 = vmax.f32 %v4115, 0.0
        %v4271 = vmax.f32 %v3779, 0.0
        %v4272 = vmax.f32 %v4117, 0.0
        %v4273 = vmax.f32 %v3782, 0.0
        %v4274 = vmax.f32 %v4120, 0.0
        %v4275 = vmax.f32 %v3784, 0.0
        %v4276 = vmax.f32 %v4122, 0.0
        %v4277 = vmax.f32 %v3787, 0.0
        %v4278 = vmax.f32 %v4125, 0.0
        %v4279 = vmax.f32 %v3789, 0.0
        %v4280 = vmax.f32 %v4127, 0.0
        %v4281 = vmax.f32 %v3792, 0.0
        %v4282 = vmax.f32 %v4130, 0.0
        %v4283 = vmax.f32 %v3794, 0.0
        %v4284 = vmax.f32 %v4132, 0.0
        %v4285 = vmax.f32 %v3797, 0.0
        %v4286 = vmax.f32 %v4135, 0.0
        %v4287 = vmax.f32 %v3799, 0.0
        %v4288 = vmax.f32 %v4137, 0.0
        %v4289 = vmax.f32 %v3802, 0.0
        %v4290 = vmax.f32 %v4140, 0.0
        %v4291 = vmax.f32 %v3804, 0.0
        %v4292 = vmax.f32 %v4142, 0.0
        %v4293 = vmax.f32 %v3807, 0.0
        %v4294 = vmax.f32 %v4145, 0.0
        %v4295 = vmax.f32 %v3809, 0.0
        %v4296 = vmax.f32 %v4147, 0.0
        %v4297 = vmax.f32 %v3812, 0.0
        %v4298 = vmax.f32 %v4150, 0.0
        %v4299 = vmax.f32 %v3814, 0.0
        %v4300 = vmax.f32 %v4152, 0.0
        %v4301 = vmax.f32 %v3817, 0.0
        %v4302 = vmax.f32 %v4155, 0.0
        %v4303 = vmax.f32 %v3819, 0.0
        %v4304 = vmax.f32 %v4157, 0.0
        %v4305 = vmax.f32 %v3822, 0.0
        %v4306 = vmax.f32 %v4160, 0.0
        %v4307 = vmax.f32 %v3824, 0.0
        %v4308 = vmax.f32 %v4162, 0.0
        %v4309 = vmax.f32 %v3827, 0.0
        %v4310 = vmax.f32 %v4165, 0.0
        %v4311 = vmax.f32 %v3829, 0.0
        %v4312 = vmax.f32 %v4167, 0.0
        %v4313 = vmax.f32 %v3832, 0.0
        %v4314 = vmax.f32 %v4170, 0.0
        %v4315 = vmax.f32 %v3834, 0.0
        %v4316 = vmax.f32 %v4172, 0.0
        %v4317 = vmax.f32 %v3837, 0.0
        %v4318 = vmax.f32 %v4175, 0.0
        %v4319 = vmax.f32 %v3839, 0.0
        %v4320 = vmax.f32 %v4177, 0.0
        %v4321 = vmax.f32 %v3842, 0.0
        %v4322 = vmax.f32 %v4180, 0.0
        %v4323 = vmax.f32 %v3844, 0.0
        %v4324 = vmax.f32 %v4182, 0.0
        %v4325 = vmax.f32 %v3847, 0.0
        %v4326 = vmax.f32 %v4185, 0.0
        %v4327 = vmax.f32 %v3849, 0.0
        %v4328 = vmax.f32 %v4187, 0.0
        %v4329 = vmax.f32 %v3852, 0.0
        %v4330 = vmax.f32 %v4190, 0.0
        %v4331 = vmax.f32 %v3854, 0.0
        %v4332 = vmax.f32 %v4192, 0.0
        %v4333 = vmax.f32 %v3857, 0.0
        %v4334 = vmax.f32 %v4195, 0.0
        %v4335 = vmax.f32 %v3859, 0.0
        %v4336 = vmax.f32 %v4197, 0.0
        %v4337 = vmax.f32 %v3862, 0.0
        %v4338 = vmax.f32 %v4200, 0.0
        %v4339 = vmax.f32 %v3864, 0.0
        %v4340 = vmax.f32 %v4202, 0.0
        %v4341 = vmax.f32 %v3867, 0.0
        %v4342 = vmax.f32 %v4205, 0.0
        %v4343 = vmax.f32 %v3869, 0.0
        %v4344 = vmax.f32 %v4207, 0.0
        %v4345 = vmax.f32 %v3872, 0.0
        %v4346 = vmax.f32 %v4210, 0.0
        %v4347 = vmax.f32 %v3874, 0.0
        %v4348 = vmax.f32 %v4212, 0.0
        %v4349 = vmax.f32 %v3877, 0.0
        %v4350 = vmax.f32 %v4215, 0.0
        %v4351 = vmax.f32 %v3879, 0.0
        %v4352 = vmax.f32 %v4217, 0.0
        %v4353 = vmax.f32 %v3882, 0.0
        %v4354 = vmax.f32 %v4220, 0.0
        %v4355 = vmax.f32 %v3884, 0.0
        %v4356 = vmax.f32 %v4222, 0.0
        %v4357 = vmax.f32 %v3887, 0.0
        %v4358 = vmax.f32 %v4225, 0.0
        %v4359 = vmax.f32 %v3889, 0.0
        %v4360 = vmax.f32 %v4227, 0.0
        %v4361 = vmax.f32 %v3892, 0.0
        %v4362 = vmax.f32 %v4230, 0.0
        %v4363 = vmax.f32 %v3894, 0.0
        %v4364 = vmax.f32 %v4232, 0.0
        %v4365 = vmax.f32 %v3897, 0.0
        %v4366 = vmax.f32 %v4235, 0.0
        %v4367 = vmax.f32 %v3899, 0.0
        %v4368 = vmax.f32 %v4237, 0.0
        %v4369 = vmax.f32 %v3902, 0.0
        %v4370 = vmax.f32 %v4240, 0.0
        %v4371 = vmax.f32 %v3904, 0.0
        %v4372 = vmax.f32 %v4242, 0.0
        %v4373 = vmax.f32 %v3907, 0.0
        %v4374 = vmax.f32 %v4245, 0.0
        %v4375 = vmax.f32 %v3909, 0.0
        %v4376 = vmax.f32 %v4247, 0.0
        %v4377 = vpack.c.bf16 %v4251, %v4249
        %v4378 = vpack.c.bf16 %v4252, %v4250
        %v4379 = vpack.c.bf16 %v4255, %v4253
        %v4380 = vpack.c.bf16 %v4256, %v4254
        %v4381 = vpack.c.bf16 %v4259, %v4257
        %v4382 = vpack.c.bf16 %v4260, %v4258
        %v4383 = vpack.c.bf16 %v4263, %v4261
        %v4384 = vpack.c.bf16 %v4264, %v4262
        %v4385 = vpack.c.bf16 %v4267, %v4265
        %v4386 = vpack.c.bf16 %v4268, %v4266
        %v4387 = vpack.c.bf16 %v4271, %v4269
        %v4388 = vpack.c.bf16 %v4272, %v4270
        %v4389 = vpack.c.bf16 %v4275, %v4273
        %v4390 = vpack.c.bf16 %v4276, %v4274
        %v4391 = vpack.c.bf16 %v4279, %v4277
        %v4392 = vpack.c.bf16 %v4280, %v4278
        %v4393 = vpack.c.bf16 %v4283, %v4281
        %v4394 = vpack.c.bf16 %v4284, %v4282
        %v4395 = vpack.c.bf16 %v4287, %v4285
        %v4396 = vpack.c.bf16 %v4288, %v4286
        %v4397 = vpack.c.bf16 %v4291, %v4289
        %v4398 = vpack.c.bf16 %v4292, %v4290
        %v4399 = vpack.c.bf16 %v4295, %v4293
        %v4400 = vpack.c.bf16 %v4296, %v4294
        %v4401 = vpack.c.bf16 %v4299, %v4297
        %v4402 = vpack.c.bf16 %v4300, %v4298
        %v4403 = vpack.c.bf16 %v4303, %v4301
        %v4404 = vpack.c.bf16 %v4304, %v4302
        %v4405 = vpack.c.bf16 %v4307, %v4305
        %v4406 = vpack.c.bf16 %v4308, %v4306
        %v4407 = vpack.c.bf16 %v4311, %v4309
        %v4408 = vpack.c.bf16 %v4312, %v4310
        %v4409 = vpack.c.bf16 %v4315, %v4313
        %v4410 = vpack.c.bf16 %v4316, %v4314
        %v4411 = vpack.c.bf16 %v4319, %v4317
        %v4412 = vpack.c.bf16 %v4320, %v4318
        %v4413 = vpack.c.bf16 %v4323, %v4321
        %v4414 = vpack.c.bf16 %v4324, %v4322
        %v4415 = vpack.c.bf16 %v4327, %v4325
        %v4416 = vpack.c.bf16 %v4328, %v4326
        %v4417 = vpack.c.bf16 %v4331, %v4329
        %v4418 = vpack.c.bf16 %v4332, %v4330
        %v4419 = vpack.c.bf16 %v4335, %v4333
        %v4420 = vpack.c.bf16 %v4336, %v4334
        %v4421 = vpack.c.bf16 %v4339, %v4337
        %v4422 = vpack.c.bf16 %v4340, %v4338
        %v4423 = vpack.c.bf16 %v4343, %v4341
        %v4424 = vpack.c.bf16 %v4344, %v4342
        %v4425 = vpack.c.bf16 %v4347, %v4345
        %v4426 = vpack.c.bf16 %v4348, %v4346
        %v4427 = vpack.c.bf16 %v4351, %v4349
        %v4428 = vpack.c.bf16 %v4352, %v4350
        %v4429 = vpack.c.bf16 %v4355, %v4353
        %v4430 = vpack.c.bf16 %v4356, %v4354
        %v4431 = vpack.c.bf16 %v4359, %v4357
        %v4432 = vpack.c.bf16 %v4360, %v4358
        %v4433 = vpack.c.bf16 %v4363, %v4361
        %v4434 = vpack.c.bf16 %v4364, %v4362
        %v4435 = vpack.c.bf16 %v4367, %v4365
        %v4436 = vpack.c.bf16 %v4368, %v4366
        %v4437 = vpack.c.bf16 %v4371, %v4369
        %v4438 = vpack.c.bf16 %v4372, %v4370
        %v4439 = vpack.c.bf16 %v4375, %v4373
        %v4440 = vpack.c.bf16 %v4376, %v4374
        %s4441 = scalar_lea.vmem [#allocation8], 768
        %v4442 = vld [vmem:[%s4441] sm:$0xff]
        %v4443 = vld [vmem:[%s4441 + $0x8] sm:$0xff]
        %v4444 = vld [vmem:[%s4441 + $0x10] sm:$0xff]
        %v4445 = vld [vmem:[%s4441 + $0x18] sm:$0xff]
        %v4446 = vld [vmem:[%s4441 + $0x20] sm:$0xff]
        %v4447 = vld [vmem:[%s4441 + $0x28] sm:$0xff]
        %v4448 = vld [vmem:[%s4441 + $0x30] sm:$0xff]
        %v4449 = vld [vmem:[%s4441 + $0x38] sm:$0xff]
        %v4450 = vld [vmem:[%s4441 + $0x40] sm:$0xff]
        %v4451 = vld [vmem:[%s4441 + $0x48] sm:$0xff]
        %v4452 = vld [vmem:[%s4441 + $0x50] sm:$0xff]
        %v4453 = vld [vmem:[%s4441 + $0x58] sm:$0xff]
        %v4454 = vld [vmem:[%s4441 + $0x60] sm:$0xff]
        %v4455 = vld [vmem:[%s4441 + $0x68] sm:$0xff]
        %v4456 = vld [vmem:[%s4441 + $0x70] sm:$0xff]
        %v4457 = vld [vmem:[%s4441 + $0x78] sm:$0xff]
        %v4458 = vld [vmem:[%s4441 + $0x80] sm:$0xff]
        %v4459 = vld [vmem:[%s4441 + $0x88] sm:$0xff]
        %v4460 = vld [vmem:[%s4441 + $0x90] sm:$0xff]
        %v4461 = vld [vmem:[%s4441 + $0x98] sm:$0xff]
        %v4462 = vld [vmem:[%s4441 + $0xa0] sm:$0xff]
        %v4463 = vld [vmem:[%s4441 + $0xa8] sm:$0xff]
        %v4464 = vld [vmem:[%s4441 + $0xb0] sm:$0xff]
        %v4465 = vld [vmem:[%s4441 + $0xb8] sm:$0xff]
        %v4466 = vld [vmem:[%s4441 + $0xc0] sm:$0xff]
        %v4467 = vld [vmem:[%s4441 + $0xc8] sm:$0xff]
        %v4468 = vld [vmem:[%s4441 + $0xd0] sm:$0xff]
        %v4469 = vld [vmem:[%s4441 + $0xd8] sm:$0xff]
        %v4470 = vld [vmem:[%s4441 + $0xe0] sm:$0xff]
        %v4471 = vld [vmem:[%s4441 + $0xe8] sm:$0xff]
        %v4472 = vld [vmem:[%s4441 + $0xf0] sm:$0xff]
        %v4473 = vld [vmem:[%s4441 + $0xf8] sm:$0xff]
        %s4474 = scalar_lea.vmem [#allocation9], 6
        %v4475 = vld [vmem:[%s4474] sm:$0x3]
        %v4477 = vperm.slane %v4475, 0
        %v4478 = vperm.slane %v4475, 1
        %v4513 = vunpack.c.l.b16 %v4442
        %v4514 = vunpack.c.h.b16 %v4442
        %v4515 = vunpack.c.l.b16 %v4443
        %v4516 = vunpack.c.h.b16 %v4443
        %v4517 = vunpack.c.l.b16 %v4444
        %v4518 = vunpack.c.h.b16 %v4444
        %v4519 = vunpack.c.l.b16 %v4445
        %v4520 = vunpack.c.h.b16 %v4445
        %v4521 = vunpack.c.l.b16 %v4446
        %v4522 = vunpack.c.h.b16 %v4446
        %v4523 = vunpack.c.l.b16 %v4447
        %v4524 = vunpack.c.h.b16 %v4447
        %v4525 = vunpack.c.l.b16 %v4448
        %v4526 = vunpack.c.h.b16 %v4448
        %v4527 = vunpack.c.l.b16 %v4449
        %v4528 = vunpack.c.h.b16 %v4449
        %v4529 = vunpack.c.l.b16 %v4450
        %v4530 = vunpack.c.h.b16 %v4450
        %v4531 = vunpack.c.l.b16 %v4451
        %v4532 = vunpack.c.h.b16 %v4451
        %v4533 = vunpack.c.l.b16 %v4452
        %v4534 = vunpack.c.h.b16 %v4452
        %v4535 = vunpack.c.l.b16 %v4453
        %v4536 = vunpack.c.h.b16 %v4453
        %v4537 = vunpack.c.l.b16 %v4454
        %v4538 = vunpack.c.h.b16 %v4454
        %v4539 = vunpack.c.l.b16 %v4455
        %v4540 = vunpack.c.h.b16 %v4455
        %v4541 = vunpack.c.l.b16 %v4456
        %v4542 = vunpack.c.h.b16 %v4456
        %v4543 = vunpack.c.l.b16 %v4457
        %v4544 = vunpack.c.h.b16 %v4457
        %v4545 = vunpack.c.l.b16 %v4458
        %v4546 = vunpack.c.h.b16 %v4458
        %v4547 = vunpack.c.l.b16 %v4459
        %v4548 = vunpack.c.h.b16 %v4459
        %v4549 = vunpack.c.l.b16 %v4460
        %v4550 = vunpack.c.h.b16 %v4460
        %v4551 = vunpack.c.l.b16 %v4461
        %v4552 = vunpack.c.h.b16 %v4461
        %v4553 = vunpack.c.l.b16 %v4462
        %v4554 = vunpack.c.h.b16 %v4462
        %v4555 = vunpack.c.l.b16 %v4463
        %v4556 = vunpack.c.h.b16 %v4463
        %v4557 = vunpack.c.l.b16 %v4464
        %v4558 = vunpack.c.h.b16 %v4464
        %v4559 = vunpack.c.l.b16 %v4465
        %v4560 = vunpack.c.h.b16 %v4465
        %v4561 = vunpack.c.l.b16 %v4466
        %v4562 = vunpack.c.h.b16 %v4466
        %v4563 = vunpack.c.l.b16 %v4467
        %v4564 = vunpack.c.h.b16 %v4467
        %v4565 = vunpack.c.l.b16 %v4468
        %v4566 = vunpack.c.h.b16 %v4468
        %v4567 = vunpack.c.l.b16 %v4469
        %v4568 = vunpack.c.h.b16 %v4469
        %v4569 = vunpack.c.l.b16 %v4470
        %v4570 = vunpack.c.h.b16 %v4470
        %v4571 = vunpack.c.l.b16 %v4471
        %v4572 = vunpack.c.h.b16 %v4471
        %v4573 = vunpack.c.l.b16 %v4472
        %v4574 = vunpack.c.h.b16 %v4472
        %v4575 = vunpack.c.l.b16 %v4473
        %v4576 = vunpack.c.h.b16 %v4473
        %v4577 = vpack.c.b16 %v4515, %v4513
        %v4578 = vpack.c.b16 %v4516, %v4514
        %v4579 = vpack.c.b16 %v4519, %v4517
        %v4580 = vpack.c.b16 %v4520, %v4518
        %v4581 = vpack.c.b16 %v4523, %v4521
        %v4582 = vpack.c.b16 %v4524, %v4522
        %v4583 = vpack.c.b16 %v4527, %v4525
        %v4584 = vpack.c.b16 %v4528, %v4526
        %v4585 = vpack.c.b16 %v4531, %v4529
        %v4586 = vpack.c.b16 %v4532, %v4530
        %v4587 = vpack.c.b16 %v4535, %v4533
        %v4588 = vpack.c.b16 %v4536, %v4534
        %v4589 = vpack.c.b16 %v4539, %v4537
        %v4590 = vpack.c.b16 %v4540, %v4538
        %v4591 = vpack.c.b16 %v4543, %v4541
        %v4592 = vpack.c.b16 %v4544, %v4542
        %v4593 = vpack.c.b16 %v4547, %v4545
        %v4594 = vpack.c.b16 %v4548, %v4546
        %v4595 = vpack.c.b16 %v4551, %v4549
        %v4596 = vpack.c.b16 %v4552, %v4550
        %v4597 = vpack.c.b16 %v4555, %v4553
        %v4598 = vpack.c.b16 %v4556, %v4554
        %v4599 = vpack.c.b16 %v4559, %v4557
        %v4600 = vpack.c.b16 %v4560, %v4558
        %v4601 = vpack.c.b16 %v4563, %v4561
        %v4602 = vpack.c.b16 %v4564, %v4562
        %v4603 = vpack.c.b16 %v4567, %v4565
        %v4604 = vpack.c.b16 %v4568, %v4566
        %v4605 = vpack.c.b16 %v4571, %v4569
        %v4606 = vpack.c.b16 %v4572, %v4570
        %v4607 = vpack.c.b16 %v4575, %v4573
        %v4608 = vpack.c.b16 %v4576, %v4574
        %4641 = vmatpush.bf16.msra.mxu0 %v4591
        %4642 = vmatpush.bf16.msra.mxu0 %v4589
        %4643 = vmatpush.bf16.msra.mxu0 %v4587
        %4644 = vmatpush.bf16.msra.mxu0 %v4585
        %4645 = vmatpush.bf16.msra.mxu0 %v4583
        %4646 = vmatpush.bf16.msra.mxu0 %v4581
        %4647 = vmatpush.bf16.msra.mxu0 %v4579
        %4648 = vmatpush.bf16.msra.mxu0 %v4577
        %4649 = vmatmul.bf16.gmra.mxu0 %v4377
        %v4650 = vpop.f32.mrf.mxu0
        %v4651 = vadd.f32 %v4477, %v4650
        %v4652 = vpop.f32.mrf.mxu0
        %v4653 = vadd.f32 %v4477, %v4652
        %4654 = vmatmul.bf16.gmra.mxu0 %v4379
        %v4655 = vpop.f32.mrf.mxu0
        %v4656 = vadd.f32 %v4477, %v4655
        %v4657 = vpop.f32.mrf.mxu0
        %v4658 = vadd.f32 %v4477, %v4657
        %4659 = vmatmul.bf16.gmra.mxu0 %v4381
        %v4660 = vpop.f32.mrf.mxu0
        %v4661 = vadd.f32 %v4477, %v4660
        %v4662 = vpop.f32.mrf.mxu0
        %v4663 = vadd.f32 %v4477, %v4662
        %4664 = vmatmul.bf16.gmra.mxu0 %v4383
        %v4665 = vpop.f32.mrf.mxu0
        %v4666 = vadd.f32 %v4477, %v4665
        %v4667 = vpop.f32.mrf.mxu0
        %v4668 = vadd.f32 %v4477, %v4667
        %4669 = vmatmul.bf16.gmra.mxu0 %v4385
        %v4670 = vpop.f32.mrf.mxu0
        %v4671 = vadd.f32 %v4477, %v4670
        %v4672 = vpop.f32.mrf.mxu0
        %v4673 = vadd.f32 %v4477, %v4672
        %4674 = vmatmul.bf16.gmra.mxu0 %v4387
        %v4675 = vpop.f32.mrf.mxu0
        %v4676 = vadd.f32 %v4477, %v4675
        %v4677 = vpop.f32.mrf.mxu0
        %v4678 = vadd.f32 %v4477, %v4677
        %4679 = vmatmul.bf16.gmra.mxu0 %v4389
        %v4680 = vpop.f32.mrf.mxu0
        %v4681 = vadd.f32 %v4477, %v4680
        %v4682 = vpop.f32.mrf.mxu0
        %v4683 = vadd.f32 %v4477, %v4682
        %4684 = vmatmul.bf16.gmra.mxu0 %v4391
        %v4685 = vpop.f32.mrf.mxu0
        %v4686 = vadd.f32 %v4477, %v4685
        %v4687 = vpop.f32.mrf.mxu0
        %v4688 = vadd.f32 %v4477, %v4687
        %4689 = vmatmul.bf16.gmra.mxu0 %v4393
        %v4690 = vpop.f32.mrf.mxu0
        %v4691 = vadd.f32 %v4477, %v4690
        %v4692 = vpop.f32.mrf.mxu0
        %v4693 = vadd.f32 %v4477, %v4692
        %4694 = vmatmul.bf16.gmra.mxu0 %v4395
        %v4695 = vpop.f32.mrf.mxu0
        %v4696 = vadd.f32 %v4477, %v4695
        %v4697 = vpop.f32.mrf.mxu0
        %v4698 = vadd.f32 %v4477, %v4697
        %4699 = vmatmul.bf16.gmra.mxu0 %v4397
        %v4700 = vpop.f32.mrf.mxu0
        %v4701 = vadd.f32 %v4477, %v4700
        %v4702 = vpop.f32.mrf.mxu0
        %v4703 = vadd.f32 %v4477, %v4702
        %4704 = vmatmul.bf16.gmra.mxu0 %v4399
        %v4705 = vpop.f32.mrf.mxu0
        %v4706 = vadd.f32 %v4477, %v4705
        %v4707 = vpop.f32.mrf.mxu0
        %v4708 = vadd.f32 %v4477, %v4707
        %4709 = vmatmul.bf16.gmra.mxu0 %v4401
        %v4710 = vpop.f32.mrf.mxu0
        %v4711 = vadd.f32 %v4477, %v4710
        %v4712 = vpop.f32.mrf.mxu0
        %v4713 = vadd.f32 %v4477, %v4712
        %4714 = vmatmul.bf16.gmra.mxu0 %v4403
        %v4715 = vpop.f32.mrf.mxu0
        %v4716 = vadd.f32 %v4477, %v4715
        %v4717 = vpop.f32.mrf.mxu0
        %v4718 = vadd.f32 %v4477, %v4717
        %4719 = vmatmul.bf16.gmra.mxu0 %v4405
        %v4720 = vpop.f32.mrf.mxu0
        %v4721 = vadd.f32 %v4477, %v4720
        %v4722 = vpop.f32.mrf.mxu0
        %v4723 = vadd.f32 %v4477, %v4722
        %4724 = vmatmul.bf16.gmra.mxu0 %v4407
        %v4725 = vpop.f32.mrf.mxu0
        %v4726 = vadd.f32 %v4477, %v4725
        %v4727 = vpop.f32.mrf.mxu0
        %v4728 = vadd.f32 %v4477, %v4727
        %4729 = vmatmul.bf16.gmra.mxu0 %v4409
        %v4730 = vpop.f32.mrf.mxu0
        %v4731 = vadd.f32 %v4477, %v4730
        %v4732 = vpop.f32.mrf.mxu0
        %v4733 = vadd.f32 %v4477, %v4732
        %4734 = vmatmul.bf16.gmra.mxu0 %v4411
        %v4735 = vpop.f32.mrf.mxu0
        %v4736 = vadd.f32 %v4477, %v4735
        %v4737 = vpop.f32.mrf.mxu0
        %v4738 = vadd.f32 %v4477, %v4737
        %4739 = vmatmul.bf16.gmra.mxu0 %v4413
        %v4740 = vpop.f32.mrf.mxu0
        %v4741 = vadd.f32 %v4477, %v4740
        %v4742 = vpop.f32.mrf.mxu0
        %v4743 = vadd.f32 %v4477, %v4742
        %4744 = vmatmul.bf16.gmra.mxu0 %v4415
        %v4745 = vpop.f32.mrf.mxu0
        %v4746 = vadd.f32 %v4477, %v4745
        %v4747 = vpop.f32.mrf.mxu0
        %v4748 = vadd.f32 %v4477, %v4747
        %4749 = vmatmul.bf16.gmra.mxu0 %v4417
        %v4750 = vpop.f32.mrf.mxu0
        %v4751 = vadd.f32 %v4477, %v4750
        %v4752 = vpop.f32.mrf.mxu0
        %v4753 = vadd.f32 %v4477, %v4752
        %4754 = vmatmul.bf16.gmra.mxu0 %v4419
        %v4755 = vpop.f32.mrf.mxu0
        %v4756 = vadd.f32 %v4477, %v4755
        %v4757 = vpop.f32.mrf.mxu0
        %v4758 = vadd.f32 %v4477, %v4757
        %4759 = vmatmul.bf16.gmra.mxu0 %v4421
        %v4760 = vpop.f32.mrf.mxu0
        %v4761 = vadd.f32 %v4477, %v4760
        %v4762 = vpop.f32.mrf.mxu0
        %v4763 = vadd.f32 %v4477, %v4762
        %4764 = vmatmul.bf16.gmra.mxu0 %v4423
        %v4765 = vpop.f32.mrf.mxu0
        %v4766 = vadd.f32 %v4477, %v4765
        %v4767 = vpop.f32.mrf.mxu0
        %v4768 = vadd.f32 %v4477, %v4767
        %4769 = vmatmul.bf16.gmra.mxu0 %v4425
        %v4770 = vpop.f32.mrf.mxu0
        %v4771 = vadd.f32 %v4477, %v4770
        %v4772 = vpop.f32.mrf.mxu0
        %v4773 = vadd.f32 %v4477, %v4772
        %4774 = vmatmul.bf16.gmra.mxu0 %v4427
        %v4775 = vpop.f32.mrf.mxu0
        %v4776 = vadd.f32 %v4477, %v4775
        %v4777 = vpop.f32.mrf.mxu0
        %v4778 = vadd.f32 %v4477, %v4777
        %4779 = vmatmul.bf16.gmra.mxu0 %v4429
        %v4780 = vpop.f32.mrf.mxu0
        %v4781 = vadd.f32 %v4477, %v4780
        %v4782 = vpop.f32.mrf.mxu0
        %v4783 = vadd.f32 %v4477, %v4782
        %4784 = vmatmul.bf16.gmra.mxu0 %v4431
        %v4785 = vpop.f32.mrf.mxu0
        %v4786 = vadd.f32 %v4477, %v4785
        %v4787 = vpop.f32.mrf.mxu0
        %v4788 = vadd.f32 %v4477, %v4787
        %4789 = vmatmul.bf16.gmra.mxu0 %v4433
        %v4790 = vpop.f32.mrf.mxu0
        %v4791 = vadd.f32 %v4477, %v4790
        %v4792 = vpop.f32.mrf.mxu0
        %v4793 = vadd.f32 %v4477, %v4792
        %4794 = vmatmul.bf16.gmra.mxu0 %v4435
        %v4795 = vpop.f32.mrf.mxu0
        %v4796 = vadd.f32 %v4477, %v4795
        %v4797 = vpop.f32.mrf.mxu0
        %v4798 = vadd.f32 %v4477, %v4797
        %4799 = vmatmul.bf16.gmra.mxu0 %v4437
        %v4800 = vpop.f32.mrf.mxu0
        %v4801 = vadd.f32 %v4477, %v4800
        %v4802 = vpop.f32.mrf.mxu0
        %v4803 = vadd.f32 %v4477, %v4802
        %4804 = vmatmul.bf16.gmra.mxu0 %v4439
        %v4805 = vpop.f32.mrf.mxu0
        %v4806 = vadd.f32 %v4477, %v4805
        %v4807 = vpop.f32.mrf.mxu0
        %v4808 = vadd.f32 %v4477, %v4807
        %4809 = vdwg.mxu0
        %4810 = vmatpush.bf16.msra.mxu0 %v4607
        %4811 = vmatpush.bf16.msra.mxu0 %v4605
        %4812 = vmatpush.bf16.msra.mxu0 %v4603
        %4813 = vmatpush.bf16.msra.mxu0 %v4601
        %4814 = vmatpush.bf16.msra.mxu0 %v4599
        %4815 = vmatpush.bf16.msra.mxu0 %v4597
        %4816 = vmatpush.bf16.msra.mxu0 %v4595
        %4817 = vmatpush.bf16.msra.mxu0 %v4593
        %4818 = vmatmul.bf16.gmra.mxu0 %v4378
        %v4819 = vpop.f32.mrf.mxu0
        %v4820 = vadd.f32 %v4651, %v4819
        %v4821 = vpop.f32.mrf.mxu0
        %v4822 = vadd.f32 %v4653, %v4821
        %4823 = vmatmul.bf16.gmra.mxu0 %v4380
        %v4824 = vpop.f32.mrf.mxu0
        %v4825 = vadd.f32 %v4656, %v4824
        %v4826 = vpop.f32.mrf.mxu0
        %v4827 = vadd.f32 %v4658, %v4826
        %4828 = vmatmul.bf16.gmra.mxu0 %v4382
        %v4829 = vpop.f32.mrf.mxu0
        %v4830 = vadd.f32 %v4661, %v4829
        %v4831 = vpop.f32.mrf.mxu0
        %v4832 = vadd.f32 %v4663, %v4831
        %4833 = vmatmul.bf16.gmra.mxu0 %v4384
        %v4834 = vpop.f32.mrf.mxu0
        %v4835 = vadd.f32 %v4666, %v4834
        %v4836 = vpop.f32.mrf.mxu0
        %v4837 = vadd.f32 %v4668, %v4836
        %4838 = vmatmul.bf16.gmra.mxu0 %v4386
        %v4839 = vpop.f32.mrf.mxu0
        %v4840 = vadd.f32 %v4671, %v4839
        %v4841 = vpop.f32.mrf.mxu0
        %v4842 = vadd.f32 %v4673, %v4841
        %4843 = vmatmul.bf16.gmra.mxu0 %v4388
        %v4844 = vpop.f32.mrf.mxu0
        %v4845 = vadd.f32 %v4676, %v4844
        %v4846 = vpop.f32.mrf.mxu0
        %v4847 = vadd.f32 %v4678, %v4846
        %4848 = vmatmul.bf16.gmra.mxu0 %v4390
        %v4849 = vpop.f32.mrf.mxu0
        %v4850 = vadd.f32 %v4681, %v4849
        %v4851 = vpop.f32.mrf.mxu0
        %v4852 = vadd.f32 %v4683, %v4851
        %4853 = vmatmul.bf16.gmra.mxu0 %v4392
        %v4854 = vpop.f32.mrf.mxu0
        %v4855 = vadd.f32 %v4686, %v4854
        %v4856 = vpop.f32.mrf.mxu0
        %v4857 = vadd.f32 %v4688, %v4856
        %4858 = vmatmul.bf16.gmra.mxu0 %v4394
        %v4859 = vpop.f32.mrf.mxu0
        %v4860 = vadd.f32 %v4691, %v4859
        %v4861 = vpop.f32.mrf.mxu0
        %v4862 = vadd.f32 %v4693, %v4861
        %4863 = vmatmul.bf16.gmra.mxu0 %v4396
        %v4864 = vpop.f32.mrf.mxu0
        %v4865 = vadd.f32 %v4696, %v4864
        %v4866 = vpop.f32.mrf.mxu0
        %v4867 = vadd.f32 %v4698, %v4866
        %4868 = vmatmul.bf16.gmra.mxu0 %v4398
        %v4869 = vpop.f32.mrf.mxu0
        %v4870 = vadd.f32 %v4701, %v4869
        %v4871 = vpop.f32.mrf.mxu0
        %v4872 = vadd.f32 %v4703, %v4871
        %4873 = vmatmul.bf16.gmra.mxu0 %v4400
        %v4874 = vpop.f32.mrf.mxu0
        %v4875 = vadd.f32 %v4706, %v4874
        %v4876 = vpop.f32.mrf.mxu0
        %v4877 = vadd.f32 %v4708, %v4876
        %4878 = vmatmul.bf16.gmra.mxu0 %v4402
        %v4879 = vpop.f32.mrf.mxu0
        %v4880 = vadd.f32 %v4711, %v4879
        %v4881 = vpop.f32.mrf.mxu0
        %v4882 = vadd.f32 %v4713, %v4881
        %4883 = vmatmul.bf16.gmra.mxu0 %v4404
        %v4884 = vpop.f32.mrf.mxu0
        %v4885 = vadd.f32 %v4716, %v4884
        %v4886 = vpop.f32.mrf.mxu0
        %v4887 = vadd.f32 %v4718, %v4886
        %4888 = vmatmul.bf16.gmra.mxu0 %v4406
        %v4889 = vpop.f32.mrf.mxu0
        %v4890 = vadd.f32 %v4721, %v4889
        %v4891 = vpop.f32.mrf.mxu0
        %v4892 = vadd.f32 %v4723, %v4891
        %4893 = vmatmul.bf16.gmra.mxu0 %v4408
        %v4894 = vpop.f32.mrf.mxu0
        %v4895 = vadd.f32 %v4726, %v4894
        %v4896 = vpop.f32.mrf.mxu0
        %v4897 = vadd.f32 %v4728, %v4896
        %4898 = vmatmul.bf16.gmra.mxu0 %v4410
        %v4899 = vpop.f32.mrf.mxu0
        %v4900 = vadd.f32 %v4731, %v4899
        %v4901 = vpop.f32.mrf.mxu0
        %v4902 = vadd.f32 %v4733, %v4901
        %4903 = vmatmul.bf16.gmra.mxu0 %v4412
        %v4904 = vpop.f32.mrf.mxu0
        %v4905 = vadd.f32 %v4736, %v4904
        %v4906 = vpop.f32.mrf.mxu0
        %v4907 = vadd.f32 %v4738, %v4906
        %4908 = vmatmul.bf16.gmra.mxu0 %v4414
        %v4909 = vpop.f32.mrf.mxu0
        %v4910 = vadd.f32 %v4741, %v4909
        %v4911 = vpop.f32.mrf.mxu0
        %v4912 = vadd.f32 %v4743, %v4911
        %4913 = vmatmul.bf16.gmra.mxu0 %v4416
        %v4914 = vpop.f32.mrf.mxu0
        %v4915 = vadd.f32 %v4746, %v4914
        %v4916 = vpop.f32.mrf.mxu0
        %v4917 = vadd.f32 %v4748, %v4916
        %4918 = vmatmul.bf16.gmra.mxu0 %v4418
        %v4919 = vpop.f32.mrf.mxu0
        %v4920 = vadd.f32 %v4751, %v4919
        %v4921 = vpop.f32.mrf.mxu0
        %v4922 = vadd.f32 %v4753, %v4921
        %4923 = vmatmul.bf16.gmra.mxu0 %v4420
        %v4924 = vpop.f32.mrf.mxu0
        %v4925 = vadd.f32 %v4756, %v4924
        %v4926 = vpop.f32.mrf.mxu0
        %v4927 = vadd.f32 %v4758, %v4926
        %4928 = vmatmul.bf16.gmra.mxu0 %v4422
        %v4929 = vpop.f32.mrf.mxu0
        %v4930 = vadd.f32 %v4761, %v4929
        %v4931 = vpop.f32.mrf.mxu0
        %v4932 = vadd.f32 %v4763, %v4931
        %4933 = vmatmul.bf16.gmra.mxu0 %v4424
        %v4934 = vpop.f32.mrf.mxu0
        %v4935 = vadd.f32 %v4766, %v4934
        %v4936 = vpop.f32.mrf.mxu0
        %v4937 = vadd.f32 %v4768, %v4936
        %4938 = vmatmul.bf16.gmra.mxu0 %v4426
        %v4939 = vpop.f32.mrf.mxu0
        %v4940 = vadd.f32 %v4771, %v4939
        %v4941 = vpop.f32.mrf.mxu0
        %v4942 = vadd.f32 %v4773, %v4941
        %4943 = vmatmul.bf16.gmra.mxu0 %v4428
        %v4944 = vpop.f32.mrf.mxu0
        %v4945 = vadd.f32 %v4776, %v4944
        %v4946 = vpop.f32.mrf.mxu0
        %v4947 = vadd.f32 %v4778, %v4946
        %4948 = vmatmul.bf16.gmra.mxu0 %v4430
        %v4949 = vpop.f32.mrf.mxu0
        %v4950 = vadd.f32 %v4781, %v4949
        %v4951 = vpop.f32.mrf.mxu0
        %v4952 = vadd.f32 %v4783, %v4951
        %4953 = vmatmul.bf16.gmra.mxu0 %v4432
        %v4954 = vpop.f32.mrf.mxu0
        %v4955 = vadd.f32 %v4786, %v4954
        %v4956 = vpop.f32.mrf.mxu0
        %v4957 = vadd.f32 %v4788, %v4956
        %4958 = vmatmul.bf16.gmra.mxu0 %v4434
        %v4959 = vpop.f32.mrf.mxu0
        %v4960 = vadd.f32 %v4791, %v4959
        %v4961 = vpop.f32.mrf.mxu0
        %v4962 = vadd.f32 %v4793, %v4961
        %4963 = vmatmul.bf16.gmra.mxu0 %v4436
        %v4964 = vpop.f32.mrf.mxu0
        %v4965 = vadd.f32 %v4796, %v4964
        %v4966 = vpop.f32.mrf.mxu0
        %v4967 = vadd.f32 %v4798, %v4966
        %4968 = vmatmul.bf16.gmra.mxu0 %v4438
        %v4969 = vpop.f32.mrf.mxu0
        %v4970 = vadd.f32 %v4801, %v4969
        %v4971 = vpop.f32.mrf.mxu0
        %v4972 = vadd.f32 %v4803, %v4971
        %4973 = vmatmul.bf16.gmra.mxu0 %v4440
        %v4974 = vpop.f32.mrf.mxu0
        %v4975 = vadd.f32 %v4806, %v4974
        %v4976 = vpop.f32.mrf.mxu0
        %v4977 = vadd.f32 %v4808, %v4976
        %4978 = vdwg.mxu0
        %4979 = vmatpush.bf16.msra.mxu0 %v4592
        %4980 = vmatpush.bf16.msra.mxu0 %v4590
        %4981 = vmatpush.bf16.msra.mxu0 %v4588
        %4982 = vmatpush.bf16.msra.mxu0 %v4586
        %4983 = vmatpush.bf16.msra.mxu0 %v4584
        %4984 = vmatpush.bf16.msra.mxu0 %v4582
        %4985 = vmatpush.bf16.msra.mxu0 %v4580
        %4986 = vmatpush.bf16.msra.mxu0 %v4578
        %4987 = vmatmul.bf16.gmra.mxu0 %v4377
        %v4988 = vpop.f32.mrf.mxu0
        %v4989 = vadd.f32 %v4478, %v4988
        %v4990 = vpop.f32.mrf.mxu0
        %v4991 = vadd.f32 %v4478, %v4990
        %4992 = vmatmul.bf16.gmra.mxu0 %v4379
        %v4993 = vpop.f32.mrf.mxu0
        %v4994 = vadd.f32 %v4478, %v4993
        %v4995 = vpop.f32.mrf.mxu0
        %v4996 = vadd.f32 %v4478, %v4995
        %4997 = vmatmul.bf16.gmra.mxu0 %v4381
        %v4998 = vpop.f32.mrf.mxu0
        %v4999 = vadd.f32 %v4478, %v4998
        %v5000 = vpop.f32.mrf.mxu0
        %v5001 = vadd.f32 %v4478, %v5000
        %5002 = vmatmul.bf16.gmra.mxu0 %v4383
        %v5003 = vpop.f32.mrf.mxu0
        %v5004 = vadd.f32 %v4478, %v5003
        %v5005 = vpop.f32.mrf.mxu0
        %v5006 = vadd.f32 %v4478, %v5005
        %5007 = vmatmul.bf16.gmra.mxu0 %v4385
        %v5008 = vpop.f32.mrf.mxu0
        %v5009 = vadd.f32 %v4478, %v5008
        %v5010 = vpop.f32.mrf.mxu0
        %v5011 = vadd.f32 %v4478, %v5010
        %5012 = vmatmul.bf16.gmra.mxu0 %v4387
        %v5013 = vpop.f32.mrf.mxu0
        %v5014 = vadd.f32 %v4478, %v5013
        %v5015 = vpop.f32.mrf.mxu0
        %v5016 = vadd.f32 %v4478, %v5015
        %5017 = vmatmul.bf16.gmra.mxu0 %v4389
        %v5018 = vpop.f32.mrf.mxu0
        %v5019 = vadd.f32 %v4478, %v5018
        %v5020 = vpop.f32.mrf.mxu0
        %v5021 = vadd.f32 %v4478, %v5020
        %5022 = vmatmul.bf16.gmra.mxu0 %v4391
        %v5023 = vpop.f32.mrf.mxu0
        %v5024 = vadd.f32 %v4478, %v5023
        %v5025 = vpop.f32.mrf.mxu0
        %v5026 = vadd.f32 %v4478, %v5025
        %5027 = vmatmul.bf16.gmra.mxu0 %v4393
        %v5028 = vpop.f32.mrf.mxu0
        %v5029 = vadd.f32 %v4478, %v5028
        %v5030 = vpop.f32.mrf.mxu0
        %v5031 = vadd.f32 %v4478, %v5030
        %5032 = vmatmul.bf16.gmra.mxu0 %v4395
        %v5033 = vpop.f32.mrf.mxu0
        %v5034 = vadd.f32 %v4478, %v5033
        %v5035 = vpop.f32.mrf.mxu0
        %v5036 = vadd.f32 %v4478, %v5035
        %5037 = vmatmul.bf16.gmra.mxu0 %v4397
        %v5038 = vpop.f32.mrf.mxu0
        %v5039 = vadd.f32 %v4478, %v5038
        %v5040 = vpop.f32.mrf.mxu0
        %v5041 = vadd.f32 %v4478, %v5040
        %5042 = vmatmul.bf16.gmra.mxu0 %v4399
        %v5043 = vpop.f32.mrf.mxu0
        %v5044 = vadd.f32 %v4478, %v5043
        %v5045 = vpop.f32.mrf.mxu0
        %v5046 = vadd.f32 %v4478, %v5045
        %5047 = vmatmul.bf16.gmra.mxu0 %v4401
        %v5048 = vpop.f32.mrf.mxu0
        %v5049 = vadd.f32 %v4478, %v5048
        %v5050 = vpop.f32.mrf.mxu0
        %v5051 = vadd.f32 %v4478, %v5050
        %5052 = vmatmul.bf16.gmra.mxu0 %v4403
        %v5053 = vpop.f32.mrf.mxu0
        %v5054 = vadd.f32 %v4478, %v5053
        %v5055 = vpop.f32.mrf.mxu0
        %v5056 = vadd.f32 %v4478, %v5055
        %5057 = vmatmul.bf16.gmra.mxu0 %v4405
        %v5058 = vpop.f32.mrf.mxu0
        %v5059 = vadd.f32 %v4478, %v5058
        %v5060 = vpop.f32.mrf.mxu0
        %v5061 = vadd.f32 %v4478, %v5060
        %5062 = vmatmul.bf16.gmra.mxu0 %v4407
        %v5063 = vpop.f32.mrf.mxu0
        %v5064 = vadd.f32 %v4478, %v5063
        %v5065 = vpop.f32.mrf.mxu0
        %v5066 = vadd.f32 %v4478, %v5065
        %5067 = vmatmul.bf16.gmra.mxu0 %v4409
        %v5068 = vpop.f32.mrf.mxu0
        %v5069 = vadd.f32 %v4478, %v5068
        %v5070 = vpop.f32.mrf.mxu0
        %v5071 = vadd.f32 %v4478, %v5070
        %5072 = vmatmul.bf16.gmra.mxu0 %v4411
        %v5073 = vpop.f32.mrf.mxu0
        %v5074 = vadd.f32 %v4478, %v5073
        %v5075 = vpop.f32.mrf.mxu0
        %v5076 = vadd.f32 %v4478, %v5075
        %5077 = vmatmul.bf16.gmra.mxu0 %v4413
        %v5078 = vpop.f32.mrf.mxu0
        %v5079 = vadd.f32 %v4478, %v5078
        %v5080 = vpop.f32.mrf.mxu0
        %v5081 = vadd.f32 %v4478, %v5080
        %5082 = vmatmul.bf16.gmra.mxu0 %v4415
        %v5083 = vpop.f32.mrf.mxu0
        %v5084 = vadd.f32 %v4478, %v5083
        %v5085 = vpop.f32.mrf.mxu0
        %v5086 = vadd.f32 %v4478, %v5085
        %5087 = vmatmul.bf16.gmra.mxu0 %v4417
        %v5088 = vpop.f32.mrf.mxu0
        %v5089 = vadd.f32 %v4478, %v5088
        %v5090 = vpop.f32.mrf.mxu0
        %v5091 = vadd.f32 %v4478, %v5090
        %5092 = vmatmul.bf16.gmra.mxu0 %v4419
        %v5093 = vpop.f32.mrf.mxu0
        %v5094 = vadd.f32 %v4478, %v5093
        %v5095 = vpop.f32.mrf.mxu0
        %v5096 = vadd.f32 %v4478, %v5095
        %5097 = vmatmul.bf16.gmra.mxu0 %v4421
        %v5098 = vpop.f32.mrf.mxu0
        %v5099 = vadd.f32 %v4478, %v5098
        %v5100 = vpop.f32.mrf.mxu0
        %v5101 = vadd.f32 %v4478, %v5100
        %5102 = vmatmul.bf16.gmra.mxu0 %v4423
        %v5103 = vpop.f32.mrf.mxu0
        %v5104 = vadd.f32 %v4478, %v5103
        %v5105 = vpop.f32.mrf.mxu0
        %v5106 = vadd.f32 %v4478, %v5105
        %5107 = vmatmul.bf16.gmra.mxu0 %v4425
        %v5108 = vpop.f32.mrf.mxu0
        %v5109 = vadd.f32 %v4478, %v5108
        %v5110 = vpop.f32.mrf.mxu0
        %v5111 = vadd.f32 %v4478, %v5110
        %5112 = vmatmul.bf16.gmra.mxu0 %v4427
        %v5113 = vpop.f32.mrf.mxu0
        %v5114 = vadd.f32 %v4478, %v5113
        %v5115 = vpop.f32.mrf.mxu0
        %v5116 = vadd.f32 %v4478, %v5115
        %5117 = vmatmul.bf16.gmra.mxu0 %v4429
        %v5118 = vpop.f32.mrf.mxu0
        %v5119 = vadd.f32 %v4478, %v5118
        %v5120 = vpop.f32.mrf.mxu0
        %v5121 = vadd.f32 %v4478, %v5120
        %5122 = vmatmul.bf16.gmra.mxu0 %v4431
        %v5123 = vpop.f32.mrf.mxu0
        %v5124 = vadd.f32 %v4478, %v5123
        %v5125 = vpop.f32.mrf.mxu0
        %v5126 = vadd.f32 %v4478, %v5125
        %5127 = vmatmul.bf16.gmra.mxu0 %v4433
        %v5128 = vpop.f32.mrf.mxu0
        %v5129 = vadd.f32 %v4478, %v5128
        %v5130 = vpop.f32.mrf.mxu0
        %v5131 = vadd.f32 %v4478, %v5130
        %5132 = vmatmul.bf16.gmra.mxu0 %v4435
        %v5133 = vpop.f32.mrf.mxu0
        %v5134 = vadd.f32 %v4478, %v5133
        %v5135 = vpop.f32.mrf.mxu0
        %v5136 = vadd.f32 %v4478, %v5135
        %5137 = vmatmul.bf16.gmra.mxu0 %v4437
        %v5138 = vpop.f32.mrf.mxu0
        %v5139 = vadd.f32 %v4478, %v5138
        %v5140 = vpop.f32.mrf.mxu0
        %v5141 = vadd.f32 %v4478, %v5140
        %5142 = vmatmul.bf16.gmra.mxu0 %v4439
        %v5143 = vpop.f32.mrf.mxu0
        %v5144 = vadd.f32 %v4478, %v5143
        %v5145 = vpop.f32.mrf.mxu0
        %v5146 = vadd.f32 %v4478, %v5145
        %5147 = vdwg.mxu0
        %5148 = vmatpush.bf16.msra.mxu0 %v4608
        %5149 = vmatpush.bf16.msra.mxu0 %v4606
        %5150 = vmatpush.bf16.msra.mxu0 %v4604
        %5151 = vmatpush.bf16.msra.mxu0 %v4602
        %5152 = vmatpush.bf16.msra.mxu0 %v4600
        %5153 = vmatpush.bf16.msra.mxu0 %v4598
        %5154 = vmatpush.bf16.msra.mxu0 %v4596
        %5155 = vmatpush.bf16.msra.mxu0 %v4594
        %5156 = vmatmul.bf16.gmra.mxu0 %v4378
        %v5157 = vpop.f32.mrf.mxu0
        %v5158 = vadd.f32 %v4989, %v5157
        %v5159 = vpop.f32.mrf.mxu0
        %v5160 = vadd.f32 %v4991, %v5159
        %5161 = vmatmul.bf16.gmra.mxu0 %v4380
        %v5162 = vpop.f32.mrf.mxu0
        %v5163 = vadd.f32 %v4994, %v5162
        %v5164 = vpop.f32.mrf.mxu0
        %v5165 = vadd.f32 %v4996, %v5164
        %5166 = vmatmul.bf16.gmra.mxu0 %v4382
        %v5167 = vpop.f32.mrf.mxu0
        %v5168 = vadd.f32 %v4999, %v5167
        %v5169 = vpop.f32.mrf.mxu0
        %v5170 = vadd.f32 %v5001, %v5169
        %5171 = vmatmul.bf16.gmra.mxu0 %v4384
        %v5172 = vpop.f32.mrf.mxu0
        %v5173 = vadd.f32 %v5004, %v5172
        %v5174 = vpop.f32.mrf.mxu0
        %v5175 = vadd.f32 %v5006, %v5174
        %5176 = vmatmul.bf16.gmra.mxu0 %v4386
        %v5177 = vpop.f32.mrf.mxu0
        %v5178 = vadd.f32 %v5009, %v5177
        %v5179 = vpop.f32.mrf.mxu0
        %v5180 = vadd.f32 %v5011, %v5179
        %5181 = vmatmul.bf16.gmra.mxu0 %v4388
        %v5182 = vpop.f32.mrf.mxu0
        %v5183 = vadd.f32 %v5014, %v5182
        %v5184 = vpop.f32.mrf.mxu0
        %v5185 = vadd.f32 %v5016, %v5184
        %5186 = vmatmul.bf16.gmra.mxu0 %v4390
        %v5187 = vpop.f32.mrf.mxu0
        %v5188 = vadd.f32 %v5019, %v5187
        %v5189 = vpop.f32.mrf.mxu0
        %v5190 = vadd.f32 %v5021, %v5189
        %5191 = vmatmul.bf16.gmra.mxu0 %v4392
        %v5192 = vpop.f32.mrf.mxu0
        %v5193 = vadd.f32 %v5024, %v5192
        %v5194 = vpop.f32.mrf.mxu0
        %v5195 = vadd.f32 %v5026, %v5194
        %5196 = vmatmul.bf16.gmra.mxu0 %v4394
        %v5197 = vpop.f32.mrf.mxu0
        %v5198 = vadd.f32 %v5029, %v5197
        %v5199 = vpop.f32.mrf.mxu0
        %v5200 = vadd.f32 %v5031, %v5199
        %5201 = vmatmul.bf16.gmra.mxu0 %v4396
        %v5202 = vpop.f32.mrf.mxu0
        %v5203 = vadd.f32 %v5034, %v5202
        %v5204 = vpop.f32.mrf.mxu0
        %v5205 = vadd.f32 %v5036, %v5204
        %5206 = vmatmul.bf16.gmra.mxu0 %v4398
        %v5207 = vpop.f32.mrf.mxu0
        %v5208 = vadd.f32 %v5039, %v5207
        %v5209 = vpop.f32.mrf.mxu0
        %v5210 = vadd.f32 %v5041, %v5209
        %5211 = vmatmul.bf16.gmra.mxu0 %v4400
        %v5212 = vpop.f32.mrf.mxu0
        %v5213 = vadd.f32 %v5044, %v5212
        %v5214 = vpop.f32.mrf.mxu0
        %v5215 = vadd.f32 %v5046, %v5214
        %5216 = vmatmul.bf16.gmra.mxu0 %v4402
        %v5217 = vpop.f32.mrf.mxu0
        %v5218 = vadd.f32 %v5049, %v5217
        %v5219 = vpop.f32.mrf.mxu0
        %v5220 = vadd.f32 %v5051, %v5219
        %5221 = vmatmul.bf16.gmra.mxu0 %v4404
        %v5222 = vpop.f32.mrf.mxu0
        %v5223 = vadd.f32 %v5054, %v5222
        %v5224 = vpop.f32.mrf.mxu0
        %v5225 = vadd.f32 %v5056, %v5224
        %5226 = vmatmul.bf16.gmra.mxu0 %v4406
        %v5227 = vpop.f32.mrf.mxu0
        %v5228 = vadd.f32 %v5059, %v5227
        %v5229 = vpop.f32.mrf.mxu0
        %v5230 = vadd.f32 %v5061, %v5229
        %5231 = vmatmul.bf16.gmra.mxu0 %v4408
        %v5232 = vpop.f32.mrf.mxu0
        %v5233 = vadd.f32 %v5064, %v5232
        %v5234 = vpop.f32.mrf.mxu0
        %v5235 = vadd.f32 %v5066, %v5234
        %5236 = vmatmul.bf16.gmra.mxu0 %v4410
        %v5237 = vpop.f32.mrf.mxu0
        %v5238 = vadd.f32 %v5069, %v5237
        %v5239 = vpop.f32.mrf.mxu0
        %v5240 = vadd.f32 %v5071, %v5239
        %5241 = vmatmul.bf16.gmra.mxu0 %v4412
        %v5242 = vpop.f32.mrf.mxu0
        %v5243 = vadd.f32 %v5074, %v5242
        %v5244 = vpop.f32.mrf.mxu0
        %v5245 = vadd.f32 %v5076, %v5244
        %5246 = vmatmul.bf16.gmra.mxu0 %v4414
        %v5247 = vpop.f32.mrf.mxu0
        %v5248 = vadd.f32 %v5079, %v5247
        %v5249 = vpop.f32.mrf.mxu0
        %v5250 = vadd.f32 %v5081, %v5249
        %5251 = vmatmul.bf16.gmra.mxu0 %v4416
        %v5252 = vpop.f32.mrf.mxu0
        %v5253 = vadd.f32 %v5084, %v5252
        %v5254 = vpop.f32.mrf.mxu0
        %v5255 = vadd.f32 %v5086, %v5254
        %5256 = vmatmul.bf16.gmra.mxu0 %v4418
        %v5257 = vpop.f32.mrf.mxu0
        %v5258 = vadd.f32 %v5089, %v5257
        %v5259 = vpop.f32.mrf.mxu0
        %v5260 = vadd.f32 %v5091, %v5259
        %5261 = vmatmul.bf16.gmra.mxu0 %v4420
        %v5262 = vpop.f32.mrf.mxu0
        %v5263 = vadd.f32 %v5094, %v5262
        %v5264 = vpop.f32.mrf.mxu0
        %v5265 = vadd.f32 %v5096, %v5264
        %5266 = vmatmul.bf16.gmra.mxu0 %v4422
        %v5267 = vpop.f32.mrf.mxu0
        %v5268 = vadd.f32 %v5099, %v5267
        %v5269 = vpop.f32.mrf.mxu0
        %v5270 = vadd.f32 %v5101, %v5269
        %5271 = vmatmul.bf16.gmra.mxu0 %v4424
        %v5272 = vpop.f32.mrf.mxu0
        %v5273 = vadd.f32 %v5104, %v5272
        %v5274 = vpop.f32.mrf.mxu0
        %v5275 = vadd.f32 %v5106, %v5274
        %5276 = vmatmul.bf16.gmra.mxu0 %v4426
        %v5277 = vpop.f32.mrf.mxu0
        %v5278 = vadd.f32 %v5109, %v5277
        %v5279 = vpop.f32.mrf.mxu0
        %v5280 = vadd.f32 %v5111, %v5279
        %5281 = vmatmul.bf16.gmra.mxu0 %v4428
        %v5282 = vpop.f32.mrf.mxu0
        %v5283 = vadd.f32 %v5114, %v5282
        %v5284 = vpop.f32.mrf.mxu0
        %v5285 = vadd.f32 %v5116, %v5284
        %5286 = vmatmul.bf16.gmra.mxu0 %v4430
        %v5287 = vpop.f32.mrf.mxu0
        %v5288 = vadd.f32 %v5119, %v5287
        %v5289 = vpop.f32.mrf.mxu0
        %v5290 = vadd.f32 %v5121, %v5289
        %5291 = vmatmul.bf16.gmra.mxu0 %v4432
        %v5292 = vpop.f32.mrf.mxu0
        %v5293 = vadd.f32 %v5124, %v5292
        %v5294 = vpop.f32.mrf.mxu0
        %v5295 = vadd.f32 %v5126, %v5294
        %5296 = vmatmul.bf16.gmra.mxu0 %v4434
        %v5297 = vpop.f32.mrf.mxu0
        %v5298 = vadd.f32 %v5129, %v5297
        %v5299 = vpop.f32.mrf.mxu0
        %v5300 = vadd.f32 %v5131, %v5299
        %5301 = vmatmul.bf16.gmra.mxu0 %v4436
        %v5302 = vpop.f32.mrf.mxu0
        %v5303 = vadd.f32 %v5134, %v5302
        %v5304 = vpop.f32.mrf.mxu0
        %v5305 = vadd.f32 %v5136, %v5304
        %5306 = vmatmul.bf16.gmra.mxu0 %v4438
        %v5307 = vpop.f32.mrf.mxu0
        %v5308 = vadd.f32 %v5139, %v5307
        %v5309 = vpop.f32.mrf.mxu0
        %v5310 = vadd.f32 %v5141, %v5309
        %5311 = vmatmul.bf16.gmra.mxu0 %v4440
        %v5312 = vpop.f32.mrf.mxu0
        %v5313 = vadd.f32 %v5144, %v5312
        %v5314 = vpop.f32.mrf.mxu0
        %v5315 = vadd.f32 %v5146, %v5314
        %5316 = vdwg.mxu0
        %v5317 = vmax.f32 %v4820, 0.0
        %v5318 = vmax.f32 %v5158, 0.0
        %v5319 = vmax.f32 %v4822, 0.0
        %v5320 = vmax.f32 %v5160, 0.0
        %v5321 = vmax.f32 %v4825, 0.0
        %v5322 = vmax.f32 %v5163, 0.0
        %v5323 = vmax.f32 %v4827, 0.0
        %v5324 = vmax.f32 %v5165, 0.0
        %v5325 = vmax.f32 %v4830, 0.0
        %v5326 = vmax.f32 %v5168, 0.0
        %v5327 = vmax.f32 %v4832, 0.0
        %v5328 = vmax.f32 %v5170, 0.0
        %v5329 = vmax.f32 %v4835, 0.0
        %v5330 = vmax.f32 %v5173, 0.0
        %v5331 = vmax.f32 %v4837, 0.0
        %v5332 = vmax.f32 %v5175, 0.0
        %v5333 = vmax.f32 %v4840, 0.0
        %v5334 = vmax.f32 %v5178, 0.0
        %v5335 = vmax.f32 %v4842, 0.0
        %v5336 = vmax.f32 %v5180, 0.0
        %v5337 = vmax.f32 %v4845, 0.0
        %v5338 = vmax.f32 %v5183, 0.0
        %v5339 = vmax.f32 %v4847, 0.0
        %v5340 = vmax.f32 %v5185, 0.0
        %v5341 = vmax.f32 %v4850, 0.0
        %v5342 = vmax.f32 %v5188, 0.0
        %v5343 = vmax.f32 %v4852, 0.0
        %v5344 = vmax.f32 %v5190, 0.0
        %v5345 = vmax.f32 %v4855, 0.0
        %v5346 = vmax.f32 %v5193, 0.0
        %v5347 = vmax.f32 %v4857, 0.0
        %v5348 = vmax.f32 %v5195, 0.0
        %v5349 = vmax.f32 %v4860, 0.0
        %v5350 = vmax.f32 %v5198, 0.0
        %v5351 = vmax.f32 %v4862, 0.0
        %v5352 = vmax.f32 %v5200, 0.0
        %v5353 = vmax.f32 %v4865, 0.0
        %v5354 = vmax.f32 %v5203, 0.0
        %v5355 = vmax.f32 %v4867, 0.0
        %v5356 = vmax.f32 %v5205, 0.0
        %v5357 = vmax.f32 %v4870, 0.0
        %v5358 = vmax.f32 %v5208, 0.0
        %v5359 = vmax.f32 %v4872, 0.0
        %v5360 = vmax.f32 %v5210, 0.0
        %v5361 = vmax.f32 %v4875, 0.0
        %v5362 = vmax.f32 %v5213, 0.0
        %v5363 = vmax.f32 %v4877, 0.0
        %v5364 = vmax.f32 %v5215, 0.0
        %v5365 = vmax.f32 %v4880, 0.0
        %v5366 = vmax.f32 %v5218, 0.0
        %v5367 = vmax.f32 %v4882, 0.0
        %v5368 = vmax.f32 %v5220, 0.0
        %v5369 = vmax.f32 %v4885, 0.0
        %v5370 = vmax.f32 %v5223, 0.0
        %v5371 = vmax.f32 %v4887, 0.0
        %v5372 = vmax.f32 %v5225, 0.0
        %v5373 = vmax.f32 %v4890, 0.0
        %v5374 = vmax.f32 %v5228, 0.0
        %v5375 = vmax.f32 %v4892, 0.0
        %v5376 = vmax.f32 %v5230, 0.0
        %v5377 = vmax.f32 %v4895, 0.0
        %v5378 = vmax.f32 %v5233, 0.0
        %v5379 = vmax.f32 %v4897, 0.0
        %v5380 = vmax.f32 %v5235, 0.0
        %v5381 = vmax.f32 %v4900, 0.0
        %v5382 = vmax.f32 %v5238, 0.0
        %v5383 = vmax.f32 %v4902, 0.0
        %v5384 = vmax.f32 %v5240, 0.0
        %v5385 = vmax.f32 %v4905, 0.0
        %v5386 = vmax.f32 %v5243, 0.0
        %v5387 = vmax.f32 %v4907, 0.0
        %v5388 = vmax.f32 %v5245, 0.0
        %v5389 = vmax.f32 %v4910, 0.0
        %v5390 = vmax.f32 %v5248, 0.0
        %v5391 = vmax.f32 %v4912, 0.0
        %v5392 = vmax.f32 %v5250, 0.0
        %v5393 = vmax.f32 %v4915, 0.0
        %v5394 = vmax.f32 %v5253, 0.0
        %v5395 = vmax.f32 %v4917, 0.0
        %v5396 = vmax.f32 %v5255, 0.0
        %v5397 = vmax.f32 %v4920, 0.0
        %v5398 = vmax.f32 %v5258, 0.0
        %v5399 = vmax.f32 %v4922, 0.0
        %v5400 = vmax.f32 %v5260, 0.0
        %v5401 = vmax.f32 %v4925, 0.0
        %v5402 = vmax.f32 %v5263, 0.0
        %v5403 = vmax.f32 %v4927, 0.0
        %v5404 = vmax.f32 %v5265, 0.0
        %v5405 = vmax.f32 %v4930, 0.0
        %v5406 = vmax.f32 %v5268, 0.0
        %v5407 = vmax.f32 %v4932, 0.0
        %v5408 = vmax.f32 %v5270, 0.0
        %v5409 = vmax.f32 %v4935, 0.0
        %v5410 = vmax.f32 %v5273, 0.0
        %v5411 = vmax.f32 %v4937, 0.0
        %v5412 = vmax.f32 %v5275, 0.0
        %v5413 = vmax.f32 %v4940, 0.0
        %v5414 = vmax.f32 %v5278, 0.0
        %v5415 = vmax.f32 %v4942, 0.0
        %v5416 = vmax.f32 %v5280, 0.0
        %v5417 = vmax.f32 %v4945, 0.0
        %v5418 = vmax.f32 %v5283, 0.0
        %v5419 = vmax.f32 %v4947, 0.0
        %v5420 = vmax.f32 %v5285, 0.0
        %v5421 = vmax.f32 %v4950, 0.0
        %v5422 = vmax.f32 %v5288, 0.0
        %v5423 = vmax.f32 %v4952, 0.0
        %v5424 = vmax.f32 %v5290, 0.0
        %v5425 = vmax.f32 %v4955, 0.0
        %v5426 = vmax.f32 %v5293, 0.0
        %v5427 = vmax.f32 %v4957, 0.0
        %v5428 = vmax.f32 %v5295, 0.0
        %v5429 = vmax.f32 %v4960, 0.0
        %v5430 = vmax.f32 %v5298, 0.0
        %v5431 = vmax.f32 %v4962, 0.0
        %v5432 = vmax.f32 %v5300, 0.0
        %v5433 = vmax.f32 %v4965, 0.0
        %v5434 = vmax.f32 %v5303, 0.0
        %v5435 = vmax.f32 %v4967, 0.0
        %v5436 = vmax.f32 %v5305, 0.0
        %v5437 = vmax.f32 %v4970, 0.0
        %v5438 = vmax.f32 %v5308, 0.0
        %v5439 = vmax.f32 %v4972, 0.0
        %v5440 = vmax.f32 %v5310, 0.0
        %v5441 = vmax.f32 %v4975, 0.0
        %v5442 = vmax.f32 %v5313, 0.0
        %v5443 = vmax.f32 %v4977, 0.0
        %v5444 = vmax.f32 %v5315, 0.0
        %v5445 = vpack.c.bf16 %v5319, %v5317
        %v5446 = vpack.c.bf16 %v5320, %v5318
        %v5447 = vpack.c.bf16 %v5323, %v5321
        %v5448 = vpack.c.bf16 %v5324, %v5322
        %v5449 = vpack.c.bf16 %v5327, %v5325
        %v5450 = vpack.c.bf16 %v5328, %v5326
        %v5451 = vpack.c.bf16 %v5331, %v5329
        %v5452 = vpack.c.bf16 %v5332, %v5330
        %v5453 = vpack.c.bf16 %v5335, %v5333
        %v5454 = vpack.c.bf16 %v5336, %v5334
        %v5455 = vpack.c.bf16 %v5339, %v5337
        %v5456 = vpack.c.bf16 %v5340, %v5338
        %v5457 = vpack.c.bf16 %v5343, %v5341
        %v5458 = vpack.c.bf16 %v5344, %v5342
        %v5459 = vpack.c.bf16 %v5347, %v5345
        %v5460 = vpack.c.bf16 %v5348, %v5346
        %v5461 = vpack.c.bf16 %v5351, %v5349
        %v5462 = vpack.c.bf16 %v5352, %v5350
        %v5463 = vpack.c.bf16 %v5355, %v5353
        %v5464 = vpack.c.bf16 %v5356, %v5354
        %v5465 = vpack.c.bf16 %v5359, %v5357
        %v5466 = vpack.c.bf16 %v5360, %v5358
        %v5467 = vpack.c.bf16 %v5363, %v5361
        %v5468 = vpack.c.bf16 %v5364, %v5362
        %v5469 = vpack.c.bf16 %v5367, %v5365
        %v5470 = vpack.c.bf16 %v5368, %v5366
        %v5471 = vpack.c.bf16 %v5371, %v5369
        %v5472 = vpack.c.bf16 %v5372, %v5370
        %v5473 = vpack.c.bf16 %v5375, %v5373
        %v5474 = vpack.c.bf16 %v5376, %v5374
        %v5475 = vpack.c.bf16 %v5379, %v5377
        %v5476 = vpack.c.bf16 %v5380, %v5378
        %v5477 = vpack.c.bf16 %v5383, %v5381
        %v5478 = vpack.c.bf16 %v5384, %v5382
        %v5479 = vpack.c.bf16 %v5387, %v5385
        %v5480 = vpack.c.bf16 %v5388, %v5386
        %v5481 = vpack.c.bf16 %v5391, %v5389
        %v5482 = vpack.c.bf16 %v5392, %v5390
        %v5483 = vpack.c.bf16 %v5395, %v5393
        %v5484 = vpack.c.bf16 %v5396, %v5394
        %v5485 = vpack.c.bf16 %v5399, %v5397
        %v5486 = vpack.c.bf16 %v5400, %v5398
        %v5487 = vpack.c.bf16 %v5403, %v5401
        %v5488 = vpack.c.bf16 %v5404, %v5402
        %v5489 = vpack.c.bf16 %v5407, %v5405
        %v5490 = vpack.c.bf16 %v5408, %v5406
        %v5491 = vpack.c.bf16 %v5411, %v5409
        %v5492 = vpack.c.bf16 %v5412, %v5410
        %v5493 = vpack.c.bf16 %v5415, %v5413
        %v5494 = vpack.c.bf16 %v5416, %v5414
        %v5495 = vpack.c.bf16 %v5419, %v5417
        %v5496 = vpack.c.bf16 %v5420, %v5418
        %v5497 = vpack.c.bf16 %v5423, %v5421
        %v5498 = vpack.c.bf16 %v5424, %v5422
        %v5499 = vpack.c.bf16 %v5427, %v5425
        %v5500 = vpack.c.bf16 %v5428, %v5426
        %v5501 = vpack.c.bf16 %v5431, %v5429
        %v5502 = vpack.c.bf16 %v5432, %v5430
        %v5503 = vpack.c.bf16 %v5435, %v5433
        %v5504 = vpack.c.bf16 %v5436, %v5434
        %v5505 = vpack.c.bf16 %v5439, %v5437
        %v5506 = vpack.c.bf16 %v5440, %v5438
        %v5507 = vpack.c.bf16 %v5443, %v5441
        %v5508 = vpack.c.bf16 %v5444, %v5442
        %s5509 = scalar_lea.vmem [#allocation8], 1024
        %v5510 = vld [vmem:[%s5509] sm:$0xff]
        %v5511 = vld [vmem:[%s5509 + $0x8] sm:$0xff]
        %v5512 = vld [vmem:[%s5509 + $0x10] sm:$0xff]
        %v5513 = vld [vmem:[%s5509 + $0x18] sm:$0xff]
        %v5514 = vld [vmem:[%s5509 + $0x20] sm:$0xff]
        %v5515 = vld [vmem:[%s5509 + $0x28] sm:$0xff]
        %v5516 = vld [vmem:[%s5509 + $0x30] sm:$0xff]
        %v5517 = vld [vmem:[%s5509 + $0x38] sm:$0xff]
        %v5518 = vld [vmem:[%s5509 + $0x40] sm:$0xff]
        %v5519 = vld [vmem:[%s5509 + $0x48] sm:$0xff]
        %v5520 = vld [vmem:[%s5509 + $0x50] sm:$0xff]
        %v5521 = vld [vmem:[%s5509 + $0x58] sm:$0xff]
        %v5522 = vld [vmem:[%s5509 + $0x60] sm:$0xff]
        %v5523 = vld [vmem:[%s5509 + $0x68] sm:$0xff]
        %v5524 = vld [vmem:[%s5509 + $0x70] sm:$0xff]
        %v5525 = vld [vmem:[%s5509 + $0x78] sm:$0xff]
        %v5526 = vld [vmem:[%s5509 + $0x80] sm:$0xff]
        %v5527 = vld [vmem:[%s5509 + $0x88] sm:$0xff]
        %v5528 = vld [vmem:[%s5509 + $0x90] sm:$0xff]
        %v5529 = vld [vmem:[%s5509 + $0x98] sm:$0xff]
        %v5530 = vld [vmem:[%s5509 + $0xa0] sm:$0xff]
        %v5531 = vld [vmem:[%s5509 + $0xa8] sm:$0xff]
        %v5532 = vld [vmem:[%s5509 + $0xb0] sm:$0xff]
        %v5533 = vld [vmem:[%s5509 + $0xb8] sm:$0xff]
        %v5534 = vld [vmem:[%s5509 + $0xc0] sm:$0xff]
        %v5535 = vld [vmem:[%s5509 + $0xc8] sm:$0xff]
        %v5536 = vld [vmem:[%s5509 + $0xd0] sm:$0xff]
        %v5537 = vld [vmem:[%s5509 + $0xd8] sm:$0xff]
        %v5538 = vld [vmem:[%s5509 + $0xe0] sm:$0xff]
        %v5539 = vld [vmem:[%s5509 + $0xe8] sm:$0xff]
        %v5540 = vld [vmem:[%s5509 + $0xf0] sm:$0xff]
        %v5541 = vld [vmem:[%s5509 + $0xf8] sm:$0xff]
        %s5542 = scalar_lea.vmem [#allocation9], 8
        %v5543 = vld [vmem:[%s5542] sm:$0x3]
        %v5545 = vperm.slane %v5543, 0
        %v5546 = vperm.slane %v5543, 1
        %v5581 = vunpack.c.l.b16 %v5510
        %v5582 = vunpack.c.h.b16 %v5510
        %v5583 = vunpack.c.l.b16 %v5511
        %v5584 = vunpack.c.h.b16 %v5511
        %v5585 = vunpack.c.l.b16 %v5512
        %v5586 = vunpack.c.h.b16 %v5512
        %v5587 = vunpack.c.l.b16 %v5513
        %v5588 = vunpack.c.h.b16 %v5513
        %v5589 = vunpack.c.l.b16 %v5514
        %v5590 = vunpack.c.h.b16 %v5514
        %v5591 = vunpack.c.l.b16 %v5515
        %v5592 = vunpack.c.h.b16 %v5515
        %v5593 = vunpack.c.l.b16 %v5516
        %v5594 = vunpack.c.h.b16 %v5516
        %v5595 = vunpack.c.l.b16 %v5517
        %v5596 = vunpack.c.h.b16 %v5517
        %v5597 = vunpack.c.l.b16 %v5518
        %v5598 = vunpack.c.h.b16 %v5518
        %v5599 = vunpack.c.l.b16 %v5519
        %v5600 = vunpack.c.h.b16 %v5519
        %v5601 = vunpack.c.l.b16 %v5520
        %v5602 = vunpack.c.h.b16 %v5520
        %v5603 = vunpack.c.l.b16 %v5521
        %v5604 = vunpack.c.h.b16 %v5521
        %v5605 = vunpack.c.l.b16 %v5522
        %v5606 = vunpack.c.h.b16 %v5522
        %v5607 = vunpack.c.l.b16 %v5523
        %v5608 = vunpack.c.h.b16 %v5523
        %v5609 = vunpack.c.l.b16 %v5524
        %v5610 = vunpack.c.h.b16 %v5524
        %v5611 = vunpack.c.l.b16 %v5525
        %v5612 = vunpack.c.h.b16 %v5525
        %v5613 = vunpack.c.l.b16 %v5526
        %v5614 = vunpack.c.h.b16 %v5526
        %v5615 = vunpack.c.l.b16 %v5527
        %v5616 = vunpack.c.h.b16 %v5527
        %v5617 = vunpack.c.l.b16 %v5528
        %v5618 = vunpack.c.h.b16 %v5528
        %v5619 = vunpack.c.l.b16 %v5529
        %v5620 = vunpack.c.h.b16 %v5529
        %v5621 = vunpack.c.l.b16 %v5530
        %v5622 = vunpack.c.h.b16 %v5530
        %v5623 = vunpack.c.l.b16 %v5531
        %v5624 = vunpack.c.h.b16 %v5531
        %v5625 = vunpack.c.l.b16 %v5532
        %v5626 = vunpack.c.h.b16 %v5532
        %v5627 = vunpack.c.l.b16 %v5533
        %v5628 = vunpack.c.h.b16 %v5533
        %v5629 = vunpack.c.l.b16 %v5534
        %v5630 = vunpack.c.h.b16 %v5534
        %v5631 = vunpack.c.l.b16 %v5535
        %v5632 = vunpack.c.h.b16 %v5535
        %v5633 = vunpack.c.l.b16 %v5536
        %v5634 = vunpack.c.h.b16 %v5536
        %v5635 = vunpack.c.l.b16 %v5537
        %v5636 = vunpack.c.h.b16 %v5537
        %v5637 = vunpack.c.l.b16 %v5538
        %v5638 = vunpack.c.h.b16 %v5538
        %v5639 = vunpack.c.l.b16 %v5539
        %v5640 = vunpack.c.h.b16 %v5539
        %v5641 = vunpack.c.l.b16 %v5540
        %v5642 = vunpack.c.h.b16 %v5540
        %v5643 = vunpack.c.l.b16 %v5541
        %v5644 = vunpack.c.h.b16 %v5541
        %v5645 = vpack.c.b16 %v5583, %v5581
        %v5646 = vpack.c.b16 %v5584, %v5582
        %v5647 = vpack.c.b16 %v5587, %v5585
        %v5648 = vpack.c.b16 %v5588, %v5586
        %v5649 = vpack.c.b16 %v5591, %v5589
        %v5650 = vpack.c.b16 %v5592, %v5590
        %v5651 = vpack.c.b16 %v5595, %v5593
        %v5652 = vpack.c.b16 %v5596, %v5594
        %v5653 = vpack.c.b16 %v5599, %v5597
        %v5654 = vpack.c.b16 %v5600, %v5598
        %v5655 = vpack.c.b16 %v5603, %v5601
        %v5656 = vpack.c.b16 %v5604, %v5602
        %v5657 = vpack.c.b16 %v5607, %v5605
        %v5658 = vpack.c.b16 %v5608, %v5606
        %v5659 = vpack.c.b16 %v5611, %v5609
        %v5660 = vpack.c.b16 %v5612, %v5610
        %v5661 = vpack.c.b16 %v5615, %v5613
        %v5662 = vpack.c.b16 %v5616, %v5614
        %v5663 = vpack.c.b16 %v5619, %v5617
        %v5664 = vpack.c.b16 %v5620, %v5618
        %v5665 = vpack.c.b16 %v5623, %v5621
        %v5666 = vpack.c.b16 %v5624, %v5622
        %v5667 = vpack.c.b16 %v5627, %v5625
        %v5668 = vpack.c.b16 %v5628, %v5626
        %v5669 = vpack.c.b16 %v5631, %v5629
        %v5670 = vpack.c.b16 %v5632, %v5630
        %v5671 = vpack.c.b16 %v5635, %v5633
        %v5672 = vpack.c.b16 %v5636, %v5634
        %v5673 = vpack.c.b16 %v5639, %v5637
        %v5674 = vpack.c.b16 %v5640, %v5638
        %v5675 = vpack.c.b16 %v5643, %v5641
        %v5676 = vpack.c.b16 %v5644, %v5642
        %5709 = vmatpush.bf16.msra.mxu0 %v5659
        %5710 = vmatpush.bf16.msra.mxu0 %v5657
        %5711 = vmatpush.bf16.msra.mxu0 %v5655
        %5712 = vmatpush.bf16.msra.mxu0 %v5653
        %5713 = vmatpush.bf16.msra.mxu0 %v5651
        %5714 = vmatpush.bf16.msra.mxu0 %v5649
        %5715 = vmatpush.bf16.msra.mxu0 %v5647
        %5716 = vmatpush.bf16.msra.mxu0 %v5645
        %5717 = vmatmul.bf16.gmra.mxu0 %v5445
        %v5718 = vpop.f32.mrf.mxu0
        %v5719 = vadd.f32 %v5545, %v5718
        %v5720 = vpop.f32.mrf.mxu0
        %v5721 = vadd.f32 %v5545, %v5720
        %5722 = vmatmul.bf16.gmra.mxu0 %v5447
        %v5723 = vpop.f32.mrf.mxu0
        %v5724 = vadd.f32 %v5545, %v5723
        %v5725 = vpop.f32.mrf.mxu0
        %v5726 = vadd.f32 %v5545, %v5725
        %5727 = vmatmul.bf16.gmra.mxu0 %v5449
        %v5728 = vpop.f32.mrf.mxu0
        %v5729 = vadd.f32 %v5545, %v5728
        %v5730 = vpop.f32.mrf.mxu0
        %v5731 = vadd.f32 %v5545, %v5730
        %5732 = vmatmul.bf16.gmra.mxu0 %v5451
        %v5733 = vpop.f32.mrf.mxu0
        %v5734 = vadd.f32 %v5545, %v5733
        %v5735 = vpop.f32.mrf.mxu0
        %v5736 = vadd.f32 %v5545, %v5735
        %5737 = vmatmul.bf16.gmra.mxu0 %v5453
        %v5738 = vpop.f32.mrf.mxu0
        %v5739 = vadd.f32 %v5545, %v5738
        %v5740 = vpop.f32.mrf.mxu0
        %v5741 = vadd.f32 %v5545, %v5740
        %5742 = vmatmul.bf16.gmra.mxu0 %v5455
        %v5743 = vpop.f32.mrf.mxu0
        %v5744 = vadd.f32 %v5545, %v5743
        %v5745 = vpop.f32.mrf.mxu0
        %v5746 = vadd.f32 %v5545, %v5745
        %5747 = vmatmul.bf16.gmra.mxu0 %v5457
        %v5748 = vpop.f32.mrf.mxu0
        %v5749 = vadd.f32 %v5545, %v5748
        %v5750 = vpop.f32.mrf.mxu0
        %v5751 = vadd.f32 %v5545, %v5750
        %5752 = vmatmul.bf16.gmra.mxu0 %v5459
        %v5753 = vpop.f32.mrf.mxu0
        %v5754 = vadd.f32 %v5545, %v5753
        %v5755 = vpop.f32.mrf.mxu0
        %v5756 = vadd.f32 %v5545, %v5755
        %5757 = vmatmul.bf16.gmra.mxu0 %v5461
        %v5758 = vpop.f32.mrf.mxu0
        %v5759 = vadd.f32 %v5545, %v5758
        %v5760 = vpop.f32.mrf.mxu0
        %v5761 = vadd.f32 %v5545, %v5760
        %5762 = vmatmul.bf16.gmra.mxu0 %v5463
        %v5763 = vpop.f32.mrf.mxu0
        %v5764 = vadd.f32 %v5545, %v5763
        %v5765 = vpop.f32.mrf.mxu0
        %v5766 = vadd.f32 %v5545, %v5765
        %5767 = vmatmul.bf16.gmra.mxu0 %v5465
        %v5768 = vpop.f32.mrf.mxu0
        %v5769 = vadd.f32 %v5545, %v5768
        %v5770 = vpop.f32.mrf.mxu0
        %v5771 = vadd.f32 %v5545, %v5770
        %5772 = vmatmul.bf16.gmra.mxu0 %v5467
        %v5773 = vpop.f32.mrf.mxu0
        %v5774 = vadd.f32 %v5545, %v5773
        %v5775 = vpop.f32.mrf.mxu0
        %v5776 = vadd.f32 %v5545, %v5775
        %5777 = vmatmul.bf16.gmra.mxu0 %v5469
        %v5778 = vpop.f32.mrf.mxu0
        %v5779 = vadd.f32 %v5545, %v5778
        %v5780 = vpop.f32.mrf.mxu0
        %v5781 = vadd.f32 %v5545, %v5780
        %5782 = vmatmul.bf16.gmra.mxu0 %v5471
        %v5783 = vpop.f32.mrf.mxu0
        %v5784 = vadd.f32 %v5545, %v5783
        %v5785 = vpop.f32.mrf.mxu0
        %v5786 = vadd.f32 %v5545, %v5785
        %5787 = vmatmul.bf16.gmra.mxu0 %v5473
        %v5788 = vpop.f32.mrf.mxu0
        %v5789 = vadd.f32 %v5545, %v5788
        %v5790 = vpop.f32.mrf.mxu0
        %v5791 = vadd.f32 %v5545, %v5790
        %5792 = vmatmul.bf16.gmra.mxu0 %v5475
        %v5793 = vpop.f32.mrf.mxu0
        %v5794 = vadd.f32 %v5545, %v5793
        %v5795 = vpop.f32.mrf.mxu0
        %v5796 = vadd.f32 %v5545, %v5795
        %5797 = vmatmul.bf16.gmra.mxu0 %v5477
        %v5798 = vpop.f32.mrf.mxu0
        %v5799 = vadd.f32 %v5545, %v5798
        %v5800 = vpop.f32.mrf.mxu0
        %v5801 = vadd.f32 %v5545, %v5800
        %5802 = vmatmul.bf16.gmra.mxu0 %v5479
        %v5803 = vpop.f32.mrf.mxu0
        %v5804 = vadd.f32 %v5545, %v5803
        %v5805 = vpop.f32.mrf.mxu0
        %v5806 = vadd.f32 %v5545, %v5805
        %5807 = vmatmul.bf16.gmra.mxu0 %v5481
        %v5808 = vpop.f32.mrf.mxu0
        %v5809 = vadd.f32 %v5545, %v5808
        %v5810 = vpop.f32.mrf.mxu0
        %v5811 = vadd.f32 %v5545, %v5810
        %5812 = vmatmul.bf16.gmra.mxu0 %v5483
        %v5813 = vpop.f32.mrf.mxu0
        %v5814 = vadd.f32 %v5545, %v5813
        %v5815 = vpop.f32.mrf.mxu0
        %v5816 = vadd.f32 %v5545, %v5815
        %5817 = vmatmul.bf16.gmra.mxu0 %v5485
        %v5818 = vpop.f32.mrf.mxu0
        %v5819 = vadd.f32 %v5545, %v5818
        %v5820 = vpop.f32.mrf.mxu0
        %v5821 = vadd.f32 %v5545, %v5820
        %5822 = vmatmul.bf16.gmra.mxu0 %v5487
        %v5823 = vpop.f32.mrf.mxu0
        %v5824 = vadd.f32 %v5545, %v5823
        %v5825 = vpop.f32.mrf.mxu0
        %v5826 = vadd.f32 %v5545, %v5825
        %5827 = vmatmul.bf16.gmra.mxu0 %v5489
        %v5828 = vpop.f32.mrf.mxu0
        %v5829 = vadd.f32 %v5545, %v5828
        %v5830 = vpop.f32.mrf.mxu0
        %v5831 = vadd.f32 %v5545, %v5830
        %5832 = vmatmul.bf16.gmra.mxu0 %v5491
        %v5833 = vpop.f32.mrf.mxu0
        %v5834 = vadd.f32 %v5545, %v5833
        %v5835 = vpop.f32.mrf.mxu0
        %v5836 = vadd.f32 %v5545, %v5835
        %5837 = vmatmul.bf16.gmra.mxu0 %v5493
        %v5838 = vpop.f32.mrf.mxu0
        %v5839 = vadd.f32 %v5545, %v5838
        %v5840 = vpop.f32.mrf.mxu0
        %v5841 = vadd.f32 %v5545, %v5840
        %5842 = vmatmul.bf16.gmra.mxu0 %v5495
        %v5843 = vpop.f32.mrf.mxu0
        %v5844 = vadd.f32 %v5545, %v5843
        %v5845 = vpop.f32.mrf.mxu0
        %v5846 = vadd.f32 %v5545, %v5845
        %5847 = vmatmul.bf16.gmra.mxu0 %v5497
        %v5848 = vpop.f32.mrf.mxu0
        %v5849 = vadd.f32 %v5545, %v5848
        %v5850 = vpop.f32.mrf.mxu0
        %v5851 = vadd.f32 %v5545, %v5850
        %5852 = vmatmul.bf16.gmra.mxu0 %v5499
        %v5853 = vpop.f32.mrf.mxu0
        %v5854 = vadd.f32 %v5545, %v5853
        %v5855 = vpop.f32.mrf.mxu0
        %v5856 = vadd.f32 %v5545, %v5855
        %5857 = vmatmul.bf16.gmra.mxu0 %v5501
        %v5858 = vpop.f32.mrf.mxu0
        %v5859 = vadd.f32 %v5545, %v5858
        %v5860 = vpop.f32.mrf.mxu0
        %v5861 = vadd.f32 %v5545, %v5860
        %5862 = vmatmul.bf16.gmra.mxu0 %v5503
        %v5863 = vpop.f32.mrf.mxu0
        %v5864 = vadd.f32 %v5545, %v5863
        %v5865 = vpop.f32.mrf.mxu0
        %v5866 = vadd.f32 %v5545, %v5865
        %5867 = vmatmul.bf16.gmra.mxu0 %v5505
        %v5868 = vpop.f32.mrf.mxu0
        %v5869 = vadd.f32 %v5545, %v5868
        %v5870 = vpop.f32.mrf.mxu0
        %v5871 = vadd.f32 %v5545, %v5870
        %5872 = vmatmul.bf16.gmra.mxu0 %v5507
        %v5873 = vpop.f32.mrf.mxu0
        %v5874 = vadd.f32 %v5545, %v5873
        %v5875 = vpop.f32.mrf.mxu0
        %v5876 = vadd.f32 %v5545, %v5875
        %5877 = vdwg.mxu0
        %5878 = vmatpush.bf16.msra.mxu0 %v5675
        %5879 = vmatpush.bf16.msra.mxu0 %v5673
        %5880 = vmatpush.bf16.msra.mxu0 %v5671
        %5881 = vmatpush.bf16.msra.mxu0 %v5669
        %5882 = vmatpush.bf16.msra.mxu0 %v5667
        %5883 = vmatpush.bf16.msra.mxu0 %v5665
        %5884 = vmatpush.bf16.msra.mxu0 %v5663
        %5885 = vmatpush.bf16.msra.mxu0 %v5661
        %5886 = vmatmul.bf16.gmra.mxu0 %v5446
        %v5887 = vpop.f32.mrf.mxu0
        %v5888 = vadd.f32 %v5719, %v5887
        %v5889 = vpop.f32.mrf.mxu0
        %v5890 = vadd.f32 %v5721, %v5889
        %5891 = vmatmul.bf16.gmra.mxu0 %v5448
        %v5892 = vpop.f32.mrf.mxu0
        %v5893 = vadd.f32 %v5724, %v5892
        %v5894 = vpop.f32.mrf.mxu0
        %v5895 = vadd.f32 %v5726, %v5894
        %5896 = vmatmul.bf16.gmra.mxu0 %v5450
        %v5897 = vpop.f32.mrf.mxu0
        %v5898 = vadd.f32 %v5729, %v5897
        %v5899 = vpop.f32.mrf.mxu0
        %v5900 = vadd.f32 %v5731, %v5899
        %5901 = vmatmul.bf16.gmra.mxu0 %v5452
        %v5902 = vpop.f32.mrf.mxu0
        %v5903 = vadd.f32 %v5734, %v5902
        %v5904 = vpop.f32.mrf.mxu0
        %v5905 = vadd.f32 %v5736, %v5904
        %5906 = vmatmul.bf16.gmra.mxu0 %v5454
        %v5907 = vpop.f32.mrf.mxu0
        %v5908 = vadd.f32 %v5739, %v5907
        %v5909 = vpop.f32.mrf.mxu0
        %v5910 = vadd.f32 %v5741, %v5909
        %5911 = vmatmul.bf16.gmra.mxu0 %v5456
        %v5912 = vpop.f32.mrf.mxu0
        %v5913 = vadd.f32 %v5744, %v5912
        %v5914 = vpop.f32.mrf.mxu0
        %v5915 = vadd.f32 %v5746, %v5914
        %5916 = vmatmul.bf16.gmra.mxu0 %v5458
        %v5917 = vpop.f32.mrf.mxu0
        %v5918 = vadd.f32 %v5749, %v5917
        %v5919 = vpop.f32.mrf.mxu0
        %v5920 = vadd.f32 %v5751, %v5919
        %5921 = vmatmul.bf16.gmra.mxu0 %v5460
        %v5922 = vpop.f32.mrf.mxu0
        %v5923 = vadd.f32 %v5754, %v5922
        %v5924 = vpop.f32.mrf.mxu0
        %v5925 = vadd.f32 %v5756, %v5924
        %5926 = vmatmul.bf16.gmra.mxu0 %v5462
        %v5927 = vpop.f32.mrf.mxu0
        %v5928 = vadd.f32 %v5759, %v5927
        %v5929 = vpop.f32.mrf.mxu0
        %v5930 = vadd.f32 %v5761, %v5929
        %5931 = vmatmul.bf16.gmra.mxu0 %v5464
        %v5932 = vpop.f32.mrf.mxu0
        %v5933 = vadd.f32 %v5764, %v5932
        %v5934 = vpop.f32.mrf.mxu0
        %v5935 = vadd.f32 %v5766, %v5934
        %5936 = vmatmul.bf16.gmra.mxu0 %v5466
        %v5937 = vpop.f32.mrf.mxu0
        %v5938 = vadd.f32 %v5769, %v5937
        %v5939 = vpop.f32.mrf.mxu0
        %v5940 = vadd.f32 %v5771, %v5939
        %5941 = vmatmul.bf16.gmra.mxu0 %v5468
        %v5942 = vpop.f32.mrf.mxu0
        %v5943 = vadd.f32 %v5774, %v5942
        %v5944 = vpop.f32.mrf.mxu0
        %v5945 = vadd.f32 %v5776, %v5944
        %5946 = vmatmul.bf16.gmra.mxu0 %v5470
        %v5947 = vpop.f32.mrf.mxu0
        %v5948 = vadd.f32 %v5779, %v5947
        %v5949 = vpop.f32.mrf.mxu0
        %v5950 = vadd.f32 %v5781, %v5949
        %5951 = vmatmul.bf16.gmra.mxu0 %v5472
        %v5952 = vpop.f32.mrf.mxu0
        %v5953 = vadd.f32 %v5784, %v5952
        %v5954 = vpop.f32.mrf.mxu0
        %v5955 = vadd.f32 %v5786, %v5954
        %5956 = vmatmul.bf16.gmra.mxu0 %v5474
        %v5957 = vpop.f32.mrf.mxu0
        %v5958 = vadd.f32 %v5789, %v5957
        %v5959 = vpop.f32.mrf.mxu0
        %v5960 = vadd.f32 %v5791, %v5959
        %5961 = vmatmul.bf16.gmra.mxu0 %v5476
        %v5962 = vpop.f32.mrf.mxu0
        %v5963 = vadd.f32 %v5794, %v5962
        %v5964 = vpop.f32.mrf.mxu0
        %v5965 = vadd.f32 %v5796, %v5964
        %5966 = vmatmul.bf16.gmra.mxu0 %v5478
        %v5967 = vpop.f32.mrf.mxu0
        %v5968 = vadd.f32 %v5799, %v5967
        %v5969 = vpop.f32.mrf.mxu0
        %v5970 = vadd.f32 %v5801, %v5969
        %5971 = vmatmul.bf16.gmra.mxu0 %v5480
        %v5972 = vpop.f32.mrf.mxu0
        %v5973 = vadd.f32 %v5804, %v5972
        %v5974 = vpop.f32.mrf.mxu0
        %v5975 = vadd.f32 %v5806, %v5974
        %5976 = vmatmul.bf16.gmra.mxu0 %v5482
        %v5977 = vpop.f32.mrf.mxu0
        %v5978 = vadd.f32 %v5809, %v5977
        %v5979 = vpop.f32.mrf.mxu0
        %v5980 = vadd.f32 %v5811, %v5979
        %5981 = vmatmul.bf16.gmra.mxu0 %v5484
        %v5982 = vpop.f32.mrf.mxu0
        %v5983 = vadd.f32 %v5814, %v5982
        %v5984 = vpop.f32.mrf.mxu0
        %v5985 = vadd.f32 %v5816, %v5984
        %5986 = vmatmul.bf16.gmra.mxu0 %v5486
        %v5987 = vpop.f32.mrf.mxu0
        %v5988 = vadd.f32 %v5819, %v5987
        %v5989 = vpop.f32.mrf.mxu0
        %v5990 = vadd.f32 %v5821, %v5989
        %5991 = vmatmul.bf16.gmra.mxu0 %v5488
        %v5992 = vpop.f32.mrf.mxu0
        %v5993 = vadd.f32 %v5824, %v5992
        %v5994 = vpop.f32.mrf.mxu0
        %v5995 = vadd.f32 %v5826, %v5994
        %5996 = vmatmul.bf16.gmra.mxu0 %v5490
        %v5997 = vpop.f32.mrf.mxu0
        %v5998 = vadd.f32 %v5829, %v5997
        %v5999 = vpop.f32.mrf.mxu0
        %v6000 = vadd.f32 %v5831, %v5999
        %6001 = vmatmul.bf16.gmra.mxu0 %v5492
        %v6002 = vpop.f32.mrf.mxu0
        %v6003 = vadd.f32 %v5834, %v6002
        %v6004 = vpop.f32.mrf.mxu0
        %v6005 = vadd.f32 %v5836, %v6004
        %6006 = vmatmul.bf16.gmra.mxu0 %v5494
        %v6007 = vpop.f32.mrf.mxu0
        %v6008 = vadd.f32 %v5839, %v6007
        %v6009 = vpop.f32.mrf.mxu0
        %v6010 = vadd.f32 %v5841, %v6009
        %6011 = vmatmul.bf16.gmra.mxu0 %v5496
        %v6012 = vpop.f32.mrf.mxu0
        %v6013 = vadd.f32 %v5844, %v6012
        %v6014 = vpop.f32.mrf.mxu0
        %v6015 = vadd.f32 %v5846, %v6014
        %6016 = vmatmul.bf16.gmra.mxu0 %v5498
        %v6017 = vpop.f32.mrf.mxu0
        %v6018 = vadd.f32 %v5849, %v6017
        %v6019 = vpop.f32.mrf.mxu0
        %v6020 = vadd.f32 %v5851, %v6019
        %6021 = vmatmul.bf16.gmra.mxu0 %v5500
        %v6022 = vpop.f32.mrf.mxu0
        %v6023 = vadd.f32 %v5854, %v6022
        %v6024 = vpop.f32.mrf.mxu0
        %v6025 = vadd.f32 %v5856, %v6024
        %6026 = vmatmul.bf16.gmra.mxu0 %v5502
        %v6027 = vpop.f32.mrf.mxu0
        %v6028 = vadd.f32 %v5859, %v6027
        %v6029 = vpop.f32.mrf.mxu0
        %v6030 = vadd.f32 %v5861, %v6029
        %6031 = vmatmul.bf16.gmra.mxu0 %v5504
        %v6032 = vpop.f32.mrf.mxu0
        %v6033 = vadd.f32 %v5864, %v6032
        %v6034 = vpop.f32.mrf.mxu0
        %v6035 = vadd.f32 %v5866, %v6034
        %6036 = vmatmul.bf16.gmra.mxu0 %v5506
        %v6037 = vpop.f32.mrf.mxu0
        %v6038 = vadd.f32 %v5869, %v6037
        %v6039 = vpop.f32.mrf.mxu0
        %v6040 = vadd.f32 %v5871, %v6039
        %6041 = vmatmul.bf16.gmra.mxu0 %v5508
        %v6042 = vpop.f32.mrf.mxu0
        %v6043 = vadd.f32 %v5874, %v6042
        %v6044 = vpop.f32.mrf.mxu0
        %v6045 = vadd.f32 %v5876, %v6044
        %6046 = vdwg.mxu0
        %6047 = vmatpush.bf16.msra.mxu0 %v5660
        %6048 = vmatpush.bf16.msra.mxu0 %v5658
        %6049 = vmatpush.bf16.msra.mxu0 %v5656
        %6050 = vmatpush.bf16.msra.mxu0 %v5654
        %6051 = vmatpush.bf16.msra.mxu0 %v5652
        %6052 = vmatpush.bf16.msra.mxu0 %v5650
        %6053 = vmatpush.bf16.msra.mxu0 %v5648
        %6054 = vmatpush.bf16.msra.mxu0 %v5646
        %6055 = vmatmul.bf16.gmra.mxu0 %v5445
        %v6056 = vpop.f32.mrf.mxu0
        %v6057 = vadd.f32 %v5546, %v6056
        %v6058 = vpop.f32.mrf.mxu0
        %v6059 = vadd.f32 %v5546, %v6058
        %6060 = vmatmul.bf16.gmra.mxu0 %v5447
        %v6061 = vpop.f32.mrf.mxu0
        %v6062 = vadd.f32 %v5546, %v6061
        %v6063 = vpop.f32.mrf.mxu0
        %v6064 = vadd.f32 %v5546, %v6063
        %6065 = vmatmul.bf16.gmra.mxu0 %v5449
        %v6066 = vpop.f32.mrf.mxu0
        %v6067 = vadd.f32 %v5546, %v6066
        %v6068 = vpop.f32.mrf.mxu0
        %v6069 = vadd.f32 %v5546, %v6068
        %6070 = vmatmul.bf16.gmra.mxu0 %v5451
        %v6071 = vpop.f32.mrf.mxu0
        %v6072 = vadd.f32 %v5546, %v6071
        %v6073 = vpop.f32.mrf.mxu0
        %v6074 = vadd.f32 %v5546, %v6073
        %6075 = vmatmul.bf16.gmra.mxu0 %v5453
        %v6076 = vpop.f32.mrf.mxu0
        %v6077 = vadd.f32 %v5546, %v6076
        %v6078 = vpop.f32.mrf.mxu0
        %v6079 = vadd.f32 %v5546, %v6078
        %6080 = vmatmul.bf16.gmra.mxu0 %v5455
        %v6081 = vpop.f32.mrf.mxu0
        %v6082 = vadd.f32 %v5546, %v6081
        %v6083 = vpop.f32.mrf.mxu0
        %v6084 = vadd.f32 %v5546, %v6083
        %6085 = vmatmul.bf16.gmra.mxu0 %v5457
        %v6086 = vpop.f32.mrf.mxu0
        %v6087 = vadd.f32 %v5546, %v6086
        %v6088 = vpop.f32.mrf.mxu0
        %v6089 = vadd.f32 %v5546, %v6088
        %6090 = vmatmul.bf16.gmra.mxu0 %v5459
        %v6091 = vpop.f32.mrf.mxu0
        %v6092 = vadd.f32 %v5546, %v6091
        %v6093 = vpop.f32.mrf.mxu0
        %v6094 = vadd.f32 %v5546, %v6093
        %6095 = vmatmul.bf16.gmra.mxu0 %v5461
        %v6096 = vpop.f32.mrf.mxu0
        %v6097 = vadd.f32 %v5546, %v6096
        %v6098 = vpop.f32.mrf.mxu0
        %v6099 = vadd.f32 %v5546, %v6098
        %6100 = vmatmul.bf16.gmra.mxu0 %v5463
        %v6101 = vpop.f32.mrf.mxu0
        %v6102 = vadd.f32 %v5546, %v6101
        %v6103 = vpop.f32.mrf.mxu0
        %v6104 = vadd.f32 %v5546, %v6103
        %6105 = vmatmul.bf16.gmra.mxu0 %v5465
        %v6106 = vpop.f32.mrf.mxu0
        %v6107 = vadd.f32 %v5546, %v6106
        %v6108 = vpop.f32.mrf.mxu0
        %v6109 = vadd.f32 %v5546, %v6108
        %6110 = vmatmul.bf16.gmra.mxu0 %v5467
        %v6111 = vpop.f32.mrf.mxu0
        %v6112 = vadd.f32 %v5546, %v6111
        %v6113 = vpop.f32.mrf.mxu0
        %v6114 = vadd.f32 %v5546, %v6113
        %6115 = vmatmul.bf16.gmra.mxu0 %v5469
        %v6116 = vpop.f32.mrf.mxu0
        %v6117 = vadd.f32 %v5546, %v6116
        %v6118 = vpop.f32.mrf.mxu0
        %v6119 = vadd.f32 %v5546, %v6118
        %6120 = vmatmul.bf16.gmra.mxu0 %v5471
        %v6121 = vpop.f32.mrf.mxu0
        %v6122 = vadd.f32 %v5546, %v6121
        %v6123 = vpop.f32.mrf.mxu0
        %v6124 = vadd.f32 %v5546, %v6123
        %6125 = vmatmul.bf16.gmra.mxu0 %v5473
        %v6126 = vpop.f32.mrf.mxu0
        %v6127 = vadd.f32 %v5546, %v6126
        %v6128 = vpop.f32.mrf.mxu0
        %v6129 = vadd.f32 %v5546, %v6128
        %6130 = vmatmul.bf16.gmra.mxu0 %v5475
        %v6131 = vpop.f32.mrf.mxu0
        %v6132 = vadd.f32 %v5546, %v6131
        %v6133 = vpop.f32.mrf.mxu0
        %v6134 = vadd.f32 %v5546, %v6133
        %6135 = vmatmul.bf16.gmra.mxu0 %v5477
        %v6136 = vpop.f32.mrf.mxu0
        %v6137 = vadd.f32 %v5546, %v6136
        %v6138 = vpop.f32.mrf.mxu0
        %v6139 = vadd.f32 %v5546, %v6138
        %6140 = vmatmul.bf16.gmra.mxu0 %v5479
        %v6141 = vpop.f32.mrf.mxu0
        %v6142 = vadd.f32 %v5546, %v6141
        %v6143 = vpop.f32.mrf.mxu0
        %v6144 = vadd.f32 %v5546, %v6143
        %6145 = vmatmul.bf16.gmra.mxu0 %v5481
        %v6146 = vpop.f32.mrf.mxu0
        %v6147 = vadd.f32 %v5546, %v6146
        %v6148 = vpop.f32.mrf.mxu0
        %v6149 = vadd.f32 %v5546, %v6148
        %6150 = vmatmul.bf16.gmra.mxu0 %v5483
        %v6151 = vpop.f32.mrf.mxu0
        %v6152 = vadd.f32 %v5546, %v6151
        %v6153 = vpop.f32.mrf.mxu0
        %v6154 = vadd.f32 %v5546, %v6153
        %6155 = vmatmul.bf16.gmra.mxu0 %v5485
        %v6156 = vpop.f32.mrf.mxu0
        %v6157 = vadd.f32 %v5546, %v6156
        %v6158 = vpop.f32.mrf.mxu0
        %v6159 = vadd.f32 %v5546, %v6158
        %6160 = vmatmul.bf16.gmra.mxu0 %v5487
        %v6161 = vpop.f32.mrf.mxu0
        %v6162 = vadd.f32 %v5546, %v6161
        %v6163 = vpop.f32.mrf.mxu0
        %v6164 = vadd.f32 %v5546, %v6163
        %6165 = vmatmul.bf16.gmra.mxu0 %v5489
        %v6166 = vpop.f32.mrf.mxu0
        %v6167 = vadd.f32 %v5546, %v6166
        %v6168 = vpop.f32.mrf.mxu0
        %v6169 = vadd.f32 %v5546, %v6168
        %6170 = vmatmul.bf16.gmra.mxu0 %v5491
        %v6171 = vpop.f32.mrf.mxu0
        %v6172 = vadd.f32 %v5546, %v6171
        %v6173 = vpop.f32.mrf.mxu0
        %v6174 = vadd.f32 %v5546, %v6173
        %6175 = vmatmul.bf16.gmra.mxu0 %v5493
        %v6176 = vpop.f32.mrf.mxu0
        %v6177 = vadd.f32 %v5546, %v6176
        %v6178 = vpop.f32.mrf.mxu0
        %v6179 = vadd.f32 %v5546, %v6178
        %6180 = vmatmul.bf16.gmra.mxu0 %v5495
        %v6181 = vpop.f32.mrf.mxu0
        %v6182 = vadd.f32 %v5546, %v6181
        %v6183 = vpop.f32.mrf.mxu0
        %v6184 = vadd.f32 %v5546, %v6183
        %6185 = vmatmul.bf16.gmra.mxu0 %v5497
        %v6186 = vpop.f32.mrf.mxu0
        %v6187 = vadd.f32 %v5546, %v6186
        %v6188 = vpop.f32.mrf.mxu0
        %v6189 = vadd.f32 %v5546, %v6188
        %6190 = vmatmul.bf16.gmra.mxu0 %v5499
        %v6191 = vpop.f32.mrf.mxu0
        %v6192 = vadd.f32 %v5546, %v6191
        %v6193 = vpop.f32.mrf.mxu0
        %v6194 = vadd.f32 %v5546, %v6193
        %6195 = vmatmul.bf16.gmra.mxu0 %v5501
        %v6196 = vpop.f32.mrf.mxu0
        %v6197 = vadd.f32 %v5546, %v6196
        %v6198 = vpop.f32.mrf.mxu0
        %v6199 = vadd.f32 %v5546, %v6198
        %6200 = vmatmul.bf16.gmra.mxu0 %v5503
        %v6201 = vpop.f32.mrf.mxu0
        %v6202 = vadd.f32 %v5546, %v6201
        %v6203 = vpop.f32.mrf.mxu0
        %v6204 = vadd.f32 %v5546, %v6203
        %6205 = vmatmul.bf16.gmra.mxu0 %v5505
        %v6206 = vpop.f32.mrf.mxu0
        %v6207 = vadd.f32 %v5546, %v6206
        %v6208 = vpop.f32.mrf.mxu0
        %v6209 = vadd.f32 %v5546, %v6208
        %6210 = vmatmul.bf16.gmra.mxu0 %v5507
        %v6211 = vpop.f32.mrf.mxu0
        %v6212 = vadd.f32 %v5546, %v6211
        %v6213 = vpop.f32.mrf.mxu0
        %v6214 = vadd.f32 %v5546, %v6213
        %6215 = vdwg.mxu0
        %6216 = vmatpush.bf16.msra.mxu0 %v5676
        %6217 = vmatpush.bf16.msra.mxu0 %v5674
        %6218 = vmatpush.bf16.msra.mxu0 %v5672
        %6219 = vmatpush.bf16.msra.mxu0 %v5670
        %6220 = vmatpush.bf16.msra.mxu0 %v5668
        %6221 = vmatpush.bf16.msra.mxu0 %v5666
        %6222 = vmatpush.bf16.msra.mxu0 %v5664
        %6223 = vmatpush.bf16.msra.mxu0 %v5662
        %6224 = vmatmul.bf16.gmra.mxu0 %v5446
        %v6225 = vpop.f32.mrf.mxu0
        %v6226 = vadd.f32 %v6057, %v6225
        %v6227 = vpop.f32.mrf.mxu0
        %v6228 = vadd.f32 %v6059, %v6227
        %6229 = vmatmul.bf16.gmra.mxu0 %v5448
        %v6230 = vpop.f32.mrf.mxu0
        %v6231 = vadd.f32 %v6062, %v6230
        %v6232 = vpop.f32.mrf.mxu0
        %v6233 = vadd.f32 %v6064, %v6232
        %6234 = vmatmul.bf16.gmra.mxu0 %v5450
        %v6235 = vpop.f32.mrf.mxu0
        %v6236 = vadd.f32 %v6067, %v6235
        %v6237 = vpop.f32.mrf.mxu0
        %v6238 = vadd.f32 %v6069, %v6237
        %6239 = vmatmul.bf16.gmra.mxu0 %v5452
        %v6240 = vpop.f32.mrf.mxu0
        %v6241 = vadd.f32 %v6072, %v6240
        %v6242 = vpop.f32.mrf.mxu0
        %v6243 = vadd.f32 %v6074, %v6242
        %6244 = vmatmul.bf16.gmra.mxu0 %v5454
        %v6245 = vpop.f32.mrf.mxu0
        %v6246 = vadd.f32 %v6077, %v6245
        %v6247 = vpop.f32.mrf.mxu0
        %v6248 = vadd.f32 %v6079, %v6247
        %6249 = vmatmul.bf16.gmra.mxu0 %v5456
        %v6250 = vpop.f32.mrf.mxu0
        %v6251 = vadd.f32 %v6082, %v6250
        %v6252 = vpop.f32.mrf.mxu0
        %v6253 = vadd.f32 %v6084, %v6252
        %6254 = vmatmul.bf16.gmra.mxu0 %v5458
        %v6255 = vpop.f32.mrf.mxu0
        %v6256 = vadd.f32 %v6087, %v6255
        %v6257 = vpop.f32.mrf.mxu0
        %v6258 = vadd.f32 %v6089, %v6257
        %6259 = vmatmul.bf16.gmra.mxu0 %v5460
        %v6260 = vpop.f32.mrf.mxu0
        %v6261 = vadd.f32 %v6092, %v6260
        %v6262 = vpop.f32.mrf.mxu0
        %v6263 = vadd.f32 %v6094, %v6262
        %6264 = vmatmul.bf16.gmra.mxu0 %v5462
        %v6265 = vpop.f32.mrf.mxu0
        %v6266 = vadd.f32 %v6097, %v6265
        %v6267 = vpop.f32.mrf.mxu0
        %v6268 = vadd.f32 %v6099, %v6267
        %6269 = vmatmul.bf16.gmra.mxu0 %v5464
        %v6270 = vpop.f32.mrf.mxu0
        %v6271 = vadd.f32 %v6102, %v6270
        %v6272 = vpop.f32.mrf.mxu0
        %v6273 = vadd.f32 %v6104, %v6272
        %6274 = vmatmul.bf16.gmra.mxu0 %v5466
        %v6275 = vpop.f32.mrf.mxu0
        %v6276 = vadd.f32 %v6107, %v6275
        %v6277 = vpop.f32.mrf.mxu0
        %v6278 = vadd.f32 %v6109, %v6277
        %6279 = vmatmul.bf16.gmra.mxu0 %v5468
        %v6280 = vpop.f32.mrf.mxu0
        %v6281 = vadd.f32 %v6112, %v6280
        %v6282 = vpop.f32.mrf.mxu0
        %v6283 = vadd.f32 %v6114, %v6282
        %6284 = vmatmul.bf16.gmra.mxu0 %v5470
        %v6285 = vpop.f32.mrf.mxu0
        %v6286 = vadd.f32 %v6117, %v6285
        %v6287 = vpop.f32.mrf.mxu0
        %v6288 = vadd.f32 %v6119, %v6287
        %6289 = vmatmul.bf16.gmra.mxu0 %v5472
        %v6290 = vpop.f32.mrf.mxu0
        %v6291 = vadd.f32 %v6122, %v6290
        %v6292 = vpop.f32.mrf.mxu0
        %v6293 = vadd.f32 %v6124, %v6292
        %6294 = vmatmul.bf16.gmra.mxu0 %v5474
        %v6295 = vpop.f32.mrf.mxu0
        %v6296 = vadd.f32 %v6127, %v6295
        %v6297 = vpop.f32.mrf.mxu0
        %v6298 = vadd.f32 %v6129, %v6297
        %6299 = vmatmul.bf16.gmra.mxu0 %v5476
        %v6300 = vpop.f32.mrf.mxu0
        %v6301 = vadd.f32 %v6132, %v6300
        %v6302 = vpop.f32.mrf.mxu0
        %v6303 = vadd.f32 %v6134, %v6302
        %6304 = vmatmul.bf16.gmra.mxu0 %v5478
        %v6305 = vpop.f32.mrf.mxu0
        %v6306 = vadd.f32 %v6137, %v6305
        %v6307 = vpop.f32.mrf.mxu0
        %v6308 = vadd.f32 %v6139, %v6307
        %6309 = vmatmul.bf16.gmra.mxu0 %v5480
        %v6310 = vpop.f32.mrf.mxu0
        %v6311 = vadd.f32 %v6142, %v6310
        %v6312 = vpop.f32.mrf.mxu0
        %v6313 = vadd.f32 %v6144, %v6312
        %6314 = vmatmul.bf16.gmra.mxu0 %v5482
        %v6315 = vpop.f32.mrf.mxu0
        %v6316 = vadd.f32 %v6147, %v6315
        %v6317 = vpop.f32.mrf.mxu0
        %v6318 = vadd.f32 %v6149, %v6317
        %6319 = vmatmul.bf16.gmra.mxu0 %v5484
        %v6320 = vpop.f32.mrf.mxu0
        %v6321 = vadd.f32 %v6152, %v6320
        %v6322 = vpop.f32.mrf.mxu0
        %v6323 = vadd.f32 %v6154, %v6322
        %6324 = vmatmul.bf16.gmra.mxu0 %v5486
        %v6325 = vpop.f32.mrf.mxu0
        %v6326 = vadd.f32 %v6157, %v6325
        %v6327 = vpop.f32.mrf.mxu0
        %v6328 = vadd.f32 %v6159, %v6327
        %6329 = vmatmul.bf16.gmra.mxu0 %v5488
        %v6330 = vpop.f32.mrf.mxu0
        %v6331 = vadd.f32 %v6162, %v6330
        %v6332 = vpop.f32.mrf.mxu0
        %v6333 = vadd.f32 %v6164, %v6332
        %6334 = vmatmul.bf16.gmra.mxu0 %v5490
        %v6335 = vpop.f32.mrf.mxu0
        %v6336 = vadd.f32 %v6167, %v6335
        %v6337 = vpop.f32.mrf.mxu0
        %v6338 = vadd.f32 %v6169, %v6337
        %6339 = vmatmul.bf16.gmra.mxu0 %v5492
        %v6340 = vpop.f32.mrf.mxu0
        %v6341 = vadd.f32 %v6172, %v6340
        %v6342 = vpop.f32.mrf.mxu0
        %v6343 = vadd.f32 %v6174, %v6342
        %6344 = vmatmul.bf16.gmra.mxu0 %v5494
        %v6345 = vpop.f32.mrf.mxu0
        %v6346 = vadd.f32 %v6177, %v6345
        %v6347 = vpop.f32.mrf.mxu0
        %v6348 = vadd.f32 %v6179, %v6347
        %6349 = vmatmul.bf16.gmra.mxu0 %v5496
        %v6350 = vpop.f32.mrf.mxu0
        %v6351 = vadd.f32 %v6182, %v6350
        %v6352 = vpop.f32.mrf.mxu0
        %v6353 = vadd.f32 %v6184, %v6352
        %6354 = vmatmul.bf16.gmra.mxu0 %v5498
        %v6355 = vpop.f32.mrf.mxu0
        %v6356 = vadd.f32 %v6187, %v6355
        %v6357 = vpop.f32.mrf.mxu0
        %v6358 = vadd.f32 %v6189, %v6357
        %6359 = vmatmul.bf16.gmra.mxu0 %v5500
        %v6360 = vpop.f32.mrf.mxu0
        %v6361 = vadd.f32 %v6192, %v6360
        %v6362 = vpop.f32.mrf.mxu0
        %v6363 = vadd.f32 %v6194, %v6362
        %6364 = vmatmul.bf16.gmra.mxu0 %v5502
        %v6365 = vpop.f32.mrf.mxu0
        %v6366 = vadd.f32 %v6197, %v6365
        %v6367 = vpop.f32.mrf.mxu0
        %v6368 = vadd.f32 %v6199, %v6367
        %6369 = vmatmul.bf16.gmra.mxu0 %v5504
        %v6370 = vpop.f32.mrf.mxu0
        %v6371 = vadd.f32 %v6202, %v6370
        %v6372 = vpop.f32.mrf.mxu0
        %v6373 = vadd.f32 %v6204, %v6372
        %6374 = vmatmul.bf16.gmra.mxu0 %v5506
        %v6375 = vpop.f32.mrf.mxu0
        %v6376 = vadd.f32 %v6207, %v6375
        %v6377 = vpop.f32.mrf.mxu0
        %v6378 = vadd.f32 %v6209, %v6377
        %6379 = vmatmul.bf16.gmra.mxu0 %v5508
        %v6380 = vpop.f32.mrf.mxu0
        %v6381 = vadd.f32 %v6212, %v6380
        %v6382 = vpop.f32.mrf.mxu0
        %v6383 = vadd.f32 %v6214, %v6382
        %6384 = vdwg.mxu0
        %v6385 = vmax.f32 %v5888, 0.0
        %v6386 = vmax.f32 %v6226, 0.0
        %v6387 = vmax.f32 %v5890, 0.0
        %v6388 = vmax.f32 %v6228, 0.0
        %v6389 = vmax.f32 %v5893, 0.0
        %v6390 = vmax.f32 %v6231, 0.0
        %v6391 = vmax.f32 %v5895, 0.0
        %v6392 = vmax.f32 %v6233, 0.0
        %v6393 = vmax.f32 %v5898, 0.0
        %v6394 = vmax.f32 %v6236, 0.0
        %v6395 = vmax.f32 %v5900, 0.0
        %v6396 = vmax.f32 %v6238, 0.0
        %v6397 = vmax.f32 %v5903, 0.0
        %v6398 = vmax.f32 %v6241, 0.0
        %v6399 = vmax.f32 %v5905, 0.0
        %v6400 = vmax.f32 %v6243, 0.0
        %v6401 = vmax.f32 %v5908, 0.0
        %v6402 = vmax.f32 %v6246, 0.0
        %v6403 = vmax.f32 %v5910, 0.0
        %v6404 = vmax.f32 %v6248, 0.0
        %v6405 = vmax.f32 %v5913, 0.0
        %v6406 = vmax.f32 %v6251, 0.0
        %v6407 = vmax.f32 %v5915, 0.0
        %v6408 = vmax.f32 %v6253, 0.0
        %v6409 = vmax.f32 %v5918, 0.0
        %v6410 = vmax.f32 %v6256, 0.0
        %v6411 = vmax.f32 %v5920, 0.0
        %v6412 = vmax.f32 %v6258, 0.0
        %v6413 = vmax.f32 %v5923, 0.0
        %v6414 = vmax.f32 %v6261, 0.0
        %v6415 = vmax.f32 %v5925, 0.0
        %v6416 = vmax.f32 %v6263, 0.0
        %v6417 = vmax.f32 %v5928, 0.0
        %v6418 = vmax.f32 %v6266, 0.0
        %v6419 = vmax.f32 %v5930, 0.0
        %v6420 = vmax.f32 %v6268, 0.0
        %v6421 = vmax.f32 %v5933, 0.0
        %v6422 = vmax.f32 %v6271, 0.0
        %v6423 = vmax.f32 %v5935, 0.0
        %v6424 = vmax.f32 %v6273, 0.0
        %v6425 = vmax.f32 %v5938, 0.0
        %v6426 = vmax.f32 %v6276, 0.0
        %v6427 = vmax.f32 %v5940, 0.0
        %v6428 = vmax.f32 %v6278, 0.0
        %v6429 = vmax.f32 %v5943, 0.0
        %v6430 = vmax.f32 %v6281, 0.0
        %v6431 = vmax.f32 %v5945, 0.0
        %v6432 = vmax.f32 %v6283, 0.0
        %v6433 = vmax.f32 %v5948, 0.0
        %v6434 = vmax.f32 %v6286, 0.0
        %v6435 = vmax.f32 %v5950, 0.0
        %v6436 = vmax.f32 %v6288, 0.0
        %v6437 = vmax.f32 %v5953, 0.0
        %v6438 = vmax.f32 %v6291, 0.0
        %v6439 = vmax.f32 %v5955, 0.0
        %v6440 = vmax.f32 %v6293, 0.0
        %v6441 = vmax.f32 %v5958, 0.0
        %v6442 = vmax.f32 %v6296, 0.0
        %v6443 = vmax.f32 %v5960, 0.0
        %v6444 = vmax.f32 %v6298, 0.0
        %v6445 = vmax.f32 %v5963, 0.0
        %v6446 = vmax.f32 %v6301, 0.0
        %v6447 = vmax.f32 %v5965, 0.0
        %v6448 = vmax.f32 %v6303, 0.0
        %v6449 = vmax.f32 %v5968, 0.0
        %v6450 = vmax.f32 %v6306, 0.0
        %v6451 = vmax.f32 %v5970, 0.0
        %v6452 = vmax.f32 %v6308, 0.0
        %v6453 = vmax.f32 %v5973, 0.0
        %v6454 = vmax.f32 %v6311, 0.0
        %v6455 = vmax.f32 %v5975, 0.0
        %v6456 = vmax.f32 %v6313, 0.0
        %v6457 = vmax.f32 %v5978, 0.0
        %v6458 = vmax.f32 %v6316, 0.0
        %v6459 = vmax.f32 %v5980, 0.0
        %v6460 = vmax.f32 %v6318, 0.0
        %v6461 = vmax.f32 %v5983, 0.0
        %v6462 = vmax.f32 %v6321, 0.0
        %v6463 = vmax.f32 %v5985, 0.0
        %v6464 = vmax.f32 %v6323, 0.0
        %v6465 = vmax.f32 %v5988, 0.0
        %v6466 = vmax.f32 %v6326, 0.0
        %v6467 = vmax.f32 %v5990, 0.0
        %v6468 = vmax.f32 %v6328, 0.0
        %v6469 = vmax.f32 %v5993, 0.0
        %v6470 = vmax.f32 %v6331, 0.0
        %v6471 = vmax.f32 %v5995, 0.0
        %v6472 = vmax.f32 %v6333, 0.0
        %v6473 = vmax.f32 %v5998, 0.0
        %v6474 = vmax.f32 %v6336, 0.0
        %v6475 = vmax.f32 %v6000, 0.0
        %v6476 = vmax.f32 %v6338, 0.0
        %v6477 = vmax.f32 %v6003, 0.0
        %v6478 = vmax.f32 %v6341, 0.0
        %v6479 = vmax.f32 %v6005, 0.0
        %v6480 = vmax.f32 %v6343, 0.0
        %v6481 = vmax.f32 %v6008, 0.0
        %v6482 = vmax.f32 %v6346, 0.0
        %v6483 = vmax.f32 %v6010, 0.0
        %v6484 = vmax.f32 %v6348, 0.0
        %v6485 = vmax.f32 %v6013, 0.0
        %v6486 = vmax.f32 %v6351, 0.0
        %v6487 = vmax.f32 %v6015, 0.0
        %v6488 = vmax.f32 %v6353, 0.0
        %v6489 = vmax.f32 %v6018, 0.0
        %v6490 = vmax.f32 %v6356, 0.0
        %v6491 = vmax.f32 %v6020, 0.0
        %v6492 = vmax.f32 %v6358, 0.0
        %v6493 = vmax.f32 %v6023, 0.0
        %v6494 = vmax.f32 %v6361, 0.0
        %v6495 = vmax.f32 %v6025, 0.0
        %v6496 = vmax.f32 %v6363, 0.0
        %v6497 = vmax.f32 %v6028, 0.0
        %v6498 = vmax.f32 %v6366, 0.0
        %v6499 = vmax.f32 %v6030, 0.0
        %v6500 = vmax.f32 %v6368, 0.0
        %v6501 = vmax.f32 %v6033, 0.0
        %v6502 = vmax.f32 %v6371, 0.0
        %v6503 = vmax.f32 %v6035, 0.0
        %v6504 = vmax.f32 %v6373, 0.0
        %v6505 = vmax.f32 %v6038, 0.0
        %v6506 = vmax.f32 %v6376, 0.0
        %v6507 = vmax.f32 %v6040, 0.0
        %v6508 = vmax.f32 %v6378, 0.0
        %v6509 = vmax.f32 %v6043, 0.0
        %v6510 = vmax.f32 %v6381, 0.0
        %v6511 = vmax.f32 %v6045, 0.0
        %v6512 = vmax.f32 %v6383, 0.0
        %v6513 = vpack.c.bf16 %v6386, %v6385
        %v6514 = vpack.c.bf16 %v6388, %v6387
        %v6515 = vpack.c.bf16 %v6390, %v6389
        %v6516 = vpack.c.bf16 %v6392, %v6391
        %v6517 = vpack.c.bf16 %v6394, %v6393
        %v6518 = vpack.c.bf16 %v6396, %v6395
        %v6519 = vpack.c.bf16 %v6398, %v6397
        %v6520 = vpack.c.bf16 %v6400, %v6399
        %v6521 = vpack.c.bf16 %v6402, %v6401
        %v6522 = vpack.c.bf16 %v6404, %v6403
        %v6523 = vpack.c.bf16 %v6406, %v6405
        %v6524 = vpack.c.bf16 %v6408, %v6407
        %v6525 = vpack.c.bf16 %v6410, %v6409
        %v6526 = vpack.c.bf16 %v6412, %v6411
        %v6527 = vpack.c.bf16 %v6414, %v6413
        %v6528 = vpack.c.bf16 %v6416, %v6415
        %v6529 = vpack.c.bf16 %v6418, %v6417
        %v6530 = vpack.c.bf16 %v6420, %v6419
        %v6531 = vpack.c.bf16 %v6422, %v6421
        %v6532 = vpack.c.bf16 %v6424, %v6423
        %v6533 = vpack.c.bf16 %v6426, %v6425
        %v6534 = vpack.c.bf16 %v6428, %v6427
        %v6535 = vpack.c.bf16 %v6430, %v6429
        %v6536 = vpack.c.bf16 %v6432, %v6431
        %v6537 = vpack.c.bf16 %v6434, %v6433
        %v6538 = vpack.c.bf16 %v6436, %v6435
        %v6539 = vpack.c.bf16 %v6438, %v6437
        %v6540 = vpack.c.bf16 %v6440, %v6439
        %v6541 = vpack.c.bf16 %v6442, %v6441
        %v6542 = vpack.c.bf16 %v6444, %v6443
        %v6543 = vpack.c.bf16 %v6446, %v6445
        %v6544 = vpack.c.bf16 %v6448, %v6447
        %v6545 = vpack.c.bf16 %v6450, %v6449
        %v6546 = vpack.c.bf16 %v6452, %v6451
        %v6547 = vpack.c.bf16 %v6454, %v6453
        %v6548 = vpack.c.bf16 %v6456, %v6455
        %v6549 = vpack.c.bf16 %v6458, %v6457
        %v6550 = vpack.c.bf16 %v6460, %v6459
        %v6551 = vpack.c.bf16 %v6462, %v6461
        %v6552 = vpack.c.bf16 %v6464, %v6463
        %v6553 = vpack.c.bf16 %v6466, %v6465
        %v6554 = vpack.c.bf16 %v6468, %v6467
        %v6555 = vpack.c.bf16 %v6470, %v6469
        %v6556 = vpack.c.bf16 %v6472, %v6471
        %v6557 = vpack.c.bf16 %v6474, %v6473
        %v6558 = vpack.c.bf16 %v6476, %v6475
        %v6559 = vpack.c.bf16 %v6478, %v6477
        %v6560 = vpack.c.bf16 %v6480, %v6479
        %v6561 = vpack.c.bf16 %v6482, %v6481
        %v6562 = vpack.c.bf16 %v6484, %v6483
        %v6563 = vpack.c.bf16 %v6486, %v6485
        %v6564 = vpack.c.bf16 %v6488, %v6487
        %v6565 = vpack.c.bf16 %v6490, %v6489
        %v6566 = vpack.c.bf16 %v6492, %v6491
        %v6567 = vpack.c.bf16 %v6494, %v6493
        %v6568 = vpack.c.bf16 %v6496, %v6495
        %v6569 = vpack.c.bf16 %v6498, %v6497
        %v6570 = vpack.c.bf16 %v6500, %v6499
        %v6571 = vpack.c.bf16 %v6502, %v6501
        %v6572 = vpack.c.bf16 %v6504, %v6503
        %v6573 = vpack.c.bf16 %v6506, %v6505
        %v6574 = vpack.c.bf16 %v6508, %v6507
        %v6575 = vpack.c.bf16 %v6510, %v6509
        %v6576 = vpack.c.bf16 %v6512, %v6511
        %v6577 = vunpack.c.l.bf16 %v6513
        %v6578 = vunpack.c.h.bf16 %v6513
        %v6579 = vunpack.c.l.bf16 %v6514
        %v6580 = vunpack.c.h.bf16 %v6514
        %v6581 = vunpack.c.l.bf16 %v6515
        %v6582 = vunpack.c.h.bf16 %v6515
        %v6583 = vunpack.c.l.bf16 %v6516
        %v6584 = vunpack.c.h.bf16 %v6516
        %v6585 = vunpack.c.l.bf16 %v6517
        %v6586 = vunpack.c.h.bf16 %v6517
        %v6587 = vunpack.c.l.bf16 %v6518
        %v6588 = vunpack.c.h.bf16 %v6518
        %v6589 = vunpack.c.l.bf16 %v6519
        %v6590 = vunpack.c.h.bf16 %v6519
        %v6591 = vunpack.c.l.bf16 %v6520
        %v6592 = vunpack.c.h.bf16 %v6520
        %v6593 = vunpack.c.l.bf16 %v6521
        %v6594 = vunpack.c.h.bf16 %v6521
        %v6595 = vunpack.c.l.bf16 %v6522
        %v6596 = vunpack.c.h.bf16 %v6522
        %v6597 = vunpack.c.l.bf16 %v6523
        %v6598 = vunpack.c.h.bf16 %v6523
        %v6599 = vunpack.c.l.bf16 %v6524
        %v6600 = vunpack.c.h.bf16 %v6524
        %v6601 = vunpack.c.l.bf16 %v6525
        %v6602 = vunpack.c.h.bf16 %v6525
        %v6603 = vunpack.c.l.bf16 %v6526
        %v6604 = vunpack.c.h.bf16 %v6526
        %v6605 = vunpack.c.l.bf16 %v6527
        %v6606 = vunpack.c.h.bf16 %v6527
        %v6607 = vunpack.c.l.bf16 %v6528
        %v6608 = vunpack.c.h.bf16 %v6528
        %v6609 = vunpack.c.l.bf16 %v6529
        %v6610 = vunpack.c.h.bf16 %v6529
        %v6611 = vunpack.c.l.bf16 %v6530
        %v6612 = vunpack.c.h.bf16 %v6530
        %v6613 = vunpack.c.l.bf16 %v6531
        %v6614 = vunpack.c.h.bf16 %v6531
        %v6615 = vunpack.c.l.bf16 %v6532
        %v6616 = vunpack.c.h.bf16 %v6532
        %v6617 = vunpack.c.l.bf16 %v6533
        %v6618 = vunpack.c.h.bf16 %v6533
        %v6619 = vunpack.c.l.bf16 %v6534
        %v6620 = vunpack.c.h.bf16 %v6534
        %v6621 = vunpack.c.l.bf16 %v6535
        %v6622 = vunpack.c.h.bf16 %v6535
        %v6623 = vunpack.c.l.bf16 %v6536
        %v6624 = vunpack.c.h.bf16 %v6536
        %v6625 = vunpack.c.l.bf16 %v6537
        %v6626 = vunpack.c.h.bf16 %v6537
        %v6627 = vunpack.c.l.bf16 %v6538
        %v6628 = vunpack.c.h.bf16 %v6538
        %v6629 = vunpack.c.l.bf16 %v6539
        %v6630 = vunpack.c.h.bf16 %v6539
        %v6631 = vunpack.c.l.bf16 %v6540
        %v6632 = vunpack.c.h.bf16 %v6540
        %v6633 = vunpack.c.l.bf16 %v6541
        %v6634 = vunpack.c.h.bf16 %v6541
        %v6635 = vunpack.c.l.bf16 %v6542
        %v6636 = vunpack.c.h.bf16 %v6542
        %v6637 = vunpack.c.l.bf16 %v6543
        %v6638 = vunpack.c.h.bf16 %v6543
        %v6639 = vunpack.c.l.bf16 %v6544
        %v6640 = vunpack.c.h.bf16 %v6544
        %v6641 = vunpack.c.l.bf16 %v6545
        %v6642 = vunpack.c.h.bf16 %v6545
        %v6643 = vunpack.c.l.bf16 %v6546
        %v6644 = vunpack.c.h.bf16 %v6546
        %v6645 = vunpack.c.l.bf16 %v6547
        %v6646 = vunpack.c.h.bf16 %v6547
        %v6647 = vunpack.c.l.bf16 %v6548
        %v6648 = vunpack.c.h.bf16 %v6548
        %v6649 = vunpack.c.l.bf16 %v6549
        %v6650 = vunpack.c.h.bf16 %v6549
        %v6651 = vunpack.c.l.bf16 %v6550
        %v6652 = vunpack.c.h.bf16 %v6550
        %v6653 = vunpack.c.l.bf16 %v6551
        %v6654 = vunpack.c.h.bf16 %v6551
        %v6655 = vunpack.c.l.bf16 %v6552
        %v6656 = vunpack.c.h.bf16 %v6552
        %v6657 = vunpack.c.l.bf16 %v6553
        %v6658 = vunpack.c.h.bf16 %v6553
        %v6659 = vunpack.c.l.bf16 %v6554
        %v6660 = vunpack.c.h.bf16 %v6554
        %v6661 = vunpack.c.l.bf16 %v6555
        %v6662 = vunpack.c.h.bf16 %v6555
        %v6663 = vunpack.c.l.bf16 %v6556
        %v6664 = vunpack.c.h.bf16 %v6556
        %v6665 = vunpack.c.l.bf16 %v6557
        %v6666 = vunpack.c.h.bf16 %v6557
        %v6667 = vunpack.c.l.bf16 %v6558
        %v6668 = vunpack.c.h.bf16 %v6558
        %v6669 = vunpack.c.l.bf16 %v6559
        %v6670 = vunpack.c.h.bf16 %v6559
        %v6671 = vunpack.c.l.bf16 %v6560
        %v6672 = vunpack.c.h.bf16 %v6560
        %v6673 = vunpack.c.l.bf16 %v6561
        %v6674 = vunpack.c.h.bf16 %v6561
        %v6675 = vunpack.c.l.bf16 %v6562
        %v6676 = vunpack.c.h.bf16 %v6562
        %v6677 = vunpack.c.l.bf16 %v6563
        %v6678 = vunpack.c.h.bf16 %v6563
        %v6679 = vunpack.c.l.bf16 %v6564
        %v6680 = vunpack.c.h.bf16 %v6564
        %v6681 = vunpack.c.l.bf16 %v6565
        %v6682 = vunpack.c.h.bf16 %v6565
        %v6683 = vunpack.c.l.bf16 %v6566
        %v6684 = vunpack.c.h.bf16 %v6566
        %v6685 = vunpack.c.l.bf16 %v6567
        %v6686 = vunpack.c.h.bf16 %v6567
        %v6687 = vunpack.c.l.bf16 %v6568
        %v6688 = vunpack.c.h.bf16 %v6568
        %v6689 = vunpack.c.l.bf16 %v6569
        %v6690 = vunpack.c.h.bf16 %v6569
        %v6691 = vunpack.c.l.bf16 %v6570
        %v6692 = vunpack.c.h.bf16 %v6570
        %v6693 = vunpack.c.l.bf16 %v6571
        %v6694 = vunpack.c.h.bf16 %v6571
        %v6695 = vunpack.c.l.bf16 %v6572
        %v6696 = vunpack.c.h.bf16 %v6572
        %v6697 = vunpack.c.l.bf16 %v6573
        %v6698 = vunpack.c.h.bf16 %v6573
        %v6699 = vunpack.c.l.bf16 %v6574
        %v6700 = vunpack.c.h.bf16 %v6574
        %v6701 = vunpack.c.l.bf16 %v6575
        %v6702 = vunpack.c.h.bf16 %v6575
        %v6703 = vunpack.c.l.bf16 %v6576
        %v6704 = vunpack.c.h.bf16 %v6576
        %v6705 = vld [vmem:[%s5] sm:$0x3]
        %v6707 = vperm.slane %v6705, 0
        %v6708 = vperm.slane %v6705, 1
        %v6711 = vmul.f32 %v6577, %v6707
        %v6712 = vmul.f32 %v6578, %v6708
        %v6713 = vmul.f32 %v6579, %v6707
        %v6714 = vmul.f32 %v6580, %v6708
        %v6715 = vmul.f32 %v6581, %v6707
        %v6716 = vmul.f32 %v6582, %v6708
        %v6717 = vmul.f32 %v6583, %v6707
        %v6718 = vmul.f32 %v6584, %v6708
        %v6719 = vmul.f32 %v6585, %v6707
        %v6720 = vmul.f32 %v6586, %v6708
        %v6721 = vmul.f32 %v6587, %v6707
        %v6722 = vmul.f32 %v6588, %v6708
        %v6723 = vmul.f32 %v6589, %v6707
        %v6724 = vmul.f32 %v6590, %v6708
        %v6725 = vmul.f32 %v6591, %v6707
        %v6726 = vmul.f32 %v6592, %v6708
        %v6727 = vmul.f32 %v6593, %v6707
        %v6728 = vmul.f32 %v6594, %v6708
        %v6729 = vmul.f32 %v6595, %v6707
        %v6730 = vmul.f32 %v6596, %v6708
        %v6731 = vmul.f32 %v6597, %v6707
        %v6732 = vmul.f32 %v6598, %v6708
        %v6733 = vmul.f32 %v6599, %v6707
        %v6734 = vmul.f32 %v6600, %v6708
        %v6735 = vmul.f32 %v6601, %v6707
        %v6736 = vmul.f32 %v6602, %v6708
        %v6737 = vmul.f32 %v6603, %v6707
        %v6738 = vmul.f32 %v6604, %v6708
        %v6739 = vmul.f32 %v6605, %v6707
        %v6740 = vmul.f32 %v6606, %v6708
        %v6741 = vmul.f32 %v6607, %v6707
        %v6742 = vmul.f32 %v6608, %v6708
        %v6743 = vmul.f32 %v6609, %v6707
        %v6744 = vmul.f32 %v6610, %v6708
        %v6745 = vmul.f32 %v6611, %v6707
        %v6746 = vmul.f32 %v6612, %v6708
        %v6747 = vmul.f32 %v6613, %v6707
        %v6748 = vmul.f32 %v6614, %v6708
        %v6749 = vmul.f32 %v6615, %v6707
        %v6750 = vmul.f32 %v6616, %v6708
        %v6751 = vmul.f32 %v6617, %v6707
        %v6752 = vmul.f32 %v6618, %v6708
        %v6753 = vmul.f32 %v6619, %v6707
        %v6754 = vmul.f32 %v6620, %v6708
        %v6755 = vmul.f32 %v6621, %v6707
        %v6756 = vmul.f32 %v6622, %v6708
        %v6757 = vmul.f32 %v6623, %v6707
        %v6758 = vmul.f32 %v6624, %v6708
        %v6759 = vmul.f32 %v6625, %v6707
        %v6760 = vmul.f32 %v6626, %v6708
        %v6761 = vmul.f32 %v6627, %v6707
        %v6762 = vmul.f32 %v6628, %v6708
        %v6763 = vmul.f32 %v6629, %v6707
        %v6764 = vmul.f32 %v6630, %v6708
        %v6765 = vmul.f32 %v6631, %v6707
        %v6766 = vmul.f32 %v6632, %v6708
        %v6767 = vmul.f32 %v6633, %v6707
        %v6768 = vmul.f32 %v6634, %v6708
        %v6769 = vmul.f32 %v6635, %v6707
        %v6770 = vmul.f32 %v6636, %v6708
        %v6771 = vmul.f32 %v6637, %v6707
        %v6772 = vmul.f32 %v6638, %v6708
        %v6773 = vmul.f32 %v6639, %v6707
        %v6774 = vmul.f32 %v6640, %v6708
        %v6775 = vmul.f32 %v6641, %v6707
        %v6776 = vmul.f32 %v6642, %v6708
        %v6777 = vmul.f32 %v6643, %v6707
        %v6778 = vmul.f32 %v6644, %v6708
        %v6779 = vmul.f32 %v6645, %v6707
        %v6780 = vmul.f32 %v6646, %v6708
        %v6781 = vmul.f32 %v6647, %v6707
        %v6782 = vmul.f32 %v6648, %v6708
        %v6783 = vmul.f32 %v6649, %v6707
        %v6784 = vmul.f32 %v6650, %v6708
        %v6785 = vmul.f32 %v6651, %v6707
        %v6786 = vmul.f32 %v6652, %v6708
        %v6787 = vmul.f32 %v6653, %v6707
        %v6788 = vmul.f32 %v6654, %v6708
        %v6789 = vmul.f32 %v6655, %v6707
        %v6790 = vmul.f32 %v6656, %v6708
        %v6791 = vmul.f32 %v6657, %v6707
        %v6792 = vmul.f32 %v6658, %v6708
        %v6793 = vmul.f32 %v6659, %v6707
        %v6794 = vmul.f32 %v6660, %v6708
        %v6795 = vmul.f32 %v6661, %v6707
        %v6796 = vmul.f32 %v6662, %v6708
        %v6797 = vmul.f32 %v6663, %v6707
        %v6798 = vmul.f32 %v6664, %v6708
        %v6799 = vmul.f32 %v6665, %v6707
        %v6800 = vmul.f32 %v6666, %v6708
        %v6801 = vmul.f32 %v6667, %v6707
        %v6802 = vmul.f32 %v6668, %v6708
        %v6803 = vmul.f32 %v6669, %v6707
        %v6804 = vmul.f32 %v6670, %v6708
        %v6805 = vmul.f32 %v6671, %v6707
        %v6806 = vmul.f32 %v6672, %v6708
        %v6807 = vmul.f32 %v6673, %v6707
        %v6808 = vmul.f32 %v6674, %v6708
        %v6809 = vmul.f32 %v6675, %v6707
        %v6810 = vmul.f32 %v6676, %v6708
        %v6811 = vmul.f32 %v6677, %v6707
        %v6812 = vmul.f32 %v6678, %v6708
        %v6813 = vmul.f32 %v6679, %v6707
        %v6814 = vmul.f32 %v6680, %v6708
        %v6815 = vmul.f32 %v6681, %v6707
        %v6816 = vmul.f32 %v6682, %v6708
        %v6817 = vmul.f32 %v6683, %v6707
        %v6818 = vmul.f32 %v6684, %v6708
        %v6819 = vmul.f32 %v6685, %v6707
        %v6820 = vmul.f32 %v6686, %v6708
        %v6821 = vmul.f32 %v6687, %v6707
        %v6822 = vmul.f32 %v6688, %v6708
        %v6823 = vmul.f32 %v6689, %v6707
        %v6824 = vmul.f32 %v6690, %v6708
        %v6825 = vmul.f32 %v6691, %v6707
        %v6826 = vmul.f32 %v6692, %v6708
        %v6827 = vmul.f32 %v6693, %v6707
        %v6828 = vmul.f32 %v6694, %v6708
        %v6829 = vmul.f32 %v6695, %v6707
        %v6830 = vmul.f32 %v6696, %v6708
        %v6831 = vmul.f32 %v6697, %v6707
        %v6832 = vmul.f32 %v6698, %v6708
        %v6833 = vmul.f32 %v6699, %v6707
        %v6834 = vmul.f32 %v6700, %v6708
        %v6835 = vmul.f32 %v6701, %v6707
        %v6836 = vmul.f32 %v6702, %v6708
        %v6837 = vmul.f32 %v6703, %v6707
        %v6838 = vmul.f32 %v6704, %v6708
        %v6839 = vadd.f32 %v6711, %v6712
        %6840 = vadd.xlane.f32.xlu0 %v6839
        %v6841 = vpop.xlane.xlu0 %6840
        %v6842 = vadd.f32 %v6713, %v6714
        %6843 = vadd.xlane.f32.xlu0 %v6842
        %v6844 = vpop.xlane.xlu0 %6843
        %v6845 = vadd.f32 %v6715, %v6716
        %6846 = vadd.xlane.f32.xlu0 %v6845
        %v6847 = vpop.xlane.xlu0 %6846
        %v6848 = vadd.f32 %v6717, %v6718
        %6849 = vadd.xlane.f32.xlu0 %v6848
        %v6850 = vpop.xlane.xlu0 %6849
        %v6851 = vadd.f32 %v6719, %v6720
        %6852 = vadd.xlane.f32.xlu0 %v6851
        %v6853 = vpop.xlane.xlu0 %6852
        %v6854 = vadd.f32 %v6721, %v6722
        %6855 = vadd.xlane.f32.xlu0 %v6854
        %v6856 = vpop.xlane.xlu0 %6855
        %v6857 = vadd.f32 %v6723, %v6724
        %6858 = vadd.xlane.f32.xlu0 %v6857
        %v6859 = vpop.xlane.xlu0 %6858
        %v6860 = vadd.f32 %v6725, %v6726
        %6861 = vadd.xlane.f32.xlu0 %v6860
        %v6862 = vpop.xlane.xlu0 %6861
        %v6863 = vadd.f32 %v6727, %v6728
        %6864 = vadd.xlane.f32.xlu0 %v6863
        %v6865 = vpop.xlane.xlu0 %6864
        %v6866 = vadd.f32 %v6729, %v6730
        %6867 = vadd.xlane.f32.xlu0 %v6866
        %v6868 = vpop.xlane.xlu0 %6867
        %v6869 = vadd.f32 %v6731, %v6732
        %6870 = vadd.xlane.f32.xlu0 %v6869
        %v6871 = vpop.xlane.xlu0 %6870
        %v6872 = vadd.f32 %v6733, %v6734
        %6873 = vadd.xlane.f32.xlu0 %v6872
        %v6874 = vpop.xlane.xlu0 %6873
        %v6875 = vadd.f32 %v6735, %v6736
        %6876 = vadd.xlane.f32.xlu0 %v6875
        %v6877 = vpop.xlane.xlu0 %6876
        %v6878 = vadd.f32 %v6737, %v6738
        %6879 = vadd.xlane.f32.xlu0 %v6878
        %v6880 = vpop.xlane.xlu0 %6879
        %v6881 = vadd.f32 %v6739, %v6740
        %6882 = vadd.xlane.f32.xlu0 %v6881
        %v6883 = vpop.xlane.xlu0 %6882
        %v6884 = vadd.f32 %v6741, %v6742
        %6885 = vadd.xlane.f32.xlu0 %v6884
        %v6886 = vpop.xlane.xlu0 %6885
        %v6887 = vadd.f32 %v6743, %v6744
        %6888 = vadd.xlane.f32.xlu0 %v6887
        %v6889 = vpop.xlane.xlu0 %6888
        %v6890 = vadd.f32 %v6745, %v6746
        %6891 = vadd.xlane.f32.xlu0 %v6890
        %v6892 = vpop.xlane.xlu0 %6891
        %v6893 = vadd.f32 %v6747, %v6748
        %6894 = vadd.xlane.f32.xlu0 %v6893
        %v6895 = vpop.xlane.xlu0 %6894
        %v6896 = vadd.f32 %v6749, %v6750
        %6897 = vadd.xlane.f32.xlu0 %v6896
        %v6898 = vpop.xlane.xlu0 %6897
        %v6899 = vadd.f32 %v6751, %v6752
        %6900 = vadd.xlane.f32.xlu0 %v6899
        %v6901 = vpop.xlane.xlu0 %6900
        %v6902 = vadd.f32 %v6753, %v6754
        %6903 = vadd.xlane.f32.xlu0 %v6902
        %v6904 = vpop.xlane.xlu0 %6903
        %v6905 = vadd.f32 %v6755, %v6756
        %6906 = vadd.xlane.f32.xlu0 %v6905
        %v6907 = vpop.xlane.xlu0 %6906
        %v6908 = vadd.f32 %v6757, %v6758
        %6909 = vadd.xlane.f32.xlu0 %v6908
        %v6910 = vpop.xlane.xlu0 %6909
        %v6911 = vadd.f32 %v6759, %v6760
        %6912 = vadd.xlane.f32.xlu0 %v6911
        %v6913 = vpop.xlane.xlu0 %6912
        %v6914 = vadd.f32 %v6761, %v6762
        %6915 = vadd.xlane.f32.xlu0 %v6914
        %v6916 = vpop.xlane.xlu0 %6915
        %v6917 = vadd.f32 %v6763, %v6764
        %6918 = vadd.xlane.f32.xlu0 %v6917
        %v6919 = vpop.xlane.xlu0 %6918
        %v6920 = vadd.f32 %v6765, %v6766
        %6921 = vadd.xlane.f32.xlu0 %v6920
        %v6922 = vpop.xlane.xlu0 %6921
        %v6923 = vadd.f32 %v6767, %v6768
        %6924 = vadd.xlane.f32.xlu0 %v6923
        %v6925 = vpop.xlane.xlu0 %6924
        %v6926 = vadd.f32 %v6769, %v6770
        %6927 = vadd.xlane.f32.xlu0 %v6926
        %v6928 = vpop.xlane.xlu0 %6927
        %v6929 = vadd.f32 %v6771, %v6772
        %6930 = vadd.xlane.f32.xlu0 %v6929
        %v6931 = vpop.xlane.xlu0 %6930
        %v6932 = vadd.f32 %v6773, %v6774
        %6933 = vadd.xlane.f32.xlu0 %v6932
        %v6934 = vpop.xlane.xlu0 %6933
        %v6935 = vadd.f32 %v6775, %v6776
        %6936 = vadd.xlane.f32.xlu0 %v6935
        %v6937 = vpop.xlane.xlu0 %6936
        %v6938 = vadd.f32 %v6777, %v6778
        %6939 = vadd.xlane.f32.xlu0 %v6938
        %v6940 = vpop.xlane.xlu0 %6939
        %v6941 = vadd.f32 %v6779, %v6780
        %6942 = vadd.xlane.f32.xlu0 %v6941
        %v6943 = vpop.xlane.xlu0 %6942
        %v6944 = vadd.f32 %v6781, %v6782
        %6945 = vadd.xlane.f32.xlu0 %v6944
        %v6946 = vpop.xlane.xlu0 %6945
        %v6947 = vadd.f32 %v6783, %v6784
        %6948 = vadd.xlane.f32.xlu0 %v6947
        %v6949 = vpop.xlane.xlu0 %6948
        %v6950 = vadd.f32 %v6785, %v6786
        %6951 = vadd.xlane.f32.xlu0 %v6950
        %v6952 = vpop.xlane.xlu0 %6951
        %v6953 = vadd.f32 %v6787, %v6788
        %6954 = vadd.xlane.f32.xlu0 %v6953
        %v6955 = vpop.xlane.xlu0 %6954
        %v6956 = vadd.f32 %v6789, %v6790
        %6957 = vadd.xlane.f32.xlu0 %v6956
        %v6958 = vpop.xlane.xlu0 %6957
        %v6959 = vadd.f32 %v6791, %v6792
        %6960 = vadd.xlane.f32.xlu0 %v6959
        %v6961 = vpop.xlane.xlu0 %6960
        %v6962 = vadd.f32 %v6793, %v6794
        %6963 = vadd.xlane.f32.xlu0 %v6962
        %v6964 = vpop.xlane.xlu0 %6963
        %v6965 = vadd.f32 %v6795, %v6796
        %6966 = vadd.xlane.f32.xlu0 %v6965
        %v6967 = vpop.xlane.xlu0 %6966
        %v6968 = vadd.f32 %v6797, %v6798
        %6969 = vadd.xlane.f32.xlu0 %v6968
        %v6970 = vpop.xlane.xlu0 %6969
        %v6971 = vadd.f32 %v6799, %v6800
        %6972 = vadd.xlane.f32.xlu0 %v6971
        %v6973 = vpop.xlane.xlu0 %6972
        %v6974 = vadd.f32 %v6801, %v6802
        %6975 = vadd.xlane.f32.xlu0 %v6974
        %v6976 = vpop.xlane.xlu0 %6975
        %v6977 = vadd.f32 %v6803, %v6804
        %6978 = vadd.xlane.f32.xlu0 %v6977
        %v6979 = vpop.xlane.xlu0 %6978
        %v6980 = vadd.f32 %v6805, %v6806
        %6981 = vadd.xlane.f32.xlu0 %v6980
        %v6982 = vpop.xlane.xlu0 %6981
        %v6983 = vadd.f32 %v6807, %v6808
        %6984 = vadd.xlane.f32.xlu0 %v6983
        %v6985 = vpop.xlane.xlu0 %6984
        %v6986 = vadd.f32 %v6809, %v6810
        %6987 = vadd.xlane.f32.xlu0 %v6986
        %v6988 = vpop.xlane.xlu0 %6987
        %v6989 = vadd.f32 %v6811, %v6812
        %6990 = vadd.xlane.f32.xlu0 %v6989
        %v6991 = vpop.xlane.xlu0 %6990
        %v6992 = vadd.f32 %v6813, %v6814
        %6993 = vadd.xlane.f32.xlu0 %v6992
        %v6994 = vpop.xlane.xlu0 %6993
        %v6995 = vadd.f32 %v6815, %v6816
        %6996 = vadd.xlane.f32.xlu0 %v6995
        %v6997 = vpop.xlane.xlu0 %6996
        %v6998 = vadd.f32 %v6817, %v6818
        %6999 = vadd.xlane.f32.xlu0 %v6998
        %v7000 = vpop.xlane.xlu0 %6999
        %v7001 = vadd.f32 %v6819, %v6820
        %7002 = vadd.xlane.f32.xlu0 %v7001
        %v7003 = vpop.xlane.xlu0 %7002
        %v7004 = vadd.f32 %v6821, %v6822
        %7005 = vadd.xlane.f32.xlu0 %v7004
        %v7006 = vpop.xlane.xlu0 %7005
        %v7007 = vadd.f32 %v6823, %v6824
        %7008 = vadd.xlane.f32.xlu0 %v7007
        %v7009 = vpop.xlane.xlu0 %7008
        %v7010 = vadd.f32 %v6825, %v6826
        %7011 = vadd.xlane.f32.xlu0 %v7010
        %v7012 = vpop.xlane.xlu0 %7011
        %v7013 = vadd.f32 %v6827, %v6828
        %7014 = vadd.xlane.f32.xlu0 %v7013
        %v7015 = vpop.xlane.xlu0 %7014
        %v7016 = vadd.f32 %v6829, %v6830
        %7017 = vadd.xlane.f32.xlu0 %v7016
        %v7018 = vpop.xlane.xlu0 %7017
        %v7019 = vadd.f32 %v6831, %v6832
        %7020 = vadd.xlane.f32.xlu0 %v7019
        %v7021 = vpop.xlane.xlu0 %7020
        %v7022 = vadd.f32 %v6833, %v6834
        %7023 = vadd.xlane.f32.xlu0 %v7022
        %v7024 = vpop.xlane.xlu0 %7023
        %v7025 = vadd.f32 %v6835, %v6836
        %7026 = vadd.xlane.f32.xlu0 %v7025
        %v7027 = vpop.xlane.xlu0 %7026
        %v7028 = vadd.f32 %v6837, %v6838
        %7029 = vadd.xlane.f32.xlu0 %v7028
        %v7030 = vpop.xlane.xlu0 %7029
        %s7031 = sld [smem:[#allocation2]]
        %v7032 = vstv %s7031
        %v7033 = vadd.f32 %v6841, %v7032
        %v7034 = vadd.f32 %v6844, %v7032
        %v7035 = vadd.f32 %v6847, %v7032
        %v7036 = vadd.f32 %v6850, %v7032
        %v7037 = vadd.f32 %v6853, %v7032
        %v7038 = vadd.f32 %v6856, %v7032
        %v7039 = vadd.f32 %v6859, %v7032
        %v7040 = vadd.f32 %v6862, %v7032
        %v7041 = vadd.f32 %v6865, %v7032
        %v7042 = vadd.f32 %v6868, %v7032
        %v7043 = vadd.f32 %v6871, %v7032
        %v7044 = vadd.f32 %v6874, %v7032
        %v7045 = vadd.f32 %v6877, %v7032
        %v7046 = vadd.f32 %v6880, %v7032
        %v7047 = vadd.f32 %v6883, %v7032
        %v7048 = vadd.f32 %v6886, %v7032
        %v7049 = vadd.f32 %v6889, %v7032
        %v7050 = vadd.f32 %v6892, %v7032
        %v7051 = vadd.f32 %v6895, %v7032
        %v7052 = vadd.f32 %v6898, %v7032
        %v7053 = vadd.f32 %v6901, %v7032
        %v7054 = vadd.f32 %v6904, %v7032
        %v7055 = vadd.f32 %v6907, %v7032
        %v7056 = vadd.f32 %v6910, %v7032
        %v7057 = vadd.f32 %v6913, %v7032
        %v7058 = vadd.f32 %v6916, %v7032
        %v7059 = vadd.f32 %v6919, %v7032
        %v7060 = vadd.f32 %v6922, %v7032
        %v7061 = vadd.f32 %v6925, %v7032
        %v7062 = vadd.f32 %v6928, %v7032
        %v7063 = vadd.f32 %v6931, %v7032
        %v7064 = vadd.f32 %v6934, %v7032
        %v7065 = vadd.f32 %v6937, %v7032
        %v7066 = vadd.f32 %v6940, %v7032
        %v7067 = vadd.f32 %v6943, %v7032
        %v7068 = vadd.f32 %v6946, %v7032
        %v7069 = vadd.f32 %v6949, %v7032
        %v7070 = vadd.f32 %v6952, %v7032
        %v7071 = vadd.f32 %v6955, %v7032
        %v7072 = vadd.f32 %v6958, %v7032
        %v7073 = vadd.f32 %v6961, %v7032
        %v7074 = vadd.f32 %v6964, %v7032
        %v7075 = vadd.f32 %v6967, %v7032
        %v7076 = vadd.f32 %v6970, %v7032
        %v7077 = vadd.f32 %v6973, %v7032
        %v7078 = vadd.f32 %v6976, %v7032
        %v7079 = vadd.f32 %v6979, %v7032
        %v7080 = vadd.f32 %v6982, %v7032
        %v7081 = vadd.f32 %v6985, %v7032
        %v7082 = vadd.f32 %v6988, %v7032
        %v7083 = vadd.f32 %v6991, %v7032
        %v7084 = vadd.f32 %v6994, %v7032
        %v7085 = vadd.f32 %v6997, %v7032
        %v7086 = vadd.f32 %v7000, %v7032
        %v7087 = vadd.f32 %v7003, %v7032
        %v7088 = vadd.f32 %v7006, %v7032
        %v7089 = vadd.f32 %v7009, %v7032
        %v7090 = vadd.f32 %v7012, %v7032
        %v7091 = vadd.f32 %v7015, %v7032
        %v7092 = vadd.f32 %v7018, %v7032
        %v7093 = vadd.f32 %v7021, %v7032
        %v7094 = vadd.f32 %v7024, %v7032
        %v7095 = vadd.f32 %v7027, %v7032
        %v7096 = vadd.f32 %v7030, %v7032
        %v7097 = vxor.u32 %v7033, 2147483648
        %v7098 = vxor.u32 %v7034, 2147483648
        %v7099 = vxor.u32 %v7035, 2147483648
        %v7100 = vxor.u32 %v7036, 2147483648
        %v7101 = vxor.u32 %v7037, 2147483648
        %v7102 = vxor.u32 %v7038, 2147483648
        %v7103 = vxor.u32 %v7039, 2147483648
        %v7104 = vxor.u32 %v7040, 2147483648
        %v7105 = vxor.u32 %v7041, 2147483648
        %v7106 = vxor.u32 %v7042, 2147483648
        %v7107 = vxor.u32 %v7043, 2147483648
        %v7108 = vxor.u32 %v7044, 2147483648
        %v7109 = vxor.u32 %v7045, 2147483648
        %v7110 = vxor.u32 %v7046, 2147483648
        %v7111 = vxor.u32 %v7047, 2147483648
        %v7112 = vxor.u32 %v7048, 2147483648
        %v7113 = vxor.u32 %v7049, 2147483648
        %v7114 = vxor.u32 %v7050, 2147483648
        %v7115 = vxor.u32 %v7051, 2147483648
        %v7116 = vxor.u32 %v7052, 2147483648
        %v7117 = vxor.u32 %v7053, 2147483648
        %v7118 = vxor.u32 %v7054, 2147483648
        %v7119 = vxor.u32 %v7055, 2147483648
        %v7120 = vxor.u32 %v7056, 2147483648
        %v7121 = vxor.u32 %v7057, 2147483648
        %v7122 = vxor.u32 %v7058, 2147483648
        %v7123 = vxor.u32 %v7059, 2147483648
        %v7124 = vxor.u32 %v7060, 2147483648
        %v7125 = vxor.u32 %v7061, 2147483648
        %v7126 = vxor.u32 %v7062, 2147483648
        %v7127 = vxor.u32 %v7063, 2147483648
        %v7128 = vxor.u32 %v7064, 2147483648
        %v7129 = vxor.u32 %v7065, 2147483648
        %v7130 = vxor.u32 %v7066, 2147483648
        %v7131 = vxor.u32 %v7067, 2147483648
        %v7132 = vxor.u32 %v7068, 2147483648
        %v7133 = vxor.u32 %v7069, 2147483648
        %v7134 = vxor.u32 %v7070, 2147483648
        %v7135 = vxor.u32 %v7071, 2147483648
        %v7136 = vxor.u32 %v7072, 2147483648
        %v7137 = vxor.u32 %v7073, 2147483648
        %v7138 = vxor.u32 %v7074, 2147483648
        %v7139 = vxor.u32 %v7075, 2147483648
        %v7140 = vxor.u32 %v7076, 2147483648
        %v7141 = vxor.u32 %v7077, 2147483648
        %v7142 = vxor.u32 %v7078, 2147483648
        %v7143 = vxor.u32 %v7079, 2147483648
        %v7144 = vxor.u32 %v7080, 2147483648
        %v7145 = vxor.u32 %v7081, 2147483648
        %v7146 = vxor.u32 %v7082, 2147483648
        %v7147 = vxor.u32 %v7083, 2147483648
        %v7148 = vxor.u32 %v7084, 2147483648
        %v7149 = vxor.u32 %v7085, 2147483648
        %v7150 = vxor.u32 %v7086, 2147483648
        %v7151 = vxor.u32 %v7087, 2147483648
        %v7152 = vxor.u32 %v7088, 2147483648
        %v7153 = vxor.u32 %v7089, 2147483648
        %v7154 = vxor.u32 %v7090, 2147483648
        %v7155 = vxor.u32 %v7091, 2147483648
        %v7156 = vxor.u32 %v7092, 2147483648
        %v7157 = vxor.u32 %v7093, 2147483648
        %v7158 = vxor.u32 %v7094, 2147483648
        %v7159 = vxor.u32 %v7095, 2147483648
        %v7160 = vxor.u32 %v7096, 2147483648
        %v7161 = vmul.f32 %v7097, 1.442695
        %v7162 = vpow.pop %v7161
        %v7163 = vmul.f32 %v7098, 1.442695
        %v7164 = vpow.pop %v7163
        %v7165 = vmul.f32 %v7099, 1.442695
        %v7166 = vpow.pop %v7165
        %v7167 = vmul.f32 %v7100, 1.442695
        %v7168 = vpow.pop %v7167
        %v7169 = vmul.f32 %v7101, 1.442695
        %v7170 = vpow.pop %v7169
        %v7171 = vmul.f32 %v7102, 1.442695
        %v7172 = vpow.pop %v7171
        %v7173 = vmul.f32 %v7103, 1.442695
        %v7174 = vpow.pop %v7173
        %v7175 = vmul.f32 %v7104, 1.442695
        %v7176 = vpow.pop %v7175
        %v7177 = vmul.f32 %v7105, 1.442695
        %v7178 = vpow.pop %v7177
        %v7179 = vmul.f32 %v7106, 1.442695
        %v7180 = vpow.pop %v7179
        %v7181 = vmul.f32 %v7107, 1.442695
        %v7182 = vpow.pop %v7181
        %v7183 = vmul.f32 %v7108, 1.442695
        %v7184 = vpow.pop %v7183
        %v7185 = vmul.f32 %v7109, 1.442695
        %v7186 = vpow.pop %v7185
        %v7187 = vmul.f32 %v7110, 1.442695
        %v7188 = vpow.pop %v7187
        %v7189 = vmul.f32 %v7111, 1.442695
        %v7190 = vpow.pop %v7189
        %v7191 = vmul.f32 %v7112, 1.442695
        %v7192 = vpow.pop %v7191
        %v7193 = vmul.f32 %v7113, 1.442695
        %v7194 = vpow.pop %v7193
        %v7195 = vmul.f32 %v7114, 1.442695
        %v7196 = vpow.pop %v7195
        %v7197 = vmul.f32 %v7115, 1.442695
        %v7198 = vpow.pop %v7197
        %v7199 = vmul.f32 %v7116, 1.442695
        %v7200 = vpow.pop %v7199
        %v7201 = vmul.f32 %v7117, 1.442695
        %v7202 = vpow.pop %v7201
        %v7203 = vmul.f32 %v7118, 1.442695
        %v7204 = vpow.pop %v7203
        %v7205 = vmul.f32 %v7119, 1.442695
        %v7206 = vpow.pop %v7205
        %v7207 = vmul.f32 %v7120, 1.442695
        %v7208 = vpow.pop %v7207
        %v7209 = vmul.f32 %v7121, 1.442695
        %v7210 = vpow.pop %v7209
        %v7211 = vmul.f32 %v7122, 1.442695
        %v7212 = vpow.pop %v7211
        %v7213 = vmul.f32 %v7123, 1.442695
        %v7214 = vpow.pop %v7213
        %v7215 = vmul.f32 %v7124, 1.442695
        %v7216 = vpow.pop %v7215
        %v7217 = vmul.f32 %v7125, 1.442695
        %v7218 = vpow.pop %v7217
        %v7219 = vmul.f32 %v7126, 1.442695
        %v7220 = vpow.pop %v7219
        %v7221 = vmul.f32 %v7127, 1.442695
        %v7222 = vpow.pop %v7221
        %v7223 = vmul.f32 %v7128, 1.442695
        %v7224 = vpow.pop %v7223
        %v7225 = vmul.f32 %v7129, 1.442695
        %v7226 = vpow.pop %v7225
        %v7227 = vmul.f32 %v7130, 1.442695
        %v7228 = vpow.pop %v7227
        %v7229 = vmul.f32 %v7131, 1.442695
        %v7230 = vpow.pop %v7229
        %v7231 = vmul.f32 %v7132, 1.442695
        %v7232 = vpow.pop %v7231
        %v7233 = vmul.f32 %v7133, 1.442695
        %v7234 = vpow.pop %v7233
        %v7235 = vmul.f32 %v7134, 1.442695
        %v7236 = vpow.pop %v7235
        %v7237 = vmul.f32 %v7135, 1.442695
        %v7238 = vpow.pop %v7237
        %v7239 = vmul.f32 %v7136, 1.442695
        %v7240 = vpow.pop %v7239
        %v7241 = vmul.f32 %v7137, 1.442695
        %v7242 = vpow.pop %v7241
        %v7243 = vmul.f32 %v7138, 1.442695
        %v7244 = vpow.pop %v7243
        %v7245 = vmul.f32 %v7139, 1.442695
        %v7246 = vpow.pop %v7245
        %v7247 = vmul.f32 %v7140, 1.442695
        %v7248 = vpow.pop %v7247
        %v7249 = vmul.f32 %v7141, 1.442695
        %v7250 = vpow.pop %v7249
        %v7251 = vmul.f32 %v7142, 1.442695
        %v7252 = vpow.pop %v7251
        %v7253 = vmul.f32 %v7143, 1.442695
        %v7254 = vpow.pop %v7253
        %v7255 = vmul.f32 %v7144, 1.442695
        %v7256 = vpow.pop %v7255
        %v7257 = vmul.f32 %v7145, 1.442695
        %v7258 = vpow.pop %v7257
        %v7259 = vmul.f32 %v7146, 1.442695
        %v7260 = vpow.pop %v7259
        %v7261 = vmul.f32 %v7147, 1.442695
        %v7262 = vpow.pop %v7261
        %v7263 = vmul.f32 %v7148, 1.442695
        %v7264 = vpow.pop %v7263
        %v7265 = vmul.f32 %v7149, 1.442695
        %v7266 = vpow.pop %v7265
        %v7267 = vmul.f32 %v7150, 1.442695
        %v7268 = vpow.pop %v7267
        %v7269 = vmul.f32 %v7151, 1.442695
        %v7270 = vpow.pop %v7269
        %v7271 = vmul.f32 %v7152, 1.442695
        %v7272 = vpow.pop %v7271
        %v7273 = vmul.f32 %v7153, 1.442695
        %v7274 = vpow.pop %v7273
        %v7275 = vmul.f32 %v7154, 1.442695
        %v7276 = vpow.pop %v7275
        %v7277 = vmul.f32 %v7155, 1.442695
        %v7278 = vpow.pop %v7277
        %v7279 = vmul.f32 %v7156, 1.442695
        %v7280 = vpow.pop %v7279
        %v7281 = vmul.f32 %v7157, 1.442695
        %v7282 = vpow.pop %v7281
        %v7283 = vmul.f32 %v7158, 1.442695
        %v7284 = vpow.pop %v7283
        %v7285 = vmul.f32 %v7159, 1.442695
        %v7286 = vpow.pop %v7285
        %v7287 = vmul.f32 %v7160, 1.442695
        %v7288 = vpow.pop %v7287
        %v7289 = vadd.f32 %v7162, 1.0
        %v7290 = vadd.f32 %v7164, 1.0
        %v7291 = vadd.f32 %v7166, 1.0
        %v7292 = vadd.f32 %v7168, 1.0
        %v7293 = vadd.f32 %v7170, 1.0
        %v7294 = vadd.f32 %v7172, 1.0
        %v7295 = vadd.f32 %v7174, 1.0
        %v7296 = vadd.f32 %v7176, 1.0
        %v7297 = vadd.f32 %v7178, 1.0
        %v7298 = vadd.f32 %v7180, 1.0
        %v7299 = vadd.f32 %v7182, 1.0
        %v7300 = vadd.f32 %v7184, 1.0
        %v7301 = vadd.f32 %v7186, 1.0
        %v7302 = vadd.f32 %v7188, 1.0
        %v7303 = vadd.f32 %v7190, 1.0
        %v7304 = vadd.f32 %v7192, 1.0
        %v7305 = vadd.f32 %v7194, 1.0
        %v7306 = vadd.f32 %v7196, 1.0
        %v7307 = vadd.f32 %v7198, 1.0
        %v7308 = vadd.f32 %v7200, 1.0
        %v7309 = vadd.f32 %v7202, 1.0
        %v7310 = vadd.f32 %v7204, 1.0
        %v7311 = vadd.f32 %v7206, 1.0
        %v7312 = vadd.f32 %v7208, 1.0
        %v7313 = vadd.f32 %v7210, 1.0
        %v7314 = vadd.f32 %v7212, 1.0
        %v7315 = vadd.f32 %v7214, 1.0
        %v7316 = vadd.f32 %v7216, 1.0
        %v7317 = vadd.f32 %v7218, 1.0
        %v7318 = vadd.f32 %v7220, 1.0
        %v7319 = vadd.f32 %v7222, 1.0
        %v7320 = vadd.f32 %v7224, 1.0
        %v7321 = vadd.f32 %v7226, 1.0
        %v7322 = vadd.f32 %v7228, 1.0
        %v7323 = vadd.f32 %v7230, 1.0
        %v7324 = vadd.f32 %v7232, 1.0
        %v7325 = vadd.f32 %v7234, 1.0
        %v7326 = vadd.f32 %v7236, 1.0
        %v7327 = vadd.f32 %v7238, 1.0
        %v7328 = vadd.f32 %v7240, 1.0
        %v7329 = vadd.f32 %v7242, 1.0
        %v7330 = vadd.f32 %v7244, 1.0
        %v7331 = vadd.f32 %v7246, 1.0
        %v7332 = vadd.f32 %v7248, 1.0
        %v7333 = vadd.f32 %v7250, 1.0
        %v7334 = vadd.f32 %v7252, 1.0
        %v7335 = vadd.f32 %v7254, 1.0
        %v7336 = vadd.f32 %v7256, 1.0
        %v7337 = vadd.f32 %v7258, 1.0
        %v7338 = vadd.f32 %v7260, 1.0
        %v7339 = vadd.f32 %v7262, 1.0
        %v7340 = vadd.f32 %v7264, 1.0
        %v7341 = vadd.f32 %v7266, 1.0
        %v7342 = vadd.f32 %v7268, 1.0
        %v7343 = vadd.f32 %v7270, 1.0
        %v7344 = vadd.f32 %v7272, 1.0
        %v7345 = vadd.f32 %v7274, 1.0
        %v7346 = vadd.f32 %v7276, 1.0
        %v7347 = vadd.f32 %v7278, 1.0
        %v7348 = vadd.f32 %v7280, 1.0
        %v7349 = vadd.f32 %v7282, 1.0
        %v7350 = vadd.f32 %v7284, 1.0
        %v7351 = vadd.f32 %v7286, 1.0
        %v7352 = vadd.f32 %v7288, 1.0
        %v7353 = vrcp.pop %v7289
        %v7354 = vmul.f32 %v7289, %v7353
        %v7355 = vsub.f32 1.0, %v7354
        %v7356 = vmul.f32 %v7353, %v7355
        %v7357 = vadd.f32 %v7353, %v7356
        %vm7358 = vweird.f32 %v7289
        %vm7359 = vweird.f32 %v7353
        %vm7360 = vmor %vm7358, %vm7359
        %v7361 = vsel %vm7360, %v7353, %v7357
        %v7362 = vand.u32 2147483647, %v7289
        %vm7363 = vcmp.eq.f32.partialorder %v7362, 8.507059e+37
        %v7364 = vand.u32 %v7289, 2147483648
        %v7365 = vor.u32 1.1754944e-38, %v7364
        %v7366 = vsel %vm7363, %v7365, %v7361
        %v7367 = vmul.f32 1.0, %v7366
        %v7368 = vrcp.pop %v7290
        %v7369 = vmul.f32 %v7290, %v7368
        %v7370 = vsub.f32 1.0, %v7369
        %v7371 = vmul.f32 %v7368, %v7370
        %v7372 = vadd.f32 %v7368, %v7371
        %vm7373 = vweird.f32 %v7290
        %vm7374 = vweird.f32 %v7368
        %vm7375 = vmor %vm7373, %vm7374
        %v7376 = vsel %vm7375, %v7368, %v7372
        %v7377 = vand.u32 2147483647, %v7290
        %vm7378 = vcmp.eq.f32.partialorder %v7377, 8.507059e+37
        %v7379 = vand.u32 %v7290, 2147483648
        %v7380 = vor.u32 1.1754944e-38, %v7379
        %v7381 = vsel %vm7378, %v7380, %v7376
        %v7382 = vmul.f32 1.0, %v7381
        %v7383 = vrcp.pop %v7291
        %v7384 = vmul.f32 %v7291, %v7383
        %v7385 = vsub.f32 1.0, %v7384
        %v7386 = vmul.f32 %v7383, %v7385
        %v7387 = vadd.f32 %v7383, %v7386
        %vm7388 = vweird.f32 %v7291
        %vm7389 = vweird.f32 %v7383
        %vm7390 = vmor %vm7388, %vm7389
        %v7391 = vsel %vm7390, %v7383, %v7387
        %v7392 = vand.u32 2147483647, %v7291
        %vm7393 = vcmp.eq.f32.partialorder %v7392, 8.507059e+37
        %v7394 = vand.u32 %v7291, 2147483648
        %v7395 = vor.u32 1.1754944e-38, %v7394
        %v7396 = vsel %vm7393, %v7395, %v7391
        %v7397 = vmul.f32 1.0, %v7396
        %v7398 = vrcp.pop %v7292
        %v7399 = vmul.f32 %v7292, %v7398
        %v7400 = vsub.f32 1.0, %v7399
        %v7401 = vmul.f32 %v7398, %v7400
        %v7402 = vadd.f32 %v7398, %v7401
        %vm7403 = vweird.f32 %v7292
        %vm7404 = vweird.f32 %v7398
        %vm7405 = vmor %vm7403, %vm7404
        %v7406 = vsel %vm7405, %v7398, %v7402
        %v7407 = vand.u32 2147483647, %v7292
        %vm7408 = vcmp.eq.f32.partialorder %v7407, 8.507059e+37
        %v7409 = vand.u32 %v7292, 2147483648
        %v7410 = vor.u32 1.1754944e-38, %v7409
        %v7411 = vsel %vm7408, %v7410, %v7406
        %v7412 = vmul.f32 1.0, %v7411
        %v7413 = vrcp.pop %v7293
        %v7414 = vmul.f32 %v7293, %v7413
        %v7415 = vsub.f32 1.0, %v7414
        %v7416 = vmul.f32 %v7413, %v7415
        %v7417 = vadd.f32 %v7413, %v7416
        %vm7418 = vweird.f32 %v7293
        %vm7419 = vweird.f32 %v7413
        %vm7420 = vmor %vm7418, %vm7419
        %v7421 = vsel %vm7420, %v7413, %v7417
        %v7422 = vand.u32 2147483647, %v7293
        %vm7423 = vcmp.eq.f32.partialorder %v7422, 8.507059e+37
        %v7424 = vand.u32 %v7293, 2147483648
        %v7425 = vor.u32 1.1754944e-38, %v7424
        %v7426 = vsel %vm7423, %v7425, %v7421
        %v7427 = vmul.f32 1.0, %v7426
        %v7428 = vrcp.pop %v7294
        %v7429 = vmul.f32 %v7294, %v7428
        %v7430 = vsub.f32 1.0, %v7429
        %v7431 = vmul.f32 %v7428, %v7430
        %v7432 = vadd.f32 %v7428, %v7431
        %vm7433 = vweird.f32 %v7294
        %vm7434 = vweird.f32 %v7428
        %vm7435 = vmor %vm7433, %vm7434
        %v7436 = vsel %vm7435, %v7428, %v7432
        %v7437 = vand.u32 2147483647, %v7294
        %vm7438 = vcmp.eq.f32.partialorder %v7437, 8.507059e+37
        %v7439 = vand.u32 %v7294, 2147483648
        %v7440 = vor.u32 1.1754944e-38, %v7439
        %v7441 = vsel %vm7438, %v7440, %v7436
        %v7442 = vmul.f32 1.0, %v7441
        %v7443 = vrcp.pop %v7295
        %v7444 = vmul.f32 %v7295, %v7443
        %v7445 = vsub.f32 1.0, %v7444
        %v7446 = vmul.f32 %v7443, %v7445
        %v7447 = vadd.f32 %v7443, %v7446
        %vm7448 = vweird.f32 %v7295
        %vm7449 = vweird.f32 %v7443
        %vm7450 = vmor %vm7448, %vm7449
        %v7451 = vsel %vm7450, %v7443, %v7447
        %v7452 = vand.u32 2147483647, %v7295
        %vm7453 = vcmp.eq.f32.partialorder %v7452, 8.507059e+37
        %v7454 = vand.u32 %v7295, 2147483648
        %v7455 = vor.u32 1.1754944e-38, %v7454
        %v7456 = vsel %vm7453, %v7455, %v7451
        %v7457 = vmul.f32 1.0, %v7456
        %v7458 = vrcp.pop %v7296
        %v7459 = vmul.f32 %v7296, %v7458
        %v7460 = vsub.f32 1.0, %v7459
        %v7461 = vmul.f32 %v7458, %v7460
        %v7462 = vadd.f32 %v7458, %v7461
        %vm7463 = vweird.f32 %v7296
        %vm7464 = vweird.f32 %v7458
        %vm7465 = vmor %vm7463, %vm7464
        %v7466 = vsel %vm7465, %v7458, %v7462
        %v7467 = vand.u32 2147483647, %v7296
        %vm7468 = vcmp.eq.f32.partialorder %v7467, 8.507059e+37
        %v7469 = vand.u32 %v7296, 2147483648
        %v7470 = vor.u32 1.1754944e-38, %v7469
        %v7471 = vsel %vm7468, %v7470, %v7466
        %v7472 = vmul.f32 1.0, %v7471
        %v7473 = vrcp.pop %v7297
        %v7474 = vmul.f32 %v7297, %v7473
        %v7475 = vsub.f32 1.0, %v7474
        %v7476 = vmul.f32 %v7473, %v7475
        %v7477 = vadd.f32 %v7473, %v7476
        %vm7478 = vweird.f32 %v7297
        %vm7479 = vweird.f32 %v7473
        %vm7480 = vmor %vm7478, %vm7479
        %v7481 = vsel %vm7480, %v7473, %v7477
        %v7482 = vand.u32 2147483647, %v7297
        %vm7483 = vcmp.eq.f32.partialorder %v7482, 8.507059e+37
        %v7484 = vand.u32 %v7297, 2147483648
        %v7485 = vor.u32 1.1754944e-38, %v7484
        %v7486 = vsel %vm7483, %v7485, %v7481
        %v7487 = vmul.f32 1.0, %v7486
        %v7488 = vrcp.pop %v7298
        %v7489 = vmul.f32 %v7298, %v7488
        %v7490 = vsub.f32 1.0, %v7489
        %v7491 = vmul.f32 %v7488, %v7490
        %v7492 = vadd.f32 %v7488, %v7491
        %vm7493 = vweird.f32 %v7298
        %vm7494 = vweird.f32 %v7488
        %vm7495 = vmor %vm7493, %vm7494
        %v7496 = vsel %vm7495, %v7488, %v7492
        %v7497 = vand.u32 2147483647, %v7298
        %vm7498 = vcmp.eq.f32.partialorder %v7497, 8.507059e+37
        %v7499 = vand.u32 %v7298, 2147483648
        %v7500 = vor.u32 1.1754944e-38, %v7499
        %v7501 = vsel %vm7498, %v7500, %v7496
        %v7502 = vmul.f32 1.0, %v7501
        %v7503 = vrcp.pop %v7299
        %v7504 = vmul.f32 %v7299, %v7503
        %v7505 = vsub.f32 1.0, %v7504
        %v7506 = vmul.f32 %v7503, %v7505
        %v7507 = vadd.f32 %v7503, %v7506
        %vm7508 = vweird.f32 %v7299
        %vm7509 = vweird.f32 %v7503
        %vm7510 = vmor %vm7508, %vm7509
        %v7511 = vsel %vm7510, %v7503, %v7507
        %v7512 = vand.u32 2147483647, %v7299
        %vm7513 = vcmp.eq.f32.partialorder %v7512, 8.507059e+37
        %v7514 = vand.u32 %v7299, 2147483648
        %v7515 = vor.u32 1.1754944e-38, %v7514
        %v7516 = vsel %vm7513, %v7515, %v7511
        %v7517 = vmul.f32 1.0, %v7516
        %v7518 = vrcp.pop %v7300
        %v7519 = vmul.f32 %v7300, %v7518
        %v7520 = vsub.f32 1.0, %v7519
        %v7521 = vmul.f32 %v7518, %v7520
        %v7522 = vadd.f32 %v7518, %v7521
        %vm7523 = vweird.f32 %v7300
        %vm7524 = vweird.f32 %v7518
        %vm7525 = vmor %vm7523, %vm7524
        %v7526 = vsel %vm7525, %v7518, %v7522
        %v7527 = vand.u32 2147483647, %v7300
        %vm7528 = vcmp.eq.f32.partialorder %v7527, 8.507059e+37
        %v7529 = vand.u32 %v7300, 2147483648
        %v7530 = vor.u32 1.1754944e-38, %v7529
        %v7531 = vsel %vm7528, %v7530, %v7526
        %v7532 = vmul.f32 1.0, %v7531
        %v7533 = vrcp.pop %v7301
        %v7534 = vmul.f32 %v7301, %v7533
        %v7535 = vsub.f32 1.0, %v7534
        %v7536 = vmul.f32 %v7533, %v7535
        %v7537 = vadd.f32 %v7533, %v7536
        %vm7538 = vweird.f32 %v7301
        %vm7539 = vweird.f32 %v7533
        %vm7540 = vmor %vm7538, %vm7539
        %v7541 = vsel %vm7540, %v7533, %v7537
        %v7542 = vand.u32 2147483647, %v7301
        %vm7543 = vcmp.eq.f32.partialorder %v7542, 8.507059e+37
        %v7544 = vand.u32 %v7301, 2147483648
        %v7545 = vor.u32 1.1754944e-38, %v7544
        %v7546 = vsel %vm7543, %v7545, %v7541
        %v7547 = vmul.f32 1.0, %v7546
        %v7548 = vrcp.pop %v7302
        %v7549 = vmul.f32 %v7302, %v7548
        %v7550 = vsub.f32 1.0, %v7549
        %v7551 = vmul.f32 %v7548, %v7550
        %v7552 = vadd.f32 %v7548, %v7551
        %vm7553 = vweird.f32 %v7302
        %vm7554 = vweird.f32 %v7548
        %vm7555 = vmor %vm7553, %vm7554
        %v7556 = vsel %vm7555, %v7548, %v7552
        %v7557 = vand.u32 2147483647, %v7302
        %vm7558 = vcmp.eq.f32.partialorder %v7557, 8.507059e+37
        %v7559 = vand.u32 %v7302, 2147483648
        %v7560 = vor.u32 1.1754944e-38, %v7559
        %v7561 = vsel %vm7558, %v7560, %v7556
        %v7562 = vmul.f32 1.0, %v7561
        %v7563 = vrcp.pop %v7303
        %v7564 = vmul.f32 %v7303, %v7563
        %v7565 = vsub.f32 1.0, %v7564
        %v7566 = vmul.f32 %v7563, %v7565
        %v7567 = vadd.f32 %v7563, %v7566
        %vm7568 = vweird.f32 %v7303
        %vm7569 = vweird.f32 %v7563
        %vm7570 = vmor %vm7568, %vm7569
        %v7571 = vsel %vm7570, %v7563, %v7567
        %v7572 = vand.u32 2147483647, %v7303
        %vm7573 = vcmp.eq.f32.partialorder %v7572, 8.507059e+37
        %v7574 = vand.u32 %v7303, 2147483648
        %v7575 = vor.u32 1.1754944e-38, %v7574
        %v7576 = vsel %vm7573, %v7575, %v7571
        %v7577 = vmul.f32 1.0, %v7576
        %v7578 = vrcp.pop %v7304
        %v7579 = vmul.f32 %v7304, %v7578
        %v7580 = vsub.f32 1.0, %v7579
        %v7581 = vmul.f32 %v7578, %v7580
        %v7582 = vadd.f32 %v7578, %v7581
        %vm7583 = vweird.f32 %v7304
        %vm7584 = vweird.f32 %v7578
        %vm7585 = vmor %vm7583, %vm7584
        %v7586 = vsel %vm7585, %v7578, %v7582
        %v7587 = vand.u32 2147483647, %v7304
        %vm7588 = vcmp.eq.f32.partialorder %v7587, 8.507059e+37
        %v7589 = vand.u32 %v7304, 2147483648
        %v7590 = vor.u32 1.1754944e-38, %v7589
        %v7591 = vsel %vm7588, %v7590, %v7586
        %v7592 = vmul.f32 1.0, %v7591
        %v7593 = vrcp.pop %v7305
        %v7594 = vmul.f32 %v7305, %v7593
        %v7595 = vsub.f32 1.0, %v7594
        %v7596 = vmul.f32 %v7593, %v7595
        %v7597 = vadd.f32 %v7593, %v7596
        %vm7598 = vweird.f32 %v7305
        %vm7599 = vweird.f32 %v7593
        %vm7600 = vmor %vm7598, %vm7599
        %v7601 = vsel %vm7600, %v7593, %v7597
        %v7602 = vand.u32 2147483647, %v7305
        %vm7603 = vcmp.eq.f32.partialorder %v7602, 8.507059e+37
        %v7604 = vand.u32 %v7305, 2147483648
        %v7605 = vor.u32 1.1754944e-38, %v7604
        %v7606 = vsel %vm7603, %v7605, %v7601
        %v7607 = vmul.f32 1.0, %v7606
        %v7608 = vrcp.pop %v7306
        %v7609 = vmul.f32 %v7306, %v7608
        %v7610 = vsub.f32 1.0, %v7609
        %v7611 = vmul.f32 %v7608, %v7610
        %v7612 = vadd.f32 %v7608, %v7611
        %vm7613 = vweird.f32 %v7306
        %vm7614 = vweird.f32 %v7608
        %vm7615 = vmor %vm7613, %vm7614
        %v7616 = vsel %vm7615, %v7608, %v7612
        %v7617 = vand.u32 2147483647, %v7306
        %vm7618 = vcmp.eq.f32.partialorder %v7617, 8.507059e+37
        %v7619 = vand.u32 %v7306, 2147483648
        %v7620 = vor.u32 1.1754944e-38, %v7619
        %v7621 = vsel %vm7618, %v7620, %v7616
        %v7622 = vmul.f32 1.0, %v7621
        %v7623 = vrcp.pop %v7307
        %v7624 = vmul.f32 %v7307, %v7623
        %v7625 = vsub.f32 1.0, %v7624
        %v7626 = vmul.f32 %v7623, %v7625
        %v7627 = vadd.f32 %v7623, %v7626
        %vm7628 = vweird.f32 %v7307
        %vm7629 = vweird.f32 %v7623
        %vm7630 = vmor %vm7628, %vm7629
        %v7631 = vsel %vm7630, %v7623, %v7627
        %v7632 = vand.u32 2147483647, %v7307
        %vm7633 = vcmp.eq.f32.partialorder %v7632, 8.507059e+37
        %v7634 = vand.u32 %v7307, 2147483648
        %v7635 = vor.u32 1.1754944e-38, %v7634
        %v7636 = vsel %vm7633, %v7635, %v7631
        %v7637 = vmul.f32 1.0, %v7636
        %v7638 = vrcp.pop %v7308
        %v7639 = vmul.f32 %v7308, %v7638
        %v7640 = vsub.f32 1.0, %v7639
        %v7641 = vmul.f32 %v7638, %v7640
        %v7642 = vadd.f32 %v7638, %v7641
        %vm7643 = vweird.f32 %v7308
        %vm7644 = vweird.f32 %v7638
        %vm7645 = vmor %vm7643, %vm7644
        %v7646 = vsel %vm7645, %v7638, %v7642
        %v7647 = vand.u32 2147483647, %v7308
        %vm7648 = vcmp.eq.f32.partialorder %v7647, 8.507059e+37
        %v7649 = vand.u32 %v7308, 2147483648
        %v7650 = vor.u32 1.1754944e-38, %v7649
        %v7651 = vsel %vm7648, %v7650, %v7646
        %v7652 = vmul.f32 1.0, %v7651
        %v7653 = vrcp.pop %v7309
        %v7654 = vmul.f32 %v7309, %v7653
        %v7655 = vsub.f32 1.0, %v7654
        %v7656 = vmul.f32 %v7653, %v7655
        %v7657 = vadd.f32 %v7653, %v7656
        %vm7658 = vweird.f32 %v7309
        %vm7659 = vweird.f32 %v7653
        %vm7660 = vmor %vm7658, %vm7659
        %v7661 = vsel %vm7660, %v7653, %v7657
        %v7662 = vand.u32 2147483647, %v7309
        %vm7663 = vcmp.eq.f32.partialorder %v7662, 8.507059e+37
        %v7664 = vand.u32 %v7309, 2147483648
        %v7665 = vor.u32 1.1754944e-38, %v7664
        %v7666 = vsel %vm7663, %v7665, %v7661
        %v7667 = vmul.f32 1.0, %v7666
        %v7668 = vrcp.pop %v7310
        %v7669 = vmul.f32 %v7310, %v7668
        %v7670 = vsub.f32 1.0, %v7669
        %v7671 = vmul.f32 %v7668, %v7670
        %v7672 = vadd.f32 %v7668, %v7671
        %vm7673 = vweird.f32 %v7310
        %vm7674 = vweird.f32 %v7668
        %vm7675 = vmor %vm7673, %vm7674
        %v7676 = vsel %vm7675, %v7668, %v7672
        %v7677 = vand.u32 2147483647, %v7310
        %vm7678 = vcmp.eq.f32.partialorder %v7677, 8.507059e+37
        %v7679 = vand.u32 %v7310, 2147483648
        %v7680 = vor.u32 1.1754944e-38, %v7679
        %v7681 = vsel %vm7678, %v7680, %v7676
        %v7682 = vmul.f32 1.0, %v7681
        %v7683 = vrcp.pop %v7311
        %v7684 = vmul.f32 %v7311, %v7683
        %v7685 = vsub.f32 1.0, %v7684
        %v7686 = vmul.f32 %v7683, %v7685
        %v7687 = vadd.f32 %v7683, %v7686
        %vm7688 = vweird.f32 %v7311
        %vm7689 = vweird.f32 %v7683
        %vm7690 = vmor %vm7688, %vm7689
        %v7691 = vsel %vm7690, %v7683, %v7687
        %v7692 = vand.u32 2147483647, %v7311
        %vm7693 = vcmp.eq.f32.partialorder %v7692, 8.507059e+37
        %v7694 = vand.u32 %v7311, 2147483648
        %v7695 = vor.u32 1.1754944e-38, %v7694
        %v7696 = vsel %vm7693, %v7695, %v7691
        %v7697 = vmul.f32 1.0, %v7696
        %v7698 = vrcp.pop %v7312
        %v7699 = vmul.f32 %v7312, %v7698
        %v7700 = vsub.f32 1.0, %v7699
        %v7701 = vmul.f32 %v7698, %v7700
        %v7702 = vadd.f32 %v7698, %v7701
        %vm7703 = vweird.f32 %v7312
        %vm7704 = vweird.f32 %v7698
        %vm7705 = vmor %vm7703, %vm7704
        %v7706 = vsel %vm7705, %v7698, %v7702
        %v7707 = vand.u32 2147483647, %v7312
        %vm7708 = vcmp.eq.f32.partialorder %v7707, 8.507059e+37
        %v7709 = vand.u32 %v7312, 2147483648
        %v7710 = vor.u32 1.1754944e-38, %v7709
        %v7711 = vsel %vm7708, %v7710, %v7706
        %v7712 = vmul.f32 1.0, %v7711
        %v7713 = vrcp.pop %v7313
        %v7714 = vmul.f32 %v7313, %v7713
        %v7715 = vsub.f32 1.0, %v7714
        %v7716 = vmul.f32 %v7713, %v7715
        %v7717 = vadd.f32 %v7713, %v7716
        %vm7718 = vweird.f32 %v7313
        %vm7719 = vweird.f32 %v7713
        %vm7720 = vmor %vm7718, %vm7719
        %v7721 = vsel %vm7720, %v7713, %v7717
        %v7722 = vand.u32 2147483647, %v7313
        %vm7723 = vcmp.eq.f32.partialorder %v7722, 8.507059e+37
        %v7724 = vand.u32 %v7313, 2147483648
        %v7725 = vor.u32 1.1754944e-38, %v7724
        %v7726 = vsel %vm7723, %v7725, %v7721
        %v7727 = vmul.f32 1.0, %v7726
        %v7728 = vrcp.pop %v7314
        %v7729 = vmul.f32 %v7314, %v7728
        %v7730 = vsub.f32 1.0, %v7729
        %v7731 = vmul.f32 %v7728, %v7730
        %v7732 = vadd.f32 %v7728, %v7731
        %vm7733 = vweird.f32 %v7314
        %vm7734 = vweird.f32 %v7728
        %vm7735 = vmor %vm7733, %vm7734
        %v7736 = vsel %vm7735, %v7728, %v7732
        %v7737 = vand.u32 2147483647, %v7314
        %vm7738 = vcmp.eq.f32.partialorder %v7737, 8.507059e+37
        %v7739 = vand.u32 %v7314, 2147483648
        %v7740 = vor.u32 1.1754944e-38, %v7739
        %v7741 = vsel %vm7738, %v7740, %v7736
        %v7742 = vmul.f32 1.0, %v7741
        %v7743 = vrcp.pop %v7315
        %v7744 = vmul.f32 %v7315, %v7743
        %v7745 = vsub.f32 1.0, %v7744
        %v7746 = vmul.f32 %v7743, %v7745
        %v7747 = vadd.f32 %v7743, %v7746
        %vm7748 = vweird.f32 %v7315
        %vm7749 = vweird.f32 %v7743
        %vm7750 = vmor %vm7748, %vm7749
        %v7751 = vsel %vm7750, %v7743, %v7747
        %v7752 = vand.u32 2147483647, %v7315
        %vm7753 = vcmp.eq.f32.partialorder %v7752, 8.507059e+37
        %v7754 = vand.u32 %v7315, 2147483648
        %v7755 = vor.u32 1.1754944e-38, %v7754
        %v7756 = vsel %vm7753, %v7755, %v7751
        %v7757 = vmul.f32 1.0, %v7756
        %v7758 = vrcp.pop %v7316
        %v7759 = vmul.f32 %v7316, %v7758
        %v7760 = vsub.f32 1.0, %v7759
        %v7761 = vmul.f32 %v7758, %v7760
        %v7762 = vadd.f32 %v7758, %v7761
        %vm7763 = vweird.f32 %v7316
        %vm7764 = vweird.f32 %v7758
        %vm7765 = vmor %vm7763, %vm7764
        %v7766 = vsel %vm7765, %v7758, %v7762
        %v7767 = vand.u32 2147483647, %v7316
        %vm7768 = vcmp.eq.f32.partialorder %v7767, 8.507059e+37
        %v7769 = vand.u32 %v7316, 2147483648
        %v7770 = vor.u32 1.1754944e-38, %v7769
        %v7771 = vsel %vm7768, %v7770, %v7766
        %v7772 = vmul.f32 1.0, %v7771
        %v7773 = vrcp.pop %v7317
        %v7774 = vmul.f32 %v7317, %v7773
        %v7775 = vsub.f32 1.0, %v7774
        %v7776 = vmul.f32 %v7773, %v7775
        %v7777 = vadd.f32 %v7773, %v7776
        %vm7778 = vweird.f32 %v7317
        %vm7779 = vweird.f32 %v7773
        %vm7780 = vmor %vm7778, %vm7779
        %v7781 = vsel %vm7780, %v7773, %v7777
        %v7782 = vand.u32 2147483647, %v7317
        %vm7783 = vcmp.eq.f32.partialorder %v7782, 8.507059e+37
        %v7784 = vand.u32 %v7317, 2147483648
        %v7785 = vor.u32 1.1754944e-38, %v7784
        %v7786 = vsel %vm7783, %v7785, %v7781
        %v7787 = vmul.f32 1.0, %v7786
        %v7788 = vrcp.pop %v7318
        %v7789 = vmul.f32 %v7318, %v7788
        %v7790 = vsub.f32 1.0, %v7789
        %v7791 = vmul.f32 %v7788, %v7790
        %v7792 = vadd.f32 %v7788, %v7791
        %vm7793 = vweird.f32 %v7318
        %vm7794 = vweird.f32 %v7788
        %vm7795 = vmor %vm7793, %vm7794
        %v7796 = vsel %vm7795, %v7788, %v7792
        %v7797 = vand.u32 2147483647, %v7318
        %vm7798 = vcmp.eq.f32.partialorder %v7797, 8.507059e+37
        %v7799 = vand.u32 %v7318, 2147483648
        %v7800 = vor.u32 1.1754944e-38, %v7799
        %v7801 = vsel %vm7798, %v7800, %v7796
        %v7802 = vmul.f32 1.0, %v7801
        %v7803 = vrcp.pop %v7319
        %v7804 = vmul.f32 %v7319, %v7803
        %v7805 = vsub.f32 1.0, %v7804
        %v7806 = vmul.f32 %v7803, %v7805
        %v7807 = vadd.f32 %v7803, %v7806
        %vm7808 = vweird.f32 %v7319
        %vm7809 = vweird.f32 %v7803
        %vm7810 = vmor %vm7808, %vm7809
        %v7811 = vsel %vm7810, %v7803, %v7807
        %v7812 = vand.u32 2147483647, %v7319
        %vm7813 = vcmp.eq.f32.partialorder %v7812, 8.507059e+37
        %v7814 = vand.u32 %v7319, 2147483648
        %v7815 = vor.u32 1.1754944e-38, %v7814
        %v7816 = vsel %vm7813, %v7815, %v7811
        %v7817 = vmul.f32 1.0, %v7816
        %v7818 = vrcp.pop %v7320
        %v7819 = vmul.f32 %v7320, %v7818
        %v7820 = vsub.f32 1.0, %v7819
        %v7821 = vmul.f32 %v7818, %v7820
        %v7822 = vadd.f32 %v7818, %v7821
        %vm7823 = vweird.f32 %v7320
        %vm7824 = vweird.f32 %v7818
        %vm7825 = vmor %vm7823, %vm7824
        %v7826 = vsel %vm7825, %v7818, %v7822
        %v7827 = vand.u32 2147483647, %v7320
        %vm7828 = vcmp.eq.f32.partialorder %v7827, 8.507059e+37
        %v7829 = vand.u32 %v7320, 2147483648
        %v7830 = vor.u32 1.1754944e-38, %v7829
        %v7831 = vsel %vm7828, %v7830, %v7826
        %v7832 = vmul.f32 1.0, %v7831
        %v7833 = vrcp.pop %v7321
        %v7834 = vmul.f32 %v7321, %v7833
        %v7835 = vsub.f32 1.0, %v7834
        %v7836 = vmul.f32 %v7833, %v7835
        %v7837 = vadd.f32 %v7833, %v7836
        %vm7838 = vweird.f32 %v7321
        %vm7839 = vweird.f32 %v7833
        %vm7840 = vmor %vm7838, %vm7839
        %v7841 = vsel %vm7840, %v7833, %v7837
        %v7842 = vand.u32 2147483647, %v7321
        %vm7843 = vcmp.eq.f32.partialorder %v7842, 8.507059e+37
        %v7844 = vand.u32 %v7321, 2147483648
        %v7845 = vor.u32 1.1754944e-38, %v7844
        %v7846 = vsel %vm7843, %v7845, %v7841
        %v7847 = vmul.f32 1.0, %v7846
        %v7848 = vrcp.pop %v7322
        %v7849 = vmul.f32 %v7322, %v7848
        %v7850 = vsub.f32 1.0, %v7849
        %v7851 = vmul.f32 %v7848, %v7850
        %v7852 = vadd.f32 %v7848, %v7851
        %vm7853 = vweird.f32 %v7322
        %vm7854 = vweird.f32 %v7848
        %vm7855 = vmor %vm7853, %vm7854
        %v7856 = vsel %vm7855, %v7848, %v7852
        %v7857 = vand.u32 2147483647, %v7322
        %vm7858 = vcmp.eq.f32.partialorder %v7857, 8.507059e+37
        %v7859 = vand.u32 %v7322, 2147483648
        %v7860 = vor.u32 1.1754944e-38, %v7859
        %v7861 = vsel %vm7858, %v7860, %v7856
        %v7862 = vmul.f32 1.0, %v7861
        %v7863 = vrcp.pop %v7323
        %v7864 = vmul.f32 %v7323, %v7863
        %v7865 = vsub.f32 1.0, %v7864
        %v7866 = vmul.f32 %v7863, %v7865
        %v7867 = vadd.f32 %v7863, %v7866
        %vm7868 = vweird.f32 %v7323
        %vm7869 = vweird.f32 %v7863
        %vm7870 = vmor %vm7868, %vm7869
        %v7871 = vsel %vm7870, %v7863, %v7867
        %v7872 = vand.u32 2147483647, %v7323
        %vm7873 = vcmp.eq.f32.partialorder %v7872, 8.507059e+37
        %v7874 = vand.u32 %v7323, 2147483648
        %v7875 = vor.u32 1.1754944e-38, %v7874
        %v7876 = vsel %vm7873, %v7875, %v7871
        %v7877 = vmul.f32 1.0, %v7876
        %v7878 = vrcp.pop %v7324
        %v7879 = vmul.f32 %v7324, %v7878
        %v7880 = vsub.f32 1.0, %v7879
        %v7881 = vmul.f32 %v7878, %v7880
        %v7882 = vadd.f32 %v7878, %v7881
        %vm7883 = vweird.f32 %v7324
        %vm7884 = vweird.f32 %v7878
        %vm7885 = vmor %vm7883, %vm7884
        %v7886 = vsel %vm7885, %v7878, %v7882
        %v7887 = vand.u32 2147483647, %v7324
        %vm7888 = vcmp.eq.f32.partialorder %v7887, 8.507059e+37
        %v7889 = vand.u32 %v7324, 2147483648
        %v7890 = vor.u32 1.1754944e-38, %v7889
        %v7891 = vsel %vm7888, %v7890, %v7886
        %v7892 = vmul.f32 1.0, %v7891
        %v7893 = vrcp.pop %v7325
        %v7894 = vmul.f32 %v7325, %v7893
        %v7895 = vsub.f32 1.0, %v7894
        %v7896 = vmul.f32 %v7893, %v7895
        %v7897 = vadd.f32 %v7893, %v7896
        %vm7898 = vweird.f32 %v7325
        %vm7899 = vweird.f32 %v7893
        %vm7900 = vmor %vm7898, %vm7899
        %v7901 = vsel %vm7900, %v7893, %v7897
        %v7902 = vand.u32 2147483647, %v7325
        %vm7903 = vcmp.eq.f32.partialorder %v7902, 8.507059e+37
        %v7904 = vand.u32 %v7325, 2147483648
        %v7905 = vor.u32 1.1754944e-38, %v7904
        %v7906 = vsel %vm7903, %v7905, %v7901
        %v7907 = vmul.f32 1.0, %v7906
        %v7908 = vrcp.pop %v7326
        %v7909 = vmul.f32 %v7326, %v7908
        %v7910 = vsub.f32 1.0, %v7909
        %v7911 = vmul.f32 %v7908, %v7910
        %v7912 = vadd.f32 %v7908, %v7911
        %vm7913 = vweird.f32 %v7326
        %vm7914 = vweird.f32 %v7908
        %vm7915 = vmor %vm7913, %vm7914
        %v7916 = vsel %vm7915, %v7908, %v7912
        %v7917 = vand.u32 2147483647, %v7326
        %vm7918 = vcmp.eq.f32.partialorder %v7917, 8.507059e+37
        %v7919 = vand.u32 %v7326, 2147483648
        %v7920 = vor.u32 1.1754944e-38, %v7919
        %v7921 = vsel %vm7918, %v7920, %v7916
        %v7922 = vmul.f32 1.0, %v7921
        %v7923 = vrcp.pop %v7327
        %v7924 = vmul.f32 %v7327, %v7923
        %v7925 = vsub.f32 1.0, %v7924
        %v7926 = vmul.f32 %v7923, %v7925
        %v7927 = vadd.f32 %v7923, %v7926
        %vm7928 = vweird.f32 %v7327
        %vm7929 = vweird.f32 %v7923
        %vm7930 = vmor %vm7928, %vm7929
        %v7931 = vsel %vm7930, %v7923, %v7927
        %v7932 = vand.u32 2147483647, %v7327
        %vm7933 = vcmp.eq.f32.partialorder %v7932, 8.507059e+37
        %v7934 = vand.u32 %v7327, 2147483648
        %v7935 = vor.u32 1.1754944e-38, %v7934
        %v7936 = vsel %vm7933, %v7935, %v7931
        %v7937 = vmul.f32 1.0, %v7936
        %v7938 = vrcp.pop %v7328
        %v7939 = vmul.f32 %v7328, %v7938
        %v7940 = vsub.f32 1.0, %v7939
        %v7941 = vmul.f32 %v7938, %v7940
        %v7942 = vadd.f32 %v7938, %v7941
        %vm7943 = vweird.f32 %v7328
        %vm7944 = vweird.f32 %v7938
        %vm7945 = vmor %vm7943, %vm7944
        %v7946 = vsel %vm7945, %v7938, %v7942
        %v7947 = vand.u32 2147483647, %v7328
        %vm7948 = vcmp.eq.f32.partialorder %v7947, 8.507059e+37
        %v7949 = vand.u32 %v7328, 2147483648
        %v7950 = vor.u32 1.1754944e-38, %v7949
        %v7951 = vsel %vm7948, %v7950, %v7946
        %v7952 = vmul.f32 1.0, %v7951
        %v7953 = vrcp.pop %v7329
        %v7954 = vmul.f32 %v7329, %v7953
        %v7955 = vsub.f32 1.0, %v7954
        %v7956 = vmul.f32 %v7953, %v7955
        %v7957 = vadd.f32 %v7953, %v7956
        %vm7958 = vweird.f32 %v7329
        %vm7959 = vweird.f32 %v7953
        %vm7960 = vmor %vm7958, %vm7959
        %v7961 = vsel %vm7960, %v7953, %v7957
        %v7962 = vand.u32 2147483647, %v7329
        %vm7963 = vcmp.eq.f32.partialorder %v7962, 8.507059e+37
        %v7964 = vand.u32 %v7329, 2147483648
        %v7965 = vor.u32 1.1754944e-38, %v7964
        %v7966 = vsel %vm7963, %v7965, %v7961
        %v7967 = vmul.f32 1.0, %v7966
        %v7968 = vrcp.pop %v7330
        %v7969 = vmul.f32 %v7330, %v7968
        %v7970 = vsub.f32 1.0, %v7969
        %v7971 = vmul.f32 %v7968, %v7970
        %v7972 = vadd.f32 %v7968, %v7971
        %vm7973 = vweird.f32 %v7330
        %vm7974 = vweird.f32 %v7968
        %vm7975 = vmor %vm7973, %vm7974
        %v7976 = vsel %vm7975, %v7968, %v7972
        %v7977 = vand.u32 2147483647, %v7330
        %vm7978 = vcmp.eq.f32.partialorder %v7977, 8.507059e+37
        %v7979 = vand.u32 %v7330, 2147483648
        %v7980 = vor.u32 1.1754944e-38, %v7979
        %v7981 = vsel %vm7978, %v7980, %v7976
        %v7982 = vmul.f32 1.0, %v7981
        %v7983 = vrcp.pop %v7331
        %v7984 = vmul.f32 %v7331, %v7983
        %v7985 = vsub.f32 1.0, %v7984
        %v7986 = vmul.f32 %v7983, %v7985
        %v7987 = vadd.f32 %v7983, %v7986
        %vm7988 = vweird.f32 %v7331
        %vm7989 = vweird.f32 %v7983
        %vm7990 = vmor %vm7988, %vm7989
        %v7991 = vsel %vm7990, %v7983, %v7987
        %v7992 = vand.u32 2147483647, %v7331
        %vm7993 = vcmp.eq.f32.partialorder %v7992, 8.507059e+37
        %v7994 = vand.u32 %v7331, 2147483648
        %v7995 = vor.u32 1.1754944e-38, %v7994
        %v7996 = vsel %vm7993, %v7995, %v7991
        %v7997 = vmul.f32 1.0, %v7996
        %v7998 = vrcp.pop %v7332
        %v7999 = vmul.f32 %v7332, %v7998
        %v8000 = vsub.f32 1.0, %v7999
        %v8001 = vmul.f32 %v7998, %v8000
        %v8002 = vadd.f32 %v7998, %v8001
        %vm8003 = vweird.f32 %v7332
        %vm8004 = vweird.f32 %v7998
        %vm8005 = vmor %vm8003, %vm8004
        %v8006 = vsel %vm8005, %v7998, %v8002
        %v8007 = vand.u32 2147483647, %v7332
        %vm8008 = vcmp.eq.f32.partialorder %v8007, 8.507059e+37
        %v8009 = vand.u32 %v7332, 2147483648
        %v8010 = vor.u32 1.1754944e-38, %v8009
        %v8011 = vsel %vm8008, %v8010, %v8006
        %v8012 = vmul.f32 1.0, %v8011
        %v8013 = vrcp.pop %v7333
        %v8014 = vmul.f32 %v7333, %v8013
        %v8015 = vsub.f32 1.0, %v8014
        %v8016 = vmul.f32 %v8013, %v8015
        %v8017 = vadd.f32 %v8013, %v8016
        %vm8018 = vweird.f32 %v7333
        %vm8019 = vweird.f32 %v8013
        %vm8020 = vmor %vm8018, %vm8019
        %v8021 = vsel %vm8020, %v8013, %v8017
        %v8022 = vand.u32 2147483647, %v7333
        %vm8023 = vcmp.eq.f32.partialorder %v8022, 8.507059e+37
        %v8024 = vand.u32 %v7333, 2147483648
        %v8025 = vor.u32 1.1754944e-38, %v8024
        %v8026 = vsel %vm8023, %v8025, %v8021
        %v8027 = vmul.f32 1.0, %v8026
        %v8028 = vrcp.pop %v7334
        %v8029 = vmul.f32 %v7334, %v8028
        %v8030 = vsub.f32 1.0, %v8029
        %v8031 = vmul.f32 %v8028, %v8030
        %v8032 = vadd.f32 %v8028, %v8031
        %vm8033 = vweird.f32 %v7334
        %vm8034 = vweird.f32 %v8028
        %vm8035 = vmor %vm8033, %vm8034
        %v8036 = vsel %vm8035, %v8028, %v8032
        %v8037 = vand.u32 2147483647, %v7334
        %vm8038 = vcmp.eq.f32.partialorder %v8037, 8.507059e+37
        %v8039 = vand.u32 %v7334, 2147483648
        %v8040 = vor.u32 1.1754944e-38, %v8039
        %v8041 = vsel %vm8038, %v8040, %v8036
        %v8042 = vmul.f32 1.0, %v8041
        %v8043 = vrcp.pop %v7335
        %v8044 = vmul.f32 %v7335, %v8043
        %v8045 = vsub.f32 1.0, %v8044
        %v8046 = vmul.f32 %v8043, %v8045
        %v8047 = vadd.f32 %v8043, %v8046
        %vm8048 = vweird.f32 %v7335
        %vm8049 = vweird.f32 %v8043
        %vm8050 = vmor %vm8048, %vm8049
        %v8051 = vsel %vm8050, %v8043, %v8047
        %v8052 = vand.u32 2147483647, %v7335
        %vm8053 = vcmp.eq.f32.partialorder %v8052, 8.507059e+37
        %v8054 = vand.u32 %v7335, 2147483648
        %v8055 = vor.u32 1.1754944e-38, %v8054
        %v8056 = vsel %vm8053, %v8055, %v8051
        %v8057 = vmul.f32 1.0, %v8056
        %v8058 = vrcp.pop %v7336
        %v8059 = vmul.f32 %v7336, %v8058
        %v8060 = vsub.f32 1.0, %v8059
        %v8061 = vmul.f32 %v8058, %v8060
        %v8062 = vadd.f32 %v8058, %v8061
        %vm8063 = vweird.f32 %v7336
        %vm8064 = vweird.f32 %v8058
        %vm8065 = vmor %vm8063, %vm8064
        %v8066 = vsel %vm8065, %v8058, %v8062
        %v8067 = vand.u32 2147483647, %v7336
        %vm8068 = vcmp.eq.f32.partialorder %v8067, 8.507059e+37
        %v8069 = vand.u32 %v7336, 2147483648
        %v8070 = vor.u32 1.1754944e-38, %v8069
        %v8071 = vsel %vm8068, %v8070, %v8066
        %v8072 = vmul.f32 1.0, %v8071
        %v8073 = vrcp.pop %v7337
        %v8074 = vmul.f32 %v7337, %v8073
        %v8075 = vsub.f32 1.0, %v8074
        %v8076 = vmul.f32 %v8073, %v8075
        %v8077 = vadd.f32 %v8073, %v8076
        %vm8078 = vweird.f32 %v7337
        %vm8079 = vweird.f32 %v8073
        %vm8080 = vmor %vm8078, %vm8079
        %v8081 = vsel %vm8080, %v8073, %v8077
        %v8082 = vand.u32 2147483647, %v7337
        %vm8083 = vcmp.eq.f32.partialorder %v8082, 8.507059e+37
        %v8084 = vand.u32 %v7337, 2147483648
        %v8085 = vor.u32 1.1754944e-38, %v8084
        %v8086 = vsel %vm8083, %v8085, %v8081
        %v8087 = vmul.f32 1.0, %v8086
        %v8088 = vrcp.pop %v7338
        %v8089 = vmul.f32 %v7338, %v8088
        %v8090 = vsub.f32 1.0, %v8089
        %v8091 = vmul.f32 %v8088, %v8090
        %v8092 = vadd.f32 %v8088, %v8091
        %vm8093 = vweird.f32 %v7338
        %vm8094 = vweird.f32 %v8088
        %vm8095 = vmor %vm8093, %vm8094
        %v8096 = vsel %vm8095, %v8088, %v8092
        %v8097 = vand.u32 2147483647, %v7338
        %vm8098 = vcmp.eq.f32.partialorder %v8097, 8.507059e+37
        %v8099 = vand.u32 %v7338, 2147483648
        %v8100 = vor.u32 1.1754944e-38, %v8099
        %v8101 = vsel %vm8098, %v8100, %v8096
        %v8102 = vmul.f32 1.0, %v8101
        %v8103 = vrcp.pop %v7339
        %v8104 = vmul.f32 %v7339, %v8103
        %v8105 = vsub.f32 1.0, %v8104
        %v8106 = vmul.f32 %v8103, %v8105
        %v8107 = vadd.f32 %v8103, %v8106
        %vm8108 = vweird.f32 %v7339
        %vm8109 = vweird.f32 %v8103
        %vm8110 = vmor %vm8108, %vm8109
        %v8111 = vsel %vm8110, %v8103, %v8107
        %v8112 = vand.u32 2147483647, %v7339
        %vm8113 = vcmp.eq.f32.partialorder %v8112, 8.507059e+37
        %v8114 = vand.u32 %v7339, 2147483648
        %v8115 = vor.u32 1.1754944e-38, %v8114
        %v8116 = vsel %vm8113, %v8115, %v8111
        %v8117 = vmul.f32 1.0, %v8116
        %v8118 = vrcp.pop %v7340
        %v8119 = vmul.f32 %v7340, %v8118
        %v8120 = vsub.f32 1.0, %v8119
        %v8121 = vmul.f32 %v8118, %v8120
        %v8122 = vadd.f32 %v8118, %v8121
        %vm8123 = vweird.f32 %v7340
        %vm8124 = vweird.f32 %v8118
        %vm8125 = vmor %vm8123, %vm8124
        %v8126 = vsel %vm8125, %v8118, %v8122
        %v8127 = vand.u32 2147483647, %v7340
        %vm8128 = vcmp.eq.f32.partialorder %v8127, 8.507059e+37
        %v8129 = vand.u32 %v7340, 2147483648
        %v8130 = vor.u32 1.1754944e-38, %v8129
        %v8131 = vsel %vm8128, %v8130, %v8126
        %v8132 = vmul.f32 1.0, %v8131
        %v8133 = vrcp.pop %v7341
        %v8134 = vmul.f32 %v7341, %v8133
        %v8135 = vsub.f32 1.0, %v8134
        %v8136 = vmul.f32 %v8133, %v8135
        %v8137 = vadd.f32 %v8133, %v8136
        %vm8138 = vweird.f32 %v7341
        %vm8139 = vweird.f32 %v8133
        %vm8140 = vmor %vm8138, %vm8139
        %v8141 = vsel %vm8140, %v8133, %v8137
        %v8142 = vand.u32 2147483647, %v7341
        %vm8143 = vcmp.eq.f32.partialorder %v8142, 8.507059e+37
        %v8144 = vand.u32 %v7341, 2147483648
        %v8145 = vor.u32 1.1754944e-38, %v8144
        %v8146 = vsel %vm8143, %v8145, %v8141
        %v8147 = vmul.f32 1.0, %v8146
        %v8148 = vrcp.pop %v7342
        %v8149 = vmul.f32 %v7342, %v8148
        %v8150 = vsub.f32 1.0, %v8149
        %v8151 = vmul.f32 %v8148, %v8150
        %v8152 = vadd.f32 %v8148, %v8151
        %vm8153 = vweird.f32 %v7342
        %vm8154 = vweird.f32 %v8148
        %vm8155 = vmor %vm8153, %vm8154
        %v8156 = vsel %vm8155, %v8148, %v8152
        %v8157 = vand.u32 2147483647, %v7342
        %vm8158 = vcmp.eq.f32.partialorder %v8157, 8.507059e+37
        %v8159 = vand.u32 %v7342, 2147483648
        %v8160 = vor.u32 1.1754944e-38, %v8159
        %v8161 = vsel %vm8158, %v8160, %v8156
        %v8162 = vmul.f32 1.0, %v8161
        %v8163 = vrcp.pop %v7343
        %v8164 = vmul.f32 %v7343, %v8163
        %v8165 = vsub.f32 1.0, %v8164
        %v8166 = vmul.f32 %v8163, %v8165
        %v8167 = vadd.f32 %v8163, %v8166
        %vm8168 = vweird.f32 %v7343
        %vm8169 = vweird.f32 %v8163
        %vm8170 = vmor %vm8168, %vm8169
        %v8171 = vsel %vm8170, %v8163, %v8167
        %v8172 = vand.u32 2147483647, %v7343
        %vm8173 = vcmp.eq.f32.partialorder %v8172, 8.507059e+37
        %v8174 = vand.u32 %v7343, 2147483648
        %v8175 = vor.u32 1.1754944e-38, %v8174
        %v8176 = vsel %vm8173, %v8175, %v8171
        %v8177 = vmul.f32 1.0, %v8176
        %v8178 = vrcp.pop %v7344
        %v8179 = vmul.f32 %v7344, %v8178
        %v8180 = vsub.f32 1.0, %v8179
        %v8181 = vmul.f32 %v8178, %v8180
        %v8182 = vadd.f32 %v8178, %v8181
        %vm8183 = vweird.f32 %v7344
        %vm8184 = vweird.f32 %v8178
        %vm8185 = vmor %vm8183, %vm8184
        %v8186 = vsel %vm8185, %v8178, %v8182
        %v8187 = vand.u32 2147483647, %v7344
        %vm8188 = vcmp.eq.f32.partialorder %v8187, 8.507059e+37
        %v8189 = vand.u32 %v7344, 2147483648
        %v8190 = vor.u32 1.1754944e-38, %v8189
        %v8191 = vsel %vm8188, %v8190, %v8186
        %v8192 = vmul.f32 1.0, %v8191
        %v8193 = vrcp.pop %v7345
        %v8194 = vmul.f32 %v7345, %v8193
        %v8195 = vsub.f32 1.0, %v8194
        %v8196 = vmul.f32 %v8193, %v8195
        %v8197 = vadd.f32 %v8193, %v8196
        %vm8198 = vweird.f32 %v7345
        %vm8199 = vweird.f32 %v8193
        %vm8200 = vmor %vm8198, %vm8199
        %v8201 = vsel %vm8200, %v8193, %v8197
        %v8202 = vand.u32 2147483647, %v7345
        %vm8203 = vcmp.eq.f32.partialorder %v8202, 8.507059e+37
        %v8204 = vand.u32 %v7345, 2147483648
        %v8205 = vor.u32 1.1754944e-38, %v8204
        %v8206 = vsel %vm8203, %v8205, %v8201
        %v8207 = vmul.f32 1.0, %v8206
        %v8208 = vrcp.pop %v7346
        %v8209 = vmul.f32 %v7346, %v8208
        %v8210 = vsub.f32 1.0, %v8209
        %v8211 = vmul.f32 %v8208, %v8210
        %v8212 = vadd.f32 %v8208, %v8211
        %vm8213 = vweird.f32 %v7346
        %vm8214 = vweird.f32 %v8208
        %vm8215 = vmor %vm8213, %vm8214
        %v8216 = vsel %vm8215, %v8208, %v8212
        %v8217 = vand.u32 2147483647, %v7346
        %vm8218 = vcmp.eq.f32.partialorder %v8217, 8.507059e+37
        %v8219 = vand.u32 %v7346, 2147483648
        %v8220 = vor.u32 1.1754944e-38, %v8219
        %v8221 = vsel %vm8218, %v8220, %v8216
        %v8222 = vmul.f32 1.0, %v8221
        %v8223 = vrcp.pop %v7347
        %v8224 = vmul.f32 %v7347, %v8223
        %v8225 = vsub.f32 1.0, %v8224
        %v8226 = vmul.f32 %v8223, %v8225
        %v8227 = vadd.f32 %v8223, %v8226
        %vm8228 = vweird.f32 %v7347
        %vm8229 = vweird.f32 %v8223
        %vm8230 = vmor %vm8228, %vm8229
        %v8231 = vsel %vm8230, %v8223, %v8227
        %v8232 = vand.u32 2147483647, %v7347
        %vm8233 = vcmp.eq.f32.partialorder %v8232, 8.507059e+37
        %v8234 = vand.u32 %v7347, 2147483648
        %v8235 = vor.u32 1.1754944e-38, %v8234
        %v8236 = vsel %vm8233, %v8235, %v8231
        %v8237 = vmul.f32 1.0, %v8236
        %v8238 = vrcp.pop %v7348
        %v8239 = vmul.f32 %v7348, %v8238
        %v8240 = vsub.f32 1.0, %v8239
        %v8241 = vmul.f32 %v8238, %v8240
        %v8242 = vadd.f32 %v8238, %v8241
        %vm8243 = vweird.f32 %v7348
        %vm8244 = vweird.f32 %v8238
        %vm8245 = vmor %vm8243, %vm8244
        %v8246 = vsel %vm8245, %v8238, %v8242
        %v8247 = vand.u32 2147483647, %v7348
        %vm8248 = vcmp.eq.f32.partialorder %v8247, 8.507059e+37
        %v8249 = vand.u32 %v7348, 2147483648
        %v8250 = vor.u32 1.1754944e-38, %v8249
        %v8251 = vsel %vm8248, %v8250, %v8246
        %v8252 = vmul.f32 1.0, %v8251
        %v8253 = vrcp.pop %v7349
        %v8254 = vmul.f32 %v7349, %v8253
        %v8255 = vsub.f32 1.0, %v8254
        %v8256 = vmul.f32 %v8253, %v8255
        %v8257 = vadd.f32 %v8253, %v8256
        %vm8258 = vweird.f32 %v7349
        %vm8259 = vweird.f32 %v8253
        %vm8260 = vmor %vm8258, %vm8259
        %v8261 = vsel %vm8260, %v8253, %v8257
        %v8262 = vand.u32 2147483647, %v7349
        %vm8263 = vcmp.eq.f32.partialorder %v8262, 8.507059e+37
        %v8264 = vand.u32 %v7349, 2147483648
        %v8265 = vor.u32 1.1754944e-38, %v8264
        %v8266 = vsel %vm8263, %v8265, %v8261
        %v8267 = vmul.f32 1.0, %v8266
        %v8268 = vrcp.pop %v7350
        %v8269 = vmul.f32 %v7350, %v8268
        %v8270 = vsub.f32 1.0, %v8269
        %v8271 = vmul.f32 %v8268, %v8270
        %v8272 = vadd.f32 %v8268, %v8271
        %vm8273 = vweird.f32 %v7350
        %vm8274 = vweird.f32 %v8268
        %vm8275 = vmor %vm8273, %vm8274
        %v8276 = vsel %vm8275, %v8268, %v8272
        %v8277 = vand.u32 2147483647, %v7350
        %vm8278 = vcmp.eq.f32.partialorder %v8277, 8.507059e+37
        %v8279 = vand.u32 %v7350, 2147483648
        %v8280 = vor.u32 1.1754944e-38, %v8279
        %v8281 = vsel %vm8278, %v8280, %v8276
        %v8282 = vmul.f32 1.0, %v8281
        %v8283 = vrcp.pop %v7351
        %v8284 = vmul.f32 %v7351, %v8283
        %v8285 = vsub.f32 1.0, %v8284
        %v8286 = vmul.f32 %v8283, %v8285
        %v8287 = vadd.f32 %v8283, %v8286
        %vm8288 = vweird.f32 %v7351
        %vm8289 = vweird.f32 %v8283
        %vm8290 = vmor %vm8288, %vm8289
        %v8291 = vsel %vm8290, %v8283, %v8287
        %v8292 = vand.u32 2147483647, %v7351
        %vm8293 = vcmp.eq.f32.partialorder %v8292, 8.507059e+37
        %v8294 = vand.u32 %v7351, 2147483648
        %v8295 = vor.u32 1.1754944e-38, %v8294
        %v8296 = vsel %vm8293, %v8295, %v8291
        %v8297 = vmul.f32 1.0, %v8296
        %v8298 = vrcp.pop %v7352
        %v8299 = vmul.f32 %v7352, %v8298
        %v8300 = vsub.f32 1.0, %v8299
        %v8301 = vmul.f32 %v8298, %v8300
        %v8302 = vadd.f32 %v8298, %v8301
        %vm8303 = vweird.f32 %v7352
        %vm8304 = vweird.f32 %v8298
        %vm8305 = vmor %vm8303, %vm8304
        %v8306 = vsel %vm8305, %v8298, %v8302
        %v8307 = vand.u32 2147483647, %v7352
        %vm8308 = vcmp.eq.f32.partialorder %v8307, 8.507059e+37
        %v8309 = vand.u32 %v7352, 2147483648
        %v8310 = vor.u32 1.1754944e-38, %v8309
        %v8311 = vsel %vm8308, %v8310, %v8306
        %v8312 = vmul.f32 1.0, %v8311
        %8313 = vxpose.xlu0.b32.start [1/16] %v7367, 128
        %8314 = vxpose.xlu0.b32.cont [2/16] %v7382, 128
        %8315 = vxpose.xlu0.b32.cont [3/16] %v7397, 128
        %8316 = vxpose.xlu0.b32.cont [4/16] %v7412, 128
        %8317 = vxpose.xlu0.b32.cont [5/16] %v7427, 128
        %8318 = vxpose.xlu0.b32.cont [6/16] %v7442, 128
        %8319 = vxpose.xlu0.b32.cont [7/16] %v7457, 128
        %8320 = vxpose.xlu0.b32.cont [8/16] %v7472, 128
        %8321 = vxpose.xlu0.b32.cont [9/16] %v7487, 128
        %8322 = vxpose.xlu0.b32.cont [10/16] %v7502, 128
        %8323 = vxpose.xlu0.b32.cont [11/16] %v7517, 128
        %8324 = vxpose.xlu0.b32.cont [12/16] %v7532, 128
        %8325 = vxpose.xlu0.b32.cont [13/16] %v7547, 128
        %8326 = vxpose.xlu0.b32.cont [14/16] %v7562, 128
        %8327 = vxpose.xlu0.b32.cont [15/16] %v7577, 128
        %8328 = vxpose.xlu0.b32.end [16/16] %v7592, 128
        %v8329 = vpop.trf.xlu0
        %v8330 = vpop.trf.xlu0
        %v8331 = vpop.trf.xlu0
        %v8332 = vpop.trf.xlu0
        %v8333 = vpop.trf.xlu0
        %v8334 = vpop.trf.xlu0
        %v8335 = vpop.trf.xlu0
        %v8336 = vpop.trf.xlu0
        %v8337 = vpop.trf.xlu0
        %v8338 = vpop.trf.xlu0
        %v8339 = vpop.trf.xlu0
        %v8340 = vpop.trf.xlu0
        %v8341 = vpop.trf.xlu0
        %v8342 = vpop.trf.xlu0
        %v8343 = vpop.trf.xlu0
        %v8344 = vpop.trf.xlu0
        %8345 = vxpose.xlu0.b32.start [1/16] %v7607, 128
        %8346 = vxpose.xlu0.b32.cont [2/16] %v7622, 128
        %8347 = vxpose.xlu0.b32.cont [3/16] %v7637, 128
        %8348 = vxpose.xlu0.b32.cont [4/16] %v7652, 128
        %8349 = vxpose.xlu0.b32.cont [5/16] %v7667, 128
        %8350 = vxpose.xlu0.b32.cont [6/16] %v7682, 128
        %8351 = vxpose.xlu0.b32.cont [7/16] %v7697, 128
        %8352 = vxpose.xlu0.b32.cont [8/16] %v7712, 128
        %8353 = vxpose.xlu0.b32.cont [9/16] %v7727, 128
        %8354 = vxpose.xlu0.b32.cont [10/16] %v7742, 128
        %8355 = vxpose.xlu0.b32.cont [11/16] %v7757, 128
        %8356 = vxpose.xlu0.b32.cont [12/16] %v7772, 128
        %8357 = vxpose.xlu0.b32.cont [13/16] %v7787, 128
        %8358 = vxpose.xlu0.b32.cont [14/16] %v7802, 128
        %8359 = vxpose.xlu0.b32.cont [15/16] %v7817, 128
        %8360 = vxpose.xlu0.b32.end [16/16] %v7832, 128
        %v8361 = vpop.trf.xlu0
        %v8362 = vpop.trf.xlu0
        %v8363 = vpop.trf.xlu0
        %v8364 = vpop.trf.xlu0
        %v8365 = vpop.trf.xlu0
        %v8366 = vpop.trf.xlu0
        %v8367 = vpop.trf.xlu0
        %v8368 = vpop.trf.xlu0
        %v8369 = vpop.trf.xlu0
        %v8370 = vpop.trf.xlu0
        %v8371 = vpop.trf.xlu0
        %v8372 = vpop.trf.xlu0
        %v8373 = vpop.trf.xlu0
        %v8374 = vpop.trf.xlu0
        %v8375 = vpop.trf.xlu0
        %v8376 = vpop.trf.xlu0
        %8377 = vxpose.xlu0.b32.start [1/16] %v7847, 128
        %8378 = vxpose.xlu0.b32.cont [2/16] %v7862, 128
        %8379 = vxpose.xlu0.b32.cont [3/16] %v7877, 128
        %8380 = vxpose.xlu0.b32.cont [4/16] %v7892, 128
        %8381 = vxpose.xlu0.b32.cont [5/16] %v7907, 128
        %8382 = vxpose.xlu0.b32.cont [6/16] %v7922, 128
        %8383 = vxpose.xlu0.b32.cont [7/16] %v7937, 128
        %8384 = vxpose.xlu0.b32.cont [8/16] %v7952, 128
        %8385 = vxpose.xlu0.b32.cont [9/16] %v7967, 128
        %8386 = vxpose.xlu0.b32.cont [10/16] %v7982, 128
        %8387 = vxpose.xlu0.b32.cont [11/16] %v7997, 128
        %8388 = vxpose.xlu0.b32.cont [12/16] %v8012, 128
        %8389 = vxpose.xlu0.b32.cont [13/16] %v8027, 128
        %8390 = vxpose.xlu0.b32.cont [14/16] %v8042, 128
        %8391 = vxpose.xlu0.b32.cont [15/16] %v8057, 128
        %8392 = vxpose.xlu0.b32.end [16/16] %v8072, 128
        %v8393 = vpop.trf.xlu0
        %v8394 = vpop.trf.xlu0
        %v8395 = vpop.trf.xlu0
        %v8396 = vpop.trf.xlu0
        %v8397 = vpop.trf.xlu0
        %v8398 = vpop.trf.xlu0
        %v8399 = vpop.trf.xlu0
        %v8400 = vpop.trf.xlu0
        %v8401 = vpop.trf.xlu0
        %v8402 = vpop.trf.xlu0
        %v8403 = vpop.trf.xlu0
        %v8404 = vpop.trf.xlu0
        %v8405 = vpop.trf.xlu0
        %v8406 = vpop.trf.xlu0
        %v8407 = vpop.trf.xlu0
        %v8408 = vpop.trf.xlu0
        %8409 = vxpose.xlu0.b32.start [1/16] %v8087, 128
        %8410 = vxpose.xlu0.b32.cont [2/16] %v8102, 128
        %8411 = vxpose.xlu0.b32.cont [3/16] %v8117, 128
        %8412 = vxpose.xlu0.b32.cont [4/16] %v8132, 128
        %8413 = vxpose.xlu0.b32.cont [5/16] %v8147, 128
        %8414 = vxpose.xlu0.b32.cont [6/16] %v8162, 128
        %8415 = vxpose.xlu0.b32.cont [7/16] %v8177, 128
        %8416 = vxpose.xlu0.b32.cont [8/16] %v8192, 128
        %8417 = vxpose.xlu0.b32.cont [9/16] %v8207, 128
        %8418 = vxpose.xlu0.b32.cont [10/16] %v8222, 128
        %8419 = vxpose.xlu0.b32.cont [11/16] %v8237, 128
        %8420 = vxpose.xlu0.b32.cont [12/16] %v8252, 128
        %8421 = vxpose.xlu0.b32.cont [13/16] %v8267, 128
        %8422 = vxpose.xlu0.b32.cont [14/16] %v8282, 128
        %8423 = vxpose.xlu0.b32.cont [15/16] %v8297, 128
        %8424 = vxpose.xlu0.b32.end [16/16] %v8312, 128
        %v8425 = vpop.trf.xlu0
        %v8426 = vpop.trf.xlu0
        %v8427 = vpop.trf.xlu0
        %v8428 = vpop.trf.xlu0
        %v8429 = vpop.trf.xlu0
        %v8430 = vpop.trf.xlu0
        %v8431 = vpop.trf.xlu0
        %v8432 = vpop.trf.xlu0
        %v8433 = vpop.trf.xlu0
        %v8434 = vpop.trf.xlu0
        %v8435 = vpop.trf.xlu0
        %v8436 = vpop.trf.xlu0
        %v8437 = vpop.trf.xlu0
        %v8438 = vpop.trf.xlu0
        %v8439 = vpop.trf.xlu0
        %v8440 = vpop.trf.xlu0
        %v8445 = vrot.slane %v8361, 7
        %v8446 = vrot.slane %v8393, 6
        %v8447 = vrot.slane %v8425, 5
        %vm8448 = vcmask 1040384
        %v8449 = vsel %vm8448, %v8329, %v8445
        %vm8450 = vcmask 1042434
        %v8451 = vsel %vm8450, %v8446, %v8447
        %vm8452 = vcmask 1041408
        %v8453 = vsel %vm8452, %v8449, %v8451
        %v8455 = vlaneseq
        %vm8456 = vcmp.ge.s32.totalorder %v8455, 0
        %vm8457 = vcmp.lt.s32.totalorder %v8455, 512
        %vm8458 = vmand %vm8456, %vm8457
        %8459 = vst.msk [vmem:[%s349] sm:$0xf] %vm8458, %v8453
        %s8460 = sand.u32 %s187, 1
        %s8461 = scalar_lea.sflag [#allocation5], %s8460
        %s8462 = sand.u32 %s187, 1
        %s8463 = smul.addr %s8462, 4
        %s8464 = scalar_lea.vmem [#allocation11], %s8463
        // Predicated region
        $region65: #{tpu_custom_call.1} parent=47 // pred_check
          %p8465 = pneg %p197
        $region66: #{tpu_custom_call.1} parent=47 // pred_check_branch
          %8467 = sbr.rel (%p8465) target = $region68
        $region67: #{tpu_custom_call.1} parent=47 // pred_region
          %8469 = vsyncadd %s8461, 0
          %s8470 = smul.addr %s27, 4
          %s8471 = scalar_lea.hbm %s7, %s8470
          %s8473 = sshll.u32 %s8464, 4
          %s8474 = int_to_ptr.vmem [resolvable:$true] %s8473
          %s8475 = sshll.u32 %s8471, 4
          %s8476 = int_to_ptr.hbm [resolvable:$true] %s8475
          %8478 = dma.vmem_to_hbm [thread:$0]  %s8474, 64, %s8476, %s8461
        $region68: #{tpu_custom_call.1} parent=47 // pred_fallthru
          _
      $region48: #{tpu_custom_call.1} parent=5 // pred_fallthru
        _
      %p8479 = scmp.le.s32.totalorder 2, %s22
      // Predicated region
      $region69: #{tpu_custom_call.1} parent=5 // pred_check
        %p8480 = pneg %p8479
      $region70: #{tpu_custom_call.1} parent=5 // pred_check_branch
        %8482 = sbr.rel (%p8480) target = $region72
      $region71: #{tpu_custom_call.1} parent=5 // pred_region
        %s8483 = ssub.s32 %s22, 2
        // Predicated region
        $region73: #{tpu_custom_call.1} parent=71 // pred_check
          %p8484 = pneg %p203
        $region74: #{tpu_custom_call.1} parent=71 // pred_check_branch
          %8486 = sbr.rel (%p8484) target = $region76
        $region75: #{tpu_custom_call.1} parent=71 // pred_region
          %s8487 = sand.u32 %s188, 1
          %s8488 = scalar_lea.sflag [#allocation5], %s8487
          %s8489 = sand.u32 %s188, 1
          %s8490 = smul.addr %s8489, 4
          %s8491 = scalar_lea.vmem [#allocation11], %s8490
          %8493 = dma.done %s8488, 64
        $region76: #{tpu_custom_call.1} parent=71 // pred_fallthru
          _
      $region72: #{tpu_custom_call.1} parent=5 // pred_fallthru
        _
    $region6: #{tpu_custom_call.1} parent=1 // loop_footer
      %s26 = sadd.s32 1, %s22
    $region7: #{tpu_custom_call.1} parent=1 // loop_footer_branch
      %21 = sbr.rel target = $region3
    $region8: #{tpu_custom_call.1} parent=1 // loop_exit
      _
    %8494 = vsyncpa [#allocation4], 1
    %s8495 = scalar_lea.sflag [#allocation4], 1
    %8496 = vsyncpa %s8495, 1
    %8497 = vsyncpa [#allocation7], 1
    %8498 = vsyncpa [#allocation10], 1
    %8499 = vsyncpa [#allocation5], 1
    %s8500 = scalar_lea.sflag [#allocation5], 1
    %8501 = vsyncpa %s8500, 1

</llo_original>
